<compile_context>
chip_gen: v7x
topology: tpu7x:2x2x1
jax: 0.10.0
libtpu: 0.0.40
codegen_flags: <defaults>
</compile_context>

<pallas_src>
import numpy as np
import jax
import jax.numpy as jnp
from jax import lax
from jax.experimental import pallas as pl
from jax.experimental.pallas import tpu as pltpu

# ----------------------------- configuration ------------------------------
N, CIN = 2, 64
D = H = W = 8
PLANES = 32
CARDINALITY = 4
CMID = CARDINALITY * (PLANES // 32)      # 4   (mid_planes)
COUT = PLANES * 2                        # 64 == CIN -> identity residual
CPG = CMID // CARDINALITY                # 1   (channels per group -> depthwise)
STRIDE = 1
PREC = lax.Precision.HIGHEST             # matmuls off critical path; keeps 1e-3 tight

DH = D * H                               # 64  (rows per batch element)
WCIN = W * CIN                           # 512 (lane-dense input width)
WCMID = W * CMID                         # 32  (mid width, lane = w*CMID + c)
WCOUT = W * COUT                         # 512 (lane-dense output width)


# ----------------------------- Pallas kernel -------------------------------
def resnext_block_kernel(x_ref, w1_ref, b1_ref, w2_ref, b2_ref, w3_ref, b3_ref,
                         out_ref):
    """Fused ResNeXt bottleneck, one grid step = `bps` batch elements.

    x_ref, out_ref : (bps, D*H, W*64)       lane-dense, same bytes as NDHWC
    w1_ref         : (W*CIN, W*CMID)        kron(I_W, w1*s1)   (block-diagonal)
    w2_ref         : (27, bps*D*H, W*CMID)  depthwise taps * s2, zero-padding /
                                            wrap-around masks folded in host-side
    w3_ref         : (W*CMID, W*COUT)       kron(I_W, w3*s3)
    b*_ref         : (1, ...)               folded BN shifts (per-lane rows)
    """
    bps = x_ref.shape[0]
    rows = bps * DH

    # conv1 (1x1x1) + BN1 + ReLU : one stacked block-diagonal MXU matmul.
    x = x_ref[...].reshape(rows, WCIN)                 # leading-dim merge (free)
    h1 = jnp.dot(x, w1_ref[...], preferred_element_type=jnp.float32,
                 precision=PREC)                       # (rows, 32)
    h1 = jnp.maximum(h1 + b1_ref[...], 0.0)

    # conv2: grouped 3x3x3, padding=1 (cpg == 1 -> depthwise).  Register-resident:
    # 27 taps built with pltpu.roll (sublane rolls for d/h, lane rolls for w);
    # boundary validity is baked into w2_ref, so rolled-in garbage contributes 0.
    acc = None
    t = 0
    for kd in range(3):
        sd = (-(kd - 1) * H) % rows                    # d offset -> sublane roll by H
        base_d = h1 if sd == 0 else pltpu.roll(h1, shift=sd, axis=0)
        for kh in range(3):
            sh = (-(kh - 1)) % rows                    # h offset -> sublane roll by 1
            base = base_d if sh == 0 else pltpu.roll(base_d, shift=sh, axis=0)
            for kw in range(3):
                sw = (-(kw - 1) * CMID) % WCMID        # w offset -> lane roll by CMID
                tap = base if sw == 0 else pltpu.roll(base, shift=sw, axis=1)
                term = tap * w2_ref[t]                 # pre-expanded masked weights
                acc = term if acc is None else acc + term
                t += 1
    h2 = jnp.maximum(acc + b2_ref[...], 0.0)           # BN2 + ReLU, (rows, 32)

    # conv3 (1x1x1) + BN3 -- stacked block-diagonal matmul back to 512 lanes.
    h3 = jnp.dot(h2, w3_ref[...], preferred_element_type=jnp.float32,
                 precision=PREC)                       # (rows, 512)
    h3 = h3 + b3_ref[...]

    # residual (identity: COUT == CIN, stride == 1) + ReLU.  Re-read x from VMEM
    # (instead of pinning 32 vregs across conv2); dense 512-lane store.
    res = x_ref[...].reshape(rows, WCOUT)
    out_ref[...] = jnp.maximum(h3 + res, 0.0).reshape(bps, DH, WCOUT)


# ------------------------------- wrapper -----------------------------------
def _pick_batch_per_step(n):
    """bps=1 on every generation:
      * v7x: one element per "parallel" grid step feeds both TensorCores.
      * v5e/v6e: the kernel is HBM-bound, so >1 grid step keeps the BlockSpec
        double-buffer pipeline active (DMA of step i+1 hidden under compute of i),
        which beats a wider (128-row) MXU LHS that the MXU does not need.
      * conv2 keeps ~48 vregs live per element; bps>=2 would spill the 64-vreg file.
    The kernel body is bps-generic (single stacked matmuls, no per-b loop)."""
    del n
    return 1


def resnext_bottleneck(x_flat, w1_wide, b1_t, w2_full, b2_t, w3_wide, b3_t,
                       *, batch_per_step):
    n = x_flat.shape[0]
    bps = batch_per_step
    assert n % bps == 0
    rows = bps * DH

    def _const_spec(shape):
        zeros = (0,) * len(shape)
        return pl.BlockSpec(shape, lambda i, _z=zeros: _z)

    return pl.pallas_call(
        resnext_block_kernel,
        out_shape=jax.ShapeDtypeStruct((n, DH, WCOUT), jnp.float32),
        grid=(n // bps,),
        in_specs=[
            pl.BlockSpec((bps, DH, WCIN), lambda i: (i, 0, 0)),
            _const_spec((WCIN, WCMID)),
            _const_spec((1, WCMID)),
            _const_spec((27, rows, WCMID)),
            _const_spec((1, WCMID)),
            _const_spec((WCMID, WCOUT)),
            _const_spec((1, WCOUT)),
        ],
        out_specs=pl.BlockSpec((bps, DH, WCOUT), lambda i: (i, 0, 0)),
        compiler_params=pltpu.CompilerParams(dimension_semantics=("parallel",)),
    )(x_flat, w1_wide, b1_t, w2_full, b2_t, w3_wide, b3_t)


# ----------------------- pure-JAX (XLA) reference ---------------------------
def ref_forward(x_ncdhw, w1_pt, w2_pt, w3_pt, s1, b1, s2, b2, s3, b3):
    def bn(h, s, b):
        return h * s[None, :, None, None, None] + b[None, :, None, None, None]

    dn1 = lax.conv_dimension_numbers(x_ncdhw.shape, w1_pt.shape,
                                     ('NCDHW', 'OIDHW', 'NCDHW'))
    h = lax.conv_general_dilated(x_ncdhw, w1_pt, (1, 1, 1), 'VALID',
                                 dimension_numbers=dn1, precision=PREC)
    h = jax.nn.relu(bn(h, s1, b1))
    dn2 = lax.conv_dimension_numbers(h.shape, w2_pt.shape,
                                     ('NCDHW', 'OIDHW', 'NCDHW'))
    h = lax.conv_general_dilated(h, w2_pt, (STRIDE,) * 3, [(1, 1)] * 3,
                                 dimension_numbers=dn2,
                                 feature_group_count=CARDINALITY, precision=PREC)
    h = jax.nn.relu(bn(h, s2, b2))
    dn3 = lax.conv_dimension_numbers(h.shape, w3_pt.shape,
                                     ('NCDHW', 'OIDHW', 'NCDHW'))
    h = lax.conv_general_dilated(h, w3_pt, (1, 1, 1), 'VALID',
                                 dimension_numbers=dn3, precision=PREC)
    h = bn(h, s3, b3)
    return jax.nn.relu(h + x_ncdhw)


# ------------------------------- main ---------------------------------------
if __name__ == "__main__":
    key = jax.random.PRNGKey(0)
    kx, k1, k2, k3, kbn = jax.random.split(key, 5)

    assert CPG == 1, "depthwise specialization requires cardinality == mid_planes"

    # Conv weights (PyTorch OIDHW layouts), deterministic init
    w1_pt = jax.random.normal(k1, (CMID, CIN, 1, 1, 1), jnp.float32) / np.sqrt(CIN)
    w2_pt = jax.random.normal(k2, (CMID, CPG, 3, 3, 3), jnp.float32) / np.sqrt(CPG * 27)
    w3_pt = jax.random.normal(k3, (COUT, CMID, 1, 1, 1), jnp.float32) / np.sqrt(CMID)

    # Folded BN parameters (eval mode): scale = g/sqrt(v+eps), shift = b - m*scale
    kk = jax.random.split(kbn, 12)

    def bn_fold(kg, kb, km, kv, c):
        gamma = 1.0 + 0.1 * jax.random.normal(kg, (c,), jnp.float32)
        beta = 0.1 * jax.random.normal(kb, (c,), jnp.float32)
        mean = 0.1 * jax.random.normal(km, (c,), jnp.float32)
        var = 1.0 + 0.1 * jax.random.uniform(kv, (c,), jnp.float32)
        scale = gamma / jnp.sqrt(var + 1e-5)
        shift = beta - mean * scale
        return scale, shift

    s1, b1 = bn_fold(kk[0], kk[1], kk[2], kk[3], CMID)
    s2, b2 = bn_fold(kk[4], kk[5], kk[6], kk[7], CMID)
    s3, b3 = bn_fold(kk[8], kk[9], kk[10], kk[11], COUT)

    bps = _pick_batch_per_step(N)

    # ---- kernel-layout parameters (host-side prep; BN scales folded into weights) ----
    eye_w = np.eye(W, dtype=np.float32)
    w1_s = np.asarray(w1_pt)[:, :, 0, 0, 0].T * np.asarray(s1)[None, :]   # (CIN, CMID)
    w3_s = np.asarray(w3_pt)[:, :, 0, 0, 0].T * np.asarray(s3)[None, :]   # (CMID, COUT)
    w1_wide = jnp.asarray(np.kron(eye_w, w1_s))                           # (512, 32)
    w3_wide = jnp.asarray(np.kron(eye_w, w3_s))                           # (32, 512)

    # Depthwise conv2 taps, pre-expanded to (27, DH, WCMID) with the zero-padding
    # boundary masks folded in (tap t = kd*9 + kh*3 + kw reads position +(k?-1)).
    w2_np = np.asarray(w2_pt)[:, 0]                                       # (CMID,3,3,3)
    s2_np = np.asarray(s2)
    d_idx = np.arange(DH) // H
    h_idx = np.arange(DH) % H
    w_idx = np.arange(WCMID) // CMID
    c_idx = np.arange(WCMID) % CMID
    w2_full_np = np.zeros((27, DH, WCMID), np.float32)
    for kd in range(3):
        for kh in range(3):
            for kw in range(3):
                t = kd * 9 + kh * 3 + kw
                vd = (d_idx + kd - 1 >= 0) & (d_idx + kd - 1 < D)
                vh = (h_idx + kh - 1 >= 0) & (h_idx + kh - 1 < H)
                vrow = (vd & vh).astype(np.float32)                        # (DH,)
                vw = ((w_idx + kw - 1 >= 0) & (w_idx + kw - 1 < W)).astype(np.float32)
                wlane = (w2_np[c_idx, kd, kh, kw] * s2_np[c_idx]) * vw     # (WCMID,)
                w2_full_np[t] = vrow[:, None] * wlane[None, :]
    w2_full = jnp.asarray(np.tile(w2_full_np, (1, bps, 1)))                # (27,bps*DH,32)

    b1_t = jnp.asarray(np.tile(np.asarray(b1), W)).reshape(1, WCMID)
    b2_t = jnp.asarray(np.tile(np.asarray(b2), W)).reshape(1, WCMID)
    b3_t = jnp.asarray(np.tile(np.asarray(b3), W)).reshape(1, WCOUT)

    # Example input (PyTorch NCDHW) -> lane-dense (N, D*H, W*CIN) for the kernel
    x_ncdhw = jax.random.normal(kx, (N, CIN, D, H, W), jnp.float32)
    x_ndhwc = jnp.transpose(x_ncdhw, (0, 2, 3, 4, 1))
    x_flat = x_ndhwc.reshape(N, DH, WCIN)

    out_flat = resnext_bottleneck(x_flat, w1_wide, b1_t, w2_full, b2_t,
                                  w3_wide, b3_t, batch_per_step=bps)
    out_flat = jax.block_until_ready(out_flat)
    out_ndhwc = out_flat.reshape(N, D, H, W, COUT)

    # Verify against the XLA reference
    ref_ncdhw = ref_forward(x_ncdhw, w1_pt, w2_pt, w3_pt, s1, b1, s2, b2, s3, b3)
    ref_ndhwc = jnp.transpose(ref_ncdhw, (0, 2, 3, 4, 1))
    np.testing.assert_allclose(np.asarray(out_ndhwc), np.asarray(ref_ndhwc),
                               rtol=1e-3, atol=1e-3)

    print("KERNEL_OK")
</pallas_src>

<mosaic_0001>
module attributes {stable_mosaic.version = 11 : i64} {
  func.func @resnext_block_kernel(%arg0: i32, %arg1: memref<1x64x512xf32, #tpu.memory_space<vmem>>, %arg2: memref<512x32xf32, #tpu.memory_space<vmem>>, %arg3: memref<1x32xf32, #tpu.memory_space<vmem>>, %arg4: memref<27x64x32xf32, #tpu.memory_space<vmem>>, %arg5: memref<1x32xf32, #tpu.memory_space<vmem>>, %arg6: memref<32x512xf32, #tpu.memory_space<vmem>>, %arg7: memref<1x512xf32, #tpu.memory_space<vmem>>, %arg8: memref<1x64x512xf32, #tpu.memory_space<vmem>>) attributes {dimension_semantics = [#tpu.dimension_semantics<parallel>], iteration_bounds = array<i64: 2>, scalar_prefetch = 0 : i64, scratch_operands = 0 : i64, tpu.core_type = #tpu.core_type<tc>, window_params = [{transform_indices = @transform_0, window_bounds = array<i64: 1, 64, 512>}, {pipeline_mode = #tpu.pipeline_mode<synchronous>, transform_indices = @transform_1, window_bounds = array<i64: 512, 32>}, {pipeline_mode = #tpu.pipeline_mode<synchronous>, transform_indices = @transform_2, window_bounds = array<i64: 1, 32>}, {pipeline_mode = #tpu.pipeline_mode<synchronous>, transform_indices = @transform_3, window_bounds = array<i64: 27, 64, 32>}, {pipeline_mode = #tpu.pipeline_mode<synchronous>, transform_indices = @transform_4, window_bounds = array<i64: 1, 32>}, {pipeline_mode = #tpu.pipeline_mode<synchronous>, transform_indices = @transform_5, window_bounds = array<i64: 32, 512>}, {pipeline_mode = #tpu.pipeline_mode<synchronous>, transform_indices = @transform_6, window_bounds = array<i64: 1, 512>}, {transform_indices = @transform_7, window_bounds = array<i64: 1, 64, 512>}]} {
    %c0 = arith.constant 0 : index
    %c0_0 = arith.constant 0 : index
    %c0_1 = arith.constant 0 : index
    %0 = vector.load %arg1[%c0, %c0_0, %c0_1] : memref<1x64x512xf32, #tpu.memory_space<vmem>>, vector<1x64x512xf32>
    %1 = vector.shape_cast %0 : vector<1x64x512xf32> to vector<64x512xf32>
    %c0_2 = arith.constant 0 : index
    %c0_3 = arith.constant 0 : index
    %2 = vector.load %arg2[%c0_2, %c0_3] : memref<512x32xf32, #tpu.memory_space<vmem>>, vector<512x32xf32>
    %cst = arith.constant dense<0.000000e+00> : vector<64x32xf32>
    %3 = tpu.matmul %1, %2, %cst {dimension_numbers = #tpu.dot_dimension_numbers<[1], [0], [0], [1], [0, 0, 1, 1], [], []>, precision = #tpu.contract_precision<fp32>} : vector<64x512xf32>, vector<512x32xf32>, vector<64x32xf32> -> vector<64x32xf32>
    %c0_4 = arith.constant 0 : index
    %c0_5 = arith.constant 0 : index
    %4 = vector.load %arg3[%c0_4, %c0_5] : memref<1x32xf32, #tpu.memory_space<vmem>>, vector<1x32xf32>
    %5 = vector.broadcast %4 : vector<1x32xf32> to vector<64x32xf32>
    %6 = arith.addf %3, %5 : vector<64x32xf32>
    %cst_6 = arith.constant 0.000000e+00 : f32
    %7 = vector.broadcast %cst_6 : f32 to vector<64x32xf32>
    %8 = arith.maximumf %6, %7 : vector<64x32xf32>
    %c8_i32 = arith.constant 8 : i32
    %9 = tpu.dynamic_rotate %8 by %c8_i32 dim 0 : vector<64x32xf32>, i32 -> vector<64x32xf32>
    %c1_i32 = arith.constant 1 : i32
    %10 = tpu.dynamic_rotate %9 by %c1_i32 dim 0 : vector<64x32xf32>, i32 -> vector<64x32xf32>
    %c4_i32 = arith.constant 4 : i32
    %11 = tpu.dynamic_rotate %10 by %c4_i32 dim 1 : vector<64x32xf32>, i32 -> vector<64x32xf32>
    %c0_7 = arith.constant 0 : index
    %c0_8 = arith.constant 0 : index
    %c0_9 = arith.constant 0 : index
    %12 = vector.load %arg4[%c0_7, %c0_8, %c0_9] : memref<27x64x32xf32, #tpu.memory_space<vmem>>, vector<1x64x32xf32>
    %13 = vector.shape_cast %12 : vector<1x64x32xf32> to vector<64x32xf32>
    %14 = arith.mulf %11, %13 : vector<64x32xf32>
    %c1 = arith.constant 1 : index
    %c0_10 = arith.constant 0 : index
    %c0_11 = arith.constant 0 : index
    %15 = vector.load %arg4[%c1, %c0_10, %c0_11] : memref<27x64x32xf32, #tpu.memory_space<vmem>>, vector<1x64x32xf32>
    %16 = vector.shape_cast %15 : vector<1x64x32xf32> to vector<64x32xf32>
    %17 = arith.mulf %10, %16 : vector<64x32xf32>
    %18 = arith.addf %14, %17 : vector<64x32xf32>
    %c28_i32 = arith.constant 28 : i32
    %19 = tpu.dynamic_rotate %10 by %c28_i32 dim 1 : vector<64x32xf32>, i32 -> vector<64x32xf32>
    %c2 = arith.constant 2 : index
    %c0_12 = arith.constant 0 : index
    %c0_13 = arith.constant 0 : index
    %20 = vector.load %arg4[%c2, %c0_12, %c0_13] : memref<27x64x32xf32, #tpu.memory_space<vmem>>, vector<1x64x32xf32>
    %21 = vector.shape_cast %20 : vector<1x64x32xf32> to vector<64x32xf32>
    %22 = arith.mulf %19, %21 : vector<64x32xf32>
    %23 = arith.addf %18, %22 : vector<64x32xf32>
    %c4_i32_14 = arith.constant 4 : i32
    %24 = tpu.dynamic_rotate %9 by %c4_i32_14 dim 1 : vector<64x32xf32>, i32 -> vector<64x32xf32>
    %c3 = arith.constant 3 : index
    %c0_15 = arith.constant 0 : index
    %c0_16 = arith.constant 0 : index
    %25 = vector.load %arg4[%c3, %c0_15, %c0_16] : memref<27x64x32xf32, #tpu.memory_space<vmem>>, vector<1x64x32xf32>
    %26 = vector.shape_cast %25 : vector<1x64x32xf32> to vector<64x32xf32>
    %27 = arith.mulf %24, %26 : vector<64x32xf32>
    %28 = arith.addf %23, %27 : vector<64x32xf32>
    %c4 = arith.constant 4 : index
    %c0_17 = arith.constant 0 : index
    %c0_18 = arith.constant 0 : index
    %29 = vector.load %arg4[%c4, %c0_17, %c0_18] : memref<27x64x32xf32, #tpu.memory_space<vmem>>, vector<1x64x32xf32>
    %30 = vector.shape_cast %29 : vector<1x64x32xf32> to vector<64x32xf32>
    %31 = arith.mulf %9, %30 : vector<64x32xf32>
    %32 = arith.addf %28, %31 : vector<64x32xf32>
    %c28_i32_19 = arith.constant 28 : i32
    %33 = tpu.dynamic_rotate %9 by %c28_i32_19 dim 1 : vector<64x32xf32>, i32 -> vector<64x32xf32>
    %c5 = arith.constant 5 : index
    %c0_20 = arith.constant 0 : index
    %c0_21 = arith.constant 0 : index
    %34 = vector.load %arg4[%c5, %c0_20, %c0_21] : memref<27x64x32xf32, #tpu.memory_space<vmem>>, vector<1x64x32xf32>
    %35 = vector.shape_cast %34 : vector<1x64x32xf32> to vector<64x32xf32>
    %36 = arith.mulf %33, %35 : vector<64x32xf32>
    %37 = arith.addf %32, %36 : vector<64x32xf32>
    %c63_i32 = arith.constant 63 : i32
    %38 = tpu.dynamic_rotate %9 by %c63_i32 dim 0 : vector<64x32xf32>, i32 -> vector<64x32xf32>
    %c4_i32_22 = arith.constant 4 : i32
    %39 = tpu.dynamic_rotate %38 by %c4_i32_22 dim 1 : vector<64x32xf32>, i32 -> vector<64x32xf32>
    %c6 = arith.constant 6 : index
    %c0_23 = arith.constant 0 : index
    %c0_24 = arith.constant 0 : index
    %40 = vector.load %arg4[%c6, %c0_23, %c0_24] : memref<27x64x32xf32, #tpu.memory_space<vmem>>, vector<1x64x32xf32>
    %41 = vector.shape_cast %40 : vector<1x64x32xf32> to vector<64x32xf32>
    %42 = arith.mulf %39, %41 : vector<64x32xf32>
    %43 = arith.addf %37, %42 : vector<64x32xf32>
    %c7 = arith.constant 7 : index
    %c0_25 = arith.constant 0 : index
    %c0_26 = arith.constant 0 : index
    %44 = vector.load %arg4[%c7, %c0_25, %c0_26] : memref<27x64x32xf32, #tpu.memory_space<vmem>>, vector<1x64x32xf32>
    %45 = vector.shape_cast %44 : vector<1x64x32xf32> to vector<64x32xf32>
    %46 = arith.mulf %38, %45 : vector<64x32xf32>
    %47 = arith.addf %43, %46 : vector<64x32xf32>
    %c28_i32_27 = arith.constant 28 : i32
    %48 = tpu.dynamic_rotate %38 by %c28_i32_27 dim 1 : vector<64x32xf32>, i32 -> vector<64x32xf32>
    %c8 = arith.constant 8 : index
    %c0_28 = arith.constant 0 : index
    %c0_29 = arith.constant 0 : index
    %49 = vector.load %arg4[%c8, %c0_28, %c0_29] : memref<27x64x32xf32, #tpu.memory_space<vmem>>, vector<1x64x32xf32>
    %50 = vector.shape_cast %49 : vector<1x64x32xf32> to vector<64x32xf32>
    %51 = arith.mulf %48, %50 : vector<64x32xf32>
    %52 = arith.addf %47, %51 : vector<64x32xf32>
    %c1_i32_30 = arith.constant 1 : i32
    %53 = tpu.dynamic_rotate %8 by %c1_i32_30 dim 0 : vector<64x32xf32>, i32 -> vector<64x32xf32>
    %c4_i32_31 = arith.constant 4 : i32
    %54 = tpu.dynamic_rotate %53 by %c4_i32_31 dim 1 : vector<64x32xf32>, i32 -> vector<64x32xf32>
    %c9 = arith.constant 9 : index
    %c0_32 = arith.constant 0 : index
    %c0_33 = arith.constant 0 : index
    %55 = vector.load %arg4[%c9, %c0_32, %c0_33] : memref<27x64x32xf32, #tpu.memory_space<vmem>>, vector<1x64x32xf32>
    %56 = vector.shape_cast %55 : vector<1x64x32xf32> to vector<64x32xf32>
    %57 = arith.mulf %54, %56 : vector<64x32xf32>
    %58 = arith.addf %52, %57 : vector<64x32xf32>
    %c10 = arith.constant 10 : index
    %c0_34 = arith.constant 0 : index
    %c0_35 = arith.constant 0 : index
    %59 = vector.load %arg4[%c10, %c0_34, %c0_35] : memref<27x64x32xf32, #tpu.memory_space<vmem>>, vector<1x64x32xf32>
    %60 = vector.shape_cast %59 : vector<1x64x32xf32> to vector<64x32xf32>
    %61 = arith.mulf %53, %60 : vector<64x32xf32>
    %62 = arith.addf %58, %61 : vector<64x32xf32>
    %c28_i32_36 = arith.constant 28 : i32
    %63 = tpu.dynamic_rotate %53 by %c28_i32_36 dim 1 : vector<64x32xf32>, i32 -> vector<64x32xf32>
    %c11 = arith.constant 11 : index
    %c0_37 = arith.constant 0 : index
    %c0_38 = arith.constant 0 : index
    %64 = vector.load %arg4[%c11, %c0_37, %c0_38] : memref<27x64x32xf32, #tpu.memory_space<vmem>>, vector<1x64x32xf32>
    %65 = vector.shape_cast %64 : vector<1x64x32xf32> to vector<64x32xf32>
    %66 = arith.mulf %63, %65 : vector<64x32xf32>
    %67 = arith.addf %62, %66 : vector<64x32xf32>
    %c4_i32_39 = arith.constant 4 : i32
    %68 = tpu.dynamic_rotate %8 by %c4_i32_39 dim 1 : vector<64x32xf32>, i32 -> vector<64x32xf32>
    %c12 = arith.constant 12 : index
    %c0_40 = arith.constant 0 : index
    %c0_41 = arith.constant 0 : index
    %69 = vector.load %arg4[%c12, %c0_40, %c0_41] : memref<27x64x32xf32, #tpu.memory_space<vmem>>, vector<1x64x32xf32>
    %70 = vector.shape_cast %69 : vector<1x64x32xf32> to vector<64x32xf32>
    %71 = arith.mulf %68, %70 : vector<64x32xf32>
    %72 = arith.addf %67, %71 : vector<64x32xf32>
    %c13 = arith.constant 13 : index
    %c0_42 = arith.constant 0 : index
    %c0_43 = arith.constant 0 : index
    %73 = vector.load %arg4[%c13, %c0_42, %c0_43] : memref<27x64x32xf32, #tpu.memory_space<vmem>>, vector<1x64x32xf32>
    %74 = vector.shape_cast %73 : vector<1x64x32xf32> to vector<64x32xf32>
    %75 = arith.mulf %8, %74 : vector<64x32xf32>
    %76 = arith.addf %72, %75 : vector<64x32xf32>
    %c28_i32_44 = arith.constant 28 : i32
    %77 = tpu.dynamic_rotate %8 by %c28_i32_44 dim 1 : vector<64x32xf32>, i32 -> vector<64x32xf32>
    %c14 = arith.constant 14 : index
    %c0_45 = arith.constant 0 : index
    %c0_46 = arith.constant 0 : index
    %78 = vector.load %arg4[%c14, %c0_45, %c0_46] : memref<27x64x32xf32, #tpu.memory_space<vmem>>, vector<1x64x32xf32>
    %79 = vector.shape_cast %78 : vector<1x64x32xf32> to vector<64x32xf32>
    %80 = arith.mulf %77, %79 : vector<64x32xf32>
    %81 = arith.addf %76, %80 : vector<64x32xf32>
    %c63_i32_47 = arith.constant 63 : i32
    %82 = tpu.dynamic_rotate %8 by %c63_i32_47 dim 0 : vector<64x32xf32>, i32 -> vector<64x32xf32>
    %c4_i32_48 = arith.constant 4 : i32
    %83 = tpu.dynamic_rotate %82 by %c4_i32_48 dim 1 : vector<64x32xf32>, i32 -> vector<64x32xf32>
    %c15 = arith.constant 15 : index
    %c0_49 = arith.constant 0 : index
    %c0_50 = arith.constant 0 : index
    %84 = vector.load %arg4[%c15, %c0_49, %c0_50] : memref<27x64x32xf32, #tpu.memory_space<vmem>>, vector<1x64x32xf32>
    %85 = vector.shape_cast %84 : vector<1x64x32xf32> to vector<64x32xf32>
    %86 = arith.mulf %83, %85 : vector<64x32xf32>
    %87 = arith.addf %81, %86 : vector<64x32xf32>
    %c16 = arith.constant 16 : index
    %c0_51 = arith.constant 0 : index
    %c0_52 = arith.constant 0 : index
    %88 = vector.load %arg4[%c16, %c0_51, %c0_52] : memref<27x64x32xf32, #tpu.memory_space<vmem>>, vector<1x64x32xf32>
    %89 = vector.shape_cast %88 : vector<1x64x32xf32> to vector<64x32xf32>
    %90 = arith.mulf %82, %89 : vector<64x32xf32>
    %91 = arith.addf %87, %90 : vector<64x32xf32>
    %c28_i32_53 = arith.constant 28 : i32
    %92 = tpu.dynamic_rotate %82 by %c28_i32_53 dim 1 : vector<64x32xf32>, i32 -> vector<64x32xf32>
    %c17 = arith.constant 17 : index
    %c0_54 = arith.constant 0 : index
    %c0_55 = arith.constant 0 : index
    %93 = vector.load %arg4[%c17, %c0_54, %c0_55] : memref<27x64x32xf32, #tpu.memory_space<vmem>>, vector<1x64x32xf32>
    %94 = vector.shape_cast %93 : vector<1x64x32xf32> to vector<64x32xf32>
    %95 = arith.mulf %92, %94 : vector<64x32xf32>
    %96 = arith.addf %91, %95 : vector<64x32xf32>
    %c56_i32 = arith.constant 56 : i32
    %97 = tpu.dynamic_rotate %8 by %c56_i32 dim 0 : vector<64x32xf32>, i32 -> vector<64x32xf32>
    %c1_i32_56 = arith.constant 1 : i32
    %98 = tpu.dynamic_rotate %97 by %c1_i32_56 dim 0 : vector<64x32xf32>, i32 -> vector<64x32xf32>
    %c4_i32_57 = arith.constant 4 : i32
    %99 = tpu.dynamic_rotate %98 by %c4_i32_57 dim 1 : vector<64x32xf32>, i32 -> vector<64x32xf32>
    %c18 = arith.constant 18 : index
    %c0_58 = arith.constant 0 : index
    %c0_59 = arith.constant 0 : index
    %100 = vector.load %arg4[%c18, %c0_58, %c0_59] : memref<27x64x32xf32, #tpu.memory_space<vmem>>, vector<1x64x32xf32>
    %101 = vector.shape_cast %100 : vector<1x64x32xf32> to vector<64x32xf32>
    %102 = arith.mulf %99, %101 : vector<64x32xf32>
    %103 = arith.addf %96, %102 : vector<64x32xf32>
    %c19 = arith.constant 19 : index
    %c0_60 = arith.constant 0 : index
    %c0_61 = arith.constant 0 : index
    %104 = vector.load %arg4[%c19, %c0_60, %c0_61] : memref<27x64x32xf32, #tpu.memory_space<vmem>>, vector<1x64x32xf32>
    %105 = vector.shape_cast %104 : vector<1x64x32xf32> to vector<64x32xf32>
    %106 = arith.mulf %98, %105 : vector<64x32xf32>
    %107 = arith.addf %103, %106 : vector<64x32xf32>
    %c28_i32_62 = arith.constant 28 : i32
    %108 = tpu.dynamic_rotate %98 by %c28_i32_62 dim 1 : vector<64x32xf32>, i32 -> vector<64x32xf32>
    %c20 = arith.constant 20 : index
    %c0_63 = arith.constant 0 : index
    %c0_64 = arith.constant 0 : index
    %109 = vector.load %arg4[%c20, %c0_63, %c0_64] : memref<27x64x32xf32, #tpu.memory_space<vmem>>, vector<1x64x32xf32>
    %110 = vector.shape_cast %109 : vector<1x64x32xf32> to vector<64x32xf32>
    %111 = arith.mulf %108, %110 : vector<64x32xf32>
    %112 = arith.addf %107, %111 : vector<64x32xf32>
    %c4_i32_65 = arith.constant 4 : i32
    %113 = tpu.dynamic_rotate %97 by %c4_i32_65 dim 1 : vector<64x32xf32>, i32 -> vector<64x32xf32>
    %c21 = arith.constant 21 : index
    %c0_66 = arith.constant 0 : index
    %c0_67 = arith.constant 0 : index
    %114 = vector.load %arg4[%c21, %c0_66, %c0_67] : memref<27x64x32xf32, #tpu.memory_space<vmem>>, vector<1x64x32xf32>
    %115 = vector.shape_cast %114 : vector<1x64x32xf32> to vector<64x32xf32>
    %116 = arith.mulf %113, %115 : vector<64x32xf32>
    %117 = arith.addf %112, %116 : vector<64x32xf32>
    %c22 = arith.constant 22 : index
    %c0_68 = arith.constant 0 : index
    %c0_69 = arith.constant 0 : index
    %118 = vector.load %arg4[%c22, %c0_68, %c0_69] : memref<27x64x32xf32, #tpu.memory_space<vmem>>, vector<1x64x32xf32>
    %119 = vector.shape_cast %118 : vector<1x64x32xf32> to vector<64x32xf32>
    %120 = arith.mulf %97, %119 : vector<64x32xf32>
    %121 = arith.addf %117, %120 : vector<64x32xf32>
    %c28_i32_70 = arith.constant 28 : i32
    %122 = tpu.dynamic_rotate %97 by %c28_i32_70 dim 1 : vector<64x32xf32>, i32 -> vector<64x32xf32>
    %c23 = arith.constant 23 : index
    %c0_71 = arith.constant 0 : index
    %c0_72 = arith.constant 0 : index
    %123 = vector.load %arg4[%c23, %c0_71, %c0_72] : memref<27x64x32xf32, #tpu.memory_space<vmem>>, vector<1x64x32xf32>
    %124 = vector.shape_cast %123 : vector<1x64x32xf32> to vector<64x32xf32>
    %125 = arith.mulf %122, %124 : vector<64x32xf32>
    %126 = arith.addf %121, %125 : vector<64x32xf32>
    %c63_i32_73 = arith.constant 63 : i32
    %127 = tpu.dynamic_rotate %97 by %c63_i32_73 dim 0 : vector<64x32xf32>, i32 -> vector<64x32xf32>
    %c4_i32_74 = arith.constant 4 : i32
    %128 = tpu.dynamic_rotate %127 by %c4_i32_74 dim 1 : vector<64x32xf32>, i32 -> vector<64x32xf32>
    %c24 = arith.constant 24 : index
    %c0_75 = arith.constant 0 : index
    %c0_76 = arith.constant 0 : index
    %129 = vector.load %arg4[%c24, %c0_75, %c0_76] : memref<27x64x32xf32, #tpu.memory_space<vmem>>, vector<1x64x32xf32>
    %130 = vector.shape_cast %129 : vector<1x64x32xf32> to vector<64x32xf32>
    %131 = arith.mulf %128, %130 : vector<64x32xf32>
    %132 = arith.addf %126, %131 : vector<64x32xf32>
    %c25 = arith.constant 25 : index
    %c0_77 = arith.constant 0 : index
    %c0_78 = arith.constant 0 : index
    %133 = vector.load %arg4[%c25, %c0_77, %c0_78] : memref<27x64x32xf32, #tpu.memory_space<vmem>>, vector<1x64x32xf32>
    %134 = vector.shape_cast %133 : vector<1x64x32xf32> to vector<64x32xf32>
    %135 = arith.mulf %127, %134 : vector<64x32xf32>
    %136 = arith.addf %132, %135 : vector<64x32xf32>
    %c28_i32_79 = arith.constant 28 : i32
    %137 = tpu.dynamic_rotate %127 by %c28_i32_79 dim 1 : vector<64x32xf32>, i32 -> vector<64x32xf32>
    %c26 = arith.constant 26 : index
    %c0_80 = arith.constant 0 : index
    %c0_81 = arith.constant 0 : index
    %138 = vector.load %arg4[%c26, %c0_80, %c0_81] : memref<27x64x32xf32, #tpu.memory_space<vmem>>, vector<1x64x32xf32>
    %139 = vector.shape_cast %138 : vector<1x64x32xf32> to vector<64x32xf32>
    %140 = arith.mulf %137, %139 : vector<64x32xf32>
    %141 = arith.addf %136, %140 : vector<64x32xf32>
    %c0_82 = arith.constant 0 : index
    %c0_83 = arith.constant 0 : index
    %142 = vector.load %arg5[%c0_82, %c0_83] : memref<1x32xf32, #tpu.memory_space<vmem>>, vector<1x32xf32>
    %143 = vector.broadcast %142 : vector<1x32xf32> to vector<64x32xf32>
    %144 = arith.addf %141, %143 : vector<64x32xf32>
    %cst_84 = arith.constant 0.000000e+00 : f32
    %145 = vector.broadcast %cst_84 : f32 to vector<64x32xf32>
    %146 = arith.maximumf %144, %145 : vector<64x32xf32>
    %c0_85 = arith.constant 0 : index
    %c0_86 = arith.constant 0 : index
    %147 = vector.load %arg6[%c0_85, %c0_86] : memref<32x512xf32, #tpu.memory_space<vmem>>, vector<32x512xf32>
    %cst_87 = arith.constant dense<0.000000e+00> : vector<64x512xf32>
    %148 = tpu.matmul %146, %147, %cst_87 {dimension_numbers = #tpu.dot_dimension_numbers<[1], [0], [0], [1], [0, 0, 1, 1], [], []>, precision = #tpu.contract_precision<fp32>} : vector<64x32xf32>, vector<32x512xf32>, vector<64x512xf32> -> vector<64x512xf32>
    %c0_88 = arith.constant 0 : index
    %c0_89 = arith.constant 0 : index
    %149 = vector.load %arg7[%c0_88, %c0_89] : memref<1x512xf32, #tpu.memory_space<vmem>>, vector<1x512xf32>
    %150 = vector.broadcast %149 : vector<1x512xf32> to vector<64x512xf32>
    %151 = arith.addf %148, %150 : vector<64x512xf32>
    %c0_90 = arith.constant 0 : index
    %c0_91 = arith.constant 0 : index
    %c0_92 = arith.constant 0 : index
    %152 = vector.load %arg1[%c0_90, %c0_91, %c0_92] : memref<1x64x512xf32, #tpu.memory_space<vmem>>, vector<1x64x512xf32>
    %153 = vector.shape_cast %152 : vector<1x64x512xf32> to vector<64x512xf32>
    %154 = arith.addf %151, %153 : vector<64x512xf32>
    %cst_93 = arith.constant 0.000000e+00 : f32
    %155 = vector.broadcast %cst_93 : f32 to vector<64x512xf32>
    %156 = arith.maximumf %154, %155 : vector<64x512xf32>
    %157 = vector.shape_cast %156 : vector<64x512xf32> to vector<1x64x512xf32>
    %c0_94 = arith.constant 0 : index
    %c0_95 = arith.constant 0 : index
    %c0_96 = arith.constant 0 : index
    %158 = vector.load %arg8[%c0_94, %c0_95, %c0_96] : memref<1x64x512xf32, #tpu.memory_space<vmem>>, vector<1x64x512xf32>
    tpu.vector_store %arg8[%c0_94, %c0_95, %c0_96], %157 {strides = array<i32>} : memref<1x64x512xf32, #tpu.memory_space<vmem>>, vector<1x64x512xf32>,
    return
  }
  func.func @transform_0(%arg0: i32) -> (i32, i32, i32) {
    %c0_i32 = arith.constant 0 : i32
    %c0_i32_0 = arith.constant 0 : i32
    %c0_i32_1 = arith.constant 0 : i32
    return %arg0, %c0_i32, %c0_i32_0 : i32, i32, i32
  }
  func.func @transform_1(%arg0: i32) -> (i32, i32) {
    %c0_i32 = arith.constant 0 : i32
    %c0_i32_0 = arith.constant 0 : i32
    %c0_i32_1 = arith.constant 0 : i32
    return %c0_i32, %c0_i32_0 : i32, i32
  }
  func.func @transform_2(%arg0: i32) -> (i32, i32) {
    %c0_i32 = arith.constant 0 : i32
    %c0_i32_0 = arith.constant 0 : i32
    %c0_i32_1 = arith.constant 0 : i32
    return %c0_i32, %c0_i32_0 : i32, i32
  }
  func.func @transform_3(%arg0: i32) -> (i32, i32, i32) {
    %c0_i32 = arith.constant 0 : i32
    %c0_i32_0 = arith.constant 0 : i32
    %c0_i32_1 = arith.constant 0 : i32
    %c0_i32_2 = arith.constant 0 : i32
    return %c0_i32, %c0_i32_0, %c0_i32_1 : i32, i32, i32
  }
  func.func @transform_4(%arg0: i32) -> (i32, i32) {
    %c0_i32 = arith.constant 0 : i32
    %c0_i32_0 = arith.constant 0 : i32
    %c0_i32_1 = arith.constant 0 : i32
    return %c0_i32, %c0_i32_0 : i32, i32
  }
  func.func @transform_5(%arg0: i32) -> (i32, i32) {
    %c0_i32 = arith.constant 0 : i32
    %c0_i32_0 = arith.constant 0 : i32
    %c0_i32_1 = arith.constant 0 : i32
    return %c0_i32, %c0_i32_0 : i32, i32
  }
  func.func @transform_6(%arg0: i32) -> (i32, i32) {
    %c0_i32 = arith.constant 0 : i32
    %c0_i32_0 = arith.constant 0 : i32
    %c0_i32_1 = arith.constant 0 : i32
    return %c0_i32, %c0_i32_0 : i32, i32
  }
  func.func @transform_7(%arg0: i32) -> (i32, i32, i32) {
    %c0_i32 = arith.constant 0 : i32
    %c0_i32_0 = arith.constant 0 : i32
    %c0_i32_1 = arith.constant 0 : i32
    return %arg0, %c0_i32, %c0_i32_0 : i32, i32, i32
  }
}

</mosaic_0001>

<llo_original>
// kernel: tpu_custom_call.1
$region0: #{tpu_custom_call.1}
  #allocation0 [shape = 'u32[]', space=smem, size = 0x4, offset = 0x4, fixed_abs, tag = 'smem constant byte address 0x4 - core index']
  #allocation1 [shape = 'u32[144,128]{1,0:T(1,128)}', space=vmem, size = 0x12000, scoped, tag = 'internal scratch']
  %s0 = inlined_call_operand.vmem [shape: f32[2,64,512], index: 0, kind: input, shape index: {}]
  %s1 = inlined_call_operand.vmem [shape: f32[512,32], index: 1, kind: input, shape index: {}]
  %s2 = inlined_call_operand.vmem [shape: f32[1,32], index: 2, kind: input, shape index: {}]
  %s3 = inlined_call_operand.vmem [shape: f32[27,64,32], index: 3, kind: input, shape index: {}]
  %s4 = inlined_call_operand.vmem [shape: f32[1,32], index: 4, kind: input, shape index: {}]
  %s5 = inlined_call_operand.vmem [shape: f32[32,512], index: 5, kind: input, shape index: {}]
  %s6 = inlined_call_operand.vmem [shape: f32[1,512], index: 6, kind: input, shape index: {}]
  %s7 = inlined_call_operand.hbm [shape: f32[2,64,512], index: 7, kind: output, shape index: {}]
  %s8 = sld [smem:[#allocation0]]
  $region61: #{tpu_custom_call.1} parent=0
    _
  %s10 = ssub.s32 1, %s8
  %s11 = scalar_select 0, %s10, %s8
  $region1: #{tpu_custom_call.1} parent=0
    #allocation2 [shape = 'u8[262144]{0}', space=vmem, size = 0x40000, scoped, tag = 'output window, operand 0']
    #allocation3 [shape = 's32[2]{0}', space=sflag, size = 0x8, scoped, tag = 'scoped memory for tpu_custom_call.1']
    %12 = vsyncpa [#allocation3], 0
    %s13 = scalar_lea.sflag [#allocation3], 1
    %14 = vsyncpa %s13, 0
    loop: start=0, step=1, limit=4
    $region2: #{tpu_custom_call.1} parent=1 // loop_pre_header
      _
    $region3: #{tpu_custom_call.1} parent=1 // loop_header
      %s16 = sphi 0, %s20
      %p17 = scmp.ge.s32.totalorder %s16, 4
      %s26 = sphi 0, %s28
      %s29 = sphi 0, %s26
      %s30 = sphi 0, %s29
      %s46 = sphi 0, %s30
      %s50 = sphi 0, %s50
      %s52 = sphi 0, %s50
      %s53 = sphi 0, %s52
      %s67 = sphi 0, %s53
      %s71 = sphi 0, %s71
      %s73 = sphi 0, %s71
      %s74 = sphi 0, %s73
      %s88 = sphi 0, %s74
      %s92 = sphi 0, %s92
      %s94 = sphi 0, %s92
      %s95 = sphi 0, %s94
      %s109 = sphi 0, %s95
      %s113 = sphi 0, %s113
      %s115 = sphi 0, %s113
      %s116 = sphi 0, %s115
      %s130 = sphi 0, %s116
      %s134 = sphi 0, %s134
      %s136 = sphi 0, %s134
      %s137 = sphi 0, %s136
      %s151 = sphi 0, %s137
      %s155 = sphi 0, %s155
      %s157 = sphi 0, %s155
      %s158 = sphi 0, %s157
      %s172 = sphi 0, %s158
      %s178 = sphi 0, %s180
      %s181 = sphi 0, %s178
      %s182 = sphi 0, %s181
      %s198 = sphi 0, %s182
    $region4: #{tpu_custom_call.1} parent=1 // loop_header_branch
      %19 = sbr.rel (%p17) target = $region8
    $region5: #{tpu_custom_call.1} parent=1 // loop_body
      %s21 = ssub.s32 %s16, 1
      %s22 = ssub.s32 %s16, 2
      %s23 = sadd.s32 %s16, 1
      %s24 = ssub.s32 %s16, %s23
      %p25 = scmp.eq.s32.totalorder %s24, 0
      %s27 = sadd.s32 %s26, 1
      %s28 = scalar_select %p25, %s26, %s27
      %p31 = pneg %p25
      %p32 = scmp.eq.s32.totalorder %s16, 1
      %p33 = por %p31, %p32
      %p34 = scmp.ne.s32.totalorder %s26, %s29
      %p35 = scmp.eq.s32.totalorder %s16, 0
      %p36 = por %p34, %p35
      %p37 = scmp.ne.s32.totalorder %s26, %s29
      %p38 = scmp.eq.s32.totalorder %s21, 1
      %p39 = por %p37, %p38
      %p40 = scmp.ne.s32.totalorder %s29, %s30
      %p41 = scmp.eq.s32.totalorder %s21, 0
      %p42 = por %p40, %p41
      %p43 = scmp.ne.s32.totalorder %s29, %s30
      %p44 = scmp.eq.s32.totalorder %s22, 1
      %p45 = por %p43, %p44
      %p47 = scmp.ne.s32.totalorder %s30, %s46
      %p48 = scmp.eq.s32.totalorder %s22, 0
      %p49 = por %p47, %p48
      %s51 = sadd.s32 %s50, 1
      %p54 = scmp.eq.s32.totalorder %s16, 1
      %p55 = scmp.ne.s32.totalorder %s50, %s52
      %p56 = scmp.eq.s32.totalorder %s16, 0
      %p57 = por %p55, %p56
      %p58 = scmp.ne.s32.totalorder %s50, %s52
      %p59 = scmp.eq.s32.totalorder %s21, 1
      %p60 = por %p58, %p59
      %p61 = scmp.ne.s32.totalorder %s52, %s53
      %p62 = scmp.eq.s32.totalorder %s21, 0
      %p63 = por %p61, %p62
      %p64 = scmp.ne.s32.totalorder %s52, %s53
      %p65 = scmp.eq.s32.totalorder %s22, 1
      %p66 = por %p64, %p65
      %p68 = scmp.ne.s32.totalorder %s53, %s67
      %p69 = scmp.eq.s32.totalorder %s22, 0
      %p70 = por %p68, %p69
      %s72 = sadd.s32 %s71, 1
      %p75 = scmp.eq.s32.totalorder %s16, 1
      %p76 = scmp.ne.s32.totalorder %s71, %s73
      %p77 = scmp.eq.s32.totalorder %s16, 0
      %p78 = por %p76, %p77
      %p79 = scmp.ne.s32.totalorder %s71, %s73
      %p80 = scmp.eq.s32.totalorder %s21, 1
      %p81 = por %p79, %p80
      %p82 = scmp.ne.s32.totalorder %s73, %s74
      %p83 = scmp.eq.s32.totalorder %s21, 0
      %p84 = por %p82, %p83
      %p85 = scmp.ne.s32.totalorder %s73, %s74
      %p86 = scmp.eq.s32.totalorder %s22, 1
      %p87 = por %p85, %p86
      %p89 = scmp.ne.s32.totalorder %s74, %s88
      %p90 = scmp.eq.s32.totalorder %s22, 0
      %p91 = por %p89, %p90
      %s93 = sadd.s32 %s92, 1
      %p96 = scmp.eq.s32.totalorder %s16, 1
      %p97 = scmp.ne.s32.totalorder %s92, %s94
      %p98 = scmp.eq.s32.totalorder %s16, 0
      %p99 = por %p97, %p98
      %p100 = scmp.ne.s32.totalorder %s92, %s94
      %p101 = scmp.eq.s32.totalorder %s21, 1
      %p102 = por %p100, %p101
      %p103 = scmp.ne.s32.totalorder %s94, %s95
      %p104 = scmp.eq.s32.totalorder %s21, 0
      %p105 = por %p103, %p104
      %p106 = scmp.ne.s32.totalorder %s94, %s95
      %p107 = scmp.eq.s32.totalorder %s22, 1
      %p108 = por %p106, %p107
      %p110 = scmp.ne.s32.totalorder %s95, %s109
      %p111 = scmp.eq.s32.totalorder %s22, 0
      %p112 = por %p110, %p111
      %s114 = sadd.s32 %s113, 1
      %p117 = scmp.eq.s32.totalorder %s16, 1
      %p118 = scmp.ne.s32.totalorder %s113, %s115
      %p119 = scmp.eq.s32.totalorder %s16, 0
      %p120 = por %p118, %p119
      %p121 = scmp.ne.s32.totalorder %s113, %s115
      %p122 = scmp.eq.s32.totalorder %s21, 1
      %p123 = por %p121, %p122
      %p124 = scmp.ne.s32.totalorder %s115, %s116
      %p125 = scmp.eq.s32.totalorder %s21, 0
      %p126 = por %p124, %p125
      %p127 = scmp.ne.s32.totalorder %s115, %s116
      %p128 = scmp.eq.s32.totalorder %s22, 1
      %p129 = por %p127, %p128
      %p131 = scmp.ne.s32.totalorder %s116, %s130
      %p132 = scmp.eq.s32.totalorder %s22, 0
      %p133 = por %p131, %p132
      %s135 = sadd.s32 %s134, 1
      %p138 = scmp.eq.s32.totalorder %s16, 1
      %p139 = scmp.ne.s32.totalorder %s134, %s136
      %p140 = scmp.eq.s32.totalorder %s16, 0
      %p141 = por %p139, %p140
      %p142 = scmp.ne.s32.totalorder %s134, %s136
      %p143 = scmp.eq.s32.totalorder %s21, 1
      %p144 = por %p142, %p143
      %p145 = scmp.ne.s32.totalorder %s136, %s137
      %p146 = scmp.eq.s32.totalorder %s21, 0
      %p147 = por %p145, %p146
      %p148 = scmp.ne.s32.totalorder %s136, %s137
      %p149 = scmp.eq.s32.totalorder %s22, 1
      %p150 = por %p148, %p149
      %p152 = scmp.ne.s32.totalorder %s137, %s151
      %p153 = scmp.eq.s32.totalorder %s22, 0
      %p154 = por %p152, %p153
      %s156 = sadd.s32 %s155, 1
      %p159 = scmp.eq.s32.totalorder %s16, 1
      %p160 = scmp.ne.s32.totalorder %s155, %s157
      %p161 = scmp.eq.s32.totalorder %s16, 0
      %p162 = por %p160, %p161
      %p163 = scmp.ne.s32.totalorder %s155, %s157
      %p164 = scmp.eq.s32.totalorder %s21, 1
      %p165 = por %p163, %p164
      %p166 = scmp.ne.s32.totalorder %s157, %s158
      %p167 = scmp.eq.s32.totalorder %s21, 0
      %p168 = por %p166, %p167
      %p169 = scmp.ne.s32.totalorder %s157, %s158
      %p170 = scmp.eq.s32.totalorder %s22, 1
      %p171 = por %p169, %p170
      %p173 = scmp.ne.s32.totalorder %s158, %s172
      %p174 = scmp.eq.s32.totalorder %s22, 0
      %p175 = por %p173, %p174
      %s176 = ssub.s32 %s16, %s23
      %p177 = scmp.eq.s32.totalorder %s176, 0
      %s179 = sadd.s32 %s178, 1
      %s180 = scalar_select %p177, %s178, %s179
      %p183 = pneg %p177
      %p184 = scmp.eq.s32.totalorder %s16, 1
      %p185 = por %p183, %p184
      %p186 = scmp.ne.s32.totalorder %s178, %s181
      %p187 = scmp.eq.s32.totalorder %s16, 0
      %p188 = por %p186, %p187
      %p189 = scmp.ne.s32.totalorder %s178, %s181
      %p190 = scmp.eq.s32.totalorder %s21, 1
      %p191 = por %p189, %p190
      %p192 = scmp.ne.s32.totalorder %s181, %s182
      %p193 = scmp.eq.s32.totalorder %s21, 0
      %p194 = por %p192, %p193
      %p195 = scmp.ne.s32.totalorder %s181, %s182
      %p196 = scmp.eq.s32.totalorder %s22, 1
      %p197 = por %p195, %p196
      %p199 = scmp.ne.s32.totalorder %s182, %s198
      %p200 = scmp.eq.s32.totalorder %s22, 0
      %p201 = por %p199, %p200
      %p202 = scmp.le.s32.totalorder 1, %s16
      %p203 = scmp.lt.s32.totalorder %s16, 3
      %p204 = pnand %p202, %p203
      %p205 = pneg %p204
      // Predicated region
      $region9: #{tpu_custom_call.1} parent=5 // pred_check
        _
      $region10: #{tpu_custom_call.1} parent=5 // pred_check_branch
        %207 = sbr.rel (%p204) target = $region12
      $region11: #{tpu_custom_call.1} parent=5 // pred_region
        %s208 = ssub.s32 %s16, 1
        // Predicated region
        $region13: #{tpu_custom_call.1} parent=11 // pred_check
          %p209 = pneg %p63
        $region14: #{tpu_custom_call.1} parent=11 // pred_check_branch
          %211 = sbr.rel (%p209) target = $region16
        $region15: #{tpu_custom_call.1} parent=11 // pred_region
          _
        $region16: #{tpu_custom_call.1} parent=11 // pred_fallthru
          _
        // Predicated region
        $region17: #{tpu_custom_call.1} parent=11 // pred_check
          %p212 = pneg %p84
        $region18: #{tpu_custom_call.1} parent=11 // pred_check_branch
          %214 = sbr.rel (%p212) target = $region20
        $region19: #{tpu_custom_call.1} parent=11 // pred_region
          _
        $region20: #{tpu_custom_call.1} parent=11 // pred_fallthru
          _
        // Predicated region
        $region21: #{tpu_custom_call.1} parent=11 // pred_check
          %p215 = pneg %p105
        $region22: #{tpu_custom_call.1} parent=11 // pred_check_branch
          %217 = sbr.rel (%p215) target = $region24
        $region23: #{tpu_custom_call.1} parent=11 // pred_region
          _
        $region24: #{tpu_custom_call.1} parent=11 // pred_fallthru
          _
        // Predicated region
        $region25: #{tpu_custom_call.1} parent=11 // pred_check
          %p218 = pneg %p126
        $region26: #{tpu_custom_call.1} parent=11 // pred_check_branch
          %220 = sbr.rel (%p218) target = $region28
        $region27: #{tpu_custom_call.1} parent=11 // pred_region
          _
        $region28: #{tpu_custom_call.1} parent=11 // pred_fallthru
          _
        // Predicated region
        $region29: #{tpu_custom_call.1} parent=11 // pred_check
          %p221 = pneg %p147
        $region30: #{tpu_custom_call.1} parent=11 // pred_check_branch
          %223 = sbr.rel (%p221) target = $region32
        $region31: #{tpu_custom_call.1} parent=11 // pred_region
          _
        $region32: #{tpu_custom_call.1} parent=11 // pred_fallthru
          _
        // Predicated region
        $region33: #{tpu_custom_call.1} parent=11 // pred_check
          %p224 = pneg %p168
        $region34: #{tpu_custom_call.1} parent=11 // pred_check_branch
          %226 = sbr.rel (%p224) target = $region36
        $region35: #{tpu_custom_call.1} parent=11 // pred_region
          _
        $region36: #{tpu_custom_call.1} parent=11 // pred_fallthru
          _
      $region12: #{tpu_custom_call.1} parent=5 // pred_fallthru
        _
      %p227 = scmp.lt.s32.totalorder %s16, 2
      // Predicated region
      $region37: #{tpu_custom_call.1} parent=5 // pred_check
        %p228 = pneg %p227
      $region38: #{tpu_custom_call.1} parent=5 // pred_check_branch
        %230 = sbr.rel (%p228) target = $region40
      $region39: #{tpu_custom_call.1} parent=5 // pred_region
        // Predicated region
        $region41: #{tpu_custom_call.1} parent=39 // pred_check
          %p231 = pneg %p36
        $region42: #{tpu_custom_call.1} parent=39 // pred_check_branch
          %233 = sbr.rel (%p231) target = $region44
        $region43: #{tpu_custom_call.1} parent=39 // pred_region
          %p234 = scmp.lt.s32.totalorder %s16, 1
          %s235 = scalar_select %p234, %s16, 1
          %s236 = smul.addr %s235, 32
          %s237 = smul.addr %s236, 8
          %s238 = scalar_lea.vmem %s0, %s237
        $region44: #{tpu_custom_call.1} parent=39 // pred_fallthru
          _
      $region40: #{tpu_custom_call.1} parent=5 // pred_fallthru
        _
      %p239 = scmp.le.s32.totalorder 1, %s16
      %p240 = scmp.lt.s32.totalorder %s16, 3
      %p241 = pnand %p239, %p240
      %p242 = pneg %p241
      // Predicated region
      $region45: #{tpu_custom_call.1} parent=5 // pred_check
        _
      $region46: #{tpu_custom_call.1} parent=5 // pred_check_branch
        %244 = sbr.rel (%p241) target = $region48
      $region47: #{tpu_custom_call.1} parent=5 // pred_region
        %s245 = ssub.s32 %s16, 1
        %p246 = scmp.lt.s32.totalorder %s21, 1
        %s247 = scalar_select %p246, %s21, 1
        %s248 = smul.addr %s247, 32
        %s249 = smul.addr %s248, 8
        %s250 = scalar_lea.vmem %s0, %s249
        %p251 = pneg %p42
        %p252 = pneg %p39
        %p253 = pneg %p63
        %p254 = pneg %p60
        %p255 = pneg %p84
        %p256 = pneg %p81
        %p257 = pneg %p105
        %p258 = pneg %p102
        %p259 = pneg %p126
        %p260 = pneg %p123
        %p261 = pneg %p147
        %p262 = pneg %p144
        %p263 = pneg %p168
        %p264 = pneg %p165
        %p265 = pneg %p194
        %p266 = pneg %p191
        %s267 = sand.u32 %s181, 1
        %s268 = scalar_lea.sflag [#allocation3], %s267
        %s269 = sand.u32 %s181, 1
        %s270 = smul.addr %s269, 256
        %s271 = scalar_lea.vmem [#allocation2], %s270
        %p272 = scmp.lt.s32.totalorder %s21, 1
        %s273 = scalar_select %p272, %s21, 1
        %s274 = smul.addr %s273, 32
        %s275 = smul.addr %s274, 8
        %s276 = scalar_lea.vmem %s0, %s275
        %v277 = vld [vmem:[%s276] sm:$0xff]
        %v278 = vld [vmem:[%s276 + $0x8] sm:$0xff]
        %v279 = vld [vmem:[%s276 + $0x10] sm:$0xff]
        %v280 = vld [vmem:[%s276 + $0x18] sm:$0xff]
        %v281 = vld [vmem:[%s276 + $0x20] sm:$0xff]
        %v282 = vld [vmem:[%s276 + $0x28] sm:$0xff]
        %v283 = vld [vmem:[%s276 + $0x30] sm:$0xff]
        %v284 = vld [vmem:[%s276 + $0x38] sm:$0xff]
        %v285 = vld [vmem:[%s276 + $0x40] sm:$0xff]
        %v286 = vld [vmem:[%s276 + $0x48] sm:$0xff]
        %v287 = vld [vmem:[%s276 + $0x50] sm:$0xff]
        %v288 = vld [vmem:[%s276 + $0x58] sm:$0xff]
        %v289 = vld [vmem:[%s276 + $0x60] sm:$0xff]
        %v290 = vld [vmem:[%s276 + $0x68] sm:$0xff]
        %v291 = vld [vmem:[%s276 + $0x70] sm:$0xff]
        %v292 = vld [vmem:[%s276 + $0x78] sm:$0xff]
        %v293 = vld [vmem:[%s276 + $0x80] sm:$0xff]
        %v294 = vld [vmem:[%s276 + $0x88] sm:$0xff]
        %v295 = vld [vmem:[%s276 + $0x90] sm:$0xff]
        %v296 = vld [vmem:[%s276 + $0x98] sm:$0xff]
        %v297 = vld [vmem:[%s276 + $0xa0] sm:$0xff]
        %v298 = vld [vmem:[%s276 + $0xa8] sm:$0xff]
        %v299 = vld [vmem:[%s276 + $0xb0] sm:$0xff]
        %v300 = vld [vmem:[%s276 + $0xb8] sm:$0xff]
        %v301 = vld [vmem:[%s276 + $0xc0] sm:$0xff]
        %v302 = vld [vmem:[%s276 + $0xc8] sm:$0xff]
        %v303 = vld [vmem:[%s276 + $0xd0] sm:$0xff]
        %v304 = vld [vmem:[%s276 + $0xd8] sm:$0xff]
        %v305 = vld [vmem:[%s276 + $0xe0] sm:$0xff]
        %v306 = vld [vmem:[%s276 + $0xe8] sm:$0xff]
        %v307 = vld [vmem:[%s276 + $0xf0] sm:$0xff]
        %v308 = vld [vmem:[%s276 + $0xf8] sm:$0xff]
        %v309 = vld [vmem:[%s1] sm:$0xff]
        %v310 = vld [vmem:[%s1 + $0x8] sm:$0xff]
        %v311 = vld [vmem:[%s1 + $0x10] sm:$0xff]
        %v312 = vld [vmem:[%s1 + $0x18] sm:$0xff]
        %v313 = vld [vmem:[%s1 + $0x20] sm:$0xff]
        %v314 = vld [vmem:[%s1 + $0x28] sm:$0xff]
        %v315 = vld [vmem:[%s1 + $0x30] sm:$0xff]
        %v316 = vld [vmem:[%s1 + $0x38] sm:$0xff]
        %v317 = vld [vmem:[%s1 + $0x40] sm:$0xff]
        %v318 = vld [vmem:[%s1 + $0x48] sm:$0xff]
        %v319 = vld [vmem:[%s1 + $0x50] sm:$0xff]
        %v320 = vld [vmem:[%s1 + $0x58] sm:$0xff]
        %v321 = vld [vmem:[%s1 + $0x60] sm:$0xff]
        %v322 = vld [vmem:[%s1 + $0x68] sm:$0xff]
        %v323 = vld [vmem:[%s1 + $0x70] sm:$0xff]
        %v324 = vld [vmem:[%s1 + $0x78] sm:$0xff]
        %v325 = vld [vmem:[%s1 + $0x80] sm:$0xff]
        %v326 = vld [vmem:[%s1 + $0x88] sm:$0xff]
        %v327 = vld [vmem:[%s1 + $0x90] sm:$0xff]
        %v328 = vld [vmem:[%s1 + $0x98] sm:$0xff]
        %v329 = vld [vmem:[%s1 + $0xa0] sm:$0xff]
        %v330 = vld [vmem:[%s1 + $0xa8] sm:$0xff]
        %v331 = vld [vmem:[%s1 + $0xb0] sm:$0xff]
        %v332 = vld [vmem:[%s1 + $0xb8] sm:$0xff]
        %v333 = vld [vmem:[%s1 + $0xc0] sm:$0xff]
        %v334 = vld [vmem:[%s1 + $0xc8] sm:$0xff]
        %v335 = vld [vmem:[%s1 + $0xd0] sm:$0xff]
        %v336 = vld [vmem:[%s1 + $0xd8] sm:$0xff]
        %v337 = vld [vmem:[%s1 + $0xe0] sm:$0xff]
        %v338 = vld [vmem:[%s1 + $0xe8] sm:$0xff]
        %v339 = vld [vmem:[%s1 + $0xf0] sm:$0xff]
        %v340 = vld [vmem:[%s1 + $0xf8] sm:$0xff]
        %v341 = vld [vmem:[%s1 + $0x100] sm:$0xff]
        %v342 = vld [vmem:[%s1 + $0x108] sm:$0xff]
        %v343 = vld [vmem:[%s1 + $0x110] sm:$0xff]
        %v344 = vld [vmem:[%s1 + $0x118] sm:$0xff]
        %v345 = vld [vmem:[%s1 + $0x120] sm:$0xff]
        %v346 = vld [vmem:[%s1 + $0x128] sm:$0xff]
        %v347 = vld [vmem:[%s1 + $0x130] sm:$0xff]
        %v348 = vld [vmem:[%s1 + $0x138] sm:$0xff]
        %v349 = vld [vmem:[%s1 + $0x140] sm:$0xff]
        %v350 = vld [vmem:[%s1 + $0x148] sm:$0xff]
        %v351 = vld [vmem:[%s1 + $0x150] sm:$0xff]
        %v352 = vld [vmem:[%s1 + $0x158] sm:$0xff]
        %v353 = vld [vmem:[%s1 + $0x160] sm:$0xff]
        %v354 = vld [vmem:[%s1 + $0x168] sm:$0xff]
        %v355 = vld [vmem:[%s1 + $0x170] sm:$0xff]
        %v356 = vld [vmem:[%s1 + $0x178] sm:$0xff]
        %v357 = vld [vmem:[%s1 + $0x180] sm:$0xff]
        %v358 = vld [vmem:[%s1 + $0x188] sm:$0xff]
        %v359 = vld [vmem:[%s1 + $0x190] sm:$0xff]
        %v360 = vld [vmem:[%s1 + $0x198] sm:$0xff]
        %v361 = vld [vmem:[%s1 + $0x1a0] sm:$0xff]
        %v362 = vld [vmem:[%s1 + $0x1a8] sm:$0xff]
        %v363 = vld [vmem:[%s1 + $0x1b0] sm:$0xff]
        %v364 = vld [vmem:[%s1 + $0x1b8] sm:$0xff]
        %v365 = vld [vmem:[%s1 + $0x1c0] sm:$0xff]
        %v366 = vld [vmem:[%s1 + $0x1c8] sm:$0xff]
        %v367 = vld [vmem:[%s1 + $0x1d0] sm:$0xff]
        %v368 = vld [vmem:[%s1 + $0x1d8] sm:$0xff]
        %v369 = vld [vmem:[%s1 + $0x1e0] sm:$0xff]
        %v370 = vld [vmem:[%s1 + $0x1e8] sm:$0xff]
        %v371 = vld [vmem:[%s1 + $0x1f0] sm:$0xff]
        %v372 = vld [vmem:[%s1 + $0x1f8] sm:$0xff]
        %v373 = vld [vmem:[%s2] sm:$0x1]
        %v375 = vlaneseq
        %v376 = vshrl.u32 %v375, 7
        %v377 = vsub.s32 0, %v376
        %v378 = vrot.slane %v373, %v377
        %380 = vmatprep.subr.mxu0 0.0
        %v381 = vand.u32 %v309, 4294901760
        %382 = vmatpush1.msra.mxu0 %v381
        %383 = vmatprep.subr.mxu0 0.0
        %v384 = vand.u32 %v310, 4294901760
        %385 = vmatpush1.msra.mxu0 %v384
        %386 = vmatprep.subr.mxu0 0.0
        %v387 = vand.u32 %v311, 4294901760
        %388 = vmatpush1.msra.mxu0 %v387
        %389 = vmatprep.subr.mxu0 0.0
        %v390 = vand.u32 %v312, 4294901760
        %391 = vmatpush1.msra.mxu0 %v390
        %392 = vmatprep.subr.mxu0 0.0
        %v393 = vand.u32 %v313, 4294901760
        %394 = vmatpush1.msra.mxu0 %v393
        %395 = vmatprep.subr.mxu0 0.0
        %v396 = vand.u32 %v314, 4294901760
        %397 = vmatpush1.msra.mxu0 %v396
        %398 = vmatprep.subr.mxu0 0.0
        %v399 = vand.u32 %v315, 4294901760
        %400 = vmatpush1.msra.mxu0 %v399
        %401 = vmatprep.subr.mxu0 0.0
        %v402 = vand.u32 %v316, 4294901760
        %403 = vmatpush1.msra.mxu0 %v402
        %404 = vmatprep.subr.mxu0 0.0
        %v405 = vand.u32 %v317, 4294901760
        %406 = vmatpush1.msra.mxu0 %v405
        %407 = vmatprep.subr.mxu0 0.0
        %v408 = vand.u32 %v318, 4294901760
        %409 = vmatpush1.msra.mxu0 %v408
        %410 = vmatprep.subr.mxu0 0.0
        %v411 = vand.u32 %v319, 4294901760
        %412 = vmatpush1.msra.mxu0 %v411
        %413 = vmatprep.subr.mxu0 0.0
        %v414 = vand.u32 %v320, 4294901760
        %415 = vmatpush1.msra.mxu0 %v414
        %416 = vmatprep.subr.mxu0 0.0
        %v417 = vand.u32 %v321, 4294901760
        %418 = vmatpush1.msra.mxu0 %v417
        %419 = vmatprep.subr.mxu0 0.0
        %v420 = vand.u32 %v322, 4294901760
        %421 = vmatpush1.msra.mxu0 %v420
        %422 = vmatprep.subr.mxu0 0.0
        %v423 = vand.u32 %v323, 4294901760
        %424 = vmatpush1.msra.mxu0 %v423
        %425 = vmatprep.subr.mxu0 0.0
        %v426 = vand.u32 %v324, 4294901760
        %427 = vmatpush1.msra.mxu0 %v426
        %428 = vmatprep.subr.mxu0 0.0
        %v429 = vand.u32 %v325, 4294901760
        %430 = vmatpush1.msra.mxu0 %v429
        %431 = vmatprep.subr.mxu0 0.0
        %v432 = vand.u32 %v326, 4294901760
        %433 = vmatpush1.msra.mxu0 %v432
        %434 = vmatprep.subr.mxu0 0.0
        %v435 = vand.u32 %v327, 4294901760
        %436 = vmatpush1.msra.mxu0 %v435
        %437 = vmatprep.subr.mxu0 0.0
        %v438 = vand.u32 %v328, 4294901760
        %439 = vmatpush1.msra.mxu0 %v438
        %440 = vmatprep.subr.mxu0 0.0
        %v441 = vand.u32 %v329, 4294901760
        %442 = vmatpush1.msra.mxu0 %v441
        %443 = vmatprep.subr.mxu0 0.0
        %v444 = vand.u32 %v330, 4294901760
        %445 = vmatpush1.msra.mxu0 %v444
        %446 = vmatprep.subr.mxu0 0.0
        %v447 = vand.u32 %v331, 4294901760
        %448 = vmatpush1.msra.mxu0 %v447
        %449 = vmatprep.subr.mxu0 0.0
        %v450 = vand.u32 %v332, 4294901760
        %451 = vmatpush1.msra.mxu0 %v450
        %452 = vmatprep.subr.mxu0 0.0
        %v453 = vand.u32 %v333, 4294901760
        %454 = vmatpush1.msra.mxu0 %v453
        %455 = vmatprep.subr.mxu0 0.0
        %v456 = vand.u32 %v334, 4294901760
        %457 = vmatpush1.msra.mxu0 %v456
        %458 = vmatprep.subr.mxu0 0.0
        %v459 = vand.u32 %v335, 4294901760
        %460 = vmatpush1.msra.mxu0 %v459
        %461 = vmatprep.subr.mxu0 0.0
        %v462 = vand.u32 %v336, 4294901760
        %463 = vmatpush1.msra.mxu0 %v462
        %464 = vmatprep.subr.mxu0 0.0
        %v465 = vand.u32 %v337, 4294901760
        %466 = vmatpush1.msra.mxu0 %v465
        %467 = vmatprep.subr.mxu0 0.0
        %v468 = vand.u32 %v338, 4294901760
        %469 = vmatpush1.msra.mxu0 %v468
        %470 = vmatprep.subr.mxu0 0.0
        %v471 = vand.u32 %v339, 4294901760
        %472 = vmatpush1.msra.mxu0 %v471
        %473 = vmatprep.subr.mxu0 0.0
        %v474 = vand.u32 %v340, 4294901760
        %475 = vmatpush1.msra.mxu0 %v474
        %v476 = vand.u32 %v278, 4294901760
        %v477 = vsub.f32 %v278, %v476
        %v478 = vand.u32 %v477, 4294901760
        %v479 = vsub.f32 %v477, %v478
        %v480 = vand.u32 %v479, 4294901760
        %481 = vmatprep.mubr.f32.mxu0 %v480
        %v482 = vand.u32 %v277, 4294901760
        %v483 = vsub.f32 %v277, %v482
        %v484 = vand.u32 %v483, 4294901760
        %v485 = vsub.f32 %v483, %v484
        %v486 = vand.u32 %v485, 4294901760
        %487 = vmatmul.mubr.f32.gmra.mrb[0].mxu0 %v486
        %v488 = vpop.f32.mrb[0].mxu0
        %v489 = vadd.f32 %v378, %v488
        %v490 = vpop.f32.mrb[0].mxu0
        %v491 = vand.u32 %v282, 4294901760
        %v492 = vsub.f32 %v282, %v491
        %v493 = vand.u32 %v492, 4294901760
        %v494 = vsub.f32 %v492, %v493
        %v495 = vand.u32 %v494, 4294901760
        %496 = vmatprep.mubr.f32.mxu0 %v495
        %v497 = vand.u32 %v281, 4294901760
        %v498 = vsub.f32 %v281, %v497
        %v499 = vand.u32 %v498, 4294901760
        %v500 = vsub.f32 %v498, %v499
        %v501 = vand.u32 %v500, 4294901760
        %502 = vmatmul.mubr.f32.gmra.mrb[0].mxu0 %v501
        %v503 = vpop.f32.mrb[0].mxu0
        %v504 = vadd.f32 %v378, %v503
        %v505 = vpop.f32.mrb[0].mxu0
        %v506 = vand.u32 %v286, 4294901760
        %v507 = vsub.f32 %v286, %v506
        %v508 = vand.u32 %v507, 4294901760
        %v509 = vsub.f32 %v507, %v508
        %v510 = vand.u32 %v509, 4294901760
        %511 = vmatprep.mubr.f32.mxu0 %v510
        %v512 = vand.u32 %v285, 4294901760
        %v513 = vsub.f32 %v285, %v512
        %v514 = vand.u32 %v513, 4294901760
        %v515 = vsub.f32 %v513, %v514
        %v516 = vand.u32 %v515, 4294901760
        %517 = vmatmul.mubr.f32.gmra.mrb[0].mxu0 %v516
        %v518 = vpop.f32.mrb[0].mxu0
        %v519 = vadd.f32 %v378, %v518
        %v520 = vpop.f32.mrb[0].mxu0
        %v521 = vand.u32 %v290, 4294901760
        %v522 = vsub.f32 %v290, %v521
        %v523 = vand.u32 %v522, 4294901760
        %v524 = vsub.f32 %v522, %v523
        %v525 = vand.u32 %v524, 4294901760
        %526 = vmatprep.mubr.f32.mxu0 %v525
        %v527 = vand.u32 %v289, 4294901760
        %v528 = vsub.f32 %v289, %v527
        %v529 = vand.u32 %v528, 4294901760
        %v530 = vsub.f32 %v528, %v529
        %v531 = vand.u32 %v530, 4294901760
        %532 = vmatmul.mubr.f32.gmra.mrb[0].mxu0 %v531
        %v533 = vpop.f32.mrb[0].mxu0
        %v534 = vadd.f32 %v378, %v533
        %v535 = vpop.f32.mrb[0].mxu0
        %v536 = vand.u32 %v294, 4294901760
        %v537 = vsub.f32 %v294, %v536
        %v538 = vand.u32 %v537, 4294901760
        %v539 = vsub.f32 %v537, %v538
        %v540 = vand.u32 %v539, 4294901760
        %541 = vmatprep.mubr.f32.mxu0 %v540
        %v542 = vand.u32 %v293, 4294901760
        %v543 = vsub.f32 %v293, %v542
        %v544 = vand.u32 %v543, 4294901760
        %v545 = vsub.f32 %v543, %v544
        %v546 = vand.u32 %v545, 4294901760
        %547 = vmatmul.mubr.f32.gmra.mrb[0].mxu0 %v546
        %v548 = vpop.f32.mrb[0].mxu0
        %v549 = vadd.f32 %v378, %v548
        %v550 = vpop.f32.mrb[0].mxu0
        %v551 = vand.u32 %v298, 4294901760
        %v552 = vsub.f32 %v298, %v551
        %v553 = vand.u32 %v552, 4294901760
        %v554 = vsub.f32 %v552, %v553
        %v555 = vand.u32 %v554, 4294901760
        %556 = vmatprep.mubr.f32.mxu0 %v555
        %v557 = vand.u32 %v297, 4294901760
        %v558 = vsub.f32 %v297, %v557
        %v559 = vand.u32 %v558, 4294901760
        %v560 = vsub.f32 %v558, %v559
        %v561 = vand.u32 %v560, 4294901760
        %562 = vmatmul.mubr.f32.gmra.mrb[0].mxu0 %v561
        %v563 = vpop.f32.mrb[0].mxu0
        %v564 = vadd.f32 %v378, %v563
        %v565 = vpop.f32.mrb[0].mxu0
        %v566 = vand.u32 %v302, 4294901760
        %v567 = vsub.f32 %v302, %v566
        %v568 = vand.u32 %v567, 4294901760
        %v569 = vsub.f32 %v567, %v568
        %v570 = vand.u32 %v569, 4294901760
        %571 = vmatprep.mubr.f32.mxu0 %v570
        %v572 = vand.u32 %v301, 4294901760
        %v573 = vsub.f32 %v301, %v572
        %v574 = vand.u32 %v573, 4294901760
        %v575 = vsub.f32 %v573, %v574
        %v576 = vand.u32 %v575, 4294901760
        %577 = vmatmul.mubr.f32.gmra.mrb[0].mxu0 %v576
        %v578 = vpop.f32.mrb[0].mxu0
        %v579 = vadd.f32 %v378, %v578
        %v580 = vpop.f32.mrb[0].mxu0
        %v581 = vand.u32 %v306, 4294901760
        %v582 = vsub.f32 %v306, %v581
        %v583 = vand.u32 %v582, 4294901760
        %v584 = vsub.f32 %v582, %v583
        %v585 = vand.u32 %v584, 4294901760
        %586 = vmatprep.mubr.f32.mxu0 %v585
        %v587 = vand.u32 %v305, 4294901760
        %v588 = vsub.f32 %v305, %v587
        %v589 = vand.u32 %v588, 4294901760
        %v590 = vsub.f32 %v588, %v589
        %v591 = vand.u32 %v590, 4294901760
        %592 = vmatmul.mubr.f32.gmra.mrb[0].mxu0 %v591
        %v593 = vpop.f32.mrb[0].mxu0
        %v594 = vadd.f32 %v378, %v593
        %v595 = vpop.f32.mrb[0].mxu0
        %596 = vdwg.mxu0
        %597 = vmatprep.subr.mxu0 0.0
        %v598 = vand.u32 %v309, 4294901760
        %v599 = vsub.f32 %v309, %v598
        %v600 = vand.u32 %v599, 4294901760
        %v601 = vsub.f32 %v599, %v600
        %v602 = vand.u32 %v601, 4294901760
        %603 = vmatpush1.msra.mxu0 %v602
        %604 = vmatprep.subr.mxu0 0.0
        %v605 = vand.u32 %v310, 4294901760
        %v606 = vsub.f32 %v310, %v605
        %v607 = vand.u32 %v606, 4294901760
        %v608 = vsub.f32 %v606, %v607
        %v609 = vand.u32 %v608, 4294901760
        %610 = vmatpush1.msra.mxu0 %v609
        %611 = vmatprep.subr.mxu0 0.0
        %v612 = vand.u32 %v311, 4294901760
        %v613 = vsub.f32 %v311, %v612
        %v614 = vand.u32 %v613, 4294901760
        %v615 = vsub.f32 %v613, %v614
        %v616 = vand.u32 %v615, 4294901760
        %617 = vmatpush1.msra.mxu0 %v616
        %618 = vmatprep.subr.mxu0 0.0
        %v619 = vand.u32 %v312, 4294901760
        %v620 = vsub.f32 %v312, %v619
        %v621 = vand.u32 %v620, 4294901760
        %v622 = vsub.f32 %v620, %v621
        %v623 = vand.u32 %v622, 4294901760
        %624 = vmatpush1.msra.mxu0 %v623
        %625 = vmatprep.subr.mxu0 0.0
        %v626 = vand.u32 %v313, 4294901760
        %v627 = vsub.f32 %v313, %v626
        %v628 = vand.u32 %v627, 4294901760
        %v629 = vsub.f32 %v627, %v628
        %v630 = vand.u32 %v629, 4294901760
        %631 = vmatpush1.msra.mxu0 %v630
        %632 = vmatprep.subr.mxu0 0.0
        %v633 = vand.u32 %v314, 4294901760
        %v634 = vsub.f32 %v314, %v633
        %v635 = vand.u32 %v634, 4294901760
        %v636 = vsub.f32 %v634, %v635
        %v637 = vand.u32 %v636, 4294901760
        %638 = vmatpush1.msra.mxu0 %v637
        %639 = vmatprep.subr.mxu0 0.0
        %v640 = vand.u32 %v315, 4294901760
        %v641 = vsub.f32 %v315, %v640
        %v642 = vand.u32 %v641, 4294901760
        %v643 = vsub.f32 %v641, %v642
        %v644 = vand.u32 %v643, 4294901760
        %645 = vmatpush1.msra.mxu0 %v644
        %646 = vmatprep.subr.mxu0 0.0
        %v647 = vand.u32 %v316, 4294901760
        %v648 = vsub.f32 %v316, %v647
        %v649 = vand.u32 %v648, 4294901760
        %v650 = vsub.f32 %v648, %v649
        %v651 = vand.u32 %v650, 4294901760
        %652 = vmatpush1.msra.mxu0 %v651
        %653 = vmatprep.subr.mxu0 0.0
        %v654 = vand.u32 %v317, 4294901760
        %v655 = vsub.f32 %v317, %v654
        %v656 = vand.u32 %v655, 4294901760
        %v657 = vsub.f32 %v655, %v656
        %v658 = vand.u32 %v657, 4294901760
        %659 = vmatpush1.msra.mxu0 %v658
        %660 = vmatprep.subr.mxu0 0.0
        %v661 = vand.u32 %v318, 4294901760
        %v662 = vsub.f32 %v318, %v661
        %v663 = vand.u32 %v662, 4294901760
        %v664 = vsub.f32 %v662, %v663
        %v665 = vand.u32 %v664, 4294901760
        %666 = vmatpush1.msra.mxu0 %v665
        %667 = vmatprep.subr.mxu0 0.0
        %v668 = vand.u32 %v319, 4294901760
        %v669 = vsub.f32 %v319, %v668
        %v670 = vand.u32 %v669, 4294901760
        %v671 = vsub.f32 %v669, %v670
        %v672 = vand.u32 %v671, 4294901760
        %673 = vmatpush1.msra.mxu0 %v672
        %674 = vmatprep.subr.mxu0 0.0
        %v675 = vand.u32 %v320, 4294901760
        %v676 = vsub.f32 %v320, %v675
        %v677 = vand.u32 %v676, 4294901760
        %v678 = vsub.f32 %v676, %v677
        %v679 = vand.u32 %v678, 4294901760
        %680 = vmatpush1.msra.mxu0 %v679
        %681 = vmatprep.subr.mxu0 0.0
        %v682 = vand.u32 %v321, 4294901760
        %v683 = vsub.f32 %v321, %v682
        %v684 = vand.u32 %v683, 4294901760
        %v685 = vsub.f32 %v683, %v684
        %v686 = vand.u32 %v685, 4294901760
        %687 = vmatpush1.msra.mxu0 %v686
        %688 = vmatprep.subr.mxu0 0.0
        %v689 = vand.u32 %v322, 4294901760
        %v690 = vsub.f32 %v322, %v689
        %v691 = vand.u32 %v690, 4294901760
        %v692 = vsub.f32 %v690, %v691
        %v693 = vand.u32 %v692, 4294901760
        %694 = vmatpush1.msra.mxu0 %v693
        %695 = vmatprep.subr.mxu0 0.0
        %v696 = vand.u32 %v323, 4294901760
        %v697 = vsub.f32 %v323, %v696
        %v698 = vand.u32 %v697, 4294901760
        %v699 = vsub.f32 %v697, %v698
        %v700 = vand.u32 %v699, 4294901760
        %701 = vmatpush1.msra.mxu0 %v700
        %702 = vmatprep.subr.mxu0 0.0
        %v703 = vand.u32 %v324, 4294901760
        %v704 = vsub.f32 %v324, %v703
        %v705 = vand.u32 %v704, 4294901760
        %v706 = vsub.f32 %v704, %v705
        %v707 = vand.u32 %v706, 4294901760
        %708 = vmatpush1.msra.mxu0 %v707
        %709 = vmatprep.subr.mxu0 0.0
        %v710 = vand.u32 %v325, 4294901760
        %v711 = vsub.f32 %v325, %v710
        %v712 = vand.u32 %v711, 4294901760
        %v713 = vsub.f32 %v711, %v712
        %v714 = vand.u32 %v713, 4294901760
        %715 = vmatpush1.msra.mxu0 %v714
        %716 = vmatprep.subr.mxu0 0.0
        %v717 = vand.u32 %v326, 4294901760
        %v718 = vsub.f32 %v326, %v717
        %v719 = vand.u32 %v718, 4294901760
        %v720 = vsub.f32 %v718, %v719
        %v721 = vand.u32 %v720, 4294901760
        %722 = vmatpush1.msra.mxu0 %v721
        %723 = vmatprep.subr.mxu0 0.0
        %v724 = vand.u32 %v327, 4294901760
        %v725 = vsub.f32 %v327, %v724
        %v726 = vand.u32 %v725, 4294901760
        %v727 = vsub.f32 %v725, %v726
        %v728 = vand.u32 %v727, 4294901760
        %729 = vmatpush1.msra.mxu0 %v728
        %730 = vmatprep.subr.mxu0 0.0
        %v731 = vand.u32 %v328, 4294901760
        %v732 = vsub.f32 %v328, %v731
        %v733 = vand.u32 %v732, 4294901760
        %v734 = vsub.f32 %v732, %v733
        %v735 = vand.u32 %v734, 4294901760
        %736 = vmatpush1.msra.mxu0 %v735
        %737 = vmatprep.subr.mxu0 0.0
        %v738 = vand.u32 %v329, 4294901760
        %v739 = vsub.f32 %v329, %v738
        %v740 = vand.u32 %v739, 4294901760
        %v741 = vsub.f32 %v739, %v740
        %v742 = vand.u32 %v741, 4294901760
        %743 = vmatpush1.msra.mxu0 %v742
        %744 = vmatprep.subr.mxu0 0.0
        %v745 = vand.u32 %v330, 4294901760
        %v746 = vsub.f32 %v330, %v745
        %v747 = vand.u32 %v746, 4294901760
        %v748 = vsub.f32 %v746, %v747
        %v749 = vand.u32 %v748, 4294901760
        %750 = vmatpush1.msra.mxu0 %v749
        %751 = vmatprep.subr.mxu0 0.0
        %v752 = vand.u32 %v331, 4294901760
        %v753 = vsub.f32 %v331, %v752
        %v754 = vand.u32 %v753, 4294901760
        %v755 = vsub.f32 %v753, %v754
        %v756 = vand.u32 %v755, 4294901760
        %757 = vmatpush1.msra.mxu0 %v756
        %758 = vmatprep.subr.mxu0 0.0
        %v759 = vand.u32 %v332, 4294901760
        %v760 = vsub.f32 %v332, %v759
        %v761 = vand.u32 %v760, 4294901760
        %v762 = vsub.f32 %v760, %v761
        %v763 = vand.u32 %v762, 4294901760
        %764 = vmatpush1.msra.mxu0 %v763
        %765 = vmatprep.subr.mxu0 0.0
        %v766 = vand.u32 %v333, 4294901760
        %v767 = vsub.f32 %v333, %v766
        %v768 = vand.u32 %v767, 4294901760
        %v769 = vsub.f32 %v767, %v768
        %v770 = vand.u32 %v769, 4294901760
        %771 = vmatpush1.msra.mxu0 %v770
        %772 = vmatprep.subr.mxu0 0.0
        %v773 = vand.u32 %v334, 4294901760
        %v774 = vsub.f32 %v334, %v773
        %v775 = vand.u32 %v774, 4294901760
        %v776 = vsub.f32 %v774, %v775
        %v777 = vand.u32 %v776, 4294901760
        %778 = vmatpush1.msra.mxu0 %v777
        %779 = vmatprep.subr.mxu0 0.0
        %v780 = vand.u32 %v335, 4294901760
        %v781 = vsub.f32 %v335, %v780
        %v782 = vand.u32 %v781, 4294901760
        %v783 = vsub.f32 %v781, %v782
        %v784 = vand.u32 %v783, 4294901760
        %785 = vmatpush1.msra.mxu0 %v784
        %786 = vmatprep.subr.mxu0 0.0
        %v787 = vand.u32 %v336, 4294901760
        %v788 = vsub.f32 %v336, %v787
        %v789 = vand.u32 %v788, 4294901760
        %v790 = vsub.f32 %v788, %v789
        %v791 = vand.u32 %v790, 4294901760
        %792 = vmatpush1.msra.mxu0 %v791
        %793 = vmatprep.subr.mxu0 0.0
        %v794 = vand.u32 %v337, 4294901760
        %v795 = vsub.f32 %v337, %v794
        %v796 = vand.u32 %v795, 4294901760
        %v797 = vsub.f32 %v795, %v796
        %v798 = vand.u32 %v797, 4294901760
        %799 = vmatpush1.msra.mxu0 %v798
        %800 = vmatprep.subr.mxu0 0.0
        %v801 = vand.u32 %v338, 4294901760
        %v802 = vsub.f32 %v338, %v801
        %v803 = vand.u32 %v802, 4294901760
        %v804 = vsub.f32 %v802, %v803
        %v805 = vand.u32 %v804, 4294901760
        %806 = vmatpush1.msra.mxu0 %v805
        %807 = vmatprep.subr.mxu0 0.0
        %v808 = vand.u32 %v339, 4294901760
        %v809 = vsub.f32 %v339, %v808
        %v810 = vand.u32 %v809, 4294901760
        %v811 = vsub.f32 %v809, %v810
        %v812 = vand.u32 %v811, 4294901760
        %813 = vmatpush1.msra.mxu0 %v812
        %814 = vmatprep.subr.mxu0 0.0
        %v815 = vand.u32 %v340, 4294901760
        %v816 = vsub.f32 %v340, %v815
        %v817 = vand.u32 %v816, 4294901760
        %v818 = vsub.f32 %v816, %v817
        %v819 = vand.u32 %v818, 4294901760
        %820 = vmatpush1.msra.mxu0 %v819
        %v821 = vand.u32 %v278, 4294901760
        %822 = vmatprep.mubr.f32.mxu0 %v821
        %v823 = vand.u32 %v277, 4294901760
        %824 = vmatmul.mubr.f32.gmra.mrb[0].mxu0 %v823
        %v825 = vpop.f32.mrb[0].mxu0
        %v826 = vadd.f32 %v489, %v825
        %v827 = vpop.f32.mrb[0].mxu0
        %v828 = vand.u32 %v282, 4294901760
        %829 = vmatprep.mubr.f32.mxu0 %v828
        %v830 = vand.u32 %v281, 4294901760
        %831 = vmatmul.mubr.f32.gmra.mrb[0].mxu0 %v830
        %v832 = vpop.f32.mrb[0].mxu0
        %v833 = vadd.f32 %v504, %v832
        %v834 = vpop.f32.mrb[0].mxu0
        %v835 = vand.u32 %v286, 4294901760
        %836 = vmatprep.mubr.f32.mxu0 %v835
        %v837 = vand.u32 %v285, 4294901760
        %838 = vmatmul.mubr.f32.gmra.mrb[0].mxu0 %v837
        %v839 = vpop.f32.mrb[0].mxu0
        %v840 = vadd.f32 %v519, %v839
        %v841 = vpop.f32.mrb[0].mxu0
        %v842 = vand.u32 %v290, 4294901760
        %843 = vmatprep.mubr.f32.mxu0 %v842
        %v844 = vand.u32 %v289, 4294901760
        %845 = vmatmul.mubr.f32.gmra.mrb[0].mxu0 %v844
        %v846 = vpop.f32.mrb[0].mxu0
        %v847 = vadd.f32 %v534, %v846
        %v848 = vpop.f32.mrb[0].mxu0
        %v849 = vand.u32 %v294, 4294901760
        %850 = vmatprep.mubr.f32.mxu0 %v849
        %v851 = vand.u32 %v293, 4294901760
        %852 = vmatmul.mubr.f32.gmra.mrb[0].mxu0 %v851
        %v853 = vpop.f32.mrb[0].mxu0
        %v854 = vadd.f32 %v549, %v853
        %v855 = vpop.f32.mrb[0].mxu0
        %v856 = vand.u32 %v298, 4294901760
        %857 = vmatprep.mubr.f32.mxu0 %v856
        %v858 = vand.u32 %v297, 4294901760
        %859 = vmatmul.mubr.f32.gmra.mrb[0].mxu0 %v858
        %v860 = vpop.f32.mrb[0].mxu0
        %v861 = vadd.f32 %v564, %v860
        %v862 = vpop.f32.mrb[0].mxu0
        %v863 = vand.u32 %v302, 4294901760
        %864 = vmatprep.mubr.f32.mxu0 %v863
        %v865 = vand.u32 %v301, 4294901760
        %866 = vmatmul.mubr.f32.gmra.mrb[0].mxu0 %v865
        %v867 = vpop.f32.mrb[0].mxu0
        %v868 = vadd.f32 %v579, %v867
        %v869 = vpop.f32.mrb[0].mxu0
        %v870 = vand.u32 %v306, 4294901760
        %871 = vmatprep.mubr.f32.mxu0 %v870
        %v872 = vand.u32 %v305, 4294901760
        %873 = vmatmul.mubr.f32.gmra.mrb[0].mxu0 %v872
        %v874 = vpop.f32.mrb[0].mxu0
        %v875 = vadd.f32 %v594, %v874
        %v876 = vpop.f32.mrb[0].mxu0
        %877 = vdwg.mxu0
        %878 = vmatprep.subr.mxu0 0.0
        %v879 = vand.u32 %v309, 4294901760
        %v880 = vsub.f32 %v309, %v879
        %881 = vmatpush1.msra.mxu0 %v880
        %882 = vmatprep.subr.mxu0 0.0
        %v883 = vand.u32 %v310, 4294901760
        %v884 = vsub.f32 %v310, %v883
        %885 = vmatpush1.msra.mxu0 %v884
        %886 = vmatprep.subr.mxu0 0.0
        %v887 = vand.u32 %v311, 4294901760
        %v888 = vsub.f32 %v311, %v887
        %889 = vmatpush1.msra.mxu0 %v888
        %890 = vmatprep.subr.mxu0 0.0
        %v891 = vand.u32 %v312, 4294901760
        %v892 = vsub.f32 %v312, %v891
        %893 = vmatpush1.msra.mxu0 %v892
        %894 = vmatprep.subr.mxu0 0.0
        %v895 = vand.u32 %v313, 4294901760
        %v896 = vsub.f32 %v313, %v895
        %897 = vmatpush1.msra.mxu0 %v896
        %898 = vmatprep.subr.mxu0 0.0
        %v899 = vand.u32 %v314, 4294901760
        %v900 = vsub.f32 %v314, %v899
        %901 = vmatpush1.msra.mxu0 %v900
        %902 = vmatprep.subr.mxu0 0.0
        %v903 = vand.u32 %v315, 4294901760
        %v904 = vsub.f32 %v315, %v903
        %905 = vmatpush1.msra.mxu0 %v904
        %906 = vmatprep.subr.mxu0 0.0
        %v907 = vand.u32 %v316, 4294901760
        %v908 = vsub.f32 %v316, %v907
        %909 = vmatpush1.msra.mxu0 %v908
        %910 = vmatprep.subr.mxu0 0.0
        %v911 = vand.u32 %v317, 4294901760
        %v912 = vsub.f32 %v317, %v911
        %913 = vmatpush1.msra.mxu0 %v912
        %914 = vmatprep.subr.mxu0 0.0
        %v915 = vand.u32 %v318, 4294901760
        %v916 = vsub.f32 %v318, %v915
        %917 = vmatpush1.msra.mxu0 %v916
        %918 = vmatprep.subr.mxu0 0.0
        %v919 = vand.u32 %v319, 4294901760
        %v920 = vsub.f32 %v319, %v919
        %921 = vmatpush1.msra.mxu0 %v920
        %922 = vmatprep.subr.mxu0 0.0
        %v923 = vand.u32 %v320, 4294901760
        %v924 = vsub.f32 %v320, %v923
        %925 = vmatpush1.msra.mxu0 %v924
        %926 = vmatprep.subr.mxu0 0.0
        %v927 = vand.u32 %v321, 4294901760
        %v928 = vsub.f32 %v321, %v927
        %929 = vmatpush1.msra.mxu0 %v928
        %930 = vmatprep.subr.mxu0 0.0
        %v931 = vand.u32 %v322, 4294901760
        %v932 = vsub.f32 %v322, %v931
        %933 = vmatpush1.msra.mxu0 %v932
        %934 = vmatprep.subr.mxu0 0.0
        %v935 = vand.u32 %v323, 4294901760
        %v936 = vsub.f32 %v323, %v935
        %937 = vmatpush1.msra.mxu0 %v936
        %938 = vmatprep.subr.mxu0 0.0
        %v939 = vand.u32 %v324, 4294901760
        %v940 = vsub.f32 %v324, %v939
        %941 = vmatpush1.msra.mxu0 %v940
        %942 = vmatprep.subr.mxu0 0.0
        %v943 = vand.u32 %v325, 4294901760
        %v944 = vsub.f32 %v325, %v943
        %945 = vmatpush1.msra.mxu0 %v944
        %946 = vmatprep.subr.mxu0 0.0
        %v947 = vand.u32 %v326, 4294901760
        %v948 = vsub.f32 %v326, %v947
        %949 = vmatpush1.msra.mxu0 %v948
        %950 = vmatprep.subr.mxu0 0.0
        %v951 = vand.u32 %v327, 4294901760
        %v952 = vsub.f32 %v327, %v951
        %953 = vmatpush1.msra.mxu0 %v952
        %954 = vmatprep.subr.mxu0 0.0
        %v955 = vand.u32 %v328, 4294901760
        %v956 = vsub.f32 %v328, %v955
        %957 = vmatpush1.msra.mxu0 %v956
        %958 = vmatprep.subr.mxu0 0.0
        %v959 = vand.u32 %v329, 4294901760
        %v960 = vsub.f32 %v329, %v959
        %961 = vmatpush1.msra.mxu0 %v960
        %962 = vmatprep.subr.mxu0 0.0
        %v963 = vand.u32 %v330, 4294901760
        %v964 = vsub.f32 %v330, %v963
        %965 = vmatpush1.msra.mxu0 %v964
        %966 = vmatprep.subr.mxu0 0.0
        %v967 = vand.u32 %v331, 4294901760
        %v968 = vsub.f32 %v331, %v967
        %969 = vmatpush1.msra.mxu0 %v968
        %970 = vmatprep.subr.mxu0 0.0
        %v971 = vand.u32 %v332, 4294901760
        %v972 = vsub.f32 %v332, %v971
        %973 = vmatpush1.msra.mxu0 %v972
        %974 = vmatprep.subr.mxu0 0.0
        %v975 = vand.u32 %v333, 4294901760
        %v976 = vsub.f32 %v333, %v975
        %977 = vmatpush1.msra.mxu0 %v976
        %978 = vmatprep.subr.mxu0 0.0
        %v979 = vand.u32 %v334, 4294901760
        %v980 = vsub.f32 %v334, %v979
        %981 = vmatpush1.msra.mxu0 %v980
        %982 = vmatprep.subr.mxu0 0.0
        %v983 = vand.u32 %v335, 4294901760
        %v984 = vsub.f32 %v335, %v983
        %985 = vmatpush1.msra.mxu0 %v984
        %986 = vmatprep.subr.mxu0 0.0
        %v987 = vand.u32 %v336, 4294901760
        %v988 = vsub.f32 %v336, %v987
        %989 = vmatpush1.msra.mxu0 %v988
        %990 = vmatprep.subr.mxu0 0.0
        %v991 = vand.u32 %v337, 4294901760
        %v992 = vsub.f32 %v337, %v991
        %993 = vmatpush1.msra.mxu0 %v992
        %994 = vmatprep.subr.mxu0 0.0
        %v995 = vand.u32 %v338, 4294901760
        %v996 = vsub.f32 %v338, %v995
        %997 = vmatpush1.msra.mxu0 %v996
        %998 = vmatprep.subr.mxu0 0.0
        %v999 = vand.u32 %v339, 4294901760
        %v1000 = vsub.f32 %v339, %v999
        %1001 = vmatpush1.msra.mxu0 %v1000
        %1002 = vmatprep.subr.mxu0 0.0
        %v1003 = vand.u32 %v340, 4294901760
        %v1004 = vsub.f32 %v340, %v1003
        %1005 = vmatpush1.msra.mxu0 %v1004
        %v1006 = vand.u32 %v278, 4294901760
        %v1007 = vsub.f32 %v278, %v1006
        %1008 = vmatprep.mubr.f32.mxu0 %v1007
        %v1009 = vand.u32 %v277, 4294901760
        %v1010 = vsub.f32 %v277, %v1009
        %1011 = vmatmul.mubr.f32.gmra.mrb[0].mxu0 %v1010
        %v1012 = vpop.f32.mrb[0].mxu0
        %v1013 = vadd.f32 %v826, %v1012
        %v1014 = vpop.f32.mrb[0].mxu0
        %v1015 = vand.u32 %v282, 4294901760
        %v1016 = vsub.f32 %v282, %v1015
        %1017 = vmatprep.mubr.f32.mxu0 %v1016
        %v1018 = vand.u32 %v281, 4294901760
        %v1019 = vsub.f32 %v281, %v1018
        %1020 = vmatmul.mubr.f32.gmra.mrb[0].mxu0 %v1019
        %v1021 = vpop.f32.mrb[0].mxu0
        %v1022 = vadd.f32 %v833, %v1021
        %v1023 = vpop.f32.mrb[0].mxu0
        %v1024 = vand.u32 %v286, 4294901760
        %v1025 = vsub.f32 %v286, %v1024
        %1026 = vmatprep.mubr.f32.mxu0 %v1025
        %v1027 = vand.u32 %v285, 4294901760
        %v1028 = vsub.f32 %v285, %v1027
        %1029 = vmatmul.mubr.f32.gmra.mrb[0].mxu0 %v1028
        %v1030 = vpop.f32.mrb[0].mxu0
        %v1031 = vadd.f32 %v840, %v1030
        %v1032 = vpop.f32.mrb[0].mxu0
        %v1033 = vand.u32 %v290, 4294901760
        %v1034 = vsub.f32 %v290, %v1033
        %1035 = vmatprep.mubr.f32.mxu0 %v1034
        %v1036 = vand.u32 %v289, 4294901760
        %v1037 = vsub.f32 %v289, %v1036
        %1038 = vmatmul.mubr.f32.gmra.mrb[0].mxu0 %v1037
        %v1039 = vpop.f32.mrb[0].mxu0
        %v1040 = vadd.f32 %v847, %v1039
        %v1041 = vpop.f32.mrb[0].mxu0
        %v1042 = vand.u32 %v294, 4294901760
        %v1043 = vsub.f32 %v294, %v1042
        %1044 = vmatprep.mubr.f32.mxu0 %v1043
        %v1045 = vand.u32 %v293, 4294901760
        %v1046 = vsub.f32 %v293, %v1045
        %1047 = vmatmul.mubr.f32.gmra.mrb[0].mxu0 %v1046
        %v1048 = vpop.f32.mrb[0].mxu0
        %v1049 = vadd.f32 %v854, %v1048
        %v1050 = vpop.f32.mrb[0].mxu0
        %v1051 = vand.u32 %v298, 4294901760
        %v1052 = vsub.f32 %v298, %v1051
        %1053 = vmatprep.mubr.f32.mxu0 %v1052
        %v1054 = vand.u32 %v297, 4294901760
        %v1055 = vsub.f32 %v297, %v1054
        %1056 = vmatmul.mubr.f32.gmra.mrb[0].mxu0 %v1055
        %v1057 = vpop.f32.mrb[0].mxu0
        %v1058 = vadd.f32 %v861, %v1057
        %v1059 = vpop.f32.mrb[0].mxu0
        %v1060 = vand.u32 %v302, 4294901760
        %v1061 = vsub.f32 %v302, %v1060
        %1062 = vmatprep.mubr.f32.mxu0 %v1061
        %v1063 = vand.u32 %v301, 4294901760
        %v1064 = vsub.f32 %v301, %v1063
        %1065 = vmatmul.mubr.f32.gmra.mrb[0].mxu0 %v1064
        %v1066 = vpop.f32.mrb[0].mxu0
        %v1067 = vadd.f32 %v868, %v1066
        %v1068 = vpop.f32.mrb[0].mxu0
        %v1069 = vand.u32 %v306, 4294901760
        %v1070 = vsub.f32 %v306, %v1069
        %1071 = vmatprep.mubr.f32.mxu0 %v1070
        %v1072 = vand.u32 %v305, 4294901760
        %v1073 = vsub.f32 %v305, %v1072
        %1074 = vmatmul.mubr.f32.gmra.mrb[0].mxu0 %v1073
        %v1075 = vpop.f32.mrb[0].mxu0
        %v1076 = vadd.f32 %v875, %v1075
        %v1077 = vpop.f32.mrb[0].mxu0
        %1078 = vdwg.mxu0
        %1079 = vmatprep.subr.mxu0 0.0
        %v1080 = vand.u32 %v309, 4294901760
        %1081 = vmatpush1.msra.mxu0 %v1080
        %1082 = vmatprep.subr.mxu0 0.0
        %v1083 = vand.u32 %v310, 4294901760
        %1084 = vmatpush1.msra.mxu0 %v1083
        %1085 = vmatprep.subr.mxu0 0.0
        %v1086 = vand.u32 %v311, 4294901760
        %1087 = vmatpush1.msra.mxu0 %v1086
        %1088 = vmatprep.subr.mxu0 0.0
        %v1089 = vand.u32 %v312, 4294901760
        %1090 = vmatpush1.msra.mxu0 %v1089
        %1091 = vmatprep.subr.mxu0 0.0
        %v1092 = vand.u32 %v313, 4294901760
        %1093 = vmatpush1.msra.mxu0 %v1092
        %1094 = vmatprep.subr.mxu0 0.0
        %v1095 = vand.u32 %v314, 4294901760
        %1096 = vmatpush1.msra.mxu0 %v1095
        %1097 = vmatprep.subr.mxu0 0.0
        %v1098 = vand.u32 %v315, 4294901760
        %1099 = vmatpush1.msra.mxu0 %v1098
        %1100 = vmatprep.subr.mxu0 0.0
        %v1101 = vand.u32 %v316, 4294901760
        %1102 = vmatpush1.msra.mxu0 %v1101
        %1103 = vmatprep.subr.mxu0 0.0
        %v1104 = vand.u32 %v317, 4294901760
        %1105 = vmatpush1.msra.mxu0 %v1104
        %1106 = vmatprep.subr.mxu0 0.0
        %v1107 = vand.u32 %v318, 4294901760
        %1108 = vmatpush1.msra.mxu0 %v1107
        %1109 = vmatprep.subr.mxu0 0.0
        %v1110 = vand.u32 %v319, 4294901760
        %1111 = vmatpush1.msra.mxu0 %v1110
        %1112 = vmatprep.subr.mxu0 0.0
        %v1113 = vand.u32 %v320, 4294901760
        %1114 = vmatpush1.msra.mxu0 %v1113
        %1115 = vmatprep.subr.mxu0 0.0
        %v1116 = vand.u32 %v321, 4294901760
        %1117 = vmatpush1.msra.mxu0 %v1116
        %1118 = vmatprep.subr.mxu0 0.0
        %v1119 = vand.u32 %v322, 4294901760
        %1120 = vmatpush1.msra.mxu0 %v1119
        %1121 = vmatprep.subr.mxu0 0.0
        %v1122 = vand.u32 %v323, 4294901760
        %1123 = vmatpush1.msra.mxu0 %v1122
        %1124 = vmatprep.subr.mxu0 0.0
        %v1125 = vand.u32 %v324, 4294901760
        %1126 = vmatpush1.msra.mxu0 %v1125
        %1127 = vmatprep.subr.mxu0 0.0
        %v1128 = vand.u32 %v325, 4294901760
        %1129 = vmatpush1.msra.mxu0 %v1128
        %1130 = vmatprep.subr.mxu0 0.0
        %v1131 = vand.u32 %v326, 4294901760
        %1132 = vmatpush1.msra.mxu0 %v1131
        %1133 = vmatprep.subr.mxu0 0.0
        %v1134 = vand.u32 %v327, 4294901760
        %1135 = vmatpush1.msra.mxu0 %v1134
        %1136 = vmatprep.subr.mxu0 0.0
        %v1137 = vand.u32 %v328, 4294901760
        %1138 = vmatpush1.msra.mxu0 %v1137
        %1139 = vmatprep.subr.mxu0 0.0
        %v1140 = vand.u32 %v329, 4294901760
        %1141 = vmatpush1.msra.mxu0 %v1140
        %1142 = vmatprep.subr.mxu0 0.0
        %v1143 = vand.u32 %v330, 4294901760
        %1144 = vmatpush1.msra.mxu0 %v1143
        %1145 = vmatprep.subr.mxu0 0.0
        %v1146 = vand.u32 %v331, 4294901760
        %1147 = vmatpush1.msra.mxu0 %v1146
        %1148 = vmatprep.subr.mxu0 0.0
        %v1149 = vand.u32 %v332, 4294901760
        %1150 = vmatpush1.msra.mxu0 %v1149
        %1151 = vmatprep.subr.mxu0 0.0
        %v1152 = vand.u32 %v333, 4294901760
        %1153 = vmatpush1.msra.mxu0 %v1152
        %1154 = vmatprep.subr.mxu0 0.0
        %v1155 = vand.u32 %v334, 4294901760
        %1156 = vmatpush1.msra.mxu0 %v1155
        %1157 = vmatprep.subr.mxu0 0.0
        %v1158 = vand.u32 %v335, 4294901760
        %1159 = vmatpush1.msra.mxu0 %v1158
        %1160 = vmatprep.subr.mxu0 0.0
        %v1161 = vand.u32 %v336, 4294901760
        %1162 = vmatpush1.msra.mxu0 %v1161
        %1163 = vmatprep.subr.mxu0 0.0
        %v1164 = vand.u32 %v337, 4294901760
        %1165 = vmatpush1.msra.mxu0 %v1164
        %1166 = vmatprep.subr.mxu0 0.0
        %v1167 = vand.u32 %v338, 4294901760
        %1168 = vmatpush1.msra.mxu0 %v1167
        %1169 = vmatprep.subr.mxu0 0.0
        %v1170 = vand.u32 %v339, 4294901760
        %1171 = vmatpush1.msra.mxu0 %v1170
        %1172 = vmatprep.subr.mxu0 0.0
        %v1173 = vand.u32 %v340, 4294901760
        %1174 = vmatpush1.msra.mxu0 %v1173
        %v1175 = vand.u32 %v278, 4294901760
        %v1176 = vsub.f32 %v278, %v1175
        %v1177 = vand.u32 %v1176, 4294901760
        %1178 = vmatprep.mubr.f32.mxu0 %v1177
        %v1179 = vand.u32 %v277, 4294901760
        %v1180 = vsub.f32 %v277, %v1179
        %v1181 = vand.u32 %v1180, 4294901760
        %1182 = vmatmul.mubr.f32.gmra.mrb[0].mxu0 %v1181
        %v1183 = vpop.f32.mrb[0].mxu0
        %v1184 = vadd.f32 %v1013, %v1183
        %v1185 = vpop.f32.mrb[0].mxu0
        %v1186 = vand.u32 %v282, 4294901760
        %v1187 = vsub.f32 %v282, %v1186
        %v1188 = vand.u32 %v1187, 4294901760
        %1189 = vmatprep.mubr.f32.mxu0 %v1188
        %v1190 = vand.u32 %v281, 4294901760
        %v1191 = vsub.f32 %v281, %v1190
        %v1192 = vand.u32 %v1191, 4294901760
        %1193 = vmatmul.mubr.f32.gmra.mrb[0].mxu0 %v1192
        %v1194 = vpop.f32.mrb[0].mxu0
        %v1195 = vadd.f32 %v1022, %v1194
        %v1196 = vpop.f32.mrb[0].mxu0
        %v1197 = vand.u32 %v286, 4294901760
        %v1198 = vsub.f32 %v286, %v1197
        %v1199 = vand.u32 %v1198, 4294901760
        %1200 = vmatprep.mubr.f32.mxu0 %v1199
        %v1201 = vand.u32 %v285, 4294901760
        %v1202 = vsub.f32 %v285, %v1201
        %v1203 = vand.u32 %v1202, 4294901760
        %1204 = vmatmul.mubr.f32.gmra.mrb[0].mxu0 %v1203
        %v1205 = vpop.f32.mrb[0].mxu0
        %v1206 = vadd.f32 %v1031, %v1205
        %v1207 = vpop.f32.mrb[0].mxu0
        %v1208 = vand.u32 %v290, 4294901760
        %v1209 = vsub.f32 %v290, %v1208
        %v1210 = vand.u32 %v1209, 4294901760
        %1211 = vmatprep.mubr.f32.mxu0 %v1210
        %v1212 = vand.u32 %v289, 4294901760
        %v1213 = vsub.f32 %v289, %v1212
        %v1214 = vand.u32 %v1213, 4294901760
        %1215 = vmatmul.mubr.f32.gmra.mrb[0].mxu0 %v1214
        %v1216 = vpop.f32.mrb[0].mxu0
        %v1217 = vadd.f32 %v1040, %v1216
        %v1218 = vpop.f32.mrb[0].mxu0
        %v1219 = vand.u32 %v294, 4294901760
        %v1220 = vsub.f32 %v294, %v1219
        %v1221 = vand.u32 %v1220, 4294901760
        %1222 = vmatprep.mubr.f32.mxu0 %v1221
        %v1223 = vand.u32 %v293, 4294901760
        %v1224 = vsub.f32 %v293, %v1223
        %v1225 = vand.u32 %v1224, 4294901760
        %1226 = vmatmul.mubr.f32.gmra.mrb[0].mxu0 %v1225
        %v1227 = vpop.f32.mrb[0].mxu0
        %v1228 = vadd.f32 %v1049, %v1227
        %v1229 = vpop.f32.mrb[0].mxu0
        %v1230 = vand.u32 %v298, 4294901760
        %v1231 = vsub.f32 %v298, %v1230
        %v1232 = vand.u32 %v1231, 4294901760
        %1233 = vmatprep.mubr.f32.mxu0 %v1232
        %v1234 = vand.u32 %v297, 4294901760
        %v1235 = vsub.f32 %v297, %v1234
        %v1236 = vand.u32 %v1235, 4294901760
        %1237 = vmatmul.mubr.f32.gmra.mrb[0].mxu0 %v1236
        %v1238 = vpop.f32.mrb[0].mxu0
        %v1239 = vadd.f32 %v1058, %v1238
        %v1240 = vpop.f32.mrb[0].mxu0
        %v1241 = vand.u32 %v302, 4294901760
        %v1242 = vsub.f32 %v302, %v1241
        %v1243 = vand.u32 %v1242, 4294901760
        %1244 = vmatprep.mubr.f32.mxu0 %v1243
        %v1245 = vand.u32 %v301, 4294901760
        %v1246 = vsub.f32 %v301, %v1245
        %v1247 = vand.u32 %v1246, 4294901760
        %1248 = vmatmul.mubr.f32.gmra.mrb[0].mxu0 %v1247
        %v1249 = vpop.f32.mrb[0].mxu0
        %v1250 = vadd.f32 %v1067, %v1249
        %v1251 = vpop.f32.mrb[0].mxu0
        %v1252 = vand.u32 %v306, 4294901760
        %v1253 = vsub.f32 %v306, %v1252
        %v1254 = vand.u32 %v1253, 4294901760
        %1255 = vmatprep.mubr.f32.mxu0 %v1254
        %v1256 = vand.u32 %v305, 4294901760
        %v1257 = vsub.f32 %v305, %v1256
        %v1258 = vand.u32 %v1257, 4294901760
        %1259 = vmatmul.mubr.f32.gmra.mrb[0].mxu0 %v1258
        %v1260 = vpop.f32.mrb[0].mxu0
        %v1261 = vadd.f32 %v1076, %v1260
        %v1262 = vpop.f32.mrb[0].mxu0
        %1263 = vdwg.mxu0
        %1264 = vmatprep.subr.mxu0 0.0
        %v1265 = vand.u32 %v309, 4294901760
        %v1266 = vsub.f32 %v309, %v1265
        %v1267 = vand.u32 %v1266, 4294901760
        %1268 = vmatpush1.msra.mxu0 %v1267
        %1269 = vmatprep.subr.mxu0 0.0
        %v1270 = vand.u32 %v310, 4294901760
        %v1271 = vsub.f32 %v310, %v1270
        %v1272 = vand.u32 %v1271, 4294901760
        %1273 = vmatpush1.msra.mxu0 %v1272
        %1274 = vmatprep.subr.mxu0 0.0
        %v1275 = vand.u32 %v311, 4294901760
        %v1276 = vsub.f32 %v311, %v1275
        %v1277 = vand.u32 %v1276, 4294901760
        %1278 = vmatpush1.msra.mxu0 %v1277
        %1279 = vmatprep.subr.mxu0 0.0
        %v1280 = vand.u32 %v312, 4294901760
        %v1281 = vsub.f32 %v312, %v1280
        %v1282 = vand.u32 %v1281, 4294901760
        %1283 = vmatpush1.msra.mxu0 %v1282
        %1284 = vmatprep.subr.mxu0 0.0
        %v1285 = vand.u32 %v313, 4294901760
        %v1286 = vsub.f32 %v313, %v1285
        %v1287 = vand.u32 %v1286, 4294901760
        %1288 = vmatpush1.msra.mxu0 %v1287
        %1289 = vmatprep.subr.mxu0 0.0
        %v1290 = vand.u32 %v314, 4294901760
        %v1291 = vsub.f32 %v314, %v1290
        %v1292 = vand.u32 %v1291, 4294901760
        %1293 = vmatpush1.msra.mxu0 %v1292
        %1294 = vmatprep.subr.mxu0 0.0
        %v1295 = vand.u32 %v315, 4294901760
        %v1296 = vsub.f32 %v315, %v1295
        %v1297 = vand.u32 %v1296, 4294901760
        %1298 = vmatpush1.msra.mxu0 %v1297
        %1299 = vmatprep.subr.mxu0 0.0
        %v1300 = vand.u32 %v316, 4294901760
        %v1301 = vsub.f32 %v316, %v1300
        %v1302 = vand.u32 %v1301, 4294901760
        %1303 = vmatpush1.msra.mxu0 %v1302
        %1304 = vmatprep.subr.mxu0 0.0
        %v1305 = vand.u32 %v317, 4294901760
        %v1306 = vsub.f32 %v317, %v1305
        %v1307 = vand.u32 %v1306, 4294901760
        %1308 = vmatpush1.msra.mxu0 %v1307
        %1309 = vmatprep.subr.mxu0 0.0
        %v1310 = vand.u32 %v318, 4294901760
        %v1311 = vsub.f32 %v318, %v1310
        %v1312 = vand.u32 %v1311, 4294901760
        %1313 = vmatpush1.msra.mxu0 %v1312
        %1314 = vmatprep.subr.mxu0 0.0
        %v1315 = vand.u32 %v319, 4294901760
        %v1316 = vsub.f32 %v319, %v1315
        %v1317 = vand.u32 %v1316, 4294901760
        %1318 = vmatpush1.msra.mxu0 %v1317
        %1319 = vmatprep.subr.mxu0 0.0
        %v1320 = vand.u32 %v320, 4294901760
        %v1321 = vsub.f32 %v320, %v1320
        %v1322 = vand.u32 %v1321, 4294901760
        %1323 = vmatpush1.msra.mxu0 %v1322
        %1324 = vmatprep.subr.mxu0 0.0
        %v1325 = vand.u32 %v321, 4294901760
        %v1326 = vsub.f32 %v321, %v1325
        %v1327 = vand.u32 %v1326, 4294901760
        %1328 = vmatpush1.msra.mxu0 %v1327
        %1329 = vmatprep.subr.mxu0 0.0
        %v1330 = vand.u32 %v322, 4294901760
        %v1331 = vsub.f32 %v322, %v1330
        %v1332 = vand.u32 %v1331, 4294901760
        %1333 = vmatpush1.msra.mxu0 %v1332
        %1334 = vmatprep.subr.mxu0 0.0
        %v1335 = vand.u32 %v323, 4294901760
        %v1336 = vsub.f32 %v323, %v1335
        %v1337 = vand.u32 %v1336, 4294901760
        %1338 = vmatpush1.msra.mxu0 %v1337
        %1339 = vmatprep.subr.mxu0 0.0
        %v1340 = vand.u32 %v324, 4294901760
        %v1341 = vsub.f32 %v324, %v1340
        %v1342 = vand.u32 %v1341, 4294901760
        %1343 = vmatpush1.msra.mxu0 %v1342
        %1344 = vmatprep.subr.mxu0 0.0
        %v1345 = vand.u32 %v325, 4294901760
        %v1346 = vsub.f32 %v325, %v1345
        %v1347 = vand.u32 %v1346, 4294901760
        %1348 = vmatpush1.msra.mxu0 %v1347
        %1349 = vmatprep.subr.mxu0 0.0
        %v1350 = vand.u32 %v326, 4294901760
        %v1351 = vsub.f32 %v326, %v1350
        %v1352 = vand.u32 %v1351, 4294901760
        %1353 = vmatpush1.msra.mxu0 %v1352
        %1354 = vmatprep.subr.mxu0 0.0
        %v1355 = vand.u32 %v327, 4294901760
        %v1356 = vsub.f32 %v327, %v1355
        %v1357 = vand.u32 %v1356, 4294901760
        %1358 = vmatpush1.msra.mxu0 %v1357
        %1359 = vmatprep.subr.mxu0 0.0
        %v1360 = vand.u32 %v328, 4294901760
        %v1361 = vsub.f32 %v328, %v1360
        %v1362 = vand.u32 %v1361, 4294901760
        %1363 = vmatpush1.msra.mxu0 %v1362
        %1364 = vmatprep.subr.mxu0 0.0
        %v1365 = vand.u32 %v329, 4294901760
        %v1366 = vsub.f32 %v329, %v1365
        %v1367 = vand.u32 %v1366, 4294901760
        %1368 = vmatpush1.msra.mxu0 %v1367
        %1369 = vmatprep.subr.mxu0 0.0
        %v1370 = vand.u32 %v330, 4294901760
        %v1371 = vsub.f32 %v330, %v1370
        %v1372 = vand.u32 %v1371, 4294901760
        %1373 = vmatpush1.msra.mxu0 %v1372
        %1374 = vmatprep.subr.mxu0 0.0
        %v1375 = vand.u32 %v331, 4294901760
        %v1376 = vsub.f32 %v331, %v1375
        %v1377 = vand.u32 %v1376, 4294901760
        %1378 = vmatpush1.msra.mxu0 %v1377
        %1379 = vmatprep.subr.mxu0 0.0
        %v1380 = vand.u32 %v332, 4294901760
        %v1381 = vsub.f32 %v332, %v1380
        %v1382 = vand.u32 %v1381, 4294901760
        %1383 = vmatpush1.msra.mxu0 %v1382
        %1384 = vmatprep.subr.mxu0 0.0
        %v1385 = vand.u32 %v333, 4294901760
        %v1386 = vsub.f32 %v333, %v1385
        %v1387 = vand.u32 %v1386, 4294901760
        %1388 = vmatpush1.msra.mxu0 %v1387
        %1389 = vmatprep.subr.mxu0 0.0
        %v1390 = vand.u32 %v334, 4294901760
        %v1391 = vsub.f32 %v334, %v1390
        %v1392 = vand.u32 %v1391, 4294901760
        %1393 = vmatpush1.msra.mxu0 %v1392
        %1394 = vmatprep.subr.mxu0 0.0
        %v1395 = vand.u32 %v335, 4294901760
        %v1396 = vsub.f32 %v335, %v1395
        %v1397 = vand.u32 %v1396, 4294901760
        %1398 = vmatpush1.msra.mxu0 %v1397
        %1399 = vmatprep.subr.mxu0 0.0
        %v1400 = vand.u32 %v336, 4294901760
        %v1401 = vsub.f32 %v336, %v1400
        %v1402 = vand.u32 %v1401, 4294901760
        %1403 = vmatpush1.msra.mxu0 %v1402
        %1404 = vmatprep.subr.mxu0 0.0
        %v1405 = vand.u32 %v337, 4294901760
        %v1406 = vsub.f32 %v337, %v1405
        %v1407 = vand.u32 %v1406, 4294901760
        %1408 = vmatpush1.msra.mxu0 %v1407
        %1409 = vmatprep.subr.mxu0 0.0
        %v1410 = vand.u32 %v338, 4294901760
        %v1411 = vsub.f32 %v338, %v1410
        %v1412 = vand.u32 %v1411, 4294901760
        %1413 = vmatpush1.msra.mxu0 %v1412
        %1414 = vmatprep.subr.mxu0 0.0
        %v1415 = vand.u32 %v339, 4294901760
        %v1416 = vsub.f32 %v339, %v1415
        %v1417 = vand.u32 %v1416, 4294901760
        %1418 = vmatpush1.msra.mxu0 %v1417
        %1419 = vmatprep.subr.mxu0 0.0
        %v1420 = vand.u32 %v340, 4294901760
        %v1421 = vsub.f32 %v340, %v1420
        %v1422 = vand.u32 %v1421, 4294901760
        %1423 = vmatpush1.msra.mxu0 %v1422
        %v1424 = vand.u32 %v278, 4294901760
        %1425 = vmatprep.mubr.f32.mxu0 %v1424
        %v1426 = vand.u32 %v277, 4294901760
        %1427 = vmatmul.mubr.f32.gmra.mrb[0].mxu0 %v1426
        %v1428 = vpop.f32.mrb[0].mxu0
        %v1429 = vadd.f32 %v1184, %v1428
        %v1430 = vpop.f32.mrb[0].mxu0
        %v1431 = vand.u32 %v282, 4294901760
        %1432 = vmatprep.mubr.f32.mxu0 %v1431
        %v1433 = vand.u32 %v281, 4294901760
        %1434 = vmatmul.mubr.f32.gmra.mrb[0].mxu0 %v1433
        %v1435 = vpop.f32.mrb[0].mxu0
        %v1436 = vadd.f32 %v1195, %v1435
        %v1437 = vpop.f32.mrb[0].mxu0
        %v1438 = vand.u32 %v286, 4294901760
        %1439 = vmatprep.mubr.f32.mxu0 %v1438
        %v1440 = vand.u32 %v285, 4294901760
        %1441 = vmatmul.mubr.f32.gmra.mrb[0].mxu0 %v1440
        %v1442 = vpop.f32.mrb[0].mxu0
        %v1443 = vadd.f32 %v1206, %v1442
        %v1444 = vpop.f32.mrb[0].mxu0
        %v1445 = vand.u32 %v290, 4294901760
        %1446 = vmatprep.mubr.f32.mxu0 %v1445
        %v1447 = vand.u32 %v289, 4294901760
        %1448 = vmatmul.mubr.f32.gmra.mrb[0].mxu0 %v1447
        %v1449 = vpop.f32.mrb[0].mxu0
        %v1450 = vadd.f32 %v1217, %v1449
        %v1451 = vpop.f32.mrb[0].mxu0
        %v1452 = vand.u32 %v294, 4294901760
        %1453 = vmatprep.mubr.f32.mxu0 %v1452
        %v1454 = vand.u32 %v293, 4294901760
        %1455 = vmatmul.mubr.f32.gmra.mrb[0].mxu0 %v1454
        %v1456 = vpop.f32.mrb[0].mxu0
        %v1457 = vadd.f32 %v1228, %v1456
        %v1458 = vpop.f32.mrb[0].mxu0
        %v1459 = vand.u32 %v298, 4294901760
        %1460 = vmatprep.mubr.f32.mxu0 %v1459
        %v1461 = vand.u32 %v297, 4294901760
        %1462 = vmatmul.mubr.f32.gmra.mrb[0].mxu0 %v1461
        %v1463 = vpop.f32.mrb[0].mxu0
        %v1464 = vadd.f32 %v1239, %v1463
        %v1465 = vpop.f32.mrb[0].mxu0
        %v1466 = vand.u32 %v302, 4294901760
        %1467 = vmatprep.mubr.f32.mxu0 %v1466
        %v1468 = vand.u32 %v301, 4294901760
        %1469 = vmatmul.mubr.f32.gmra.mrb[0].mxu0 %v1468
        %v1470 = vpop.f32.mrb[0].mxu0
        %v1471 = vadd.f32 %v1250, %v1470
        %v1472 = vpop.f32.mrb[0].mxu0
        %v1473 = vand.u32 %v306, 4294901760
        %1474 = vmatprep.mubr.f32.mxu0 %v1473
        %v1475 = vand.u32 %v305, 4294901760
        %1476 = vmatmul.mubr.f32.gmra.mrb[0].mxu0 %v1475
        %v1477 = vpop.f32.mrb[0].mxu0
        %v1478 = vadd.f32 %v1261, %v1477
        %v1479 = vpop.f32.mrb[0].mxu0
        %1480 = vdwg.mxu0
        %1481 = vmatprep.subr.mxu0 0.0
        %v1482 = vand.u32 %v309, 4294901760
        %1483 = vmatpush1.msra.mxu0 %v1482
        %1484 = vmatprep.subr.mxu0 0.0
        %v1485 = vand.u32 %v310, 4294901760
        %1486 = vmatpush1.msra.mxu0 %v1485
        %1487 = vmatprep.subr.mxu0 0.0
        %v1488 = vand.u32 %v311, 4294901760
        %1489 = vmatpush1.msra.mxu0 %v1488
        %1490 = vmatprep.subr.mxu0 0.0
        %v1491 = vand.u32 %v312, 4294901760
        %1492 = vmatpush1.msra.mxu0 %v1491
        %1493 = vmatprep.subr.mxu0 0.0
        %v1494 = vand.u32 %v313, 4294901760
        %1495 = vmatpush1.msra.mxu0 %v1494
        %1496 = vmatprep.subr.mxu0 0.0
        %v1497 = vand.u32 %v314, 4294901760
        %1498 = vmatpush1.msra.mxu0 %v1497
        %1499 = vmatprep.subr.mxu0 0.0
        %v1500 = vand.u32 %v315, 4294901760
        %1501 = vmatpush1.msra.mxu0 %v1500
        %1502 = vmatprep.subr.mxu0 0.0
        %v1503 = vand.u32 %v316, 4294901760
        %1504 = vmatpush1.msra.mxu0 %v1503
        %1505 = vmatprep.subr.mxu0 0.0
        %v1506 = vand.u32 %v317, 4294901760
        %1507 = vmatpush1.msra.mxu0 %v1506
        %1508 = vmatprep.subr.mxu0 0.0
        %v1509 = vand.u32 %v318, 4294901760
        %1510 = vmatpush1.msra.mxu0 %v1509
        %1511 = vmatprep.subr.mxu0 0.0
        %v1512 = vand.u32 %v319, 4294901760
        %1513 = vmatpush1.msra.mxu0 %v1512
        %1514 = vmatprep.subr.mxu0 0.0
        %v1515 = vand.u32 %v320, 4294901760
        %1516 = vmatpush1.msra.mxu0 %v1515
        %1517 = vmatprep.subr.mxu0 0.0
        %v1518 = vand.u32 %v321, 4294901760
        %1519 = vmatpush1.msra.mxu0 %v1518
        %1520 = vmatprep.subr.mxu0 0.0
        %v1521 = vand.u32 %v322, 4294901760
        %1522 = vmatpush1.msra.mxu0 %v1521
        %1523 = vmatprep.subr.mxu0 0.0
        %v1524 = vand.u32 %v323, 4294901760
        %1525 = vmatpush1.msra.mxu0 %v1524
        %1526 = vmatprep.subr.mxu0 0.0
        %v1527 = vand.u32 %v324, 4294901760
        %1528 = vmatpush1.msra.mxu0 %v1527
        %1529 = vmatprep.subr.mxu0 0.0
        %v1530 = vand.u32 %v325, 4294901760
        %1531 = vmatpush1.msra.mxu0 %v1530
        %1532 = vmatprep.subr.mxu0 0.0
        %v1533 = vand.u32 %v326, 4294901760
        %1534 = vmatpush1.msra.mxu0 %v1533
        %1535 = vmatprep.subr.mxu0 0.0
        %v1536 = vand.u32 %v327, 4294901760
        %1537 = vmatpush1.msra.mxu0 %v1536
        %1538 = vmatprep.subr.mxu0 0.0
        %v1539 = vand.u32 %v328, 4294901760
        %1540 = vmatpush1.msra.mxu0 %v1539
        %1541 = vmatprep.subr.mxu0 0.0
        %v1542 = vand.u32 %v329, 4294901760
        %1543 = vmatpush1.msra.mxu0 %v1542
        %1544 = vmatprep.subr.mxu0 0.0
        %v1545 = vand.u32 %v330, 4294901760
        %1546 = vmatpush1.msra.mxu0 %v1545
        %1547 = vmatprep.subr.mxu0 0.0
        %v1548 = vand.u32 %v331, 4294901760
        %1549 = vmatpush1.msra.mxu0 %v1548
        %1550 = vmatprep.subr.mxu0 0.0
        %v1551 = vand.u32 %v332, 4294901760
        %1552 = vmatpush1.msra.mxu0 %v1551
        %1553 = vmatprep.subr.mxu0 0.0
        %v1554 = vand.u32 %v333, 4294901760
        %1555 = vmatpush1.msra.mxu0 %v1554
        %1556 = vmatprep.subr.mxu0 0.0
        %v1557 = vand.u32 %v334, 4294901760
        %1558 = vmatpush1.msra.mxu0 %v1557
        %1559 = vmatprep.subr.mxu0 0.0
        %v1560 = vand.u32 %v335, 4294901760
        %1561 = vmatpush1.msra.mxu0 %v1560
        %1562 = vmatprep.subr.mxu0 0.0
        %v1563 = vand.u32 %v336, 4294901760
        %1564 = vmatpush1.msra.mxu0 %v1563
        %1565 = vmatprep.subr.mxu0 0.0
        %v1566 = vand.u32 %v337, 4294901760
        %1567 = vmatpush1.msra.mxu0 %v1566
        %1568 = vmatprep.subr.mxu0 0.0
        %v1569 = vand.u32 %v338, 4294901760
        %1570 = vmatpush1.msra.mxu0 %v1569
        %1571 = vmatprep.subr.mxu0 0.0
        %v1572 = vand.u32 %v339, 4294901760
        %1573 = vmatpush1.msra.mxu0 %v1572
        %1574 = vmatprep.subr.mxu0 0.0
        %v1575 = vand.u32 %v340, 4294901760
        %1576 = vmatpush1.msra.mxu0 %v1575
        %v1577 = vand.u32 %v278, 4294901760
        %1578 = vmatprep.mubr.f32.mxu0 %v1577
        %v1579 = vand.u32 %v277, 4294901760
        %1580 = vmatmul.mubr.f32.gmra.mrb[0].mxu0 %v1579
        %v1581 = vpop.f32.mrb[0].mxu0
        %v1582 = vadd.f32 %v1429, %v1581
        %v1583 = vpop.f32.mrb[0].mxu0
        %v1584 = vand.u32 %v282, 4294901760
        %1585 = vmatprep.mubr.f32.mxu0 %v1584
        %v1586 = vand.u32 %v281, 4294901760
        %1587 = vmatmul.mubr.f32.gmra.mrb[0].mxu0 %v1586
        %v1588 = vpop.f32.mrb[0].mxu0
        %v1589 = vadd.f32 %v1436, %v1588
        %v1590 = vpop.f32.mrb[0].mxu0
        %v1591 = vand.u32 %v286, 4294901760
        %1592 = vmatprep.mubr.f32.mxu0 %v1591
        %v1593 = vand.u32 %v285, 4294901760
        %1594 = vmatmul.mubr.f32.gmra.mrb[0].mxu0 %v1593
        %v1595 = vpop.f32.mrb[0].mxu0
        %v1596 = vadd.f32 %v1443, %v1595
        %v1597 = vpop.f32.mrb[0].mxu0
        %v1598 = vand.u32 %v290, 4294901760
        %1599 = vmatprep.mubr.f32.mxu0 %v1598
        %v1600 = vand.u32 %v289, 4294901760
        %1601 = vmatmul.mubr.f32.gmra.mrb[0].mxu0 %v1600
        %v1602 = vpop.f32.mrb[0].mxu0
        %v1603 = vadd.f32 %v1450, %v1602
        %v1604 = vpop.f32.mrb[0].mxu0
        %v1605 = vand.u32 %v294, 4294901760
        %1606 = vmatprep.mubr.f32.mxu0 %v1605
        %v1607 = vand.u32 %v293, 4294901760
        %1608 = vmatmul.mubr.f32.gmra.mrb[0].mxu0 %v1607
        %v1609 = vpop.f32.mrb[0].mxu0
        %v1610 = vadd.f32 %v1457, %v1609
        %v1611 = vpop.f32.mrb[0].mxu0
        %v1612 = vand.u32 %v298, 4294901760
        %1613 = vmatprep.mubr.f32.mxu0 %v1612
        %v1614 = vand.u32 %v297, 4294901760
        %1615 = vmatmul.mubr.f32.gmra.mrb[0].mxu0 %v1614
        %v1616 = vpop.f32.mrb[0].mxu0
        %v1617 = vadd.f32 %v1464, %v1616
        %v1618 = vpop.f32.mrb[0].mxu0
        %v1619 = vand.u32 %v302, 4294901760
        %1620 = vmatprep.mubr.f32.mxu0 %v1619
        %v1621 = vand.u32 %v301, 4294901760
        %1622 = vmatmul.mubr.f32.gmra.mrb[0].mxu0 %v1621
        %v1623 = vpop.f32.mrb[0].mxu0
        %v1624 = vadd.f32 %v1471, %v1623
        %v1625 = vpop.f32.mrb[0].mxu0
        %v1626 = vand.u32 %v306, 4294901760
        %1627 = vmatprep.mubr.f32.mxu0 %v1626
        %v1628 = vand.u32 %v305, 4294901760
        %1629 = vmatmul.mubr.f32.gmra.mrb[0].mxu0 %v1628
        %v1630 = vpop.f32.mrb[0].mxu0
        %v1631 = vadd.f32 %v1478, %v1630
        %v1632 = vpop.f32.mrb[0].mxu0
        %1633 = vdwg.mxu0
        %1634 = vmatprep.subr.mxu0 0.0
        %v1635 = vand.u32 %v341, 4294901760
        %1636 = vmatpush1.msra.mxu0 %v1635
        %1637 = vmatprep.subr.mxu0 0.0
        %v1638 = vand.u32 %v342, 4294901760
        %1639 = vmatpush1.msra.mxu0 %v1638
        %1640 = vmatprep.subr.mxu0 0.0
        %v1641 = vand.u32 %v343, 4294901760
        %1642 = vmatpush1.msra.mxu0 %v1641
        %1643 = vmatprep.subr.mxu0 0.0
        %v1644 = vand.u32 %v344, 4294901760
        %1645 = vmatpush1.msra.mxu0 %v1644
        %1646 = vmatprep.subr.mxu0 0.0
        %v1647 = vand.u32 %v345, 4294901760
        %1648 = vmatpush1.msra.mxu0 %v1647
        %1649 = vmatprep.subr.mxu0 0.0
        %v1650 = vand.u32 %v346, 4294901760
        %1651 = vmatpush1.msra.mxu0 %v1650
        %1652 = vmatprep.subr.mxu0 0.0
        %v1653 = vand.u32 %v347, 4294901760
        %1654 = vmatpush1.msra.mxu0 %v1653
        %1655 = vmatprep.subr.mxu0 0.0
        %v1656 = vand.u32 %v348, 4294901760
        %1657 = vmatpush1.msra.mxu0 %v1656
        %1658 = vmatprep.subr.mxu0 0.0
        %v1659 = vand.u32 %v349, 4294901760
        %1660 = vmatpush1.msra.mxu0 %v1659
        %1661 = vmatprep.subr.mxu0 0.0
        %v1662 = vand.u32 %v350, 4294901760
        %1663 = vmatpush1.msra.mxu0 %v1662
        %1664 = vmatprep.subr.mxu0 0.0
        %v1665 = vand.u32 %v351, 4294901760
        %1666 = vmatpush1.msra.mxu0 %v1665
        %1667 = vmatprep.subr.mxu0 0.0
        %v1668 = vand.u32 %v352, 4294901760
        %1669 = vmatpush1.msra.mxu0 %v1668
        %1670 = vmatprep.subr.mxu0 0.0
        %v1671 = vand.u32 %v353, 4294901760
        %1672 = vmatpush1.msra.mxu0 %v1671
        %1673 = vmatprep.subr.mxu0 0.0
        %v1674 = vand.u32 %v354, 4294901760
        %1675 = vmatpush1.msra.mxu0 %v1674
        %1676 = vmatprep.subr.mxu0 0.0
        %v1677 = vand.u32 %v355, 4294901760
        %1678 = vmatpush1.msra.mxu0 %v1677
        %1679 = vmatprep.subr.mxu0 0.0
        %v1680 = vand.u32 %v356, 4294901760
        %1681 = vmatpush1.msra.mxu0 %v1680
        %1682 = vmatprep.subr.mxu0 0.0
        %v1683 = vand.u32 %v357, 4294901760
        %1684 = vmatpush1.msra.mxu0 %v1683
        %1685 = vmatprep.subr.mxu0 0.0
        %v1686 = vand.u32 %v358, 4294901760
        %1687 = vmatpush1.msra.mxu0 %v1686
        %1688 = vmatprep.subr.mxu0 0.0
        %v1689 = vand.u32 %v359, 4294901760
        %1690 = vmatpush1.msra.mxu0 %v1689
        %1691 = vmatprep.subr.mxu0 0.0
        %v1692 = vand.u32 %v360, 4294901760
        %1693 = vmatpush1.msra.mxu0 %v1692
        %1694 = vmatprep.subr.mxu0 0.0
        %v1695 = vand.u32 %v361, 4294901760
        %1696 = vmatpush1.msra.mxu0 %v1695
        %1697 = vmatprep.subr.mxu0 0.0
        %v1698 = vand.u32 %v362, 4294901760
        %1699 = vmatpush1.msra.mxu0 %v1698
        %1700 = vmatprep.subr.mxu0 0.0
        %v1701 = vand.u32 %v363, 4294901760
        %1702 = vmatpush1.msra.mxu0 %v1701
        %1703 = vmatprep.subr.mxu0 0.0
        %v1704 = vand.u32 %v364, 4294901760
        %1705 = vmatpush1.msra.mxu0 %v1704
        %1706 = vmatprep.subr.mxu0 0.0
        %v1707 = vand.u32 %v365, 4294901760
        %1708 = vmatpush1.msra.mxu0 %v1707
        %1709 = vmatprep.subr.mxu0 0.0
        %v1710 = vand.u32 %v366, 4294901760
        %1711 = vmatpush1.msra.mxu0 %v1710
        %1712 = vmatprep.subr.mxu0 0.0
        %v1713 = vand.u32 %v367, 4294901760
        %1714 = vmatpush1.msra.mxu0 %v1713
        %1715 = vmatprep.subr.mxu0 0.0
        %v1716 = vand.u32 %v368, 4294901760
        %1717 = vmatpush1.msra.mxu0 %v1716
        %1718 = vmatprep.subr.mxu0 0.0
        %v1719 = vand.u32 %v369, 4294901760
        %1720 = vmatpush1.msra.mxu0 %v1719
        %1721 = vmatprep.subr.mxu0 0.0
        %v1722 = vand.u32 %v370, 4294901760
        %1723 = vmatpush1.msra.mxu0 %v1722
        %1724 = vmatprep.subr.mxu0 0.0
        %v1725 = vand.u32 %v371, 4294901760
        %1726 = vmatpush1.msra.mxu0 %v1725
        %1727 = vmatprep.subr.mxu0 0.0
        %v1728 = vand.u32 %v372, 4294901760
        %1729 = vmatpush1.msra.mxu0 %v1728
        %v1730 = vand.u32 %v280, 4294901760
        %v1731 = vsub.f32 %v280, %v1730
        %v1732 = vand.u32 %v1731, 4294901760
        %v1733 = vsub.f32 %v1731, %v1732
        %v1734 = vand.u32 %v1733, 4294901760
        %1735 = vmatprep.mubr.f32.mxu0 %v1734
        %v1736 = vand.u32 %v279, 4294901760
        %v1737 = vsub.f32 %v279, %v1736
        %v1738 = vand.u32 %v1737, 4294901760
        %v1739 = vsub.f32 %v1737, %v1738
        %v1740 = vand.u32 %v1739, 4294901760
        %1741 = vmatmul.mubr.f32.gmra.mrb[0].mxu0 %v1740
        %v1742 = vpop.f32.mrb[0].mxu0
        %v1743 = vadd.f32 %v1582, %v1742
        %v1744 = vpop.f32.mrb[0].mxu0
        %v1745 = vand.u32 %v284, 4294901760
        %v1746 = vsub.f32 %v284, %v1745
        %v1747 = vand.u32 %v1746, 4294901760
        %v1748 = vsub.f32 %v1746, %v1747
        %v1749 = vand.u32 %v1748, 4294901760
        %1750 = vmatprep.mubr.f32.mxu0 %v1749
        %v1751 = vand.u32 %v283, 4294901760
        %v1752 = vsub.f32 %v283, %v1751
        %v1753 = vand.u32 %v1752, 4294901760
        %v1754 = vsub.f32 %v1752, %v1753
        %v1755 = vand.u32 %v1754, 4294901760
        %1756 = vmatmul.mubr.f32.gmra.mrb[0].mxu0 %v1755
        %v1757 = vpop.f32.mrb[0].mxu0
        %v1758 = vadd.f32 %v1589, %v1757
        %v1759 = vpop.f32.mrb[0].mxu0
        %v1760 = vand.u32 %v288, 4294901760
        %v1761 = vsub.f32 %v288, %v1760
        %v1762 = vand.u32 %v1761, 4294901760
        %v1763 = vsub.f32 %v1761, %v1762
        %v1764 = vand.u32 %v1763, 4294901760
        %1765 = vmatprep.mubr.f32.mxu0 %v1764
        %v1766 = vand.u32 %v287, 4294901760
        %v1767 = vsub.f32 %v287, %v1766
        %v1768 = vand.u32 %v1767, 4294901760
        %v1769 = vsub.f32 %v1767, %v1768
        %v1770 = vand.u32 %v1769, 4294901760
        %1771 = vmatmul.mubr.f32.gmra.mrb[0].mxu0 %v1770
        %v1772 = vpop.f32.mrb[0].mxu0
        %v1773 = vadd.f32 %v1596, %v1772
        %v1774 = vpop.f32.mrb[0].mxu0
        %v1775 = vand.u32 %v292, 4294901760
        %v1776 = vsub.f32 %v292, %v1775
        %v1777 = vand.u32 %v1776, 4294901760
        %v1778 = vsub.f32 %v1776, %v1777
        %v1779 = vand.u32 %v1778, 4294901760
        %1780 = vmatprep.mubr.f32.mxu0 %v1779
        %v1781 = vand.u32 %v291, 4294901760
        %v1782 = vsub.f32 %v291, %v1781
        %v1783 = vand.u32 %v1782, 4294901760
        %v1784 = vsub.f32 %v1782, %v1783
        %v1785 = vand.u32 %v1784, 4294901760
        %1786 = vmatmul.mubr.f32.gmra.mrb[0].mxu0 %v1785
        %v1787 = vpop.f32.mrb[0].mxu0
        %v1788 = vadd.f32 %v1603, %v1787
        %v1789 = vpop.f32.mrb[0].mxu0
        %v1790 = vand.u32 %v296, 4294901760
        %v1791 = vsub.f32 %v296, %v1790
        %v1792 = vand.u32 %v1791, 4294901760
        %v1793 = vsub.f32 %v1791, %v1792
        %v1794 = vand.u32 %v1793, 4294901760
        %1795 = vmatprep.mubr.f32.mxu0 %v1794
        %v1796 = vand.u32 %v295, 4294901760
        %v1797 = vsub.f32 %v295, %v1796
        %v1798 = vand.u32 %v1797, 4294901760
        %v1799 = vsub.f32 %v1797, %v1798
        %v1800 = vand.u32 %v1799, 4294901760
        %1801 = vmatmul.mubr.f32.gmra.mrb[0].mxu0 %v1800
        %v1802 = vpop.f32.mrb[0].mxu0
        %v1803 = vadd.f32 %v1610, %v1802
        %v1804 = vpop.f32.mrb[0].mxu0
        %v1805 = vand.u32 %v300, 4294901760
        %v1806 = vsub.f32 %v300, %v1805
        %v1807 = vand.u32 %v1806, 4294901760
        %v1808 = vsub.f32 %v1806, %v1807
        %v1809 = vand.u32 %v1808, 4294901760
        %1810 = vmatprep.mubr.f32.mxu0 %v1809
        %v1811 = vand.u32 %v299, 4294901760
        %v1812 = vsub.f32 %v299, %v1811
        %v1813 = vand.u32 %v1812, 4294901760
        %v1814 = vsub.f32 %v1812, %v1813
        %v1815 = vand.u32 %v1814, 4294901760
        %1816 = vmatmul.mubr.f32.gmra.mrb[0].mxu0 %v1815
        %v1817 = vpop.f32.mrb[0].mxu0
        %v1818 = vadd.f32 %v1617, %v1817
        %v1819 = vpop.f32.mrb[0].mxu0
        %v1820 = vand.u32 %v304, 4294901760
        %v1821 = vsub.f32 %v304, %v1820
        %v1822 = vand.u32 %v1821, 4294901760
        %v1823 = vsub.f32 %v1821, %v1822
        %v1824 = vand.u32 %v1823, 4294901760
        %1825 = vmatprep.mubr.f32.mxu0 %v1824
        %v1826 = vand.u32 %v303, 4294901760
        %v1827 = vsub.f32 %v303, %v1826
        %v1828 = vand.u32 %v1827, 4294901760
        %v1829 = vsub.f32 %v1827, %v1828
        %v1830 = vand.u32 %v1829, 4294901760
        %1831 = vmatmul.mubr.f32.gmra.mrb[0].mxu0 %v1830
        %v1832 = vpop.f32.mrb[0].mxu0
        %v1833 = vadd.f32 %v1624, %v1832
        %v1834 = vpop.f32.mrb[0].mxu0
        %v1835 = vand.u32 %v308, 4294901760
        %v1836 = vsub.f32 %v308, %v1835
        %v1837 = vand.u32 %v1836, 4294901760
        %v1838 = vsub.f32 %v1836, %v1837
        %v1839 = vand.u32 %v1838, 4294901760
        %1840 = vmatprep.mubr.f32.mxu0 %v1839
        %v1841 = vand.u32 %v307, 4294901760
        %v1842 = vsub.f32 %v307, %v1841
        %v1843 = vand.u32 %v1842, 4294901760
        %v1844 = vsub.f32 %v1842, %v1843
        %v1845 = vand.u32 %v1844, 4294901760
        %1846 = vmatmul.mubr.f32.gmra.mrb[0].mxu0 %v1845
        %v1847 = vpop.f32.mrb[0].mxu0
        %v1848 = vadd.f32 %v1631, %v1847
        %v1849 = vpop.f32.mrb[0].mxu0
        %1850 = vdwg.mxu0
        %1851 = vmatprep.subr.mxu0 0.0
        %v1852 = vand.u32 %v341, 4294901760
        %v1853 = vsub.f32 %v341, %v1852
        %v1854 = vand.u32 %v1853, 4294901760
        %v1855 = vsub.f32 %v1853, %v1854
        %v1856 = vand.u32 %v1855, 4294901760
        %1857 = vmatpush1.msra.mxu0 %v1856
        %1858 = vmatprep.subr.mxu0 0.0
        %v1859 = vand.u32 %v342, 4294901760
        %v1860 = vsub.f32 %v342, %v1859
        %v1861 = vand.u32 %v1860, 4294901760
        %v1862 = vsub.f32 %v1860, %v1861
        %v1863 = vand.u32 %v1862, 4294901760
        %1864 = vmatpush1.msra.mxu0 %v1863
        %1865 = vmatprep.subr.mxu0 0.0
        %v1866 = vand.u32 %v343, 4294901760
        %v1867 = vsub.f32 %v343, %v1866
        %v1868 = vand.u32 %v1867, 4294901760
        %v1869 = vsub.f32 %v1867, %v1868
        %v1870 = vand.u32 %v1869, 4294901760
        %1871 = vmatpush1.msra.mxu0 %v1870
        %1872 = vmatprep.subr.mxu0 0.0
        %v1873 = vand.u32 %v344, 4294901760
        %v1874 = vsub.f32 %v344, %v1873
        %v1875 = vand.u32 %v1874, 4294901760
        %v1876 = vsub.f32 %v1874, %v1875
        %v1877 = vand.u32 %v1876, 4294901760
        %1878 = vmatpush1.msra.mxu0 %v1877
        %1879 = vmatprep.subr.mxu0 0.0
        %v1880 = vand.u32 %v345, 4294901760
        %v1881 = vsub.f32 %v345, %v1880
        %v1882 = vand.u32 %v1881, 4294901760
        %v1883 = vsub.f32 %v1881, %v1882
        %v1884 = vand.u32 %v1883, 4294901760
        %1885 = vmatpush1.msra.mxu0 %v1884
        %1886 = vmatprep.subr.mxu0 0.0
        %v1887 = vand.u32 %v346, 4294901760
        %v1888 = vsub.f32 %v346, %v1887
        %v1889 = vand.u32 %v1888, 4294901760
        %v1890 = vsub.f32 %v1888, %v1889
        %v1891 = vand.u32 %v1890, 4294901760
        %1892 = vmatpush1.msra.mxu0 %v1891
        %1893 = vmatprep.subr.mxu0 0.0
        %v1894 = vand.u32 %v347, 4294901760
        %v1895 = vsub.f32 %v347, %v1894
        %v1896 = vand.u32 %v1895, 4294901760
        %v1897 = vsub.f32 %v1895, %v1896
        %v1898 = vand.u32 %v1897, 4294901760
        %1899 = vmatpush1.msra.mxu0 %v1898
        %1900 = vmatprep.subr.mxu0 0.0
        %v1901 = vand.u32 %v348, 4294901760
        %v1902 = vsub.f32 %v348, %v1901
        %v1903 = vand.u32 %v1902, 4294901760
        %v1904 = vsub.f32 %v1902, %v1903
        %v1905 = vand.u32 %v1904, 4294901760
        %1906 = vmatpush1.msra.mxu0 %v1905
        %1907 = vmatprep.subr.mxu0 0.0
        %v1908 = vand.u32 %v349, 4294901760
        %v1909 = vsub.f32 %v349, %v1908
        %v1910 = vand.u32 %v1909, 4294901760
        %v1911 = vsub.f32 %v1909, %v1910
        %v1912 = vand.u32 %v1911, 4294901760
        %1913 = vmatpush1.msra.mxu0 %v1912
        %1914 = vmatprep.subr.mxu0 0.0
        %v1915 = vand.u32 %v350, 4294901760
        %v1916 = vsub.f32 %v350, %v1915
        %v1917 = vand.u32 %v1916, 4294901760
        %v1918 = vsub.f32 %v1916, %v1917
        %v1919 = vand.u32 %v1918, 4294901760
        %1920 = vmatpush1.msra.mxu0 %v1919
        %1921 = vmatprep.subr.mxu0 0.0
        %v1922 = vand.u32 %v351, 4294901760
        %v1923 = vsub.f32 %v351, %v1922
        %v1924 = vand.u32 %v1923, 4294901760
        %v1925 = vsub.f32 %v1923, %v1924
        %v1926 = vand.u32 %v1925, 4294901760
        %1927 = vmatpush1.msra.mxu0 %v1926
        %1928 = vmatprep.subr.mxu0 0.0
        %v1929 = vand.u32 %v352, 4294901760
        %v1930 = vsub.f32 %v352, %v1929
        %v1931 = vand.u32 %v1930, 4294901760
        %v1932 = vsub.f32 %v1930, %v1931
        %v1933 = vand.u32 %v1932, 4294901760
        %1934 = vmatpush1.msra.mxu0 %v1933
        %1935 = vmatprep.subr.mxu0 0.0
        %v1936 = vand.u32 %v353, 4294901760
        %v1937 = vsub.f32 %v353, %v1936
        %v1938 = vand.u32 %v1937, 4294901760
        %v1939 = vsub.f32 %v1937, %v1938
        %v1940 = vand.u32 %v1939, 4294901760
        %1941 = vmatpush1.msra.mxu0 %v1940
        %1942 = vmatprep.subr.mxu0 0.0
        %v1943 = vand.u32 %v354, 4294901760
        %v1944 = vsub.f32 %v354, %v1943
        %v1945 = vand.u32 %v1944, 4294901760
        %v1946 = vsub.f32 %v1944, %v1945
        %v1947 = vand.u32 %v1946, 4294901760
        %1948 = vmatpush1.msra.mxu0 %v1947
        %1949 = vmatprep.subr.mxu0 0.0
        %v1950 = vand.u32 %v355, 4294901760
        %v1951 = vsub.f32 %v355, %v1950
        %v1952 = vand.u32 %v1951, 4294901760
        %v1953 = vsub.f32 %v1951, %v1952
        %v1954 = vand.u32 %v1953, 4294901760
        %1955 = vmatpush1.msra.mxu0 %v1954
        %1956 = vmatprep.subr.mxu0 0.0
        %v1957 = vand.u32 %v356, 4294901760
        %v1958 = vsub.f32 %v356, %v1957
        %v1959 = vand.u32 %v1958, 4294901760
        %v1960 = vsub.f32 %v1958, %v1959
        %v1961 = vand.u32 %v1960, 4294901760
        %1962 = vmatpush1.msra.mxu0 %v1961
        %1963 = vmatprep.subr.mxu0 0.0
        %v1964 = vand.u32 %v357, 4294901760
        %v1965 = vsub.f32 %v357, %v1964
        %v1966 = vand.u32 %v1965, 4294901760
        %v1967 = vsub.f32 %v1965, %v1966
        %v1968 = vand.u32 %v1967, 4294901760
        %1969 = vmatpush1.msra.mxu0 %v1968
        %1970 = vmatprep.subr.mxu0 0.0
        %v1971 = vand.u32 %v358, 4294901760
        %v1972 = vsub.f32 %v358, %v1971
        %v1973 = vand.u32 %v1972, 4294901760
        %v1974 = vsub.f32 %v1972, %v1973
        %v1975 = vand.u32 %v1974, 4294901760
        %1976 = vmatpush1.msra.mxu0 %v1975
        %1977 = vmatprep.subr.mxu0 0.0
        %v1978 = vand.u32 %v359, 4294901760
        %v1979 = vsub.f32 %v359, %v1978
        %v1980 = vand.u32 %v1979, 4294901760
        %v1981 = vsub.f32 %v1979, %v1980
        %v1982 = vand.u32 %v1981, 4294901760
        %1983 = vmatpush1.msra.mxu0 %v1982
        %1984 = vmatprep.subr.mxu0 0.0
        %v1985 = vand.u32 %v360, 4294901760
        %v1986 = vsub.f32 %v360, %v1985
        %v1987 = vand.u32 %v1986, 4294901760
        %v1988 = vsub.f32 %v1986, %v1987
        %v1989 = vand.u32 %v1988, 4294901760
        %1990 = vmatpush1.msra.mxu0 %v1989
        %1991 = vmatprep.subr.mxu0 0.0
        %v1992 = vand.u32 %v361, 4294901760
        %v1993 = vsub.f32 %v361, %v1992
        %v1994 = vand.u32 %v1993, 4294901760
        %v1995 = vsub.f32 %v1993, %v1994
        %v1996 = vand.u32 %v1995, 4294901760
        %1997 = vmatpush1.msra.mxu0 %v1996
        %1998 = vmatprep.subr.mxu0 0.0
        %v1999 = vand.u32 %v362, 4294901760
        %v2000 = vsub.f32 %v362, %v1999
        %v2001 = vand.u32 %v2000, 4294901760
        %v2002 = vsub.f32 %v2000, %v2001
        %v2003 = vand.u32 %v2002, 4294901760
        %2004 = vmatpush1.msra.mxu0 %v2003
        %2005 = vmatprep.subr.mxu0 0.0
        %v2006 = vand.u32 %v363, 4294901760
        %v2007 = vsub.f32 %v363, %v2006
        %v2008 = vand.u32 %v2007, 4294901760
        %v2009 = vsub.f32 %v2007, %v2008
        %v2010 = vand.u32 %v2009, 4294901760
        %2011 = vmatpush1.msra.mxu0 %v2010
        %2012 = vmatprep.subr.mxu0 0.0
        %v2013 = vand.u32 %v364, 4294901760
        %v2014 = vsub.f32 %v364, %v2013
        %v2015 = vand.u32 %v2014, 4294901760
        %v2016 = vsub.f32 %v2014, %v2015
        %v2017 = vand.u32 %v2016, 4294901760
        %2018 = vmatpush1.msra.mxu0 %v2017
        %2019 = vmatprep.subr.mxu0 0.0
        %v2020 = vand.u32 %v365, 4294901760
        %v2021 = vsub.f32 %v365, %v2020
        %v2022 = vand.u32 %v2021, 4294901760
        %v2023 = vsub.f32 %v2021, %v2022
        %v2024 = vand.u32 %v2023, 4294901760
        %2025 = vmatpush1.msra.mxu0 %v2024
        %2026 = vmatprep.subr.mxu0 0.0
        %v2027 = vand.u32 %v366, 4294901760
        %v2028 = vsub.f32 %v366, %v2027
        %v2029 = vand.u32 %v2028, 4294901760
        %v2030 = vsub.f32 %v2028, %v2029
        %v2031 = vand.u32 %v2030, 4294901760
        %2032 = vmatpush1.msra.mxu0 %v2031
        %2033 = vmatprep.subr.mxu0 0.0
        %v2034 = vand.u32 %v367, 4294901760
        %v2035 = vsub.f32 %v367, %v2034
        %v2036 = vand.u32 %v2035, 4294901760
        %v2037 = vsub.f32 %v2035, %v2036
        %v2038 = vand.u32 %v2037, 4294901760
        %2039 = vmatpush1.msra.mxu0 %v2038
        %2040 = vmatprep.subr.mxu0 0.0
        %v2041 = vand.u32 %v368, 4294901760
        %v2042 = vsub.f32 %v368, %v2041
        %v2043 = vand.u32 %v2042, 4294901760
        %v2044 = vsub.f32 %v2042, %v2043
        %v2045 = vand.u32 %v2044, 4294901760
        %2046 = vmatpush1.msra.mxu0 %v2045
        %2047 = vmatprep.subr.mxu0 0.0
        %v2048 = vand.u32 %v369, 4294901760
        %v2049 = vsub.f32 %v369, %v2048
        %v2050 = vand.u32 %v2049, 4294901760
        %v2051 = vsub.f32 %v2049, %v2050
        %v2052 = vand.u32 %v2051, 4294901760
        %2053 = vmatpush1.msra.mxu0 %v2052
        %2054 = vmatprep.subr.mxu0 0.0
        %v2055 = vand.u32 %v370, 4294901760
        %v2056 = vsub.f32 %v370, %v2055
        %v2057 = vand.u32 %v2056, 4294901760
        %v2058 = vsub.f32 %v2056, %v2057
        %v2059 = vand.u32 %v2058, 4294901760
        %2060 = vmatpush1.msra.mxu0 %v2059
        %2061 = vmatprep.subr.mxu0 0.0
        %v2062 = vand.u32 %v371, 4294901760
        %v2063 = vsub.f32 %v371, %v2062
        %v2064 = vand.u32 %v2063, 4294901760
        %v2065 = vsub.f32 %v2063, %v2064
        %v2066 = vand.u32 %v2065, 4294901760
        %2067 = vmatpush1.msra.mxu0 %v2066
        %2068 = vmatprep.subr.mxu0 0.0
        %v2069 = vand.u32 %v372, 4294901760
        %v2070 = vsub.f32 %v372, %v2069
        %v2071 = vand.u32 %v2070, 4294901760
        %v2072 = vsub.f32 %v2070, %v2071
        %v2073 = vand.u32 %v2072, 4294901760
        %2074 = vmatpush1.msra.mxu0 %v2073
        %v2075 = vand.u32 %v280, 4294901760
        %2076 = vmatprep.mubr.f32.mxu0 %v2075
        %v2077 = vand.u32 %v279, 4294901760
        %2078 = vmatmul.mubr.f32.gmra.mrb[0].mxu0 %v2077
        %v2079 = vpop.f32.mrb[0].mxu0
        %v2080 = vadd.f32 %v1743, %v2079
        %v2081 = vpop.f32.mrb[0].mxu0
        %v2082 = vand.u32 %v284, 4294901760
        %2083 = vmatprep.mubr.f32.mxu0 %v2082
        %v2084 = vand.u32 %v283, 4294901760
        %2085 = vmatmul.mubr.f32.gmra.mrb[0].mxu0 %v2084
        %v2086 = vpop.f32.mrb[0].mxu0
        %v2087 = vadd.f32 %v1758, %v2086
        %v2088 = vpop.f32.mrb[0].mxu0
        %v2089 = vand.u32 %v288, 4294901760
        %2090 = vmatprep.mubr.f32.mxu0 %v2089
        %v2091 = vand.u32 %v287, 4294901760
        %2092 = vmatmul.mubr.f32.gmra.mrb[0].mxu0 %v2091
        %v2093 = vpop.f32.mrb[0].mxu0
        %v2094 = vadd.f32 %v1773, %v2093
        %v2095 = vpop.f32.mrb[0].mxu0
        %v2096 = vand.u32 %v292, 4294901760
        %2097 = vmatprep.mubr.f32.mxu0 %v2096
        %v2098 = vand.u32 %v291, 4294901760
        %2099 = vmatmul.mubr.f32.gmra.mrb[0].mxu0 %v2098
        %v2100 = vpop.f32.mrb[0].mxu0
        %v2101 = vadd.f32 %v1788, %v2100
        %v2102 = vpop.f32.mrb[0].mxu0
        %v2103 = vand.u32 %v296, 4294901760
        %2104 = vmatprep.mubr.f32.mxu0 %v2103
        %v2105 = vand.u32 %v295, 4294901760
        %2106 = vmatmul.mubr.f32.gmra.mrb[0].mxu0 %v2105
        %v2107 = vpop.f32.mrb[0].mxu0
        %v2108 = vadd.f32 %v1803, %v2107
        %v2109 = vpop.f32.mrb[0].mxu0
        %v2110 = vand.u32 %v300, 4294901760
        %2111 = vmatprep.mubr.f32.mxu0 %v2110
        %v2112 = vand.u32 %v299, 4294901760
        %2113 = vmatmul.mubr.f32.gmra.mrb[0].mxu0 %v2112
        %v2114 = vpop.f32.mrb[0].mxu0
        %v2115 = vadd.f32 %v1818, %v2114
        %v2116 = vpop.f32.mrb[0].mxu0
        %v2117 = vand.u32 %v304, 4294901760
        %2118 = vmatprep.mubr.f32.mxu0 %v2117
        %v2119 = vand.u32 %v303, 4294901760
        %2120 = vmatmul.mubr.f32.gmra.mrb[0].mxu0 %v2119
        %v2121 = vpop.f32.mrb[0].mxu0
        %v2122 = vadd.f32 %v1833, %v2121
        %v2123 = vpop.f32.mrb[0].mxu0
        %v2124 = vand.u32 %v308, 4294901760
        %2125 = vmatprep.mubr.f32.mxu0 %v2124
        %v2126 = vand.u32 %v307, 4294901760
        %2127 = vmatmul.mubr.f32.gmra.mrb[0].mxu0 %v2126
        %v2128 = vpop.f32.mrb[0].mxu0
        %v2129 = vadd.f32 %v1848, %v2128
        %v2130 = vpop.f32.mrb[0].mxu0
        %2131 = vdwg.mxu0
        %2132 = vmatprep.subr.mxu0 0.0
        %v2133 = vand.u32 %v341, 4294901760
        %v2134 = vsub.f32 %v341, %v2133
        %2135 = vmatpush1.msra.mxu0 %v2134
        %2136 = vmatprep.subr.mxu0 0.0
        %v2137 = vand.u32 %v342, 4294901760
        %v2138 = vsub.f32 %v342, %v2137
        %2139 = vmatpush1.msra.mxu0 %v2138
        %2140 = vmatprep.subr.mxu0 0.0
        %v2141 = vand.u32 %v343, 4294901760
        %v2142 = vsub.f32 %v343, %v2141
        %2143 = vmatpush1.msra.mxu0 %v2142
        %2144 = vmatprep.subr.mxu0 0.0
        %v2145 = vand.u32 %v344, 4294901760
        %v2146 = vsub.f32 %v344, %v2145
        %2147 = vmatpush1.msra.mxu0 %v2146
        %2148 = vmatprep.subr.mxu0 0.0
        %v2149 = vand.u32 %v345, 4294901760
        %v2150 = vsub.f32 %v345, %v2149
        %2151 = vmatpush1.msra.mxu0 %v2150
        %2152 = vmatprep.subr.mxu0 0.0
        %v2153 = vand.u32 %v346, 4294901760
        %v2154 = vsub.f32 %v346, %v2153
        %2155 = vmatpush1.msra.mxu0 %v2154
        %2156 = vmatprep.subr.mxu0 0.0
        %v2157 = vand.u32 %v347, 4294901760
        %v2158 = vsub.f32 %v347, %v2157
        %2159 = vmatpush1.msra.mxu0 %v2158
        %2160 = vmatprep.subr.mxu0 0.0
        %v2161 = vand.u32 %v348, 4294901760
        %v2162 = vsub.f32 %v348, %v2161
        %2163 = vmatpush1.msra.mxu0 %v2162
        %2164 = vmatprep.subr.mxu0 0.0
        %v2165 = vand.u32 %v349, 4294901760
        %v2166 = vsub.f32 %v349, %v2165
        %2167 = vmatpush1.msra.mxu0 %v2166
        %2168 = vmatprep.subr.mxu0 0.0
        %v2169 = vand.u32 %v350, 4294901760
        %v2170 = vsub.f32 %v350, %v2169
        %2171 = vmatpush1.msra.mxu0 %v2170
        %2172 = vmatprep.subr.mxu0 0.0
        %v2173 = vand.u32 %v351, 4294901760
        %v2174 = vsub.f32 %v351, %v2173
        %2175 = vmatpush1.msra.mxu0 %v2174
        %2176 = vmatprep.subr.mxu0 0.0
        %v2177 = vand.u32 %v352, 4294901760
        %v2178 = vsub.f32 %v352, %v2177
        %2179 = vmatpush1.msra.mxu0 %v2178
        %2180 = vmatprep.subr.mxu0 0.0
        %v2181 = vand.u32 %v353, 4294901760
        %v2182 = vsub.f32 %v353, %v2181
        %2183 = vmatpush1.msra.mxu0 %v2182
        %2184 = vmatprep.subr.mxu0 0.0
        %v2185 = vand.u32 %v354, 4294901760
        %v2186 = vsub.f32 %v354, %v2185
        %2187 = vmatpush1.msra.mxu0 %v2186
        %2188 = vmatprep.subr.mxu0 0.0
        %v2189 = vand.u32 %v355, 4294901760
        %v2190 = vsub.f32 %v355, %v2189
        %2191 = vmatpush1.msra.mxu0 %v2190
        %2192 = vmatprep.subr.mxu0 0.0
        %v2193 = vand.u32 %v356, 4294901760
        %v2194 = vsub.f32 %v356, %v2193
        %2195 = vmatpush1.msra.mxu0 %v2194
        %2196 = vmatprep.subr.mxu0 0.0
        %v2197 = vand.u32 %v357, 4294901760
        %v2198 = vsub.f32 %v357, %v2197
        %2199 = vmatpush1.msra.mxu0 %v2198
        %2200 = vmatprep.subr.mxu0 0.0
        %v2201 = vand.u32 %v358, 4294901760
        %v2202 = vsub.f32 %v358, %v2201
        %2203 = vmatpush1.msra.mxu0 %v2202
        %2204 = vmatprep.subr.mxu0 0.0
        %v2205 = vand.u32 %v359, 4294901760
        %v2206 = vsub.f32 %v359, %v2205
        %2207 = vmatpush1.msra.mxu0 %v2206
        %2208 = vmatprep.subr.mxu0 0.0
        %v2209 = vand.u32 %v360, 4294901760
        %v2210 = vsub.f32 %v360, %v2209
        %2211 = vmatpush1.msra.mxu0 %v2210
        %2212 = vmatprep.subr.mxu0 0.0
        %v2213 = vand.u32 %v361, 4294901760
        %v2214 = vsub.f32 %v361, %v2213
        %2215 = vmatpush1.msra.mxu0 %v2214
        %2216 = vmatprep.subr.mxu0 0.0
        %v2217 = vand.u32 %v362, 4294901760
        %v2218 = vsub.f32 %v362, %v2217
        %2219 = vmatpush1.msra.mxu0 %v2218
        %2220 = vmatprep.subr.mxu0 0.0
        %v2221 = vand.u32 %v363, 4294901760
        %v2222 = vsub.f32 %v363, %v2221
        %2223 = vmatpush1.msra.mxu0 %v2222
        %2224 = vmatprep.subr.mxu0 0.0
        %v2225 = vand.u32 %v364, 4294901760
        %v2226 = vsub.f32 %v364, %v2225
        %2227 = vmatpush1.msra.mxu0 %v2226
        %2228 = vmatprep.subr.mxu0 0.0
        %v2229 = vand.u32 %v365, 4294901760
        %v2230 = vsub.f32 %v365, %v2229
        %2231 = vmatpush1.msra.mxu0 %v2230
        %2232 = vmatprep.subr.mxu0 0.0
        %v2233 = vand.u32 %v366, 4294901760
        %v2234 = vsub.f32 %v366, %v2233
        %2235 = vmatpush1.msra.mxu0 %v2234
        %2236 = vmatprep.subr.mxu0 0.0
        %v2237 = vand.u32 %v367, 4294901760
        %v2238 = vsub.f32 %v367, %v2237
        %2239 = vmatpush1.msra.mxu0 %v2238
        %2240 = vmatprep.subr.mxu0 0.0
        %v2241 = vand.u32 %v368, 4294901760
        %v2242 = vsub.f32 %v368, %v2241
        %2243 = vmatpush1.msra.mxu0 %v2242
        %2244 = vmatprep.subr.mxu0 0.0
        %v2245 = vand.u32 %v369, 4294901760
        %v2246 = vsub.f32 %v369, %v2245
        %2247 = vmatpush1.msra.mxu0 %v2246
        %2248 = vmatprep.subr.mxu0 0.0
        %v2249 = vand.u32 %v370, 4294901760
        %v2250 = vsub.f32 %v370, %v2249
        %2251 = vmatpush1.msra.mxu0 %v2250
        %2252 = vmatprep.subr.mxu0 0.0
        %v2253 = vand.u32 %v371, 4294901760
        %v2254 = vsub.f32 %v371, %v2253
        %2255 = vmatpush1.msra.mxu0 %v2254
        %2256 = vmatprep.subr.mxu0 0.0
        %v2257 = vand.u32 %v372, 4294901760
        %v2258 = vsub.f32 %v372, %v2257
        %2259 = vmatpush1.msra.mxu0 %v2258
        %v2260 = vand.u32 %v280, 4294901760
        %v2261 = vsub.f32 %v280, %v2260
        %2262 = vmatprep.mubr.f32.mxu0 %v2261
        %v2263 = vand.u32 %v279, 4294901760
        %v2264 = vsub.f32 %v279, %v2263
        %2265 = vmatmul.mubr.f32.gmra.mrb[0].mxu0 %v2264
        %v2266 = vpop.f32.mrb[0].mxu0
        %v2267 = vadd.f32 %v2080, %v2266
        %v2268 = vpop.f32.mrb[0].mxu0
        %v2269 = vand.u32 %v284, 4294901760
        %v2270 = vsub.f32 %v284, %v2269
        %2271 = vmatprep.mubr.f32.mxu0 %v2270
        %v2272 = vand.u32 %v283, 4294901760
        %v2273 = vsub.f32 %v283, %v2272
        %2274 = vmatmul.mubr.f32.gmra.mrb[0].mxu0 %v2273
        %v2275 = vpop.f32.mrb[0].mxu0
        %v2276 = vadd.f32 %v2087, %v2275
        %v2277 = vpop.f32.mrb[0].mxu0
        %v2278 = vand.u32 %v288, 4294901760
        %v2279 = vsub.f32 %v288, %v2278
        %2280 = vmatprep.mubr.f32.mxu0 %v2279
        %v2281 = vand.u32 %v287, 4294901760
        %v2282 = vsub.f32 %v287, %v2281
        %2283 = vmatmul.mubr.f32.gmra.mrb[0].mxu0 %v2282
        %v2284 = vpop.f32.mrb[0].mxu0
        %v2285 = vadd.f32 %v2094, %v2284
        %v2286 = vpop.f32.mrb[0].mxu0
        %v2287 = vand.u32 %v292, 4294901760
        %v2288 = vsub.f32 %v292, %v2287
        %2289 = vmatprep.mubr.f32.mxu0 %v2288
        %v2290 = vand.u32 %v291, 4294901760
        %v2291 = vsub.f32 %v291, %v2290
        %2292 = vmatmul.mubr.f32.gmra.mrb[0].mxu0 %v2291
        %v2293 = vpop.f32.mrb[0].mxu0
        %v2294 = vadd.f32 %v2101, %v2293
        %v2295 = vpop.f32.mrb[0].mxu0
        %v2296 = vand.u32 %v296, 4294901760
        %v2297 = vsub.f32 %v296, %v2296
        %2298 = vmatprep.mubr.f32.mxu0 %v2297
        %v2299 = vand.u32 %v295, 4294901760
        %v2300 = vsub.f32 %v295, %v2299
        %2301 = vmatmul.mubr.f32.gmra.mrb[0].mxu0 %v2300
        %v2302 = vpop.f32.mrb[0].mxu0
        %v2303 = vadd.f32 %v2108, %v2302
        %v2304 = vpop.f32.mrb[0].mxu0
        %v2305 = vand.u32 %v300, 4294901760
        %v2306 = vsub.f32 %v300, %v2305
        %2307 = vmatprep.mubr.f32.mxu0 %v2306
        %v2308 = vand.u32 %v299, 4294901760
        %v2309 = vsub.f32 %v299, %v2308
        %2310 = vmatmul.mubr.f32.gmra.mrb[0].mxu0 %v2309
        %v2311 = vpop.f32.mrb[0].mxu0
        %v2312 = vadd.f32 %v2115, %v2311
        %v2313 = vpop.f32.mrb[0].mxu0
        %v2314 = vand.u32 %v304, 4294901760
        %v2315 = vsub.f32 %v304, %v2314
        %2316 = vmatprep.mubr.f32.mxu0 %v2315
        %v2317 = vand.u32 %v303, 4294901760
        %v2318 = vsub.f32 %v303, %v2317
        %2319 = vmatmul.mubr.f32.gmra.mrb[0].mxu0 %v2318
        %v2320 = vpop.f32.mrb[0].mxu0
        %v2321 = vadd.f32 %v2122, %v2320
        %v2322 = vpop.f32.mrb[0].mxu0
        %v2323 = vand.u32 %v308, 4294901760
        %v2324 = vsub.f32 %v308, %v2323
        %2325 = vmatprep.mubr.f32.mxu0 %v2324
        %v2326 = vand.u32 %v307, 4294901760
        %v2327 = vsub.f32 %v307, %v2326
        %2328 = vmatmul.mubr.f32.gmra.mrb[0].mxu0 %v2327
        %v2329 = vpop.f32.mrb[0].mxu0
        %v2330 = vadd.f32 %v2129, %v2329
        %v2331 = vpop.f32.mrb[0].mxu0
        %2332 = vdwg.mxu0
        %2333 = vmatprep.subr.mxu0 0.0
        %v2334 = vand.u32 %v341, 4294901760
        %2335 = vmatpush1.msra.mxu0 %v2334
        %2336 = vmatprep.subr.mxu0 0.0
        %v2337 = vand.u32 %v342, 4294901760
        %2338 = vmatpush1.msra.mxu0 %v2337
        %2339 = vmatprep.subr.mxu0 0.0
        %v2340 = vand.u32 %v343, 4294901760
        %2341 = vmatpush1.msra.mxu0 %v2340
        %2342 = vmatprep.subr.mxu0 0.0
        %v2343 = vand.u32 %v344, 4294901760
        %2344 = vmatpush1.msra.mxu0 %v2343
        %2345 = vmatprep.subr.mxu0 0.0
        %v2346 = vand.u32 %v345, 4294901760
        %2347 = vmatpush1.msra.mxu0 %v2346
        %2348 = vmatprep.subr.mxu0 0.0
        %v2349 = vand.u32 %v346, 4294901760
        %2350 = vmatpush1.msra.mxu0 %v2349
        %2351 = vmatprep.subr.mxu0 0.0
        %v2352 = vand.u32 %v347, 4294901760
        %2353 = vmatpush1.msra.mxu0 %v2352
        %2354 = vmatprep.subr.mxu0 0.0
        %v2355 = vand.u32 %v348, 4294901760
        %2356 = vmatpush1.msra.mxu0 %v2355
        %2357 = vmatprep.subr.mxu0 0.0
        %v2358 = vand.u32 %v349, 4294901760
        %2359 = vmatpush1.msra.mxu0 %v2358
        %2360 = vmatprep.subr.mxu0 0.0
        %v2361 = vand.u32 %v350, 4294901760
        %2362 = vmatpush1.msra.mxu0 %v2361
        %2363 = vmatprep.subr.mxu0 0.0
        %v2364 = vand.u32 %v351, 4294901760
        %2365 = vmatpush1.msra.mxu0 %v2364
        %2366 = vmatprep.subr.mxu0 0.0
        %v2367 = vand.u32 %v352, 4294901760
        %2368 = vmatpush1.msra.mxu0 %v2367
        %2369 = vmatprep.subr.mxu0 0.0
        %v2370 = vand.u32 %v353, 4294901760
        %2371 = vmatpush1.msra.mxu0 %v2370
        %2372 = vmatprep.subr.mxu0 0.0
        %v2373 = vand.u32 %v354, 4294901760
        %2374 = vmatpush1.msra.mxu0 %v2373
        %2375 = vmatprep.subr.mxu0 0.0
        %v2376 = vand.u32 %v355, 4294901760
        %2377 = vmatpush1.msra.mxu0 %v2376
        %2378 = vmatprep.subr.mxu0 0.0
        %v2379 = vand.u32 %v356, 4294901760
        %2380 = vmatpush1.msra.mxu0 %v2379
        %2381 = vmatprep.subr.mxu0 0.0
        %v2382 = vand.u32 %v357, 4294901760
        %2383 = vmatpush1.msra.mxu0 %v2382
        %2384 = vmatprep.subr.mxu0 0.0
        %v2385 = vand.u32 %v358, 4294901760
        %2386 = vmatpush1.msra.mxu0 %v2385
        %2387 = vmatprep.subr.mxu0 0.0
        %v2388 = vand.u32 %v359, 4294901760
        %2389 = vmatpush1.msra.mxu0 %v2388
        %2390 = vmatprep.subr.mxu0 0.0
        %v2391 = vand.u32 %v360, 4294901760
        %2392 = vmatpush1.msra.mxu0 %v2391
        %2393 = vmatprep.subr.mxu0 0.0
        %v2394 = vand.u32 %v361, 4294901760
        %2395 = vmatpush1.msra.mxu0 %v2394
        %2396 = vmatprep.subr.mxu0 0.0
        %v2397 = vand.u32 %v362, 4294901760
        %2398 = vmatpush1.msra.mxu0 %v2397
        %2399 = vmatprep.subr.mxu0 0.0
        %v2400 = vand.u32 %v363, 4294901760
        %2401 = vmatpush1.msra.mxu0 %v2400
        %2402 = vmatprep.subr.mxu0 0.0
        %v2403 = vand.u32 %v364, 4294901760
        %2404 = vmatpush1.msra.mxu0 %v2403
        %2405 = vmatprep.subr.mxu0 0.0
        %v2406 = vand.u32 %v365, 4294901760
        %2407 = vmatpush1.msra.mxu0 %v2406
        %2408 = vmatprep.subr.mxu0 0.0
        %v2409 = vand.u32 %v366, 4294901760
        %2410 = vmatpush1.msra.mxu0 %v2409
        %2411 = vmatprep.subr.mxu0 0.0
        %v2412 = vand.u32 %v367, 4294901760
        %2413 = vmatpush1.msra.mxu0 %v2412
        %2414 = vmatprep.subr.mxu0 0.0
        %v2415 = vand.u32 %v368, 4294901760
        %2416 = vmatpush1.msra.mxu0 %v2415
        %2417 = vmatprep.subr.mxu0 0.0
        %v2418 = vand.u32 %v369, 4294901760
        %2419 = vmatpush1.msra.mxu0 %v2418
        %2420 = vmatprep.subr.mxu0 0.0
        %v2421 = vand.u32 %v370, 4294901760
        %2422 = vmatpush1.msra.mxu0 %v2421
        %2423 = vmatprep.subr.mxu0 0.0
        %v2424 = vand.u32 %v371, 4294901760
        %2425 = vmatpush1.msra.mxu0 %v2424
        %2426 = vmatprep.subr.mxu0 0.0
        %v2427 = vand.u32 %v372, 4294901760
        %2428 = vmatpush1.msra.mxu0 %v2427
        %v2429 = vand.u32 %v280, 4294901760
        %v2430 = vsub.f32 %v280, %v2429
        %v2431 = vand.u32 %v2430, 4294901760
        %2432 = vmatprep.mubr.f32.mxu0 %v2431
        %v2433 = vand.u32 %v279, 4294901760
        %v2434 = vsub.f32 %v279, %v2433
        %v2435 = vand.u32 %v2434, 4294901760
        %2436 = vmatmul.mubr.f32.gmra.mrb[0].mxu0 %v2435
        %v2437 = vpop.f32.mrb[0].mxu0
        %v2438 = vadd.f32 %v2267, %v2437
        %v2439 = vpop.f32.mrb[0].mxu0
        %v2440 = vand.u32 %v284, 4294901760
        %v2441 = vsub.f32 %v284, %v2440
        %v2442 = vand.u32 %v2441, 4294901760
        %2443 = vmatprep.mubr.f32.mxu0 %v2442
        %v2444 = vand.u32 %v283, 4294901760
        %v2445 = vsub.f32 %v283, %v2444
        %v2446 = vand.u32 %v2445, 4294901760
        %2447 = vmatmul.mubr.f32.gmra.mrb[0].mxu0 %v2446
        %v2448 = vpop.f32.mrb[0].mxu0
        %v2449 = vadd.f32 %v2276, %v2448
        %v2450 = vpop.f32.mrb[0].mxu0
        %v2451 = vand.u32 %v288, 4294901760
        %v2452 = vsub.f32 %v288, %v2451
        %v2453 = vand.u32 %v2452, 4294901760
        %2454 = vmatprep.mubr.f32.mxu0 %v2453
        %v2455 = vand.u32 %v287, 4294901760
        %v2456 = vsub.f32 %v287, %v2455
        %v2457 = vand.u32 %v2456, 4294901760
        %2458 = vmatmul.mubr.f32.gmra.mrb[0].mxu0 %v2457
        %v2459 = vpop.f32.mrb[0].mxu0
        %v2460 = vadd.f32 %v2285, %v2459
        %v2461 = vpop.f32.mrb[0].mxu0
        %v2462 = vand.u32 %v292, 4294901760
        %v2463 = vsub.f32 %v292, %v2462
        %v2464 = vand.u32 %v2463, 4294901760
        %2465 = vmatprep.mubr.f32.mxu0 %v2464
        %v2466 = vand.u32 %v291, 4294901760
        %v2467 = vsub.f32 %v291, %v2466
        %v2468 = vand.u32 %v2467, 4294901760
        %2469 = vmatmul.mubr.f32.gmra.mrb[0].mxu0 %v2468
        %v2470 = vpop.f32.mrb[0].mxu0
        %v2471 = vadd.f32 %v2294, %v2470
        %v2472 = vpop.f32.mrb[0].mxu0
        %v2473 = vand.u32 %v296, 4294901760
        %v2474 = vsub.f32 %v296, %v2473
        %v2475 = vand.u32 %v2474, 4294901760
        %2476 = vmatprep.mubr.f32.mxu0 %v2475
        %v2477 = vand.u32 %v295, 4294901760
        %v2478 = vsub.f32 %v295, %v2477
        %v2479 = vand.u32 %v2478, 4294901760
        %2480 = vmatmul.mubr.f32.gmra.mrb[0].mxu0 %v2479
        %v2481 = vpop.f32.mrb[0].mxu0
        %v2482 = vadd.f32 %v2303, %v2481
        %v2483 = vpop.f32.mrb[0].mxu0
        %v2484 = vand.u32 %v300, 4294901760
        %v2485 = vsub.f32 %v300, %v2484
        %v2486 = vand.u32 %v2485, 4294901760
        %2487 = vmatprep.mubr.f32.mxu0 %v2486
        %v2488 = vand.u32 %v299, 4294901760
        %v2489 = vsub.f32 %v299, %v2488
        %v2490 = vand.u32 %v2489, 4294901760
        %2491 = vmatmul.mubr.f32.gmra.mrb[0].mxu0 %v2490
        %v2492 = vpop.f32.mrb[0].mxu0
        %v2493 = vadd.f32 %v2312, %v2492
        %v2494 = vpop.f32.mrb[0].mxu0
        %v2495 = vand.u32 %v304, 4294901760
        %v2496 = vsub.f32 %v304, %v2495
        %v2497 = vand.u32 %v2496, 4294901760
        %2498 = vmatprep.mubr.f32.mxu0 %v2497
        %v2499 = vand.u32 %v303, 4294901760
        %v2500 = vsub.f32 %v303, %v2499
        %v2501 = vand.u32 %v2500, 4294901760
        %2502 = vmatmul.mubr.f32.gmra.mrb[0].mxu0 %v2501
        %v2503 = vpop.f32.mrb[0].mxu0
        %v2504 = vadd.f32 %v2321, %v2503
        %v2505 = vpop.f32.mrb[0].mxu0
        %v2506 = vand.u32 %v308, 4294901760
        %v2507 = vsub.f32 %v308, %v2506
        %v2508 = vand.u32 %v2507, 4294901760
        %2509 = vmatprep.mubr.f32.mxu0 %v2508
        %v2510 = vand.u32 %v307, 4294901760
        %v2511 = vsub.f32 %v307, %v2510
        %v2512 = vand.u32 %v2511, 4294901760
        %2513 = vmatmul.mubr.f32.gmra.mrb[0].mxu0 %v2512
        %v2514 = vpop.f32.mrb[0].mxu0
        %v2515 = vadd.f32 %v2330, %v2514
        %v2516 = vpop.f32.mrb[0].mxu0
        %2517 = vdwg.mxu0
        %2518 = vmatprep.subr.mxu0 0.0
        %v2519 = vand.u32 %v341, 4294901760
        %v2520 = vsub.f32 %v341, %v2519
        %v2521 = vand.u32 %v2520, 4294901760
        %2522 = vmatpush1.msra.mxu0 %v2521
        %2523 = vmatprep.subr.mxu0 0.0
        %v2524 = vand.u32 %v342, 4294901760
        %v2525 = vsub.f32 %v342, %v2524
        %v2526 = vand.u32 %v2525, 4294901760
        %2527 = vmatpush1.msra.mxu0 %v2526
        %2528 = vmatprep.subr.mxu0 0.0
        %v2529 = vand.u32 %v343, 4294901760
        %v2530 = vsub.f32 %v343, %v2529
        %v2531 = vand.u32 %v2530, 4294901760
        %2532 = vmatpush1.msra.mxu0 %v2531
        %2533 = vmatprep.subr.mxu0 0.0
        %v2534 = vand.u32 %v344, 4294901760
        %v2535 = vsub.f32 %v344, %v2534
        %v2536 = vand.u32 %v2535, 4294901760
        %2537 = vmatpush1.msra.mxu0 %v2536
        %2538 = vmatprep.subr.mxu0 0.0
        %v2539 = vand.u32 %v345, 4294901760
        %v2540 = vsub.f32 %v345, %v2539
        %v2541 = vand.u32 %v2540, 4294901760
        %2542 = vmatpush1.msra.mxu0 %v2541
        %2543 = vmatprep.subr.mxu0 0.0
        %v2544 = vand.u32 %v346, 4294901760
        %v2545 = vsub.f32 %v346, %v2544
        %v2546 = vand.u32 %v2545, 4294901760
        %2547 = vmatpush1.msra.mxu0 %v2546
        %2548 = vmatprep.subr.mxu0 0.0
        %v2549 = vand.u32 %v347, 4294901760
        %v2550 = vsub.f32 %v347, %v2549
        %v2551 = vand.u32 %v2550, 4294901760
        %2552 = vmatpush1.msra.mxu0 %v2551
        %2553 = vmatprep.subr.mxu0 0.0
        %v2554 = vand.u32 %v348, 4294901760
        %v2555 = vsub.f32 %v348, %v2554
        %v2556 = vand.u32 %v2555, 4294901760
        %2557 = vmatpush1.msra.mxu0 %v2556
        %2558 = vmatprep.subr.mxu0 0.0
        %v2559 = vand.u32 %v349, 4294901760
        %v2560 = vsub.f32 %v349, %v2559
        %v2561 = vand.u32 %v2560, 4294901760
        %2562 = vmatpush1.msra.mxu0 %v2561
        %2563 = vmatprep.subr.mxu0 0.0
        %v2564 = vand.u32 %v350, 4294901760
        %v2565 = vsub.f32 %v350, %v2564
        %v2566 = vand.u32 %v2565, 4294901760
        %2567 = vmatpush1.msra.mxu0 %v2566
        %2568 = vmatprep.subr.mxu0 0.0
        %v2569 = vand.u32 %v351, 4294901760
        %v2570 = vsub.f32 %v351, %v2569
        %v2571 = vand.u32 %v2570, 4294901760
        %2572 = vmatpush1.msra.mxu0 %v2571
        %2573 = vmatprep.subr.mxu0 0.0
        %v2574 = vand.u32 %v352, 4294901760
        %v2575 = vsub.f32 %v352, %v2574
        %v2576 = vand.u32 %v2575, 4294901760
        %2577 = vmatpush1.msra.mxu0 %v2576
        %2578 = vmatprep.subr.mxu0 0.0
        %v2579 = vand.u32 %v353, 4294901760
        %v2580 = vsub.f32 %v353, %v2579
        %v2581 = vand.u32 %v2580, 4294901760
        %2582 = vmatpush1.msra.mxu0 %v2581
        %2583 = vmatprep.subr.mxu0 0.0
        %v2584 = vand.u32 %v354, 4294901760
        %v2585 = vsub.f32 %v354, %v2584
        %v2586 = vand.u32 %v2585, 4294901760
        %2587 = vmatpush1.msra.mxu0 %v2586
        %2588 = vmatprep.subr.mxu0 0.0
        %v2589 = vand.u32 %v355, 4294901760
        %v2590 = vsub.f32 %v355, %v2589
        %v2591 = vand.u32 %v2590, 4294901760
        %2592 = vmatpush1.msra.mxu0 %v2591
        %2593 = vmatprep.subr.mxu0 0.0
        %v2594 = vand.u32 %v356, 4294901760
        %v2595 = vsub.f32 %v356, %v2594
        %v2596 = vand.u32 %v2595, 4294901760
        %2597 = vmatpush1.msra.mxu0 %v2596
        %2598 = vmatprep.subr.mxu0 0.0
        %v2599 = vand.u32 %v357, 4294901760
        %v2600 = vsub.f32 %v357, %v2599
        %v2601 = vand.u32 %v2600, 4294901760
        %2602 = vmatpush1.msra.mxu0 %v2601
        %2603 = vmatprep.subr.mxu0 0.0
        %v2604 = vand.u32 %v358, 4294901760
        %v2605 = vsub.f32 %v358, %v2604
        %v2606 = vand.u32 %v2605, 4294901760
        %2607 = vmatpush1.msra.mxu0 %v2606
        %2608 = vmatprep.subr.mxu0 0.0
        %v2609 = vand.u32 %v359, 4294901760
        %v2610 = vsub.f32 %v359, %v2609
        %v2611 = vand.u32 %v2610, 4294901760
        %2612 = vmatpush1.msra.mxu0 %v2611
        %2613 = vmatprep.subr.mxu0 0.0
        %v2614 = vand.u32 %v360, 4294901760
        %v2615 = vsub.f32 %v360, %v2614
        %v2616 = vand.u32 %v2615, 4294901760
        %2617 = vmatpush1.msra.mxu0 %v2616
        %2618 = vmatprep.subr.mxu0 0.0
        %v2619 = vand.u32 %v361, 4294901760
        %v2620 = vsub.f32 %v361, %v2619
        %v2621 = vand.u32 %v2620, 4294901760
        %2622 = vmatpush1.msra.mxu0 %v2621
        %2623 = vmatprep.subr.mxu0 0.0
        %v2624 = vand.u32 %v362, 4294901760
        %v2625 = vsub.f32 %v362, %v2624
        %v2626 = vand.u32 %v2625, 4294901760
        %2627 = vmatpush1.msra.mxu0 %v2626
        %2628 = vmatprep.subr.mxu0 0.0
        %v2629 = vand.u32 %v363, 4294901760
        %v2630 = vsub.f32 %v363, %v2629
        %v2631 = vand.u32 %v2630, 4294901760
        %2632 = vmatpush1.msra.mxu0 %v2631
        %2633 = vmatprep.subr.mxu0 0.0
        %v2634 = vand.u32 %v364, 4294901760
        %v2635 = vsub.f32 %v364, %v2634
        %v2636 = vand.u32 %v2635, 4294901760
        %2637 = vmatpush1.msra.mxu0 %v2636
        %2638 = vmatprep.subr.mxu0 0.0
        %v2639 = vand.u32 %v365, 4294901760
        %v2640 = vsub.f32 %v365, %v2639
        %v2641 = vand.u32 %v2640, 4294901760
        %2642 = vmatpush1.msra.mxu0 %v2641
        %2643 = vmatprep.subr.mxu0 0.0
        %v2644 = vand.u32 %v366, 4294901760
        %v2645 = vsub.f32 %v366, %v2644
        %v2646 = vand.u32 %v2645, 4294901760
        %2647 = vmatpush1.msra.mxu0 %v2646
        %2648 = vmatprep.subr.mxu0 0.0
        %v2649 = vand.u32 %v367, 4294901760
        %v2650 = vsub.f32 %v367, %v2649
        %v2651 = vand.u32 %v2650, 4294901760
        %2652 = vmatpush1.msra.mxu0 %v2651
        %2653 = vmatprep.subr.mxu0 0.0
        %v2654 = vand.u32 %v368, 4294901760
        %v2655 = vsub.f32 %v368, %v2654
        %v2656 = vand.u32 %v2655, 4294901760
        %2657 = vmatpush1.msra.mxu0 %v2656
        %2658 = vmatprep.subr.mxu0 0.0
        %v2659 = vand.u32 %v369, 4294901760
        %v2660 = vsub.f32 %v369, %v2659
        %v2661 = vand.u32 %v2660, 4294901760
        %2662 = vmatpush1.msra.mxu0 %v2661
        %2663 = vmatprep.subr.mxu0 0.0
        %v2664 = vand.u32 %v370, 4294901760
        %v2665 = vsub.f32 %v370, %v2664
        %v2666 = vand.u32 %v2665, 4294901760
        %2667 = vmatpush1.msra.mxu0 %v2666
        %2668 = vmatprep.subr.mxu0 0.0
        %v2669 = vand.u32 %v371, 4294901760
        %v2670 = vsub.f32 %v371, %v2669
        %v2671 = vand.u32 %v2670, 4294901760
        %2672 = vmatpush1.msra.mxu0 %v2671
        %2673 = vmatprep.subr.mxu0 0.0
        %v2674 = vand.u32 %v372, 4294901760
        %v2675 = vsub.f32 %v372, %v2674
        %v2676 = vand.u32 %v2675, 4294901760
        %2677 = vmatpush1.msra.mxu0 %v2676
        %v2678 = vand.u32 %v280, 4294901760
        %2679 = vmatprep.mubr.f32.mxu0 %v2678
        %v2680 = vand.u32 %v279, 4294901760
        %2681 = vmatmul.mubr.f32.gmra.mrb[0].mxu0 %v2680
        %v2682 = vpop.f32.mrb[0].mxu0
        %v2683 = vadd.f32 %v2438, %v2682
        %v2684 = vpop.f32.mrb[0].mxu0
        %v2685 = vand.u32 %v284, 4294901760
        %2686 = vmatprep.mubr.f32.mxu0 %v2685
        %v2687 = vand.u32 %v283, 4294901760
        %2688 = vmatmul.mubr.f32.gmra.mrb[0].mxu0 %v2687
        %v2689 = vpop.f32.mrb[0].mxu0
        %v2690 = vadd.f32 %v2449, %v2689
        %v2691 = vpop.f32.mrb[0].mxu0
        %v2692 = vand.u32 %v288, 4294901760
        %2693 = vmatprep.mubr.f32.mxu0 %v2692
        %v2694 = vand.u32 %v287, 4294901760
        %2695 = vmatmul.mubr.f32.gmra.mrb[0].mxu0 %v2694
        %v2696 = vpop.f32.mrb[0].mxu0
        %v2697 = vadd.f32 %v2460, %v2696
        %v2698 = vpop.f32.mrb[0].mxu0
        %v2699 = vand.u32 %v292, 4294901760
        %2700 = vmatprep.mubr.f32.mxu0 %v2699
        %v2701 = vand.u32 %v291, 4294901760
        %2702 = vmatmul.mubr.f32.gmra.mrb[0].mxu0 %v2701
        %v2703 = vpop.f32.mrb[0].mxu0
        %v2704 = vadd.f32 %v2471, %v2703
        %v2705 = vpop.f32.mrb[0].mxu0
        %v2706 = vand.u32 %v296, 4294901760
        %2707 = vmatprep.mubr.f32.mxu0 %v2706
        %v2708 = vand.u32 %v295, 4294901760
        %2709 = vmatmul.mubr.f32.gmra.mrb[0].mxu0 %v2708
        %v2710 = vpop.f32.mrb[0].mxu0
        %v2711 = vadd.f32 %v2482, %v2710
        %v2712 = vpop.f32.mrb[0].mxu0
        %v2713 = vand.u32 %v300, 4294901760
        %2714 = vmatprep.mubr.f32.mxu0 %v2713
        %v2715 = vand.u32 %v299, 4294901760
        %2716 = vmatmul.mubr.f32.gmra.mrb[0].mxu0 %v2715
        %v2717 = vpop.f32.mrb[0].mxu0
        %v2718 = vadd.f32 %v2493, %v2717
        %v2719 = vpop.f32.mrb[0].mxu0
        %v2720 = vand.u32 %v304, 4294901760
        %2721 = vmatprep.mubr.f32.mxu0 %v2720
        %v2722 = vand.u32 %v303, 4294901760
        %2723 = vmatmul.mubr.f32.gmra.mrb[0].mxu0 %v2722
        %v2724 = vpop.f32.mrb[0].mxu0
        %v2725 = vadd.f32 %v2504, %v2724
        %v2726 = vpop.f32.mrb[0].mxu0
        %v2727 = vand.u32 %v308, 4294901760
        %2728 = vmatprep.mubr.f32.mxu0 %v2727
        %v2729 = vand.u32 %v307, 4294901760
        %2730 = vmatmul.mubr.f32.gmra.mrb[0].mxu0 %v2729
        %v2731 = vpop.f32.mrb[0].mxu0
        %v2732 = vadd.f32 %v2515, %v2731
        %v2733 = vpop.f32.mrb[0].mxu0
        %2734 = vdwg.mxu0
        %2735 = vmatprep.subr.mxu0 0.0
        %v2736 = vand.u32 %v341, 4294901760
        %2737 = vmatpush1.msra.mxu0 %v2736
        %2738 = vmatprep.subr.mxu0 0.0
        %v2739 = vand.u32 %v342, 4294901760
        %2740 = vmatpush1.msra.mxu0 %v2739
        %2741 = vmatprep.subr.mxu0 0.0
        %v2742 = vand.u32 %v343, 4294901760
        %2743 = vmatpush1.msra.mxu0 %v2742
        %2744 = vmatprep.subr.mxu0 0.0
        %v2745 = vand.u32 %v344, 4294901760
        %2746 = vmatpush1.msra.mxu0 %v2745
        %2747 = vmatprep.subr.mxu0 0.0
        %v2748 = vand.u32 %v345, 4294901760
        %2749 = vmatpush1.msra.mxu0 %v2748
        %2750 = vmatprep.subr.mxu0 0.0
        %v2751 = vand.u32 %v346, 4294901760
        %2752 = vmatpush1.msra.mxu0 %v2751
        %2753 = vmatprep.subr.mxu0 0.0
        %v2754 = vand.u32 %v347, 4294901760
        %2755 = vmatpush1.msra.mxu0 %v2754
        %2756 = vmatprep.subr.mxu0 0.0
        %v2757 = vand.u32 %v348, 4294901760
        %2758 = vmatpush1.msra.mxu0 %v2757
        %2759 = vmatprep.subr.mxu0 0.0
        %v2760 = vand.u32 %v349, 4294901760
        %2761 = vmatpush1.msra.mxu0 %v2760
        %2762 = vmatprep.subr.mxu0 0.0
        %v2763 = vand.u32 %v350, 4294901760
        %2764 = vmatpush1.msra.mxu0 %v2763
        %2765 = vmatprep.subr.mxu0 0.0
        %v2766 = vand.u32 %v351, 4294901760
        %2767 = vmatpush1.msra.mxu0 %v2766
        %2768 = vmatprep.subr.mxu0 0.0
        %v2769 = vand.u32 %v352, 4294901760
        %2770 = vmatpush1.msra.mxu0 %v2769
        %2771 = vmatprep.subr.mxu0 0.0
        %v2772 = vand.u32 %v353, 4294901760
        %2773 = vmatpush1.msra.mxu0 %v2772
        %2774 = vmatprep.subr.mxu0 0.0
        %v2775 = vand.u32 %v354, 4294901760
        %2776 = vmatpush1.msra.mxu0 %v2775
        %2777 = vmatprep.subr.mxu0 0.0
        %v2778 = vand.u32 %v355, 4294901760
        %2779 = vmatpush1.msra.mxu0 %v2778
        %2780 = vmatprep.subr.mxu0 0.0
        %v2781 = vand.u32 %v356, 4294901760
        %2782 = vmatpush1.msra.mxu0 %v2781
        %2783 = vmatprep.subr.mxu0 0.0
        %v2784 = vand.u32 %v357, 4294901760
        %2785 = vmatpush1.msra.mxu0 %v2784
        %2786 = vmatprep.subr.mxu0 0.0
        %v2787 = vand.u32 %v358, 4294901760
        %2788 = vmatpush1.msra.mxu0 %v2787
        %2789 = vmatprep.subr.mxu0 0.0
        %v2790 = vand.u32 %v359, 4294901760
        %2791 = vmatpush1.msra.mxu0 %v2790
        %2792 = vmatprep.subr.mxu0 0.0
        %v2793 = vand.u32 %v360, 4294901760
        %2794 = vmatpush1.msra.mxu0 %v2793
        %2795 = vmatprep.subr.mxu0 0.0
        %v2796 = vand.u32 %v361, 4294901760
        %2797 = vmatpush1.msra.mxu0 %v2796
        %2798 = vmatprep.subr.mxu0 0.0
        %v2799 = vand.u32 %v362, 4294901760
        %2800 = vmatpush1.msra.mxu0 %v2799
        %2801 = vmatprep.subr.mxu0 0.0
        %v2802 = vand.u32 %v363, 4294901760
        %2803 = vmatpush1.msra.mxu0 %v2802
        %2804 = vmatprep.subr.mxu0 0.0
        %v2805 = vand.u32 %v364, 4294901760
        %2806 = vmatpush1.msra.mxu0 %v2805
        %2807 = vmatprep.subr.mxu0 0.0
        %v2808 = vand.u32 %v365, 4294901760
        %2809 = vmatpush1.msra.mxu0 %v2808
        %2810 = vmatprep.subr.mxu0 0.0
        %v2811 = vand.u32 %v366, 4294901760
        %2812 = vmatpush1.msra.mxu0 %v2811
        %2813 = vmatprep.subr.mxu0 0.0
        %v2814 = vand.u32 %v367, 4294901760
        %2815 = vmatpush1.msra.mxu0 %v2814
        %2816 = vmatprep.subr.mxu0 0.0
        %v2817 = vand.u32 %v368, 4294901760
        %2818 = vmatpush1.msra.mxu0 %v2817
        %2819 = vmatprep.subr.mxu0 0.0
        %v2820 = vand.u32 %v369, 4294901760
        %2821 = vmatpush1.msra.mxu0 %v2820
        %2822 = vmatprep.subr.mxu0 0.0
        %v2823 = vand.u32 %v370, 4294901760
        %2824 = vmatpush1.msra.mxu0 %v2823
        %2825 = vmatprep.subr.mxu0 0.0
        %v2826 = vand.u32 %v371, 4294901760
        %2827 = vmatpush1.msra.mxu0 %v2826
        %2828 = vmatprep.subr.mxu0 0.0
        %v2829 = vand.u32 %v372, 4294901760
        %2830 = vmatpush1.msra.mxu0 %v2829
        %v2831 = vand.u32 %v280, 4294901760
        %2832 = vmatprep.mubr.f32.mxu0 %v2831
        %v2833 = vand.u32 %v279, 4294901760
        %2834 = vmatmul.mubr.f32.gmra.mrb[0].mxu0 %v2833
        %v2835 = vpop.f32.mrb[0].mxu0
        %v2836 = vadd.f32 %v2683, %v2835
        %v2837 = vpop.f32.mrb[0].mxu0
        %v2838 = vand.u32 %v284, 4294901760
        %2839 = vmatprep.mubr.f32.mxu0 %v2838
        %v2840 = vand.u32 %v283, 4294901760
        %2841 = vmatmul.mubr.f32.gmra.mrb[0].mxu0 %v2840
        %v2842 = vpop.f32.mrb[0].mxu0
        %v2843 = vadd.f32 %v2690, %v2842
        %v2844 = vpop.f32.mrb[0].mxu0
        %v2845 = vand.u32 %v288, 4294901760
        %2846 = vmatprep.mubr.f32.mxu0 %v2845
        %v2847 = vand.u32 %v287, 4294901760
        %2848 = vmatmul.mubr.f32.gmra.mrb[0].mxu0 %v2847
        %v2849 = vpop.f32.mrb[0].mxu0
        %v2850 = vadd.f32 %v2697, %v2849
        %v2851 = vpop.f32.mrb[0].mxu0
        %v2852 = vand.u32 %v292, 4294901760
        %2853 = vmatprep.mubr.f32.mxu0 %v2852
        %v2854 = vand.u32 %v291, 4294901760
        %2855 = vmatmul.mubr.f32.gmra.mrb[0].mxu0 %v2854
        %v2856 = vpop.f32.mrb[0].mxu0
        %v2857 = vadd.f32 %v2704, %v2856
        %v2858 = vpop.f32.mrb[0].mxu0
        %v2859 = vand.u32 %v296, 4294901760
        %2860 = vmatprep.mubr.f32.mxu0 %v2859
        %v2861 = vand.u32 %v295, 4294901760
        %2862 = vmatmul.mubr.f32.gmra.mrb[0].mxu0 %v2861
        %v2863 = vpop.f32.mrb[0].mxu0
        %v2864 = vadd.f32 %v2711, %v2863
        %v2865 = vpop.f32.mrb[0].mxu0
        %v2866 = vand.u32 %v300, 4294901760
        %2867 = vmatprep.mubr.f32.mxu0 %v2866
        %v2868 = vand.u32 %v299, 4294901760
        %2869 = vmatmul.mubr.f32.gmra.mrb[0].mxu0 %v2868
        %v2870 = vpop.f32.mrb[0].mxu0
        %v2871 = vadd.f32 %v2718, %v2870
        %v2872 = vpop.f32.mrb[0].mxu0
        %v2873 = vand.u32 %v304, 4294901760
        %2874 = vmatprep.mubr.f32.mxu0 %v2873
        %v2875 = vand.u32 %v303, 4294901760
        %2876 = vmatmul.mubr.f32.gmra.mrb[0].mxu0 %v2875
        %v2877 = vpop.f32.mrb[0].mxu0
        %v2878 = vadd.f32 %v2725, %v2877
        %v2879 = vpop.f32.mrb[0].mxu0
        %v2880 = vand.u32 %v308, 4294901760
        %2881 = vmatprep.mubr.f32.mxu0 %v2880
        %v2882 = vand.u32 %v307, 4294901760
        %2883 = vmatmul.mubr.f32.gmra.mrb[0].mxu0 %v2882
        %v2884 = vpop.f32.mrb[0].mxu0
        %v2885 = vadd.f32 %v2732, %v2884
        %v2886 = vpop.f32.mrb[0].mxu0
        %2887 = vdwg.mxu0
        %v2888 = vmax.f32 %v2836, 0.0
        %v2889 = vmax.f32 %v2843, 0.0
        %v2890 = vmax.f32 %v2850, 0.0
        %v2891 = vmax.f32 %v2857, 0.0
        %v2892 = vmax.f32 %v2864, 0.0
        %v2893 = vmax.f32 %v2871, 0.0
        %v2894 = vmax.f32 %v2878, 0.0
        %v2895 = vmax.f32 %v2885, 0.0
        %v2896 = vrot.slane %v2895, 7
        %v2897 = vrot.slane %v2888, 7
        %v2898 = vrot.slane %v2889, 7
        %v2899 = vrot.slane %v2890, 7
        %v2900 = vrot.slane %v2891, 7
        %v2901 = vrot.slane %v2892, 7
        %v2902 = vrot.slane %v2893, 7
        %v2903 = vrot.slane %v2894, 7
        %v2904 = vlaneseq
        %v2905 = vshrl.u32 %v2904, 7
        %vm2906 = vcmp.lt.s32.totalorder %v2905, 1
        %v2907 = vsel %vm2906, %v2902, %v2903
        %v2908 = vsel %vm2906, %v2901, %v2902
        %v2909 = vsel %vm2906, %v2900, %v2901
        %v2910 = vsel %vm2906, %v2899, %v2900
        %v2911 = vsel %vm2906, %v2898, %v2899
        %v2912 = vsel %vm2906, %v2897, %v2898
        %v2913 = vsel %vm2906, %v2896, %v2897
        %v2914 = vsel %vm2906, %v2903, %v2896
        %vm2915 = vcmask 1047808
        %2916 = vrot.lane.b32.xlu0 %v2914, 32
        %v2917 = vpop.permute.xlu0 %2916
        %v2918 = vsel %vm2915, %v2917, %v2914
        %2919 = vrot.lane.b32.xlu0 %v2913, 32
        %v2920 = vpop.permute.xlu0 %2919
        %v2921 = vsel %vm2915, %v2920, %v2913
        %2922 = vrot.lane.b32.xlu0 %v2912, 32
        %v2923 = vpop.permute.xlu0 %2922
        %v2924 = vsel %vm2915, %v2923, %v2912
        %2925 = vrot.lane.b32.xlu0 %v2911, 32
        %v2926 = vpop.permute.xlu0 %2925
        %v2927 = vsel %vm2915, %v2926, %v2911
        %2928 = vrot.lane.b32.xlu0 %v2910, 32
        %v2929 = vpop.permute.xlu0 %2928
        %v2930 = vsel %vm2915, %v2929, %v2910
        %2931 = vrot.lane.b32.xlu0 %v2909, 32
        %v2932 = vpop.permute.xlu0 %2931
        %v2933 = vsel %vm2915, %v2932, %v2909
        %2934 = vrot.lane.b32.xlu0 %v2908, 32
        %v2935 = vpop.permute.xlu0 %2934
        %v2936 = vsel %vm2915, %v2935, %v2908
        %2937 = vrot.lane.b32.xlu0 %v2907, 32
        %v2938 = vpop.permute.xlu0 %2937
        %v2939 = vsel %vm2915, %v2938, %v2907
        %2940 = vrot.lane.b32.xlu0 %v2918, 32
        %v2941 = vpop.permute.xlu0 %2940
        %2942 = vrot.lane.b32.xlu0 %v2921, 32
        %v2943 = vpop.permute.xlu0 %2942
        %2944 = vrot.lane.b32.xlu0 %v2924, 32
        %v2945 = vpop.permute.xlu0 %2944
        %2946 = vrot.lane.b32.xlu0 %v2927, 32
        %v2947 = vpop.permute.xlu0 %2946
        %2948 = vrot.lane.b32.xlu0 %v2930, 32
        %v2949 = vpop.permute.xlu0 %2948
        %2950 = vrot.lane.b32.xlu0 %v2933, 32
        %v2951 = vpop.permute.xlu0 %2950
        %2952 = vrot.lane.b32.xlu0 %v2936, 32
        %v2953 = vpop.permute.xlu0 %2952
        %2954 = vrot.lane.b32.xlu0 %v2939, 32
        %v2955 = vpop.permute.xlu0 %2954
        %v2956 = vsel %vm2915, %v2941, %v2914
        %v2957 = vsel %vm2915, %v2943, %v2913
        %v2958 = vsel %vm2915, %v2945, %v2912
        %v2959 = vsel %vm2915, %v2947, %v2911
        %v2960 = vsel %vm2915, %v2949, %v2910
        %v2961 = vsel %vm2915, %v2951, %v2909
        %v2962 = vsel %vm2915, %v2953, %v2908
        %v2963 = vsel %vm2915, %v2955, %v2907
        %v2964 = vld [vmem:[%s3] sm:$0xff]
        %v2965 = vld [vmem:[%s3 + $0x8] sm:$0xff]
        %v2966 = vld [vmem:[%s3 + $0x10] sm:$0xff]
        %v2967 = vld [vmem:[%s3 + $0x18] sm:$0xff]
        %v2968 = vld [vmem:[%s3 + $0x20] sm:$0xff]
        %v2969 = vld [vmem:[%s3 + $0x28] sm:$0xff]
        %v2970 = vld [vmem:[%s3 + $0x30] sm:$0xff]
        %v2971 = vld [vmem:[%s3 + $0x38] sm:$0xff]
        %2980 = vrot.lane.b32.xlu0 %v2964, 28
        %v2981 = vpop.permute.xlu0 %2980
        %2982 = vrot.lane.b32.xlu0 %v2965, 28
        %v2983 = vpop.permute.xlu0 %2982
        %2984 = vrot.lane.b32.xlu0 %v2966, 28
        %v2985 = vpop.permute.xlu0 %2984
        %2986 = vrot.lane.b32.xlu0 %v2967, 28
        %v2987 = vpop.permute.xlu0 %2986
        %2988 = vrot.lane.b32.xlu0 %v2968, 28
        %v2989 = vpop.permute.xlu0 %2988
        %2990 = vrot.lane.b32.xlu0 %v2969, 28
        %v2991 = vpop.permute.xlu0 %2990
        %2992 = vrot.lane.b32.xlu0 %v2970, 28
        %v2993 = vpop.permute.xlu0 %2992
        %2994 = vrot.lane.b32.xlu0 %v2971, 28
        %v2995 = vpop.permute.xlu0 %2994
        %v3004 = vmul.f32 %v2956, %v2981
        %v3005 = vmul.f32 %v2957, %v2983
        %v3006 = vmul.f32 %v2958, %v2985
        %v3007 = vmul.f32 %v2959, %v2987
        %v3008 = vmul.f32 %v2960, %v2989
        %v3009 = vmul.f32 %v2961, %v2991
        %v3010 = vmul.f32 %v2962, %v2993
        %v3011 = vmul.f32 %v2963, %v2995
        %s3012 = scalar_lea.vmem %s3, 64
        %v3013 = vld [vmem:[%s3012] sm:$0xff]
        %v3014 = vld [vmem:[%s3012 + $0x8] sm:$0xff]
        %v3015 = vld [vmem:[%s3012 + $0x10] sm:$0xff]
        %v3016 = vld [vmem:[%s3012 + $0x18] sm:$0xff]
        %v3017 = vld [vmem:[%s3012 + $0x20] sm:$0xff]
        %v3018 = vld [vmem:[%s3012 + $0x28] sm:$0xff]
        %v3019 = vld [vmem:[%s3012 + $0x30] sm:$0xff]
        %v3020 = vld [vmem:[%s3012 + $0x38] sm:$0xff]
        %v3021 = vmul.f32 %v2914, %v3013
        %v3022 = vmul.f32 %v2913, %v3014
        %v3023 = vmul.f32 %v2912, %v3015
        %v3024 = vmul.f32 %v2911, %v3016
        %v3025 = vmul.f32 %v2910, %v3017
        %v3026 = vmul.f32 %v2909, %v3018
        %v3027 = vmul.f32 %v2908, %v3019
        %v3028 = vmul.f32 %v2907, %v3020
        %3037 = vrot.lane.b32.xlu0 %v3021, 28
        %v3038 = vpop.permute.xlu0 %3037
        %3039 = vrot.lane.b32.xlu0 %v3022, 28
        %v3040 = vpop.permute.xlu0 %3039
        %3041 = vrot.lane.b32.xlu0 %v3023, 28
        %v3042 = vpop.permute.xlu0 %3041
        %3043 = vrot.lane.b32.xlu0 %v3024, 28
        %v3044 = vpop.permute.xlu0 %3043
        %3045 = vrot.lane.b32.xlu0 %v3025, 28
        %v3046 = vpop.permute.xlu0 %3045
        %3047 = vrot.lane.b32.xlu0 %v3026, 28
        %v3048 = vpop.permute.xlu0 %3047
        %3049 = vrot.lane.b32.xlu0 %v3027, 28
        %v3050 = vpop.permute.xlu0 %3049
        %3051 = vrot.lane.b32.xlu0 %v3028, 28
        %v3052 = vpop.permute.xlu0 %3051
        %v3061 = vadd.f32 %v3004, %v3038
        %v3062 = vadd.f32 %v3005, %v3040
        %v3063 = vadd.f32 %v3006, %v3042
        %v3064 = vadd.f32 %v3007, %v3044
        %v3065 = vadd.f32 %v3008, %v3046
        %v3066 = vadd.f32 %v3009, %v3048
        %v3067 = vadd.f32 %v3010, %v3050
        %v3068 = vadd.f32 %v3011, %v3052
        %s3069 = scalar_lea.vmem %s3, 128
        %v3070 = vld [vmem:[%s3069] sm:$0xff]
        %v3071 = vld [vmem:[%s3069 + $0x8] sm:$0xff]
        %v3072 = vld [vmem:[%s3069 + $0x10] sm:$0xff]
        %v3073 = vld [vmem:[%s3069 + $0x18] sm:$0xff]
        %v3074 = vld [vmem:[%s3069 + $0x20] sm:$0xff]
        %v3075 = vld [vmem:[%s3069 + $0x28] sm:$0xff]
        %v3076 = vld [vmem:[%s3069 + $0x30] sm:$0xff]
        %v3077 = vld [vmem:[%s3069 + $0x38] sm:$0xff]
        %3086 = vrot.lane.b32.xlu0 %v3070, 4
        %v3087 = vpop.permute.xlu0 %3086
        %3088 = vrot.lane.b32.xlu0 %v3071, 4
        %v3089 = vpop.permute.xlu0 %3088
        %3090 = vrot.lane.b32.xlu0 %v3072, 4
        %v3091 = vpop.permute.xlu0 %3090
        %3092 = vrot.lane.b32.xlu0 %v3073, 4
        %v3093 = vpop.permute.xlu0 %3092
        %3094 = vrot.lane.b32.xlu0 %v3074, 4
        %v3095 = vpop.permute.xlu0 %3094
        %3096 = vrot.lane.b32.xlu0 %v3075, 4
        %v3097 = vpop.permute.xlu0 %3096
        %3098 = vrot.lane.b32.xlu0 %v3076, 4
        %v3099 = vpop.permute.xlu0 %3098
        %3100 = vrot.lane.b32.xlu0 %v3077, 4
        %v3101 = vpop.permute.xlu0 %3100
        %v3110 = vmul.f32 %v2956, %v3087
        %v3111 = vmul.f32 %v2957, %v3089
        %v3112 = vmul.f32 %v2958, %v3091
        %v3113 = vmul.f32 %v2959, %v3093
        %v3114 = vmul.f32 %v2960, %v3095
        %v3115 = vmul.f32 %v2961, %v3097
        %v3116 = vmul.f32 %v2962, %v3099
        %v3117 = vmul.f32 %v2963, %v3101
        %3126 = vrot.lane.b32.xlu0 %v3110, 24
        %v3127 = vpop.permute.xlu0 %3126
        %3128 = vrot.lane.b32.xlu0 %v3111, 24
        %v3129 = vpop.permute.xlu0 %3128
        %3130 = vrot.lane.b32.xlu0 %v3112, 24
        %v3131 = vpop.permute.xlu0 %3130
        %3132 = vrot.lane.b32.xlu0 %v3113, 24
        %v3133 = vpop.permute.xlu0 %3132
        %3134 = vrot.lane.b32.xlu0 %v3114, 24
        %v3135 = vpop.permute.xlu0 %3134
        %3136 = vrot.lane.b32.xlu0 %v3115, 24
        %v3137 = vpop.permute.xlu0 %3136
        %3138 = vrot.lane.b32.xlu0 %v3116, 24
        %v3139 = vpop.permute.xlu0 %3138
        %3140 = vrot.lane.b32.xlu0 %v3117, 24
        %v3141 = vpop.permute.xlu0 %3140
        %v3150 = vadd.f32 %v3061, %v3127
        %v3151 = vadd.f32 %v3062, %v3129
        %v3152 = vadd.f32 %v3063, %v3131
        %v3153 = vadd.f32 %v3064, %v3133
        %v3154 = vadd.f32 %v3065, %v3135
        %v3155 = vadd.f32 %v3066, %v3137
        %v3156 = vadd.f32 %v3067, %v3139
        %v3157 = vadd.f32 %v3068, %v3141
        %3158 = vrot.lane.b32.xlu0 %v2895, 32
        %v3159 = vpop.permute.xlu0 %3158
        %v3160 = vsel %vm2915, %v3159, %v2895
        %3161 = vrot.lane.b32.xlu0 %v2888, 32
        %v3162 = vpop.permute.xlu0 %3161
        %v3163 = vsel %vm2915, %v3162, %v2888
        %3164 = vrot.lane.b32.xlu0 %v2889, 32
        %v3165 = vpop.permute.xlu0 %3164
        %v3166 = vsel %vm2915, %v3165, %v2889
        %3167 = vrot.lane.b32.xlu0 %v2890, 32
        %v3168 = vpop.permute.xlu0 %3167
        %v3169 = vsel %vm2915, %v3168, %v2890
        %3170 = vrot.lane.b32.xlu0 %v2891, 32
        %v3171 = vpop.permute.xlu0 %3170
        %v3172 = vsel %vm2915, %v3171, %v2891
        %3173 = vrot.lane.b32.xlu0 %v2892, 32
        %v3174 = vpop.permute.xlu0 %3173
        %v3175 = vsel %vm2915, %v3174, %v2892
        %3176 = vrot.lane.b32.xlu0 %v2893, 32
        %v3177 = vpop.permute.xlu0 %3176
        %v3178 = vsel %vm2915, %v3177, %v2893
        %3179 = vrot.lane.b32.xlu0 %v2894, 32
        %v3180 = vpop.permute.xlu0 %3179
        %v3181 = vsel %vm2915, %v3180, %v2894
        %3182 = vrot.lane.b32.xlu0 %v3160, 32
        %v3183 = vpop.permute.xlu0 %3182
        %3184 = vrot.lane.b32.xlu0 %v3163, 32
        %v3185 = vpop.permute.xlu0 %3184
        %3186 = vrot.lane.b32.xlu0 %v3166, 32
        %v3187 = vpop.permute.xlu0 %3186
        %3188 = vrot.lane.b32.xlu0 %v3169, 32
        %v3189 = vpop.permute.xlu0 %3188
        %3190 = vrot.lane.b32.xlu0 %v3172, 32
        %v3191 = vpop.permute.xlu0 %3190
        %3192 = vrot.lane.b32.xlu0 %v3175, 32
        %v3193 = vpop.permute.xlu0 %3192
        %3194 = vrot.lane.b32.xlu0 %v3178, 32
        %v3195 = vpop.permute.xlu0 %3194
        %3196 = vrot.lane.b32.xlu0 %v3181, 32
        %v3197 = vpop.permute.xlu0 %3196
        %v3198 = vsel %vm2915, %v3183, %v2895
        %v3199 = vsel %vm2915, %v3185, %v2888
        %v3200 = vsel %vm2915, %v3187, %v2889
        %v3201 = vsel %vm2915, %v3189, %v2890
        %v3202 = vsel %vm2915, %v3191, %v2891
        %v3203 = vsel %vm2915, %v3193, %v2892
        %v3204 = vsel %vm2915, %v3195, %v2893
        %v3205 = vsel %vm2915, %v3197, %v2894
        %s3206 = scalar_lea.vmem %s3, 192
        %v3207 = vld [vmem:[%s3206] sm:$0xff]
        %v3208 = vld [vmem:[%s3206 + $0x8] sm:$0xff]
        %v3209 = vld [vmem:[%s3206 + $0x10] sm:$0xff]
        %v3210 = vld [vmem:[%s3206 + $0x18] sm:$0xff]
        %v3211 = vld [vmem:[%s3206 + $0x20] sm:$0xff]
        %v3212 = vld [vmem:[%s3206 + $0x28] sm:$0xff]
        %v3213 = vld [vmem:[%s3206 + $0x30] sm:$0xff]
        %v3214 = vld [vmem:[%s3206 + $0x38] sm:$0xff]
        %3223 = vrot.lane.b32.xlu0 %v3207, 28
        %v3224 = vpop.permute.xlu0 %3223
        %3225 = vrot.lane.b32.xlu0 %v3208, 28
        %v3226 = vpop.permute.xlu0 %3225
        %3227 = vrot.lane.b32.xlu0 %v3209, 28
        %v3228 = vpop.permute.xlu0 %3227
        %3229 = vrot.lane.b32.xlu0 %v3210, 28
        %v3230 = vpop.permute.xlu0 %3229
        %3231 = vrot.lane.b32.xlu0 %v3211, 28
        %v3232 = vpop.permute.xlu0 %3231
        %3233 = vrot.lane.b32.xlu0 %v3212, 28
        %v3234 = vpop.permute.xlu0 %3233
        %3235 = vrot.lane.b32.xlu0 %v3213, 28
        %v3236 = vpop.permute.xlu0 %3235
        %3237 = vrot.lane.b32.xlu0 %v3214, 28
        %v3238 = vpop.permute.xlu0 %3237
        %v3247 = vmul.f32 %v3198, %v3224
        %v3248 = vmul.f32 %v3199, %v3226
        %v3249 = vmul.f32 %v3200, %v3228
        %v3250 = vmul.f32 %v3201, %v3230
        %v3251 = vmul.f32 %v3202, %v3232
        %v3252 = vmul.f32 %v3203, %v3234
        %v3253 = vmul.f32 %v3204, %v3236
        %v3254 = vmul.f32 %v3205, %v3238
        %v3255 = vadd.f32 %v3150, %v3247
        %v3256 = vadd.f32 %v3151, %v3248
        %v3257 = vadd.f32 %v3152, %v3249
        %v3258 = vadd.f32 %v3153, %v3250
        %v3259 = vadd.f32 %v3154, %v3251
        %v3260 = vadd.f32 %v3155, %v3252
        %v3261 = vadd.f32 %v3156, %v3253
        %v3262 = vadd.f32 %v3157, %v3254
        %s3263 = scalar_lea.vmem %s3, 256
        %v3264 = vld [vmem:[%s3263] sm:$0xff]
        %v3265 = vld [vmem:[%s3263 + $0x8] sm:$0xff]
        %v3266 = vld [vmem:[%s3263 + $0x10] sm:$0xff]
        %v3267 = vld [vmem:[%s3263 + $0x18] sm:$0xff]
        %v3268 = vld [vmem:[%s3263 + $0x20] sm:$0xff]
        %v3269 = vld [vmem:[%s3263 + $0x28] sm:$0xff]
        %v3270 = vld [vmem:[%s3263 + $0x30] sm:$0xff]
        %v3271 = vld [vmem:[%s3263 + $0x38] sm:$0xff]
        %v3272 = vmul.f32 %v2895, %v3264
        %v3273 = vmul.f32 %v2888, %v3265
        %v3274 = vmul.f32 %v2889, %v3266
        %v3275 = vmul.f32 %v2890, %v3267
        %v3276 = vmul.f32 %v2891, %v3268
        %v3277 = vmul.f32 %v2892, %v3269
        %v3278 = vmul.f32 %v2893, %v3270
        %v3279 = vmul.f32 %v2894, %v3271
        %3288 = vrot.lane.b32.xlu0 %v3272, 28
        %v3289 = vpop.permute.xlu0 %3288
        %3290 = vrot.lane.b32.xlu0 %v3273, 28
        %v3291 = vpop.permute.xlu0 %3290
        %3292 = vrot.lane.b32.xlu0 %v3274, 28
        %v3293 = vpop.permute.xlu0 %3292
        %3294 = vrot.lane.b32.xlu0 %v3275, 28
        %v3295 = vpop.permute.xlu0 %3294
        %3296 = vrot.lane.b32.xlu0 %v3276, 28
        %v3297 = vpop.permute.xlu0 %3296
        %3298 = vrot.lane.b32.xlu0 %v3277, 28
        %v3299 = vpop.permute.xlu0 %3298
        %3300 = vrot.lane.b32.xlu0 %v3278, 28
        %v3301 = vpop.permute.xlu0 %3300
        %3302 = vrot.lane.b32.xlu0 %v3279, 28
        %v3303 = vpop.permute.xlu0 %3302
        %v3312 = vadd.f32 %v3255, %v3289
        %v3313 = vadd.f32 %v3256, %v3291
        %v3314 = vadd.f32 %v3257, %v3293
        %v3315 = vadd.f32 %v3258, %v3295
        %v3316 = vadd.f32 %v3259, %v3297
        %v3317 = vadd.f32 %v3260, %v3299
        %v3318 = vadd.f32 %v3261, %v3301
        %v3319 = vadd.f32 %v3262, %v3303
        %s3320 = scalar_lea.vmem %s3, 320
        %v3321 = vld [vmem:[%s3320] sm:$0xff]
        %v3322 = vld [vmem:[%s3320 + $0x8] sm:$0xff]
        %v3323 = vld [vmem:[%s3320 + $0x10] sm:$0xff]
        %v3324 = vld [vmem:[%s3320 + $0x18] sm:$0xff]
        %v3325 = vld [vmem:[%s3320 + $0x20] sm:$0xff]
        %v3326 = vld [vmem:[%s3320 + $0x28] sm:$0xff]
        %v3327 = vld [vmem:[%s3320 + $0x30] sm:$0xff]
        %v3328 = vld [vmem:[%s3320 + $0x38] sm:$0xff]
        %3337 = vrot.lane.b32.xlu0 %v3321, 4
        %v3338 = vpop.permute.xlu0 %3337
        %3339 = vrot.lane.b32.xlu0 %v3322, 4
        %v3340 = vpop.permute.xlu0 %3339
        %3341 = vrot.lane.b32.xlu0 %v3323, 4
        %v3342 = vpop.permute.xlu0 %3341
        %3343 = vrot.lane.b32.xlu0 %v3324, 4
        %v3344 = vpop.permute.xlu0 %3343
        %3345 = vrot.lane.b32.xlu0 %v3325, 4
        %v3346 = vpop.permute.xlu0 %3345
        %3347 = vrot.lane.b32.xlu0 %v3326, 4
        %v3348 = vpop.permute.xlu0 %3347
        %3349 = vrot.lane.b32.xlu0 %v3327, 4
        %v3350 = vpop.permute.xlu0 %3349
        %3351 = vrot.lane.b32.xlu0 %v3328, 4
        %v3352 = vpop.permute.xlu0 %3351
        %v3361 = vmul.f32 %v3198, %v3338
        %v3362 = vmul.f32 %v3199, %v3340
        %v3363 = vmul.f32 %v3200, %v3342
        %v3364 = vmul.f32 %v3201, %v3344
        %v3365 = vmul.f32 %v3202, %v3346
        %v3366 = vmul.f32 %v3203, %v3348
        %v3367 = vmul.f32 %v3204, %v3350
        %v3368 = vmul.f32 %v3205, %v3352
        %3377 = vrot.lane.b32.xlu0 %v3361, 24
        %v3378 = vpop.permute.xlu0 %3377
        %3379 = vrot.lane.b32.xlu0 %v3362, 24
        %v3380 = vpop.permute.xlu0 %3379
        %3381 = vrot.lane.b32.xlu0 %v3363, 24
        %v3382 = vpop.permute.xlu0 %3381
        %3383 = vrot.lane.b32.xlu0 %v3364, 24
        %v3384 = vpop.permute.xlu0 %3383
        %3385 = vrot.lane.b32.xlu0 %v3365, 24
        %v3386 = vpop.permute.xlu0 %3385
        %3387 = vrot.lane.b32.xlu0 %v3366, 24
        %v3388 = vpop.permute.xlu0 %3387
        %3389 = vrot.lane.b32.xlu0 %v3367, 24
        %v3390 = vpop.permute.xlu0 %3389
        %3391 = vrot.lane.b32.xlu0 %v3368, 24
        %v3392 = vpop.permute.xlu0 %3391
        %v3401 = vadd.f32 %v3312, %v3378
        %v3402 = vadd.f32 %v3313, %v3380
        %v3403 = vadd.f32 %v3314, %v3382
        %v3404 = vadd.f32 %v3315, %v3384
        %v3405 = vadd.f32 %v3316, %v3386
        %v3406 = vadd.f32 %v3317, %v3388
        %v3407 = vadd.f32 %v3318, %v3390
        %v3408 = vadd.f32 %v3319, %v3392
        %v3409 = vrot.slane %v2895, 1
        %v3410 = vrot.slane %v2888, 1
        %v3411 = vrot.slane %v2889, 1
        %v3412 = vrot.slane %v2890, 1
        %v3413 = vrot.slane %v2891, 1
        %v3414 = vrot.slane %v2892, 1
        %v3415 = vrot.slane %v2893, 1
        %v3416 = vrot.slane %v2894, 1
        %vm3417 = vcmp.lt.s32.totalorder %v2905, 7
        %v3418 = vsel %vm3417, %v3415, %v3416
        %v3419 = vsel %vm3417, %v3414, %v3415
        %v3420 = vsel %vm3417, %v3413, %v3414
        %v3421 = vsel %vm3417, %v3412, %v3413
        %v3422 = vsel %vm3417, %v3411, %v3412
        %v3423 = vsel %vm3417, %v3410, %v3411
        %v3424 = vsel %vm3417, %v3409, %v3410
        %v3425 = vsel %vm3417, %v3416, %v3409
        %3426 = vrot.lane.b32.xlu0 %v3424, 32
        %v3427 = vpop.permute.xlu0 %3426
        %v3428 = vsel %vm2915, %v3427, %v3424
        %3429 = vrot.lane.b32.xlu0 %v3423, 32
        %v3430 = vpop.permute.xlu0 %3429
        %v3431 = vsel %vm2915, %v3430, %v3423
        %3432 = vrot.lane.b32.xlu0 %v3422, 32
        %v3433 = vpop.permute.xlu0 %3432
        %v3434 = vsel %vm2915, %v3433, %v3422
        %3435 = vrot.lane.b32.xlu0 %v3421, 32
        %v3436 = vpop.permute.xlu0 %3435
        %v3437 = vsel %vm2915, %v3436, %v3421
        %3438 = vrot.lane.b32.xlu0 %v3420, 32
        %v3439 = vpop.permute.xlu0 %3438
        %v3440 = vsel %vm2915, %v3439, %v3420
        %3441 = vrot.lane.b32.xlu0 %v3419, 32
        %v3442 = vpop.permute.xlu0 %3441
        %v3443 = vsel %vm2915, %v3442, %v3419
        %3444 = vrot.lane.b32.xlu0 %v3418, 32
        %v3445 = vpop.permute.xlu0 %3444
        %v3446 = vsel %vm2915, %v3445, %v3418
        %3447 = vrot.lane.b32.xlu0 %v3425, 32
        %v3448 = vpop.permute.xlu0 %3447
        %v3449 = vsel %vm2915, %v3448, %v3425
        %3450 = vrot.lane.b32.xlu0 %v3428, 32
        %v3451 = vpop.permute.xlu0 %3450
        %3452 = vrot.lane.b32.xlu0 %v3431, 32
        %v3453 = vpop.permute.xlu0 %3452
        %3454 = vrot.lane.b32.xlu0 %v3434, 32
        %v3455 = vpop.permute.xlu0 %3454
        %3456 = vrot.lane.b32.xlu0 %v3437, 32
        %v3457 = vpop.permute.xlu0 %3456
        %3458 = vrot.lane.b32.xlu0 %v3440, 32
        %v3459 = vpop.permute.xlu0 %3458
        %3460 = vrot.lane.b32.xlu0 %v3443, 32
        %v3461 = vpop.permute.xlu0 %3460
        %3462 = vrot.lane.b32.xlu0 %v3446, 32
        %v3463 = vpop.permute.xlu0 %3462
        %3464 = vrot.lane.b32.xlu0 %v3449, 32
        %v3465 = vpop.permute.xlu0 %3464
        %v3466 = vsel %vm2915, %v3451, %v3424
        %v3467 = vsel %vm2915, %v3453, %v3423
        %v3468 = vsel %vm2915, %v3455, %v3422
        %v3469 = vsel %vm2915, %v3457, %v3421
        %v3470 = vsel %vm2915, %v3459, %v3420
        %v3471 = vsel %vm2915, %v3461, %v3419
        %v3472 = vsel %vm2915, %v3463, %v3418
        %v3473 = vsel %vm2915, %v3465, %v3425
        %s3474 = scalar_lea.vmem %s3, 384
        %v3475 = vld [vmem:[%s3474] sm:$0xff]
        %v3476 = vld [vmem:[%s3474 + $0x8] sm:$0xff]
        %v3477 = vld [vmem:[%s3474 + $0x10] sm:$0xff]
        %v3478 = vld [vmem:[%s3474 + $0x18] sm:$0xff]
        %v3479 = vld [vmem:[%s3474 + $0x20] sm:$0xff]
        %v3480 = vld [vmem:[%s3474 + $0x28] sm:$0xff]
        %v3481 = vld [vmem:[%s3474 + $0x30] sm:$0xff]
        %v3482 = vld [vmem:[%s3474 + $0x38] sm:$0xff]
        %3491 = vrot.lane.b32.xlu0 %v3475, 28
        %v3492 = vpop.permute.xlu0 %3491
        %3493 = vrot.lane.b32.xlu0 %v3476, 28
        %v3494 = vpop.permute.xlu0 %3493
        %3495 = vrot.lane.b32.xlu0 %v3477, 28
        %v3496 = vpop.permute.xlu0 %3495
        %3497 = vrot.lane.b32.xlu0 %v3478, 28
        %v3498 = vpop.permute.xlu0 %3497
        %3499 = vrot.lane.b32.xlu0 %v3479, 28
        %v3500 = vpop.permute.xlu0 %3499
        %3501 = vrot.lane.b32.xlu0 %v3480, 28
        %v3502 = vpop.permute.xlu0 %3501
        %3503 = vrot.lane.b32.xlu0 %v3481, 28
        %v3504 = vpop.permute.xlu0 %3503
        %3505 = vrot.lane.b32.xlu0 %v3482, 28
        %v3506 = vpop.permute.xlu0 %3505
        %v3515 = vmul.f32 %v3466, %v3492
        %v3516 = vmul.f32 %v3467, %v3494
        %v3517 = vmul.f32 %v3468, %v3496
        %v3518 = vmul.f32 %v3469, %v3498
        %v3519 = vmul.f32 %v3470, %v3500
        %v3520 = vmul.f32 %v3471, %v3502
        %v3521 = vmul.f32 %v3472, %v3504
        %v3522 = vmul.f32 %v3473, %v3506
        %v3523 = vadd.f32 %v3401, %v3515
        %v3524 = vadd.f32 %v3402, %v3516
        %v3525 = vadd.f32 %v3403, %v3517
        %v3526 = vadd.f32 %v3404, %v3518
        %v3527 = vadd.f32 %v3405, %v3519
        %v3528 = vadd.f32 %v3406, %v3520
        %v3529 = vadd.f32 %v3407, %v3521
        %v3530 = vadd.f32 %v3408, %v3522
        %s3531 = scalar_lea.vmem %s3, 448
        %v3532 = vld [vmem:[%s3531] sm:$0xff]
        %v3533 = vld [vmem:[%s3531 + $0x8] sm:$0xff]
        %v3534 = vld [vmem:[%s3531 + $0x10] sm:$0xff]
        %v3535 = vld [vmem:[%s3531 + $0x18] sm:$0xff]
        %v3536 = vld [vmem:[%s3531 + $0x20] sm:$0xff]
        %v3537 = vld [vmem:[%s3531 + $0x28] sm:$0xff]
        %v3538 = vld [vmem:[%s3531 + $0x30] sm:$0xff]
        %v3539 = vld [vmem:[%s3531 + $0x38] sm:$0xff]
        %v3540 = vmul.f32 %v3424, %v3532
        %v3541 = vmul.f32 %v3423, %v3533
        %v3542 = vmul.f32 %v3422, %v3534
        %v3543 = vmul.f32 %v3421, %v3535
        %v3544 = vmul.f32 %v3420, %v3536
        %v3545 = vmul.f32 %v3419, %v3537
        %v3546 = vmul.f32 %v3418, %v3538
        %v3547 = vmul.f32 %v3425, %v3539
        %3556 = vrot.lane.b32.xlu0 %v3540, 28
        %v3557 = vpop.permute.xlu0 %3556
        %3558 = vrot.lane.b32.xlu0 %v3541, 28
        %v3559 = vpop.permute.xlu0 %3558
        %3560 = vrot.lane.b32.xlu0 %v3542, 28
        %v3561 = vpop.permute.xlu0 %3560
        %3562 = vrot.lane.b32.xlu0 %v3543, 28
        %v3563 = vpop.permute.xlu0 %3562
        %3564 = vrot.lane.b32.xlu0 %v3544, 28
        %v3565 = vpop.permute.xlu0 %3564
        %3566 = vrot.lane.b32.xlu0 %v3545, 28
        %v3567 = vpop.permute.xlu0 %3566
        %3568 = vrot.lane.b32.xlu0 %v3546, 28
        %v3569 = vpop.permute.xlu0 %3568
        %3570 = vrot.lane.b32.xlu0 %v3547, 28
        %v3571 = vpop.permute.xlu0 %3570
        %v3580 = vadd.f32 %v3523, %v3557
        %v3581 = vadd.f32 %v3524, %v3559
        %v3582 = vadd.f32 %v3525, %v3561
        %v3583 = vadd.f32 %v3526, %v3563
        %v3584 = vadd.f32 %v3527, %v3565
        %v3585 = vadd.f32 %v3528, %v3567
        %v3586 = vadd.f32 %v3529, %v3569
        %v3587 = vadd.f32 %v3530, %v3571
        %s3588 = scalar_lea.vmem %s3, 512
        %v3589 = vld [vmem:[%s3588] sm:$0xff]
        %v3590 = vld [vmem:[%s3588 + $0x8] sm:$0xff]
        %v3591 = vld [vmem:[%s3588 + $0x10] sm:$0xff]
        %v3592 = vld [vmem:[%s3588 + $0x18] sm:$0xff]
        %v3593 = vld [vmem:[%s3588 + $0x20] sm:$0xff]
        %v3594 = vld [vmem:[%s3588 + $0x28] sm:$0xff]
        %v3595 = vld [vmem:[%s3588 + $0x30] sm:$0xff]
        %v3596 = vld [vmem:[%s3588 + $0x38] sm:$0xff]
        %3605 = vrot.lane.b32.xlu0 %v3589, 4
        %v3606 = vpop.permute.xlu0 %3605
        %3607 = vrot.lane.b32.xlu0 %v3590, 4
        %v3608 = vpop.permute.xlu0 %3607
        %3609 = vrot.lane.b32.xlu0 %v3591, 4
        %v3610 = vpop.permute.xlu0 %3609
        %3611 = vrot.lane.b32.xlu0 %v3592, 4
        %v3612 = vpop.permute.xlu0 %3611
        %3613 = vrot.lane.b32.xlu0 %v3593, 4
        %v3614 = vpop.permute.xlu0 %3613
        %3615 = vrot.lane.b32.xlu0 %v3594, 4
        %v3616 = vpop.permute.xlu0 %3615
        %3617 = vrot.lane.b32.xlu0 %v3595, 4
        %v3618 = vpop.permute.xlu0 %3617
        %3619 = vrot.lane.b32.xlu0 %v3596, 4
        %v3620 = vpop.permute.xlu0 %3619
        %v3629 = vmul.f32 %v3466, %v3606
        %v3630 = vmul.f32 %v3467, %v3608
        %v3631 = vmul.f32 %v3468, %v3610
        %v3632 = vmul.f32 %v3469, %v3612
        %v3633 = vmul.f32 %v3470, %v3614
        %v3634 = vmul.f32 %v3471, %v3616
        %v3635 = vmul.f32 %v3472, %v3618
        %v3636 = vmul.f32 %v3473, %v3620
        %3645 = vrot.lane.b32.xlu0 %v3629, 24
        %v3646 = vpop.permute.xlu0 %3645
        %3647 = vrot.lane.b32.xlu0 %v3630, 24
        %v3648 = vpop.permute.xlu0 %3647
        %3649 = vrot.lane.b32.xlu0 %v3631, 24
        %v3650 = vpop.permute.xlu0 %3649
        %3651 = vrot.lane.b32.xlu0 %v3632, 24
        %v3652 = vpop.permute.xlu0 %3651
        %3653 = vrot.lane.b32.xlu0 %v3633, 24
        %v3654 = vpop.permute.xlu0 %3653
        %3655 = vrot.lane.b32.xlu0 %v3634, 24
        %v3656 = vpop.permute.xlu0 %3655
        %3657 = vrot.lane.b32.xlu0 %v3635, 24
        %v3658 = vpop.permute.xlu0 %3657
        %3659 = vrot.lane.b32.xlu0 %v3636, 24
        %v3660 = vpop.permute.xlu0 %3659
        %v3669 = vadd.f32 %v3580, %v3646
        %v3670 = vadd.f32 %v3581, %v3648
        %v3671 = vadd.f32 %v3582, %v3650
        %v3672 = vadd.f32 %v3583, %v3652
        %v3673 = vadd.f32 %v3584, %v3654
        %v3674 = vadd.f32 %v3585, %v3656
        %v3675 = vadd.f32 %v3586, %v3658
        %v3676 = vadd.f32 %v3587, %v3660
        %s3677 = scalar_lea.vmem %s3, 576
        %v3678 = vld [vmem:[%s3677] sm:$0xff]
        %v3679 = vld [vmem:[%s3677 + $0x8] sm:$0xff]
        %v3680 = vld [vmem:[%s3677 + $0x10] sm:$0xff]
        %v3681 = vld [vmem:[%s3677 + $0x18] sm:$0xff]
        %v3682 = vld [vmem:[%s3677 + $0x20] sm:$0xff]
        %v3683 = vld [vmem:[%s3677 + $0x28] sm:$0xff]
        %v3684 = vld [vmem:[%s3677 + $0x30] sm:$0xff]
        %v3685 = vld [vmem:[%s3677 + $0x38] sm:$0xff]
        %3694 = vrot.lane.b32.xlu0 %v3678, 28
        %v3695 = vpop.permute.xlu0 %3694
        %3696 = vrot.lane.b32.xlu0 %v3679, 28
        %v3697 = vpop.permute.xlu0 %3696
        %3698 = vrot.lane.b32.xlu0 %v3680, 28
        %v3699 = vpop.permute.xlu0 %3698
        %3700 = vrot.lane.b32.xlu0 %v3681, 28
        %v3701 = vpop.permute.xlu0 %3700
        %3702 = vrot.lane.b32.xlu0 %v3682, 28
        %v3703 = vpop.permute.xlu0 %3702
        %3704 = vrot.lane.b32.xlu0 %v3683, 28
        %v3705 = vpop.permute.xlu0 %3704
        %3706 = vrot.lane.b32.xlu0 %v3684, 28
        %v3707 = vpop.permute.xlu0 %3706
        %3708 = vrot.lane.b32.xlu0 %v3685, 28
        %v3709 = vpop.permute.xlu0 %3708
        %v3718 = vmul.f32 %v2957, %v3695
        %v3719 = vmul.f32 %v2958, %v3697
        %v3720 = vmul.f32 %v2959, %v3699
        %v3721 = vmul.f32 %v2960, %v3701
        %v3722 = vmul.f32 %v2961, %v3703
        %v3723 = vmul.f32 %v2962, %v3705
        %v3724 = vmul.f32 %v2963, %v3707
        %v3725 = vmul.f32 %v2956, %v3709
        %v3726 = vadd.f32 %v3669, %v3718
        %v3727 = vadd.f32 %v3670, %v3719
        %v3728 = vadd.f32 %v3671, %v3720
        %v3729 = vadd.f32 %v3672, %v3721
        %v3730 = vadd.f32 %v3673, %v3722
        %v3731 = vadd.f32 %v3674, %v3723
        %v3732 = vadd.f32 %v3675, %v3724
        %v3733 = vadd.f32 %v3676, %v3725
        %s3734 = scalar_lea.vmem %s3, 640
        %v3735 = vld [vmem:[%s3734] sm:$0xff]
        %v3736 = vld [vmem:[%s3734 + $0x8] sm:$0xff]
        %v3737 = vld [vmem:[%s3734 + $0x10] sm:$0xff]
        %v3738 = vld [vmem:[%s3734 + $0x18] sm:$0xff]
        %v3739 = vld [vmem:[%s3734 + $0x20] sm:$0xff]
        %v3740 = vld [vmem:[%s3734 + $0x28] sm:$0xff]
        %v3741 = vld [vmem:[%s3734 + $0x30] sm:$0xff]
        %v3742 = vld [vmem:[%s3734 + $0x38] sm:$0xff]
        %v3743 = vmul.f32 %v2913, %v3735
        %v3744 = vmul.f32 %v2912, %v3736
        %v3745 = vmul.f32 %v2911, %v3737
        %v3746 = vmul.f32 %v2910, %v3738
        %v3747 = vmul.f32 %v2909, %v3739
        %v3748 = vmul.f32 %v2908, %v3740
        %v3749 = vmul.f32 %v2907, %v3741
        %v3750 = vmul.f32 %v2914, %v3742
        %3759 = vrot.lane.b32.xlu0 %v3743, 28
        %v3760 = vpop.permute.xlu0 %3759
        %3761 = vrot.lane.b32.xlu0 %v3744, 28
        %v3762 = vpop.permute.xlu0 %3761
        %3763 = vrot.lane.b32.xlu0 %v3745, 28
        %v3764 = vpop.permute.xlu0 %3763
        %3765 = vrot.lane.b32.xlu0 %v3746, 28
        %v3766 = vpop.permute.xlu0 %3765
        %3767 = vrot.lane.b32.xlu0 %v3747, 28
        %v3768 = vpop.permute.xlu0 %3767
        %3769 = vrot.lane.b32.xlu0 %v3748, 28
        %v3770 = vpop.permute.xlu0 %3769
        %3771 = vrot.lane.b32.xlu0 %v3749, 28
        %v3772 = vpop.permute.xlu0 %3771
        %3773 = vrot.lane.b32.xlu0 %v3750, 28
        %v3774 = vpop.permute.xlu0 %3773
        %v3783 = vadd.f32 %v3726, %v3760
        %v3784 = vadd.f32 %v3727, %v3762
        %v3785 = vadd.f32 %v3728, %v3764
        %v3786 = vadd.f32 %v3729, %v3766
        %v3787 = vadd.f32 %v3730, %v3768
        %v3788 = vadd.f32 %v3731, %v3770
        %v3789 = vadd.f32 %v3732, %v3772
        %v3790 = vadd.f32 %v3733, %v3774
        %s3791 = scalar_lea.vmem %s3, 704
        %v3792 = vld [vmem:[%s3791] sm:$0xff]
        %v3793 = vld [vmem:[%s3791 + $0x8] sm:$0xff]
        %v3794 = vld [vmem:[%s3791 + $0x10] sm:$0xff]
        %v3795 = vld [vmem:[%s3791 + $0x18] sm:$0xff]
        %v3796 = vld [vmem:[%s3791 + $0x20] sm:$0xff]
        %v3797 = vld [vmem:[%s3791 + $0x28] sm:$0xff]
        %v3798 = vld [vmem:[%s3791 + $0x30] sm:$0xff]
        %v3799 = vld [vmem:[%s3791 + $0x38] sm:$0xff]
        %3808 = vrot.lane.b32.xlu0 %v3792, 4
        %v3809 = vpop.permute.xlu0 %3808
        %3810 = vrot.lane.b32.xlu0 %v3793, 4
        %v3811 = vpop.permute.xlu0 %3810
        %3812 = vrot.lane.b32.xlu0 %v3794, 4
        %v3813 = vpop.permute.xlu0 %3812
        %3814 = vrot.lane.b32.xlu0 %v3795, 4
        %v3815 = vpop.permute.xlu0 %3814
        %3816 = vrot.lane.b32.xlu0 %v3796, 4
        %v3817 = vpop.permute.xlu0 %3816
        %3818 = vrot.lane.b32.xlu0 %v3797, 4
        %v3819 = vpop.permute.xlu0 %3818
        %3820 = vrot.lane.b32.xlu0 %v3798, 4
        %v3821 = vpop.permute.xlu0 %3820
        %3822 = vrot.lane.b32.xlu0 %v3799, 4
        %v3823 = vpop.permute.xlu0 %3822
        %v3832 = vmul.f32 %v2957, %v3809
        %v3833 = vmul.f32 %v2958, %v3811
        %v3834 = vmul.f32 %v2959, %v3813
        %v3835 = vmul.f32 %v2960, %v3815
        %v3836 = vmul.f32 %v2961, %v3817
        %v3837 = vmul.f32 %v2962, %v3819
        %v3838 = vmul.f32 %v2963, %v3821
        %v3839 = vmul.f32 %v2956, %v3823
        %3848 = vrot.lane.b32.xlu0 %v3832, 24
        %v3849 = vpop.permute.xlu0 %3848
        %3850 = vrot.lane.b32.xlu0 %v3833, 24
        %v3851 = vpop.permute.xlu0 %3850
        %3852 = vrot.lane.b32.xlu0 %v3834, 24
        %v3853 = vpop.permute.xlu0 %3852
        %3854 = vrot.lane.b32.xlu0 %v3835, 24
        %v3855 = vpop.permute.xlu0 %3854
        %3856 = vrot.lane.b32.xlu0 %v3836, 24
        %v3857 = vpop.permute.xlu0 %3856
        %3858 = vrot.lane.b32.xlu0 %v3837, 24
        %v3859 = vpop.permute.xlu0 %3858
        %3860 = vrot.lane.b32.xlu0 %v3838, 24
        %v3861 = vpop.permute.xlu0 %3860
        %3862 = vrot.lane.b32.xlu0 %v3839, 24
        %v3863 = vpop.permute.xlu0 %3862
        %v3872 = vadd.f32 %v3783, %v3849
        %v3873 = vadd.f32 %v3784, %v3851
        %v3874 = vadd.f32 %v3785, %v3853
        %v3875 = vadd.f32 %v3786, %v3855
        %v3876 = vadd.f32 %v3787, %v3857
        %v3877 = vadd.f32 %v3788, %v3859
        %v3878 = vadd.f32 %v3789, %v3861
        %v3879 = vadd.f32 %v3790, %v3863
        %s3880 = scalar_lea.vmem %s3, 768
        %v3881 = vld [vmem:[%s3880] sm:$0xff]
        %v3882 = vld [vmem:[%s3880 + $0x8] sm:$0xff]
        %v3883 = vld [vmem:[%s3880 + $0x10] sm:$0xff]
        %v3884 = vld [vmem:[%s3880 + $0x18] sm:$0xff]
        %v3885 = vld [vmem:[%s3880 + $0x20] sm:$0xff]
        %v3886 = vld [vmem:[%s3880 + $0x28] sm:$0xff]
        %v3887 = vld [vmem:[%s3880 + $0x30] sm:$0xff]
        %v3888 = vld [vmem:[%s3880 + $0x38] sm:$0xff]
        %3897 = vrot.lane.b32.xlu0 %v3881, 28
        %v3898 = vpop.permute.xlu0 %3897
        %3899 = vrot.lane.b32.xlu0 %v3882, 28
        %v3900 = vpop.permute.xlu0 %3899
        %3901 = vrot.lane.b32.xlu0 %v3883, 28
        %v3902 = vpop.permute.xlu0 %3901
        %3903 = vrot.lane.b32.xlu0 %v3884, 28
        %v3904 = vpop.permute.xlu0 %3903
        %3905 = vrot.lane.b32.xlu0 %v3885, 28
        %v3906 = vpop.permute.xlu0 %3905
        %3907 = vrot.lane.b32.xlu0 %v3886, 28
        %v3908 = vpop.permute.xlu0 %3907
        %3909 = vrot.lane.b32.xlu0 %v3887, 28
        %v3910 = vpop.permute.xlu0 %3909
        %3911 = vrot.lane.b32.xlu0 %v3888, 28
        %v3912 = vpop.permute.xlu0 %3911
        %v3921 = vmul.f32 %v3199, %v3898
        %v3922 = vmul.f32 %v3200, %v3900
        %v3923 = vmul.f32 %v3201, %v3902
        %v3924 = vmul.f32 %v3202, %v3904
        %v3925 = vmul.f32 %v3203, %v3906
        %v3926 = vmul.f32 %v3204, %v3908
        %v3927 = vmul.f32 %v3205, %v3910
        %v3928 = vmul.f32 %v3198, %v3912
        %v3929 = vadd.f32 %v3872, %v3921
        %v3930 = vadd.f32 %v3873, %v3922
        %v3931 = vadd.f32 %v3874, %v3923
        %v3932 = vadd.f32 %v3875, %v3924
        %v3933 = vadd.f32 %v3876, %v3925
        %v3934 = vadd.f32 %v3877, %v3926
        %v3935 = vadd.f32 %v3878, %v3927
        %v3936 = vadd.f32 %v3879, %v3928
        %s3937 = scalar_lea.vmem %s3, 832
        %v3938 = vld [vmem:[%s3937] sm:$0xff]
        %v3939 = vld [vmem:[%s3937 + $0x8] sm:$0xff]
        %v3940 = vld [vmem:[%s3937 + $0x10] sm:$0xff]
        %v3941 = vld [vmem:[%s3937 + $0x18] sm:$0xff]
        %v3942 = vld [vmem:[%s3937 + $0x20] sm:$0xff]
        %v3943 = vld [vmem:[%s3937 + $0x28] sm:$0xff]
        %v3944 = vld [vmem:[%s3937 + $0x30] sm:$0xff]
        %v3945 = vld [vmem:[%s3937 + $0x38] sm:$0xff]
        %v3946 = vmul.f32 %v2888, %v3938
        %v3947 = vmul.f32 %v2889, %v3939
        %v3948 = vmul.f32 %v2890, %v3940
        %v3949 = vmul.f32 %v2891, %v3941
        %v3950 = vmul.f32 %v2892, %v3942
        %v3951 = vmul.f32 %v2893, %v3943
        %v3952 = vmul.f32 %v2894, %v3944
        %v3953 = vmul.f32 %v2895, %v3945
        %3962 = vrot.lane.b32.xlu0 %v3946, 28
        %v3963 = vpop.permute.xlu0 %3962
        %3964 = vrot.lane.b32.xlu0 %v3947, 28
        %v3965 = vpop.permute.xlu0 %3964
        %3966 = vrot.lane.b32.xlu0 %v3948, 28
        %v3967 = vpop.permute.xlu0 %3966
        %3968 = vrot.lane.b32.xlu0 %v3949, 28
        %v3969 = vpop.permute.xlu0 %3968
        %3970 = vrot.lane.b32.xlu0 %v3950, 28
        %v3971 = vpop.permute.xlu0 %3970
        %3972 = vrot.lane.b32.xlu0 %v3951, 28
        %v3973 = vpop.permute.xlu0 %3972
        %3974 = vrot.lane.b32.xlu0 %v3952, 28
        %v3975 = vpop.permute.xlu0 %3974
        %3976 = vrot.lane.b32.xlu0 %v3953, 28
        %v3977 = vpop.permute.xlu0 %3976
        %v3986 = vadd.f32 %v3929, %v3963
        %v3987 = vadd.f32 %v3930, %v3965
        %v3988 = vadd.f32 %v3931, %v3967
        %v3989 = vadd.f32 %v3932, %v3969
        %v3990 = vadd.f32 %v3933, %v3971
        %v3991 = vadd.f32 %v3934, %v3973
        %v3992 = vadd.f32 %v3935, %v3975
        %v3993 = vadd.f32 %v3936, %v3977
        %s3994 = scalar_lea.vmem %s3, 896
        %v3995 = vld [vmem:[%s3994] sm:$0xff]
        %v3996 = vld [vmem:[%s3994 + $0x8] sm:$0xff]
        %v3997 = vld [vmem:[%s3994 + $0x10] sm:$0xff]
        %v3998 = vld [vmem:[%s3994 + $0x18] sm:$0xff]
        %v3999 = vld [vmem:[%s3994 + $0x20] sm:$0xff]
        %v4000 = vld [vmem:[%s3994 + $0x28] sm:$0xff]
        %v4001 = vld [vmem:[%s3994 + $0x30] sm:$0xff]
        %v4002 = vld [vmem:[%s3994 + $0x38] sm:$0xff]
        %4011 = vrot.lane.b32.xlu0 %v3995, 4
        %v4012 = vpop.permute.xlu0 %4011
        %4013 = vrot.lane.b32.xlu0 %v3996, 4
        %v4014 = vpop.permute.xlu0 %4013
        %4015 = vrot.lane.b32.xlu0 %v3997, 4
        %v4016 = vpop.permute.xlu0 %4015
        %4017 = vrot.lane.b32.xlu0 %v3998, 4
        %v4018 = vpop.permute.xlu0 %4017
        %4019 = vrot.lane.b32.xlu0 %v3999, 4
        %v4020 = vpop.permute.xlu0 %4019
        %4021 = vrot.lane.b32.xlu0 %v4000, 4
        %v4022 = vpop.permute.xlu0 %4021
        %4023 = vrot.lane.b32.xlu0 %v4001, 4
        %v4024 = vpop.permute.xlu0 %4023
        %4025 = vrot.lane.b32.xlu0 %v4002, 4
        %v4026 = vpop.permute.xlu0 %4025
        %v4035 = vmul.f32 %v3199, %v4012
        %v4036 = vmul.f32 %v3200, %v4014
        %v4037 = vmul.f32 %v3201, %v4016
        %v4038 = vmul.f32 %v3202, %v4018
        %v4039 = vmul.f32 %v3203, %v4020
        %v4040 = vmul.f32 %v3204, %v4022
        %v4041 = vmul.f32 %v3205, %v4024
        %v4042 = vmul.f32 %v3198, %v4026
        %4051 = vrot.lane.b32.xlu0 %v4035, 24
        %v4052 = vpop.permute.xlu0 %4051
        %4053 = vrot.lane.b32.xlu0 %v4036, 24
        %v4054 = vpop.permute.xlu0 %4053
        %4055 = vrot.lane.b32.xlu0 %v4037, 24
        %v4056 = vpop.permute.xlu0 %4055
        %4057 = vrot.lane.b32.xlu0 %v4038, 24
        %v4058 = vpop.permute.xlu0 %4057
        %4059 = vrot.lane.b32.xlu0 %v4039, 24
        %v4060 = vpop.permute.xlu0 %4059
        %4061 = vrot.lane.b32.xlu0 %v4040, 24
        %v4062 = vpop.permute.xlu0 %4061
        %4063 = vrot.lane.b32.xlu0 %v4041, 24
        %v4064 = vpop.permute.xlu0 %4063
        %4065 = vrot.lane.b32.xlu0 %v4042, 24
        %v4066 = vpop.permute.xlu0 %4065
        %v4075 = vadd.f32 %v3986, %v4052
        %v4076 = vadd.f32 %v3987, %v4054
        %v4077 = vadd.f32 %v3988, %v4056
        %v4078 = vadd.f32 %v3989, %v4058
        %v4079 = vadd.f32 %v3990, %v4060
        %v4080 = vadd.f32 %v3991, %v4062
        %v4081 = vadd.f32 %v3992, %v4064
        %v4082 = vadd.f32 %v3993, %v4066
        %s4083 = scalar_lea.vmem %s3, 960
        %v4084 = vld [vmem:[%s4083] sm:$0xff]
        %v4085 = vld [vmem:[%s4083 + $0x8] sm:$0xff]
        %v4086 = vld [vmem:[%s4083 + $0x10] sm:$0xff]
        %v4087 = vld [vmem:[%s4083 + $0x18] sm:$0xff]
        %v4088 = vld [vmem:[%s4083 + $0x20] sm:$0xff]
        %v4089 = vld [vmem:[%s4083 + $0x28] sm:$0xff]
        %v4090 = vld [vmem:[%s4083 + $0x30] sm:$0xff]
        %v4091 = vld [vmem:[%s4083 + $0x38] sm:$0xff]
        %4100 = vrot.lane.b32.xlu0 %v4084, 28
        %v4101 = vpop.permute.xlu0 %4100
        %4102 = vrot.lane.b32.xlu0 %v4085, 28
        %v4103 = vpop.permute.xlu0 %4102
        %4104 = vrot.lane.b32.xlu0 %v4086, 28
        %v4105 = vpop.permute.xlu0 %4104
        %4106 = vrot.lane.b32.xlu0 %v4087, 28
        %v4107 = vpop.permute.xlu0 %4106
        %4108 = vrot.lane.b32.xlu0 %v4088, 28
        %v4109 = vpop.permute.xlu0 %4108
        %4110 = vrot.lane.b32.xlu0 %v4089, 28
        %v4111 = vpop.permute.xlu0 %4110
        %4112 = vrot.lane.b32.xlu0 %v4090, 28
        %v4113 = vpop.permute.xlu0 %4112
        %4114 = vrot.lane.b32.xlu0 %v4091, 28
        %v4115 = vpop.permute.xlu0 %4114
        %v4124 = vmul.f32 %v3467, %v4101
        %v4125 = vmul.f32 %v3468, %v4103
        %v4126 = vmul.f32 %v3469, %v4105
        %v4127 = vmul.f32 %v3470, %v4107
        %v4128 = vmul.f32 %v3471, %v4109
        %v4129 = vmul.f32 %v3472, %v4111
        %v4130 = vmul.f32 %v3473, %v4113
        %v4131 = vmul.f32 %v3466, %v4115
        %v4132 = vadd.f32 %v4075, %v4124
        %v4133 = vadd.f32 %v4076, %v4125
        %v4134 = vadd.f32 %v4077, %v4126
        %v4135 = vadd.f32 %v4078, %v4127
        %v4136 = vadd.f32 %v4079, %v4128
        %v4137 = vadd.f32 %v4080, %v4129
        %v4138 = vadd.f32 %v4081, %v4130
        %v4139 = vadd.f32 %v4082, %v4131
        %s4140 = scalar_lea.vmem %s3, 1024
        %v4141 = vld [vmem:[%s4140] sm:$0xff]
        %v4142 = vld [vmem:[%s4140 + $0x8] sm:$0xff]
        %v4143 = vld [vmem:[%s4140 + $0x10] sm:$0xff]
        %v4144 = vld [vmem:[%s4140 + $0x18] sm:$0xff]
        %v4145 = vld [vmem:[%s4140 + $0x20] sm:$0xff]
        %v4146 = vld [vmem:[%s4140 + $0x28] sm:$0xff]
        %v4147 = vld [vmem:[%s4140 + $0x30] sm:$0xff]
        %v4148 = vld [vmem:[%s4140 + $0x38] sm:$0xff]
        %v4149 = vmul.f32 %v3423, %v4141
        %v4150 = vmul.f32 %v3422, %v4142
        %v4151 = vmul.f32 %v3421, %v4143
        %v4152 = vmul.f32 %v3420, %v4144
        %v4153 = vmul.f32 %v3419, %v4145
        %v4154 = vmul.f32 %v3418, %v4146
        %v4155 = vmul.f32 %v3425, %v4147
        %v4156 = vmul.f32 %v3424, %v4148
        %4165 = vrot.lane.b32.xlu0 %v4149, 28
        %v4166 = vpop.permute.xlu0 %4165
        %4167 = vrot.lane.b32.xlu0 %v4150, 28
        %v4168 = vpop.permute.xlu0 %4167
        %4169 = vrot.lane.b32.xlu0 %v4151, 28
        %v4170 = vpop.permute.xlu0 %4169
        %4171 = vrot.lane.b32.xlu0 %v4152, 28
        %v4172 = vpop.permute.xlu0 %4171
        %4173 = vrot.lane.b32.xlu0 %v4153, 28
        %v4174 = vpop.permute.xlu0 %4173
        %4175 = vrot.lane.b32.xlu0 %v4154, 28
        %v4176 = vpop.permute.xlu0 %4175
        %4177 = vrot.lane.b32.xlu0 %v4155, 28
        %v4178 = vpop.permute.xlu0 %4177
        %4179 = vrot.lane.b32.xlu0 %v4156, 28
        %v4180 = vpop.permute.xlu0 %4179
        %v4189 = vadd.f32 %v4132, %v4166
        %v4190 = vadd.f32 %v4133, %v4168
        %v4191 = vadd.f32 %v4134, %v4170
        %v4192 = vadd.f32 %v4135, %v4172
        %v4193 = vadd.f32 %v4136, %v4174
        %v4194 = vadd.f32 %v4137, %v4176
        %v4195 = vadd.f32 %v4138, %v4178
        %v4196 = vadd.f32 %v4139, %v4180
        %s4197 = scalar_lea.vmem %s3, 1088
        %v4198 = vld [vmem:[%s4197] sm:$0xff]
        %v4199 = vld [vmem:[%s4197 + $0x8] sm:$0xff]
        %v4200 = vld [vmem:[%s4197 + $0x10] sm:$0xff]
        %v4201 = vld [vmem:[%s4197 + $0x18] sm:$0xff]
        %v4202 = vld [vmem:[%s4197 + $0x20] sm:$0xff]
        %v4203 = vld [vmem:[%s4197 + $0x28] sm:$0xff]
        %v4204 = vld [vmem:[%s4197 + $0x30] sm:$0xff]
        %v4205 = vld [vmem:[%s4197 + $0x38] sm:$0xff]
        %4214 = vrot.lane.b32.xlu0 %v4198, 4
        %v4215 = vpop.permute.xlu0 %4214
        %4216 = vrot.lane.b32.xlu0 %v4199, 4
        %v4217 = vpop.permute.xlu0 %4216
        %4218 = vrot.lane.b32.xlu0 %v4200, 4
        %v4219 = vpop.permute.xlu0 %4218
        %4220 = vrot.lane.b32.xlu0 %v4201, 4
        %v4221 = vpop.permute.xlu0 %4220
        %4222 = vrot.lane.b32.xlu0 %v4202, 4
        %v4223 = vpop.permute.xlu0 %4222
        %4224 = vrot.lane.b32.xlu0 %v4203, 4
        %v4225 = vpop.permute.xlu0 %4224
        %4226 = vrot.lane.b32.xlu0 %v4204, 4
        %v4227 = vpop.permute.xlu0 %4226
        %4228 = vrot.lane.b32.xlu0 %v4205, 4
        %v4229 = vpop.permute.xlu0 %4228
        %v4238 = vmul.f32 %v3467, %v4215
        %v4239 = vmul.f32 %v3468, %v4217
        %v4240 = vmul.f32 %v3469, %v4219
        %v4241 = vmul.f32 %v3470, %v4221
        %v4242 = vmul.f32 %v3471, %v4223
        %v4243 = vmul.f32 %v3472, %v4225
        %v4244 = vmul.f32 %v3473, %v4227
        %v4245 = vmul.f32 %v3466, %v4229
        %4254 = vrot.lane.b32.xlu0 %v4238, 24
        %v4255 = vpop.permute.xlu0 %4254
        %4256 = vrot.lane.b32.xlu0 %v4239, 24
        %v4257 = vpop.permute.xlu0 %4256
        %4258 = vrot.lane.b32.xlu0 %v4240, 24
        %v4259 = vpop.permute.xlu0 %4258
        %4260 = vrot.lane.b32.xlu0 %v4241, 24
        %v4261 = vpop.permute.xlu0 %4260
        %4262 = vrot.lane.b32.xlu0 %v4242, 24
        %v4263 = vpop.permute.xlu0 %4262
        %4264 = vrot.lane.b32.xlu0 %v4243, 24
        %v4265 = vpop.permute.xlu0 %4264
        %4266 = vrot.lane.b32.xlu0 %v4244, 24
        %v4267 = vpop.permute.xlu0 %4266
        %4268 = vrot.lane.b32.xlu0 %v4245, 24
        %v4269 = vpop.permute.xlu0 %4268
        %v4278 = vadd.f32 %v4189, %v4255
        %v4279 = vadd.f32 %v4190, %v4257
        %v4280 = vadd.f32 %v4191, %v4259
        %v4281 = vadd.f32 %v4192, %v4261
        %v4282 = vadd.f32 %v4193, %v4263
        %v4283 = vadd.f32 %v4194, %v4265
        %v4284 = vadd.f32 %v4195, %v4267
        %v4285 = vadd.f32 %v4196, %v4269
        %s4286 = scalar_lea.vmem %s3, 1152
        %v4287 = vld [vmem:[%s4286] sm:$0xff]
        %v4288 = vld [vmem:[%s4286 + $0x8] sm:$0xff]
        %v4289 = vld [vmem:[%s4286 + $0x10] sm:$0xff]
        %v4290 = vld [vmem:[%s4286 + $0x18] sm:$0xff]
        %v4291 = vld [vmem:[%s4286 + $0x20] sm:$0xff]
        %v4292 = vld [vmem:[%s4286 + $0x28] sm:$0xff]
        %v4293 = vld [vmem:[%s4286 + $0x30] sm:$0xff]
        %v4294 = vld [vmem:[%s4286 + $0x38] sm:$0xff]
        %4303 = vrot.lane.b32.xlu0 %v4287, 28
        %v4304 = vpop.permute.xlu0 %4303
        %4305 = vrot.lane.b32.xlu0 %v4288, 28
        %v4306 = vpop.permute.xlu0 %4305
        %4307 = vrot.lane.b32.xlu0 %v4289, 28
        %v4308 = vpop.permute.xlu0 %4307
        %4309 = vrot.lane.b32.xlu0 %v4290, 28
        %v4310 = vpop.permute.xlu0 %4309
        %4311 = vrot.lane.b32.xlu0 %v4291, 28
        %v4312 = vpop.permute.xlu0 %4311
        %4313 = vrot.lane.b32.xlu0 %v4292, 28
        %v4314 = vpop.permute.xlu0 %4313
        %4315 = vrot.lane.b32.xlu0 %v4293, 28
        %v4316 = vpop.permute.xlu0 %4315
        %4317 = vrot.lane.b32.xlu0 %v4294, 28
        %v4318 = vpop.permute.xlu0 %4317
        %v4327 = vmul.f32 %v2958, %v4304
        %v4328 = vmul.f32 %v2959, %v4306
        %v4329 = vmul.f32 %v2960, %v4308
        %v4330 = vmul.f32 %v2961, %v4310
        %v4331 = vmul.f32 %v2962, %v4312
        %v4332 = vmul.f32 %v2963, %v4314
        %v4333 = vmul.f32 %v2956, %v4316
        %v4334 = vmul.f32 %v2957, %v4318
        %v4335 = vadd.f32 %v4278, %v4327
        %v4336 = vadd.f32 %v4279, %v4328
        %v4337 = vadd.f32 %v4280, %v4329
        %v4338 = vadd.f32 %v4281, %v4330
        %v4339 = vadd.f32 %v4282, %v4331
        %v4340 = vadd.f32 %v4283, %v4332
        %v4341 = vadd.f32 %v4284, %v4333
        %v4342 = vadd.f32 %v4285, %v4334
        %s4343 = scalar_lea.vmem %s3, 1216
        %v4344 = vld [vmem:[%s4343] sm:$0xff]
        %v4345 = vld [vmem:[%s4343 + $0x8] sm:$0xff]
        %v4346 = vld [vmem:[%s4343 + $0x10] sm:$0xff]
        %v4347 = vld [vmem:[%s4343 + $0x18] sm:$0xff]
        %v4348 = vld [vmem:[%s4343 + $0x20] sm:$0xff]
        %v4349 = vld [vmem:[%s4343 + $0x28] sm:$0xff]
        %v4350 = vld [vmem:[%s4343 + $0x30] sm:$0xff]
        %v4351 = vld [vmem:[%s4343 + $0x38] sm:$0xff]
        %v4352 = vmul.f32 %v2912, %v4344
        %v4353 = vmul.f32 %v2911, %v4345
        %v4354 = vmul.f32 %v2910, %v4346
        %v4355 = vmul.f32 %v2909, %v4347
        %v4356 = vmul.f32 %v2908, %v4348
        %v4357 = vmul.f32 %v2907, %v4349
        %v4358 = vmul.f32 %v2914, %v4350
        %v4359 = vmul.f32 %v2913, %v4351
        %4368 = vrot.lane.b32.xlu0 %v4352, 28
        %v4369 = vpop.permute.xlu0 %4368
        %4370 = vrot.lane.b32.xlu0 %v4353, 28
        %v4371 = vpop.permute.xlu0 %4370
        %4372 = vrot.lane.b32.xlu0 %v4354, 28
        %v4373 = vpop.permute.xlu0 %4372
        %4374 = vrot.lane.b32.xlu0 %v4355, 28
        %v4375 = vpop.permute.xlu0 %4374
        %4376 = vrot.lane.b32.xlu0 %v4356, 28
        %v4377 = vpop.permute.xlu0 %4376
        %4378 = vrot.lane.b32.xlu0 %v4357, 28
        %v4379 = vpop.permute.xlu0 %4378
        %4380 = vrot.lane.b32.xlu0 %v4358, 28
        %v4381 = vpop.permute.xlu0 %4380
        %4382 = vrot.lane.b32.xlu0 %v4359, 28
        %v4383 = vpop.permute.xlu0 %4382
        %v4392 = vadd.f32 %v4335, %v4369
        %v4393 = vadd.f32 %v4336, %v4371
        %v4394 = vadd.f32 %v4337, %v4373
        %v4395 = vadd.f32 %v4338, %v4375
        %v4396 = vadd.f32 %v4339, %v4377
        %v4397 = vadd.f32 %v4340, %v4379
        %v4398 = vadd.f32 %v4341, %v4381
        %v4399 = vadd.f32 %v4342, %v4383
        %s4400 = scalar_lea.vmem %s3, 1280
        %v4401 = vld [vmem:[%s4400] sm:$0xff]
        %v4402 = vld [vmem:[%s4400 + $0x8] sm:$0xff]
        %v4403 = vld [vmem:[%s4400 + $0x10] sm:$0xff]
        %v4404 = vld [vmem:[%s4400 + $0x18] sm:$0xff]
        %v4405 = vld [vmem:[%s4400 + $0x20] sm:$0xff]
        %v4406 = vld [vmem:[%s4400 + $0x28] sm:$0xff]
        %v4407 = vld [vmem:[%s4400 + $0x30] sm:$0xff]
        %v4408 = vld [vmem:[%s4400 + $0x38] sm:$0xff]
        %4417 = vrot.lane.b32.xlu0 %v4401, 4
        %v4418 = vpop.permute.xlu0 %4417
        %4419 = vrot.lane.b32.xlu0 %v4402, 4
        %v4420 = vpop.permute.xlu0 %4419
        %4421 = vrot.lane.b32.xlu0 %v4403, 4
        %v4422 = vpop.permute.xlu0 %4421
        %4423 = vrot.lane.b32.xlu0 %v4404, 4
        %v4424 = vpop.permute.xlu0 %4423
        %4425 = vrot.lane.b32.xlu0 %v4405, 4
        %v4426 = vpop.permute.xlu0 %4425
        %4427 = vrot.lane.b32.xlu0 %v4406, 4
        %v4428 = vpop.permute.xlu0 %4427
        %4429 = vrot.lane.b32.xlu0 %v4407, 4
        %v4430 = vpop.permute.xlu0 %4429
        %4431 = vrot.lane.b32.xlu0 %v4408, 4
        %v4432 = vpop.permute.xlu0 %4431
        %v4441 = vmul.f32 %v2958, %v4418
        %v4442 = vmul.f32 %v2959, %v4420
        %v4443 = vmul.f32 %v2960, %v4422
        %v4444 = vmul.f32 %v2961, %v4424
        %v4445 = vmul.f32 %v2962, %v4426
        %v4446 = vmul.f32 %v2963, %v4428
        %v4447 = vmul.f32 %v2956, %v4430
        %v4448 = vmul.f32 %v2957, %v4432
        %4457 = vrot.lane.b32.xlu0 %v4441, 24
        %v4458 = vpop.permute.xlu0 %4457
        %4459 = vrot.lane.b32.xlu0 %v4442, 24
        %v4460 = vpop.permute.xlu0 %4459
        %4461 = vrot.lane.b32.xlu0 %v4443, 24
        %v4462 = vpop.permute.xlu0 %4461
        %4463 = vrot.lane.b32.xlu0 %v4444, 24
        %v4464 = vpop.permute.xlu0 %4463
        %4465 = vrot.lane.b32.xlu0 %v4445, 24
        %v4466 = vpop.permute.xlu0 %4465
        %4467 = vrot.lane.b32.xlu0 %v4446, 24
        %v4468 = vpop.permute.xlu0 %4467
        %4469 = vrot.lane.b32.xlu0 %v4447, 24
        %v4470 = vpop.permute.xlu0 %4469
        %4471 = vrot.lane.b32.xlu0 %v4448, 24
        %v4472 = vpop.permute.xlu0 %4471
        %v4481 = vadd.f32 %v4392, %v4458
        %v4482 = vadd.f32 %v4393, %v4460
        %v4483 = vadd.f32 %v4394, %v4462
        %v4484 = vadd.f32 %v4395, %v4464
        %v4485 = vadd.f32 %v4396, %v4466
        %v4486 = vadd.f32 %v4397, %v4468
        %v4487 = vadd.f32 %v4398, %v4470
        %v4488 = vadd.f32 %v4399, %v4472
        %s4489 = scalar_lea.vmem %s3, 1344
        %v4490 = vld [vmem:[%s4489] sm:$0xff]
        %v4491 = vld [vmem:[%s4489 + $0x8] sm:$0xff]
        %v4492 = vld [vmem:[%s4489 + $0x10] sm:$0xff]
        %v4493 = vld [vmem:[%s4489 + $0x18] sm:$0xff]
        %v4494 = vld [vmem:[%s4489 + $0x20] sm:$0xff]
        %v4495 = vld [vmem:[%s4489 + $0x28] sm:$0xff]
        %v4496 = vld [vmem:[%s4489 + $0x30] sm:$0xff]
        %v4497 = vld [vmem:[%s4489 + $0x38] sm:$0xff]
        %4506 = vrot.lane.b32.xlu0 %v4490, 28
        %v4507 = vpop.permute.xlu0 %4506
        %4508 = vrot.lane.b32.xlu0 %v4491, 28
        %v4509 = vpop.permute.xlu0 %4508
        %4510 = vrot.lane.b32.xlu0 %v4492, 28
        %v4511 = vpop.permute.xlu0 %4510
        %4512 = vrot.lane.b32.xlu0 %v4493, 28
        %v4513 = vpop.permute.xlu0 %4512
        %4514 = vrot.lane.b32.xlu0 %v4494, 28
        %v4515 = vpop.permute.xlu0 %4514
        %4516 = vrot.lane.b32.xlu0 %v4495, 28
        %v4517 = vpop.permute.xlu0 %4516
        %4518 = vrot.lane.b32.xlu0 %v4496, 28
        %v4519 = vpop.permute.xlu0 %4518
        %4520 = vrot.lane.b32.xlu0 %v4497, 28
        %v4521 = vpop.permute.xlu0 %4520
        %v4530 = vmul.f32 %v3200, %v4507
        %v4531 = vmul.f32 %v3201, %v4509
        %v4532 = vmul.f32 %v3202, %v4511
        %v4533 = vmul.f32 %v3203, %v4513
        %v4534 = vmul.f32 %v3204, %v4515
        %v4535 = vmul.f32 %v3205, %v4517
        %v4536 = vmul.f32 %v3198, %v4519
        %v4537 = vmul.f32 %v3199, %v4521
        %v4538 = vadd.f32 %v4481, %v4530
        %v4539 = vadd.f32 %v4482, %v4531
        %v4540 = vadd.f32 %v4483, %v4532
        %v4541 = vadd.f32 %v4484, %v4533
        %v4542 = vadd.f32 %v4485, %v4534
        %v4543 = vadd.f32 %v4486, %v4535
        %v4544 = vadd.f32 %v4487, %v4536
        %v4545 = vadd.f32 %v4488, %v4537
        %s4546 = scalar_lea.vmem %s3, 1408
        %v4547 = vld [vmem:[%s4546] sm:$0xff]
        %v4548 = vld [vmem:[%s4546 + $0x8] sm:$0xff]
        %v4549 = vld [vmem:[%s4546 + $0x10] sm:$0xff]
        %v4550 = vld [vmem:[%s4546 + $0x18] sm:$0xff]
        %v4551 = vld [vmem:[%s4546 + $0x20] sm:$0xff]
        %v4552 = vld [vmem:[%s4546 + $0x28] sm:$0xff]
        %v4553 = vld [vmem:[%s4546 + $0x30] sm:$0xff]
        %v4554 = vld [vmem:[%s4546 + $0x38] sm:$0xff]
        %v4555 = vmul.f32 %v2889, %v4547
        %v4556 = vmul.f32 %v2890, %v4548
        %v4557 = vmul.f32 %v2891, %v4549
        %v4558 = vmul.f32 %v2892, %v4550
        %v4559 = vmul.f32 %v2893, %v4551
        %v4560 = vmul.f32 %v2894, %v4552
        %v4561 = vmul.f32 %v2895, %v4553
        %v4562 = vmul.f32 %v2888, %v4554
        %4571 = vrot.lane.b32.xlu0 %v4555, 28
        %v4572 = vpop.permute.xlu0 %4571
        %4573 = vrot.lane.b32.xlu0 %v4556, 28
        %v4574 = vpop.permute.xlu0 %4573
        %4575 = vrot.lane.b32.xlu0 %v4557, 28
        %v4576 = vpop.permute.xlu0 %4575
        %4577 = vrot.lane.b32.xlu0 %v4558, 28
        %v4578 = vpop.permute.xlu0 %4577
        %4579 = vrot.lane.b32.xlu0 %v4559, 28
        %v4580 = vpop.permute.xlu0 %4579
        %4581 = vrot.lane.b32.xlu0 %v4560, 28
        %v4582 = vpop.permute.xlu0 %4581
        %4583 = vrot.lane.b32.xlu0 %v4561, 28
        %v4584 = vpop.permute.xlu0 %4583
        %4585 = vrot.lane.b32.xlu0 %v4562, 28
        %v4586 = vpop.permute.xlu0 %4585
        %v4595 = vadd.f32 %v4538, %v4572
        %v4596 = vadd.f32 %v4539, %v4574
        %v4597 = vadd.f32 %v4540, %v4576
        %v4598 = vadd.f32 %v4541, %v4578
        %v4599 = vadd.f32 %v4542, %v4580
        %v4600 = vadd.f32 %v4543, %v4582
        %v4601 = vadd.f32 %v4544, %v4584
        %v4602 = vadd.f32 %v4545, %v4586
        %s4603 = scalar_lea.vmem %s3, 1472
        %v4604 = vld [vmem:[%s4603] sm:$0xff]
        %v4605 = vld [vmem:[%s4603 + $0x8] sm:$0xff]
        %v4606 = vld [vmem:[%s4603 + $0x10] sm:$0xff]
        %v4607 = vld [vmem:[%s4603 + $0x18] sm:$0xff]
        %v4608 = vld [vmem:[%s4603 + $0x20] sm:$0xff]
        %v4609 = vld [vmem:[%s4603 + $0x28] sm:$0xff]
        %v4610 = vld [vmem:[%s4603 + $0x30] sm:$0xff]
        %v4611 = vld [vmem:[%s4603 + $0x38] sm:$0xff]
        %4620 = vrot.lane.b32.xlu0 %v4604, 4
        %v4621 = vpop.permute.xlu0 %4620
        %4622 = vrot.lane.b32.xlu0 %v4605, 4
        %v4623 = vpop.permute.xlu0 %4622
        %4624 = vrot.lane.b32.xlu0 %v4606, 4
        %v4625 = vpop.permute.xlu0 %4624
        %4626 = vrot.lane.b32.xlu0 %v4607, 4
        %v4627 = vpop.permute.xlu0 %4626
        %4628 = vrot.lane.b32.xlu0 %v4608, 4
        %v4629 = vpop.permute.xlu0 %4628
        %4630 = vrot.lane.b32.xlu0 %v4609, 4
        %v4631 = vpop.permute.xlu0 %4630
        %4632 = vrot.lane.b32.xlu0 %v4610, 4
        %v4633 = vpop.permute.xlu0 %4632
        %4634 = vrot.lane.b32.xlu0 %v4611, 4
        %v4635 = vpop.permute.xlu0 %4634
        %v4644 = vmul.f32 %v3200, %v4621
        %v4645 = vmul.f32 %v3201, %v4623
        %v4646 = vmul.f32 %v3202, %v4625
        %v4647 = vmul.f32 %v3203, %v4627
        %v4648 = vmul.f32 %v3204, %v4629
        %v4649 = vmul.f32 %v3205, %v4631
        %v4650 = vmul.f32 %v3198, %v4633
        %v4651 = vmul.f32 %v3199, %v4635
        %4660 = vrot.lane.b32.xlu0 %v4644, 24
        %v4661 = vpop.permute.xlu0 %4660
        %4662 = vrot.lane.b32.xlu0 %v4645, 24
        %v4663 = vpop.permute.xlu0 %4662
        %4664 = vrot.lane.b32.xlu0 %v4646, 24
        %v4665 = vpop.permute.xlu0 %4664
        %4666 = vrot.lane.b32.xlu0 %v4647, 24
        %v4667 = vpop.permute.xlu0 %4666
        %4668 = vrot.lane.b32.xlu0 %v4648, 24
        %v4669 = vpop.permute.xlu0 %4668
        %4670 = vrot.lane.b32.xlu0 %v4649, 24
        %v4671 = vpop.permute.xlu0 %4670
        %4672 = vrot.lane.b32.xlu0 %v4650, 24
        %v4673 = vpop.permute.xlu0 %4672
        %4674 = vrot.lane.b32.xlu0 %v4651, 24
        %v4675 = vpop.permute.xlu0 %4674
        %v4684 = vadd.f32 %v4595, %v4661
        %v4685 = vadd.f32 %v4596, %v4663
        %v4686 = vadd.f32 %v4597, %v4665
        %v4687 = vadd.f32 %v4598, %v4667
        %v4688 = vadd.f32 %v4599, %v4669
        %v4689 = vadd.f32 %v4600, %v4671
        %v4690 = vadd.f32 %v4601, %v4673
        %v4691 = vadd.f32 %v4602, %v4675
        %s4692 = scalar_lea.vmem %s3, 1536
        %v4693 = vld [vmem:[%s4692] sm:$0xff]
        %v4694 = vld [vmem:[%s4692 + $0x8] sm:$0xff]
        %v4695 = vld [vmem:[%s4692 + $0x10] sm:$0xff]
        %v4696 = vld [vmem:[%s4692 + $0x18] sm:$0xff]
        %v4697 = vld [vmem:[%s4692 + $0x20] sm:$0xff]
        %v4698 = vld [vmem:[%s4692 + $0x28] sm:$0xff]
        %v4699 = vld [vmem:[%s4692 + $0x30] sm:$0xff]
        %v4700 = vld [vmem:[%s4692 + $0x38] sm:$0xff]
        %4709 = vrot.lane.b32.xlu0 %v4693, 28
        %v4710 = vpop.permute.xlu0 %4709
        %4711 = vrot.lane.b32.xlu0 %v4694, 28
        %v4712 = vpop.permute.xlu0 %4711
        %4713 = vrot.lane.b32.xlu0 %v4695, 28
        %v4714 = vpop.permute.xlu0 %4713
        %4715 = vrot.lane.b32.xlu0 %v4696, 28
        %v4716 = vpop.permute.xlu0 %4715
        %4717 = vrot.lane.b32.xlu0 %v4697, 28
        %v4718 = vpop.permute.xlu0 %4717
        %4719 = vrot.lane.b32.xlu0 %v4698, 28
        %v4720 = vpop.permute.xlu0 %4719
        %4721 = vrot.lane.b32.xlu0 %v4699, 28
        %v4722 = vpop.permute.xlu0 %4721
        %4723 = vrot.lane.b32.xlu0 %v4700, 28
        %v4724 = vpop.permute.xlu0 %4723
        %v4733 = vmul.f32 %v3468, %v4710
        %v4734 = vmul.f32 %v3469, %v4712
        %v4735 = vmul.f32 %v3470, %v4714
        %v4736 = vmul.f32 %v3471, %v4716
        %v4737 = vmul.f32 %v3472, %v4718
        %v4738 = vmul.f32 %v3473, %v4720
        %v4739 = vmul.f32 %v3466, %v4722
        %v4740 = vmul.f32 %v3467, %v4724
        %v4741 = vadd.f32 %v4684, %v4733
        %v4742 = vadd.f32 %v4685, %v4734
        %v4743 = vadd.f32 %v4686, %v4735
        %v4744 = vadd.f32 %v4687, %v4736
        %v4745 = vadd.f32 %v4688, %v4737
        %v4746 = vadd.f32 %v4689, %v4738
        %v4747 = vadd.f32 %v4690, %v4739
        %v4748 = vadd.f32 %v4691, %v4740
        %s4749 = scalar_lea.vmem %s3, 1600
        %v4750 = vld [vmem:[%s4749] sm:$0xff]
        %v4751 = vld [vmem:[%s4749 + $0x8] sm:$0xff]
        %v4752 = vld [vmem:[%s4749 + $0x10] sm:$0xff]
        %v4753 = vld [vmem:[%s4749 + $0x18] sm:$0xff]
        %v4754 = vld [vmem:[%s4749 + $0x20] sm:$0xff]
        %v4755 = vld [vmem:[%s4749 + $0x28] sm:$0xff]
        %v4756 = vld [vmem:[%s4749 + $0x30] sm:$0xff]
        %v4757 = vld [vmem:[%s4749 + $0x38] sm:$0xff]
        %v4758 = vmul.f32 %v3422, %v4750
        %v4759 = vmul.f32 %v3421, %v4751
        %v4760 = vmul.f32 %v3420, %v4752
        %v4761 = vmul.f32 %v3419, %v4753
        %v4762 = vmul.f32 %v3418, %v4754
        %v4763 = vmul.f32 %v3425, %v4755
        %v4764 = vmul.f32 %v3424, %v4756
        %v4765 = vmul.f32 %v3423, %v4757
        %4774 = vrot.lane.b32.xlu0 %v4758, 28
        %v4775 = vpop.permute.xlu0 %4774
        %4776 = vrot.lane.b32.xlu0 %v4759, 28
        %v4777 = vpop.permute.xlu0 %4776
        %4778 = vrot.lane.b32.xlu0 %v4760, 28
        %v4779 = vpop.permute.xlu0 %4778
        %4780 = vrot.lane.b32.xlu0 %v4761, 28
        %v4781 = vpop.permute.xlu0 %4780
        %4782 = vrot.lane.b32.xlu0 %v4762, 28
        %v4783 = vpop.permute.xlu0 %4782
        %4784 = vrot.lane.b32.xlu0 %v4763, 28
        %v4785 = vpop.permute.xlu0 %4784
        %4786 = vrot.lane.b32.xlu0 %v4764, 28
        %v4787 = vpop.permute.xlu0 %4786
        %4788 = vrot.lane.b32.xlu0 %v4765, 28
        %v4789 = vpop.permute.xlu0 %4788
        %v4798 = vadd.f32 %v4741, %v4775
        %v4799 = vadd.f32 %v4742, %v4777
        %v4800 = vadd.f32 %v4743, %v4779
        %v4801 = vadd.f32 %v4744, %v4781
        %v4802 = vadd.f32 %v4745, %v4783
        %v4803 = vadd.f32 %v4746, %v4785
        %v4804 = vadd.f32 %v4747, %v4787
        %v4805 = vadd.f32 %v4748, %v4789
        %s4806 = scalar_lea.vmem %s3, 1664
        %v4807 = vld [vmem:[%s4806] sm:$0xff]
        %v4808 = vld [vmem:[%s4806 + $0x8] sm:$0xff]
        %v4809 = vld [vmem:[%s4806 + $0x10] sm:$0xff]
        %v4810 = vld [vmem:[%s4806 + $0x18] sm:$0xff]
        %v4811 = vld [vmem:[%s4806 + $0x20] sm:$0xff]
        %v4812 = vld [vmem:[%s4806 + $0x28] sm:$0xff]
        %v4813 = vld [vmem:[%s4806 + $0x30] sm:$0xff]
        %v4814 = vld [vmem:[%s4806 + $0x38] sm:$0xff]
        %4823 = vrot.lane.b32.xlu0 %v4807, 4
        %v4824 = vpop.permute.xlu0 %4823
        %4825 = vrot.lane.b32.xlu0 %v4808, 4
        %v4826 = vpop.permute.xlu0 %4825
        %4827 = vrot.lane.b32.xlu0 %v4809, 4
        %v4828 = vpop.permute.xlu0 %4827
        %4829 = vrot.lane.b32.xlu0 %v4810, 4
        %v4830 = vpop.permute.xlu0 %4829
        %4831 = vrot.lane.b32.xlu0 %v4811, 4
        %v4832 = vpop.permute.xlu0 %4831
        %4833 = vrot.lane.b32.xlu0 %v4812, 4
        %v4834 = vpop.permute.xlu0 %4833
        %4835 = vrot.lane.b32.xlu0 %v4813, 4
        %v4836 = vpop.permute.xlu0 %4835
        %4837 = vrot.lane.b32.xlu0 %v4814, 4
        %v4838 = vpop.permute.xlu0 %4837
        %v4847 = vmul.f32 %v3468, %v4824
        %v4848 = vmul.f32 %v3469, %v4826
        %v4849 = vmul.f32 %v3470, %v4828
        %v4850 = vmul.f32 %v3471, %v4830
        %v4851 = vmul.f32 %v3472, %v4832
        %v4852 = vmul.f32 %v3473, %v4834
        %v4853 = vmul.f32 %v3466, %v4836
        %v4854 = vmul.f32 %v3467, %v4838
        %4863 = vrot.lane.b32.xlu0 %v4847, 24
        %v4864 = vpop.permute.xlu0 %4863
        %4865 = vrot.lane.b32.xlu0 %v4848, 24
        %v4866 = vpop.permute.xlu0 %4865
        %4867 = vrot.lane.b32.xlu0 %v4849, 24
        %v4868 = vpop.permute.xlu0 %4867
        %4869 = vrot.lane.b32.xlu0 %v4850, 24
        %v4870 = vpop.permute.xlu0 %4869
        %4871 = vrot.lane.b32.xlu0 %v4851, 24
        %v4872 = vpop.permute.xlu0 %4871
        %4873 = vrot.lane.b32.xlu0 %v4852, 24
        %v4874 = vpop.permute.xlu0 %4873
        %4875 = vrot.lane.b32.xlu0 %v4853, 24
        %v4876 = vpop.permute.xlu0 %4875
        %4877 = vrot.lane.b32.xlu0 %v4854, 24
        %v4878 = vpop.permute.xlu0 %4877
        %v4887 = vadd.f32 %v4798, %v4864
        %v4888 = vadd.f32 %v4799, %v4866
        %v4889 = vadd.f32 %v4800, %v4868
        %v4890 = vadd.f32 %v4801, %v4870
        %v4891 = vadd.f32 %v4802, %v4872
        %v4892 = vadd.f32 %v4803, %v4874
        %v4893 = vadd.f32 %v4804, %v4876
        %v4894 = vadd.f32 %v4805, %v4878
        %v4895 = vld [vmem:[%s4] sm:$0x1]
        %v4897 = vlaneseq
        %v4898 = vshrl.u32 %v4897, 7
        %v4899 = vsub.s32 0, %v4898
        %v4900 = vrot.slane %v4895, %v4899
        %4901 = vrot.lane.b32.xlu0 %v4900, 28
        %v4902 = vpop.permute.xlu0 %4901
        %v4904 = vadd.f32 %v4887, %v4902
        %v4905 = vadd.f32 %v4888, %v4902
        %v4906 = vadd.f32 %v4889, %v4902
        %v4907 = vadd.f32 %v4890, %v4902
        %v4908 = vadd.f32 %v4891, %v4902
        %v4909 = vadd.f32 %v4892, %v4902
        %v4910 = vadd.f32 %v4893, %v4902
        %v4911 = vadd.f32 %v4894, %v4902
        %v4912 = vmax.f32 %v4904, 0.0
        %v4913 = vmax.f32 %v4905, 0.0
        %v4914 = vmax.f32 %v4906, 0.0
        %v4915 = vmax.f32 %v4907, 0.0
        %v4916 = vmax.f32 %v4908, 0.0
        %v4917 = vmax.f32 %v4909, 0.0
        %v4918 = vmax.f32 %v4910, 0.0
        %v4919 = vmax.f32 %v4911, 0.0
        %v4920 = vld [vmem:[%s5] sm:$0xff]
        %v4921 = vld [vmem:[%s5 + $0x8] sm:$0xff]
        %v4922 = vld [vmem:[%s5 + $0x10] sm:$0xff]
        %v4923 = vld [vmem:[%s5 + $0x18] sm:$0xff]
        %v4924 = vld [vmem:[%s5 + $0x20] sm:$0xff]
        %v4925 = vld [vmem:[%s5 + $0x28] sm:$0xff]
        %v4926 = vld [vmem:[%s5 + $0x30] sm:$0xff]
        %v4927 = vld [vmem:[%s5 + $0x38] sm:$0xff]
        %v4928 = vld [vmem:[%s5 + $0x40] sm:$0xff]
        %v4929 = vld [vmem:[%s5 + $0x48] sm:$0xff]
        %v4930 = vld [vmem:[%s5 + $0x50] sm:$0xff]
        %v4931 = vld [vmem:[%s5 + $0x58] sm:$0xff]
        %v4932 = vld [vmem:[%s5 + $0x60] sm:$0xff]
        %v4933 = vld [vmem:[%s5 + $0x68] sm:$0xff]
        %v4934 = vld [vmem:[%s5 + $0x70] sm:$0xff]
        %v4935 = vld [vmem:[%s5 + $0x78] sm:$0xff]
        %v4936 = vld [vmem:[%s6] sm:$0xf]
        %v4938 = vlaneseq
        %v4939 = vshrl.u32 %v4938, 7
        %v4940 = vsub.s32 0, %v4939
        %v4941 = vrot.slane %v4936, %v4940
        %v4942 = vlaneseq
        %v4943 = vshrl.u32 %v4942, 7
        %v4944 = vsub.s32 1, %v4943
        %v4945 = vrot.slane %v4936, %v4944
        %v4946 = vlaneseq
        %v4947 = vshrl.u32 %v4946, 7
        %v4948 = vsub.s32 2, %v4947
        %v4949 = vrot.slane %v4936, %v4948
        %v4950 = vlaneseq
        %v4951 = vshrl.u32 %v4950, 7
        %v4952 = vsub.s32 3, %v4951
        %v4953 = vrot.slane %v4936, %v4952
        %4966 = vrot.lane.b32.xlu0 %v4912, 100
        %v4967 = vpop.permute.xlu0 %4966
        %4968 = vrot.lane.b32.xlu0 %v4913, 100
        %v4969 = vpop.permute.xlu0 %4968
        %4970 = vrot.lane.b32.xlu0 %v4914, 100
        %v4971 = vpop.permute.xlu0 %4970
        %4972 = vrot.lane.b32.xlu0 %v4915, 100
        %v4973 = vpop.permute.xlu0 %4972
        %4974 = vrot.lane.b32.xlu0 %v4916, 100
        %v4975 = vpop.permute.xlu0 %4974
        %4976 = vrot.lane.b32.xlu0 %v4917, 100
        %v4977 = vpop.permute.xlu0 %4976
        %4978 = vrot.lane.b32.xlu0 %v4918, 100
        %v4979 = vpop.permute.xlu0 %4978
        %4980 = vrot.lane.b32.xlu0 %v4919, 100
        %v4981 = vpop.permute.xlu0 %4980
        %vm4982 = vcmask 261120
        %v4983 = vsel %vm4982, %v4967, 0
        %v4985 = vsel %vm4982, %v4969, 0
        %v4987 = vsel %vm4982, %v4971, 0
        %v4989 = vsel %vm4982, %v4973, 0
        %v4991 = vsel %vm4982, %v4975, 0
        %v4993 = vsel %vm4982, %v4977, 0
        %v4995 = vsel %vm4982, %v4979, 0
        %v4997 = vsel %vm4982, %v4981, 0
        %v4999 = vand.u32 %v4921, 4294901760
        %5000 = vmatprep.subr.mxu0 %v4999
        %v5001 = vand.u32 %v4920, 4294901760
        %5002 = vmatpush1.msra.mxu0 %v5001
        %v5003 = vand.u32 %v4925, 4294901760
        %5004 = vmatprep.subr.mxu0 %v5003
        %v5005 = vand.u32 %v4924, 4294901760
        %5006 = vmatpush1.msra.mxu0 %v5005
        %v5007 = vand.u32 %v4929, 4294901760
        %5008 = vmatprep.subr.mxu0 %v5007
        %v5009 = vand.u32 %v4928, 4294901760
        %5010 = vmatpush1.msra.mxu0 %v5009
        %v5011 = vand.u32 %v4933, 4294901760
        %5012 = vmatprep.subr.mxu0 %v5011
        %v5013 = vand.u32 %v4932, 4294901760
        %5014 = vmatpush1.msra.mxu0 %v5013
        %5015 = vmatprep.subr.mxu0 0.0
        %5016 = vmatpush1.msra.mxu0 0.0
        %5017 = vmatprep.subr.mxu0 0.0
        %5018 = vmatpush1.msra.mxu0 0.0
        %5019 = vmatprep.subr.mxu0 0.0
        %5020 = vmatpush1.msra.mxu0 0.0
        %5021 = vmatprep.subr.mxu0 0.0
        %5022 = vmatpush1.msra.mxu0 0.0
        %5023 = vmatprep.subr.mxu0 0.0
        %5024 = vmatpush1.msra.mxu0 0.0
        %5025 = vmatprep.subr.mxu0 0.0
        %5026 = vmatpush1.msra.mxu0 0.0
        %5027 = vmatprep.subr.mxu0 0.0
        %5028 = vmatpush1.msra.mxu0 0.0
        %5029 = vmatprep.subr.mxu0 0.0
        %5030 = vmatpush1.msra.mxu0 0.0
        %5031 = vmatprep.subr.mxu0 0.0
        %5032 = vmatpush1.msra.mxu0 0.0
        %5033 = vmatprep.subr.mxu0 0.0
        %5034 = vmatpush1.msra.mxu0 0.0
        %5035 = vmatprep.subr.mxu0 0.0
        %5036 = vmatpush1.msra.mxu0 0.0
        %5037 = vmatprep.subr.mxu0 0.0
        %5038 = vmatpush1.msra.mxu0 0.0
        %5039 = vmatprep.subr.mxu0 0.0
        %5040 = vmatpush1.msra.mxu0 0.0
        %5041 = vmatprep.subr.mxu0 0.0
        %5042 = vmatpush1.msra.mxu0 0.0
        %5043 = vmatprep.subr.mxu0 0.0
        %5044 = vmatpush1.msra.mxu0 0.0
        %5045 = vmatprep.subr.mxu0 0.0
        %5046 = vmatpush1.msra.mxu0 0.0
        %5047 = vmatprep.subr.mxu0 0.0
        %5048 = vmatpush1.msra.mxu0 0.0
        %5049 = vmatprep.subr.mxu0 0.0
        %5050 = vmatpush1.msra.mxu0 0.0
        %5051 = vmatprep.subr.mxu0 0.0
        %5052 = vmatpush1.msra.mxu0 0.0
        %5053 = vmatprep.subr.mxu0 0.0
        %5054 = vmatpush1.msra.mxu0 0.0
        %5055 = vmatprep.subr.mxu0 0.0
        %5056 = vmatpush1.msra.mxu0 0.0
        %5057 = vmatprep.subr.mxu0 0.0
        %5058 = vmatpush1.msra.mxu0 0.0
        %5059 = vmatprep.subr.mxu0 0.0
        %5060 = vmatpush1.msra.mxu0 0.0
        %5061 = vmatprep.subr.mxu0 0.0
        %5062 = vmatpush1.msra.mxu0 0.0
        %5063 = vmatprep.subr.mxu0 0.0
        %5064 = vmatpush1.msra.mxu0 0.0
        %5065 = vmatprep.subr.mxu0 0.0
        %5066 = vmatpush1.msra.mxu0 0.0
        %5067 = vmatprep.subr.mxu0 0.0
        %5068 = vmatpush1.msra.mxu0 0.0
        %5069 = vmatprep.subr.mxu0 0.0
        %5070 = vmatpush1.msra.mxu0 0.0
        %5071 = vmatprep.mubr.f32.mxu0 0.0
        %v5072 = vand.u32 %v4983, 4294901760
        %v5073 = vsub.f32 %v4983, %v5072
        %v5074 = vand.u32 %v5073, 4294901760
        %v5075 = vsub.f32 %v5073, %v5074
        %v5076 = vand.u32 %v5075, 4294901760
        %5077 = vmatmul.mubr.f32.gmra.mrb[0].mxu0 %v5076
        %v5078 = vpop.f32.mrb[0].mxu0
        %v5079 = vadd.f32 %v4941, %v5078
        %v5080 = vpop.f32.mrb[0].mxu0
        %v5081 = vadd.f32 %v4945, %v5080
        %5082 = vmatprep.mubr.f32.mxu0 0.0
        %v5083 = vand.u32 %v4985, 4294901760
        %v5084 = vsub.f32 %v4985, %v5083
        %v5085 = vand.u32 %v5084, 4294901760
        %v5086 = vsub.f32 %v5084, %v5085
        %v5087 = vand.u32 %v5086, 4294901760
        %5088 = vmatmul.mubr.f32.gmra.mrb[0].mxu0 %v5087
        %v5089 = vpop.f32.mrb[0].mxu0
        %v5090 = vadd.f32 %v4941, %v5089
        %v5091 = vpop.f32.mrb[0].mxu0
        %v5092 = vadd.f32 %v4945, %v5091
        %5093 = vmatprep.mubr.f32.mxu0 0.0
        %v5094 = vand.u32 %v4987, 4294901760
        %v5095 = vsub.f32 %v4987, %v5094
        %v5096 = vand.u32 %v5095, 4294901760
        %v5097 = vsub.f32 %v5095, %v5096
        %v5098 = vand.u32 %v5097, 4294901760
        %5099 = vmatmul.mubr.f32.gmra.mrb[0].mxu0 %v5098
        %v5100 = vpop.f32.mrb[0].mxu0
        %v5101 = vadd.f32 %v4941, %v5100
        %v5102 = vpop.f32.mrb[0].mxu0
        %v5103 = vadd.f32 %v4945, %v5102
        %5104 = vmatprep.mubr.f32.mxu0 0.0
        %v5105 = vand.u32 %v4989, 4294901760
        %v5106 = vsub.f32 %v4989, %v5105
        %v5107 = vand.u32 %v5106, 4294901760
        %v5108 = vsub.f32 %v5106, %v5107
        %v5109 = vand.u32 %v5108, 4294901760
        %5110 = vmatmul.mubr.f32.gmra.mrb[0].mxu0 %v5109
        %v5111 = vpop.f32.mrb[0].mxu0
        %v5112 = vadd.f32 %v4941, %v5111
        %v5113 = vpop.f32.mrb[0].mxu0
        %v5114 = vadd.f32 %v4945, %v5113
        %5115 = vmatprep.mubr.f32.mxu0 0.0
        %v5116 = vand.u32 %v4991, 4294901760
        %v5117 = vsub.f32 %v4991, %v5116
        %v5118 = vand.u32 %v5117, 4294901760
        %v5119 = vsub.f32 %v5117, %v5118
        %v5120 = vand.u32 %v5119, 4294901760
        %5121 = vmatmul.mubr.f32.gmra.mrb[0].mxu0 %v5120
        %v5122 = vpop.f32.mrb[0].mxu0
        %v5123 = vadd.f32 %v4941, %v5122
        %v5124 = vpop.f32.mrb[0].mxu0
        %v5125 = vadd.f32 %v4945, %v5124
        %5126 = vmatprep.mubr.f32.mxu0 0.0
        %v5127 = vand.u32 %v4993, 4294901760
        %v5128 = vsub.f32 %v4993, %v5127
        %v5129 = vand.u32 %v5128, 4294901760
        %v5130 = vsub.f32 %v5128, %v5129
        %v5131 = vand.u32 %v5130, 4294901760
        %5132 = vmatmul.mubr.f32.gmra.mrb[0].mxu0 %v5131
        %v5133 = vpop.f32.mrb[0].mxu0
        %v5134 = vadd.f32 %v4941, %v5133
        %v5135 = vpop.f32.mrb[0].mxu0
        %v5136 = vadd.f32 %v4945, %v5135
        %5137 = vmatprep.mubr.f32.mxu0 0.0
        %v5138 = vand.u32 %v4995, 4294901760
        %v5139 = vsub.f32 %v4995, %v5138
        %v5140 = vand.u32 %v5139, 4294901760
        %v5141 = vsub.f32 %v5139, %v5140
        %v5142 = vand.u32 %v5141, 4294901760
        %5143 = vmatmul.mubr.f32.gmra.mrb[0].mxu0 %v5142
        %v5144 = vpop.f32.mrb[0].mxu0
        %v5145 = vadd.f32 %v4941, %v5144
        %v5146 = vpop.f32.mrb[0].mxu0
        %v5147 = vadd.f32 %v4945, %v5146
        %5148 = vmatprep.mubr.f32.mxu0 0.0
        %v5149 = vand.u32 %v4997, 4294901760
        %v5150 = vsub.f32 %v4997, %v5149
        %v5151 = vand.u32 %v5150, 4294901760
        %v5152 = vsub.f32 %v5150, %v5151
        %v5153 = vand.u32 %v5152, 4294901760
        %5154 = vmatmul.mubr.f32.gmra.mrb[0].mxu0 %v5153
        %v5155 = vpop.f32.mrb[0].mxu0
        %v5156 = vadd.f32 %v4941, %v5155
        %v5157 = vpop.f32.mrb[0].mxu0
        %v5158 = vadd.f32 %v4945, %v5157
        %5159 = vdwg.mxu0
        %v5160 = vand.u32 %v4921, 4294901760
        %v5161 = vsub.f32 %v4921, %v5160
        %v5162 = vand.u32 %v5161, 4294901760
        %v5163 = vsub.f32 %v5161, %v5162
        %v5164 = vand.u32 %v5163, 4294901760
        %5165 = vmatprep.subr.mxu0 %v5164
        %v5166 = vand.u32 %v4920, 4294901760
        %v5167 = vsub.f32 %v4920, %v5166
        %v5168 = vand.u32 %v5167, 4294901760
        %v5169 = vsub.f32 %v5167, %v5168
        %v5170 = vand.u32 %v5169, 4294901760
        %5171 = vmatpush1.msra.mxu0 %v5170
        %v5172 = vand.u32 %v4925, 4294901760
        %v5173 = vsub.f32 %v4925, %v5172
        %v5174 = vand.u32 %v5173, 4294901760
        %v5175 = vsub.f32 %v5173, %v5174
        %v5176 = vand.u32 %v5175, 4294901760
        %5177 = vmatprep.subr.mxu0 %v5176
        %v5178 = vand.u32 %v4924, 4294901760
        %v5179 = vsub.f32 %v4924, %v5178
        %v5180 = vand.u32 %v5179, 4294901760
        %v5181 = vsub.f32 %v5179, %v5180
        %v5182 = vand.u32 %v5181, 4294901760
        %5183 = vmatpush1.msra.mxu0 %v5182
        %v5184 = vand.u32 %v4929, 4294901760
        %v5185 = vsub.f32 %v4929, %v5184
        %v5186 = vand.u32 %v5185, 4294901760
        %v5187 = vsub.f32 %v5185, %v5186
        %v5188 = vand.u32 %v5187, 4294901760
        %5189 = vmatprep.subr.mxu0 %v5188
        %v5190 = vand.u32 %v4928, 4294901760
        %v5191 = vsub.f32 %v4928, %v5190
        %v5192 = vand.u32 %v5191, 4294901760
        %v5193 = vsub.f32 %v5191, %v5192
        %v5194 = vand.u32 %v5193, 4294901760
        %5195 = vmatpush1.msra.mxu0 %v5194
        %v5196 = vand.u32 %v4933, 4294901760
        %v5197 = vsub.f32 %v4933, %v5196
        %v5198 = vand.u32 %v5197, 4294901760
        %v5199 = vsub.f32 %v5197, %v5198
        %v5200 = vand.u32 %v5199, 4294901760
        %5201 = vmatprep.subr.mxu0 %v5200
        %v5202 = vand.u32 %v4932, 4294901760
        %v5203 = vsub.f32 %v4932, %v5202
        %v5204 = vand.u32 %v5203, 4294901760
        %v5205 = vsub.f32 %v5203, %v5204
        %v5206 = vand.u32 %v5205, 4294901760
        %5207 = vmatpush1.msra.mxu0 %v5206
        %5208 = vmatprep.subr.mxu0 0.0
        %5209 = vmatpush1.msra.mxu0 0.0
        %5210 = vmatprep.subr.mxu0 0.0
        %5211 = vmatpush1.msra.mxu0 0.0
        %5212 = vmatprep.subr.mxu0 0.0
        %5213 = vmatpush1.msra.mxu0 0.0
        %5214 = vmatprep.subr.mxu0 0.0
        %5215 = vmatpush1.msra.mxu0 0.0
        %5216 = vmatprep.subr.mxu0 0.0
        %5217 = vmatpush1.msra.mxu0 0.0
        %5218 = vmatprep.subr.mxu0 0.0
        %5219 = vmatpush1.msra.mxu0 0.0
        %5220 = vmatprep.subr.mxu0 0.0
        %5221 = vmatpush1.msra.mxu0 0.0
        %5222 = vmatprep.subr.mxu0 0.0
        %5223 = vmatpush1.msra.mxu0 0.0
        %5224 = vmatprep.subr.mxu0 0.0
        %5225 = vmatpush1.msra.mxu0 0.0
        %5226 = vmatprep.subr.mxu0 0.0
        %5227 = vmatpush1.msra.mxu0 0.0
        %5228 = vmatprep.subr.mxu0 0.0
        %5229 = vmatpush1.msra.mxu0 0.0
        %5230 = vmatprep.subr.mxu0 0.0
        %5231 = vmatpush1.msra.mxu0 0.0
        %5232 = vmatprep.subr.mxu0 0.0
        %5233 = vmatpush1.msra.mxu0 0.0
        %5234 = vmatprep.subr.mxu0 0.0
        %5235 = vmatpush1.msra.mxu0 0.0
        %5236 = vmatprep.subr.mxu0 0.0
        %5237 = vmatpush1.msra.mxu0 0.0
        %5238 = vmatprep.subr.mxu0 0.0
        %5239 = vmatpush1.msra.mxu0 0.0
        %5240 = vmatprep.subr.mxu0 0.0
        %5241 = vmatpush1.msra.mxu0 0.0
        %5242 = vmatprep.subr.mxu0 0.0
        %5243 = vmatpush1.msra.mxu0 0.0
        %5244 = vmatprep.subr.mxu0 0.0
        %5245 = vmatpush1.msra.mxu0 0.0
        %5246 = vmatprep.subr.mxu0 0.0
        %5247 = vmatpush1.msra.mxu0 0.0
        %5248 = vmatprep.subr.mxu0 0.0
        %5249 = vmatpush1.msra.mxu0 0.0
        %5250 = vmatprep.subr.mxu0 0.0
        %5251 = vmatpush1.msra.mxu0 0.0
        %5252 = vmatprep.subr.mxu0 0.0
        %5253 = vmatpush1.msra.mxu0 0.0
        %5254 = vmatprep.subr.mxu0 0.0
        %5255 = vmatpush1.msra.mxu0 0.0
        %5256 = vmatprep.subr.mxu0 0.0
        %5257 = vmatpush1.msra.mxu0 0.0
        %5258 = vmatprep.subr.mxu0 0.0
        %5259 = vmatpush1.msra.mxu0 0.0
        %5260 = vmatprep.subr.mxu0 0.0
        %5261 = vmatpush1.msra.mxu0 0.0
        %5262 = vmatprep.subr.mxu0 0.0
        %5263 = vmatpush1.msra.mxu0 0.0
        %5264 = vmatprep.mubr.f32.mxu0 0.0
        %v5265 = vand.u32 %v4983, 4294901760
        %5266 = vmatmul.mubr.f32.gmra.mrb[0].mxu0 %v5265
        %v5267 = vpop.f32.mrb[0].mxu0
        %v5268 = vadd.f32 %v5079, %v5267
        %v5269 = vpop.f32.mrb[0].mxu0
        %v5270 = vadd.f32 %v5081, %v5269
        %5271 = vmatprep.mubr.f32.mxu0 0.0
        %v5272 = vand.u32 %v4985, 4294901760
        %5273 = vmatmul.mubr.f32.gmra.mrb[0].mxu0 %v5272
        %v5274 = vpop.f32.mrb[0].mxu0
        %v5275 = vadd.f32 %v5090, %v5274
        %v5276 = vpop.f32.mrb[0].mxu0
        %v5277 = vadd.f32 %v5092, %v5276
        %5278 = vmatprep.mubr.f32.mxu0 0.0
        %v5279 = vand.u32 %v4987, 4294901760
        %5280 = vmatmul.mubr.f32.gmra.mrb[0].mxu0 %v5279
        %v5281 = vpop.f32.mrb[0].mxu0
        %v5282 = vadd.f32 %v5101, %v5281
        %v5283 = vpop.f32.mrb[0].mxu0
        %v5284 = vadd.f32 %v5103, %v5283
        %5285 = vmatprep.mubr.f32.mxu0 0.0
        %v5286 = vand.u32 %v4989, 4294901760
        %5287 = vmatmul.mubr.f32.gmra.mrb[0].mxu0 %v5286
        %v5288 = vpop.f32.mrb[0].mxu0
        %v5289 = vadd.f32 %v5112, %v5288
        %v5290 = vpop.f32.mrb[0].mxu0
        %v5291 = vadd.f32 %v5114, %v5290
        %5292 = vmatprep.mubr.f32.mxu0 0.0
        %v5293 = vand.u32 %v4991, 4294901760
        %5294 = vmatmul.mubr.f32.gmra.mrb[0].mxu0 %v5293
        %v5295 = vpop.f32.mrb[0].mxu0
        %v5296 = vadd.f32 %v5123, %v5295
        %v5297 = vpop.f32.mrb[0].mxu0
        %v5298 = vadd.f32 %v5125, %v5297
        %5299 = vmatprep.mubr.f32.mxu0 0.0
        %v5300 = vand.u32 %v4993, 4294901760
        %5301 = vmatmul.mubr.f32.gmra.mrb[0].mxu0 %v5300
        %v5302 = vpop.f32.mrb[0].mxu0
        %v5303 = vadd.f32 %v5134, %v5302
        %v5304 = vpop.f32.mrb[0].mxu0
        %v5305 = vadd.f32 %v5136, %v5304
        %5306 = vmatprep.mubr.f32.mxu0 0.0
        %v5307 = vand.u32 %v4995, 4294901760
        %5308 = vmatmul.mubr.f32.gmra.mrb[0].mxu0 %v5307
        %v5309 = vpop.f32.mrb[0].mxu0
        %v5310 = vadd.f32 %v5145, %v5309
        %v5311 = vpop.f32.mrb[0].mxu0
        %v5312 = vadd.f32 %v5147, %v5311
        %5313 = vmatprep.mubr.f32.mxu0 0.0
        %v5314 = vand.u32 %v4997, 4294901760
        %5315 = vmatmul.mubr.f32.gmra.mrb[0].mxu0 %v5314
        %v5316 = vpop.f32.mrb[0].mxu0
        %v5317 = vadd.f32 %v5156, %v5316
        %v5318 = vpop.f32.mrb[0].mxu0
        %v5319 = vadd.f32 %v5158, %v5318
        %5320 = vdwg.mxu0
        %v5321 = vand.u32 %v4921, 4294901760
        %v5322 = vsub.f32 %v4921, %v5321
        %5323 = vmatprep.subr.mxu0 %v5322
        %v5324 = vand.u32 %v4920, 4294901760
        %v5325 = vsub.f32 %v4920, %v5324
        %5326 = vmatpush1.msra.mxu0 %v5325
        %v5327 = vand.u32 %v4925, 4294901760
        %v5328 = vsub.f32 %v4925, %v5327
        %5329 = vmatprep.subr.mxu0 %v5328
        %v5330 = vand.u32 %v4924, 4294901760
        %v5331 = vsub.f32 %v4924, %v5330
        %5332 = vmatpush1.msra.mxu0 %v5331
        %v5333 = vand.u32 %v4929, 4294901760
        %v5334 = vsub.f32 %v4929, %v5333
        %5335 = vmatprep.subr.mxu0 %v5334
        %v5336 = vand.u32 %v4928, 4294901760
        %v5337 = vsub.f32 %v4928, %v5336
        %5338 = vmatpush1.msra.mxu0 %v5337
        %v5339 = vand.u32 %v4933, 4294901760
        %v5340 = vsub.f32 %v4933, %v5339
        %5341 = vmatprep.subr.mxu0 %v5340
        %v5342 = vand.u32 %v4932, 4294901760
        %v5343 = vsub.f32 %v4932, %v5342
        %5344 = vmatpush1.msra.mxu0 %v5343
        %5345 = vmatprep.subr.mxu0 0.0
        %5346 = vmatpush1.msra.mxu0 0.0
        %5347 = vmatprep.subr.mxu0 0.0
        %5348 = vmatpush1.msra.mxu0 0.0
        %5349 = vmatprep.subr.mxu0 0.0
        %5350 = vmatpush1.msra.mxu0 0.0
        %5351 = vmatprep.subr.mxu0 0.0
        %5352 = vmatpush1.msra.mxu0 0.0
        %5353 = vmatprep.subr.mxu0 0.0
        %5354 = vmatpush1.msra.mxu0 0.0
        %5355 = vmatprep.subr.mxu0 0.0
        %5356 = vmatpush1.msra.mxu0 0.0
        %5357 = vmatprep.subr.mxu0 0.0
        %5358 = vmatpush1.msra.mxu0 0.0
        %5359 = vmatprep.subr.mxu0 0.0
        %5360 = vmatpush1.msra.mxu0 0.0
        %5361 = vmatprep.subr.mxu0 0.0
        %5362 = vmatpush1.msra.mxu0 0.0
        %5363 = vmatprep.subr.mxu0 0.0
        %5364 = vmatpush1.msra.mxu0 0.0
        %5365 = vmatprep.subr.mxu0 0.0
        %5366 = vmatpush1.msra.mxu0 0.0
        %5367 = vmatprep.subr.mxu0 0.0
        %5368 = vmatpush1.msra.mxu0 0.0
        %5369 = vmatprep.subr.mxu0 0.0
        %5370 = vmatpush1.msra.mxu0 0.0
        %5371 = vmatprep.subr.mxu0 0.0
        %5372 = vmatpush1.msra.mxu0 0.0
        %5373 = vmatprep.subr.mxu0 0.0
        %5374 = vmatpush1.msra.mxu0 0.0
        %5375 = vmatprep.subr.mxu0 0.0
        %5376 = vmatpush1.msra.mxu0 0.0
        %5377 = vmatprep.subr.mxu0 0.0
        %5378 = vmatpush1.msra.mxu0 0.0
        %5379 = vmatprep.subr.mxu0 0.0
        %5380 = vmatpush1.msra.mxu0 0.0
        %5381 = vmatprep.subr.mxu0 0.0
        %5382 = vmatpush1.msra.mxu0 0.0
        %5383 = vmatprep.subr.mxu0 0.0
        %5384 = vmatpush1.msra.mxu0 0.0
        %5385 = vmatprep.subr.mxu0 0.0
        %5386 = vmatpush1.msra.mxu0 0.0
        %5387 = vmatprep.subr.mxu0 0.0
        %5388 = vmatpush1.msra.mxu0 0.0
        %5389 = vmatprep.subr.mxu0 0.0
        %5390 = vmatpush1.msra.mxu0 0.0
        %5391 = vmatprep.subr.mxu0 0.0
        %5392 = vmatpush1.msra.mxu0 0.0
        %5393 = vmatprep.subr.mxu0 0.0
        %5394 = vmatpush1.msra.mxu0 0.0
        %5395 = vmatprep.subr.mxu0 0.0
        %5396 = vmatpush1.msra.mxu0 0.0
        %5397 = vmatprep.subr.mxu0 0.0
        %5398 = vmatpush1.msra.mxu0 0.0
        %5399 = vmatprep.subr.mxu0 0.0
        %5400 = vmatpush1.msra.mxu0 0.0
        %5401 = vmatprep.mubr.f32.mxu0 0.0
        %v5402 = vand.u32 %v4983, 4294901760
        %v5403 = vsub.f32 %v4983, %v5402
        %5404 = vmatmul.mubr.f32.gmra.mrb[0].mxu0 %v5403
        %v5405 = vpop.f32.mrb[0].mxu0
        %v5406 = vadd.f32 %v5268, %v5405
        %v5407 = vpop.f32.mrb[0].mxu0
        %v5408 = vadd.f32 %v5270, %v5407
        %5409 = vmatprep.mubr.f32.mxu0 0.0
        %v5410 = vand.u32 %v4985, 4294901760
        %v5411 = vsub.f32 %v4985, %v5410
        %5412 = vmatmul.mubr.f32.gmra.mrb[0].mxu0 %v5411
        %v5413 = vpop.f32.mrb[0].mxu0
        %v5414 = vadd.f32 %v5275, %v5413
        %v5415 = vpop.f32.mrb[0].mxu0
        %v5416 = vadd.f32 %v5277, %v5415
        %5417 = vmatprep.mubr.f32.mxu0 0.0
        %v5418 = vand.u32 %v4987, 4294901760
        %v5419 = vsub.f32 %v4987, %v5418
        %5420 = vmatmul.mubr.f32.gmra.mrb[0].mxu0 %v5419
        %v5421 = vpop.f32.mrb[0].mxu0
        %v5422 = vadd.f32 %v5282, %v5421
        %v5423 = vpop.f32.mrb[0].mxu0
        %v5424 = vadd.f32 %v5284, %v5423
        %5425 = vmatprep.mubr.f32.mxu0 0.0
        %v5426 = vand.u32 %v4989, 4294901760
        %v5427 = vsub.f32 %v4989, %v5426
        %5428 = vmatmul.mubr.f32.gmra.mrb[0].mxu0 %v5427
        %v5429 = vpop.f32.mrb[0].mxu0
        %v5430 = vadd.f32 %v5289, %v5429
        %v5431 = vpop.f32.mrb[0].mxu0
        %v5432 = vadd.f32 %v5291, %v5431
        %5433 = vmatprep.mubr.f32.mxu0 0.0
        %v5434 = vand.u32 %v4991, 4294901760
        %v5435 = vsub.f32 %v4991, %v5434
        %5436 = vmatmul.mubr.f32.gmra.mrb[0].mxu0 %v5435
        %v5437 = vpop.f32.mrb[0].mxu0
        %v5438 = vadd.f32 %v5296, %v5437
        %v5439 = vpop.f32.mrb[0].mxu0
        %v5440 = vadd.f32 %v5298, %v5439
        %5441 = vmatprep.mubr.f32.mxu0 0.0
        %v5442 = vand.u32 %v4993, 4294901760
        %v5443 = vsub.f32 %v4993, %v5442
        %5444 = vmatmul.mubr.f32.gmra.mrb[0].mxu0 %v5443
        %v5445 = vpop.f32.mrb[0].mxu0
        %v5446 = vadd.f32 %v5303, %v5445
        %v5447 = vpop.f32.mrb[0].mxu0
        %v5448 = vadd.f32 %v5305, %v5447
        %5449 = vmatprep.mubr.f32.mxu0 0.0
        %v5450 = vand.u32 %v4995, 4294901760
        %v5451 = vsub.f32 %v4995, %v5450
        %5452 = vmatmul.mubr.f32.gmra.mrb[0].mxu0 %v5451
        %v5453 = vpop.f32.mrb[0].mxu0
        %v5454 = vadd.f32 %v5310, %v5453
        %v5455 = vpop.f32.mrb[0].mxu0
        %v5456 = vadd.f32 %v5312, %v5455
        %5457 = vmatprep.mubr.f32.mxu0 0.0
        %v5458 = vand.u32 %v4997, 4294901760
        %v5459 = vsub.f32 %v4997, %v5458
        %5460 = vmatmul.mubr.f32.gmra.mrb[0].mxu0 %v5459
        %v5461 = vpop.f32.mrb[0].mxu0
        %v5462 = vadd.f32 %v5317, %v5461
        %v5463 = vpop.f32.mrb[0].mxu0
        %v5464 = vadd.f32 %v5319, %v5463
        %5465 = vdwg.mxu0
        %v5466 = vand.u32 %v4921, 4294901760
        %5467 = vmatprep.subr.mxu0 %v5466
        %v5468 = vand.u32 %v4920, 4294901760
        %5469 = vmatpush1.msra.mxu0 %v5468
        %v5470 = vand.u32 %v4925, 4294901760
        %5471 = vmatprep.subr.mxu0 %v5470
        %v5472 = vand.u32 %v4924, 4294901760
        %5473 = vmatpush1.msra.mxu0 %v5472
        %v5474 = vand.u32 %v4929, 4294901760
        %5475 = vmatprep.subr.mxu0 %v5474
        %v5476 = vand.u32 %v4928, 4294901760
        %5477 = vmatpush1.msra.mxu0 %v5476
        %v5478 = vand.u32 %v4933, 4294901760
        %5479 = vmatprep.subr.mxu0 %v5478
        %v5480 = vand.u32 %v4932, 4294901760
        %5481 = vmatpush1.msra.mxu0 %v5480
        %5482 = vmatprep.subr.mxu0 0.0
        %5483 = vmatpush1.msra.mxu0 0.0
        %5484 = vmatprep.subr.mxu0 0.0
        %5485 = vmatpush1.msra.mxu0 0.0
        %5486 = vmatprep.subr.mxu0 0.0
        %5487 = vmatpush1.msra.mxu0 0.0
        %5488 = vmatprep.subr.mxu0 0.0
        %5489 = vmatpush1.msra.mxu0 0.0
        %5490 = vmatprep.subr.mxu0 0.0
        %5491 = vmatpush1.msra.mxu0 0.0
        %5492 = vmatprep.subr.mxu0 0.0
        %5493 = vmatpush1.msra.mxu0 0.0
        %5494 = vmatprep.subr.mxu0 0.0
        %5495 = vmatpush1.msra.mxu0 0.0
        %5496 = vmatprep.subr.mxu0 0.0
        %5497 = vmatpush1.msra.mxu0 0.0
        %5498 = vmatprep.subr.mxu0 0.0
        %5499 = vmatpush1.msra.mxu0 0.0
        %5500 = vmatprep.subr.mxu0 0.0
        %5501 = vmatpush1.msra.mxu0 0.0
        %5502 = vmatprep.subr.mxu0 0.0
        %5503 = vmatpush1.msra.mxu0 0.0
        %5504 = vmatprep.subr.mxu0 0.0
        %5505 = vmatpush1.msra.mxu0 0.0
        %5506 = vmatprep.subr.mxu0 0.0
        %5507 = vmatpush1.msra.mxu0 0.0
        %5508 = vmatprep.subr.mxu0 0.0
        %5509 = vmatpush1.msra.mxu0 0.0
        %5510 = vmatprep.subr.mxu0 0.0
        %5511 = vmatpush1.msra.mxu0 0.0
        %5512 = vmatprep.subr.mxu0 0.0
        %5513 = vmatpush1.msra.mxu0 0.0
        %5514 = vmatprep.subr.mxu0 0.0
        %5515 = vmatpush1.msra.mxu0 0.0
        %5516 = vmatprep.subr.mxu0 0.0
        %5517 = vmatpush1.msra.mxu0 0.0
        %5518 = vmatprep.subr.mxu0 0.0
        %5519 = vmatpush1.msra.mxu0 0.0
        %5520 = vmatprep.subr.mxu0 0.0
        %5521 = vmatpush1.msra.mxu0 0.0
        %5522 = vmatprep.subr.mxu0 0.0
        %5523 = vmatpush1.msra.mxu0 0.0
        %5524 = vmatprep.subr.mxu0 0.0
        %5525 = vmatpush1.msra.mxu0 0.0
        %5526 = vmatprep.subr.mxu0 0.0
        %5527 = vmatpush1.msra.mxu0 0.0
        %5528 = vmatprep.subr.mxu0 0.0
        %5529 = vmatpush1.msra.mxu0 0.0
        %5530 = vmatprep.subr.mxu0 0.0
        %5531 = vmatpush1.msra.mxu0 0.0
        %5532 = vmatprep.subr.mxu0 0.0
        %5533 = vmatpush1.msra.mxu0 0.0
        %5534 = vmatprep.subr.mxu0 0.0
        %5535 = vmatpush1.msra.mxu0 0.0
        %5536 = vmatprep.subr.mxu0 0.0
        %5537 = vmatpush1.msra.mxu0 0.0
        %5538 = vmatprep.mubr.f32.mxu0 0.0
        %v5539 = vand.u32 %v4983, 4294901760
        %v5540 = vsub.f32 %v4983, %v5539
        %v5541 = vand.u32 %v5540, 4294901760
        %5542 = vmatmul.mubr.f32.gmra.mrb[0].mxu0 %v5541
        %v5543 = vpop.f32.mrb[0].mxu0
        %v5544 = vadd.f32 %v5406, %v5543
        %v5545 = vpop.f32.mrb[0].mxu0
        %v5546 = vadd.f32 %v5408, %v5545
        %5547 = vmatprep.mubr.f32.mxu0 0.0
        %v5548 = vand.u32 %v4985, 4294901760
        %v5549 = vsub.f32 %v4985, %v5548
        %v5550 = vand.u32 %v5549, 4294901760
        %5551 = vmatmul.mubr.f32.gmra.mrb[0].mxu0 %v5550
        %v5552 = vpop.f32.mrb[0].mxu0
        %v5553 = vadd.f32 %v5414, %v5552
        %v5554 = vpop.f32.mrb[0].mxu0
        %v5555 = vadd.f32 %v5416, %v5554
        %5556 = vmatprep.mubr.f32.mxu0 0.0
        %v5557 = vand.u32 %v4987, 4294901760
        %v5558 = vsub.f32 %v4987, %v5557
        %v5559 = vand.u32 %v5558, 4294901760
        %5560 = vmatmul.mubr.f32.gmra.mrb[0].mxu0 %v5559
        %v5561 = vpop.f32.mrb[0].mxu0
        %v5562 = vadd.f32 %v5422, %v5561
        %v5563 = vpop.f32.mrb[0].mxu0
        %v5564 = vadd.f32 %v5424, %v5563
        %5565 = vmatprep.mubr.f32.mxu0 0.0
        %v5566 = vand.u32 %v4989, 4294901760
        %v5567 = vsub.f32 %v4989, %v5566
        %v5568 = vand.u32 %v5567, 4294901760
        %5569 = vmatmul.mubr.f32.gmra.mrb[0].mxu0 %v5568
        %v5570 = vpop.f32.mrb[0].mxu0
        %v5571 = vadd.f32 %v5430, %v5570
        %v5572 = vpop.f32.mrb[0].mxu0
        %v5573 = vadd.f32 %v5432, %v5572
        %5574 = vmatprep.mubr.f32.mxu0 0.0
        %v5575 = vand.u32 %v4991, 4294901760
        %v5576 = vsub.f32 %v4991, %v5575
        %v5577 = vand.u32 %v5576, 4294901760
        %5578 = vmatmul.mubr.f32.gmra.mrb[0].mxu0 %v5577
        %v5579 = vpop.f32.mrb[0].mxu0
        %v5580 = vadd.f32 %v5438, %v5579
        %v5581 = vpop.f32.mrb[0].mxu0
        %v5582 = vadd.f32 %v5440, %v5581
        %5583 = vmatprep.mubr.f32.mxu0 0.0
        %v5584 = vand.u32 %v4993, 4294901760
        %v5585 = vsub.f32 %v4993, %v5584
        %v5586 = vand.u32 %v5585, 4294901760
        %5587 = vmatmul.mubr.f32.gmra.mrb[0].mxu0 %v5586
        %v5588 = vpop.f32.mrb[0].mxu0
        %v5589 = vadd.f32 %v5446, %v5588
        %v5590 = vpop.f32.mrb[0].mxu0
        %v5591 = vadd.f32 %v5448, %v5590
        %5592 = vmatprep.mubr.f32.mxu0 0.0
        %v5593 = vand.u32 %v4995, 4294901760
        %v5594 = vsub.f32 %v4995, %v5593
        %v5595 = vand.u32 %v5594, 4294901760
        %5596 = vmatmul.mubr.f32.gmra.mrb[0].mxu0 %v5595
        %v5597 = vpop.f32.mrb[0].mxu0
        %v5598 = vadd.f32 %v5454, %v5597
        %v5599 = vpop.f32.mrb[0].mxu0
        %v5600 = vadd.f32 %v5456, %v5599
        %5601 = vmatprep.mubr.f32.mxu0 0.0
        %v5602 = vand.u32 %v4997, 4294901760
        %v5603 = vsub.f32 %v4997, %v5602
        %v5604 = vand.u32 %v5603, 4294901760
        %5605 = vmatmul.mubr.f32.gmra.mrb[0].mxu0 %v5604
        %v5606 = vpop.f32.mrb[0].mxu0
        %v5607 = vadd.f32 %v5462, %v5606
        %v5608 = vpop.f32.mrb[0].mxu0
        %v5609 = vadd.f32 %v5464, %v5608
        %5610 = vdwg.mxu0
        %v5611 = vand.u32 %v4921, 4294901760
        %v5612 = vsub.f32 %v4921, %v5611
        %v5613 = vand.u32 %v5612, 4294901760
        %5614 = vmatprep.subr.mxu0 %v5613
        %v5615 = vand.u32 %v4920, 4294901760
        %v5616 = vsub.f32 %v4920, %v5615
        %v5617 = vand.u32 %v5616, 4294901760
        %5618 = vmatpush1.msra.mxu0 %v5617
        %v5619 = vand.u32 %v4925, 4294901760
        %v5620 = vsub.f32 %v4925, %v5619
        %v5621 = vand.u32 %v5620, 4294901760
        %5622 = vmatprep.subr.mxu0 %v5621
        %v5623 = vand.u32 %v4924, 4294901760
        %v5624 = vsub.f32 %v4924, %v5623
        %v5625 = vand.u32 %v5624, 4294901760
        %5626 = vmatpush1.msra.mxu0 %v5625
        %v5627 = vand.u32 %v4929, 4294901760
        %v5628 = vsub.f32 %v4929, %v5627
        %v5629 = vand.u32 %v5628, 4294901760
        %5630 = vmatprep.subr.mxu0 %v5629
        %v5631 = vand.u32 %v4928, 4294901760
        %v5632 = vsub.f32 %v4928, %v5631
        %v5633 = vand.u32 %v5632, 4294901760
        %5634 = vmatpush1.msra.mxu0 %v5633
        %v5635 = vand.u32 %v4933, 4294901760
        %v5636 = vsub.f32 %v4933, %v5635
        %v5637 = vand.u32 %v5636, 4294901760
        %5638 = vmatprep.subr.mxu0 %v5637
        %v5639 = vand.u32 %v4932, 4294901760
        %v5640 = vsub.f32 %v4932, %v5639
        %v5641 = vand.u32 %v5640, 4294901760
        %5642 = vmatpush1.msra.mxu0 %v5641
        %5643 = vmatprep.subr.mxu0 0.0
        %5644 = vmatpush1.msra.mxu0 0.0
        %5645 = vmatprep.subr.mxu0 0.0
        %5646 = vmatpush1.msra.mxu0 0.0
        %5647 = vmatprep.subr.mxu0 0.0
        %5648 = vmatpush1.msra.mxu0 0.0
        %5649 = vmatprep.subr.mxu0 0.0
        %5650 = vmatpush1.msra.mxu0 0.0
        %5651 = vmatprep.subr.mxu0 0.0
        %5652 = vmatpush1.msra.mxu0 0.0
        %5653 = vmatprep.subr.mxu0 0.0
        %5654 = vmatpush1.msra.mxu0 0.0
        %5655 = vmatprep.subr.mxu0 0.0
        %5656 = vmatpush1.msra.mxu0 0.0
        %5657 = vmatprep.subr.mxu0 0.0
        %5658 = vmatpush1.msra.mxu0 0.0
        %5659 = vmatprep.subr.mxu0 0.0
        %5660 = vmatpush1.msra.mxu0 0.0
        %5661 = vmatprep.subr.mxu0 0.0
        %5662 = vmatpush1.msra.mxu0 0.0
        %5663 = vmatprep.subr.mxu0 0.0
        %5664 = vmatpush1.msra.mxu0 0.0
        %5665 = vmatprep.subr.mxu0 0.0
        %5666 = vmatpush1.msra.mxu0 0.0
        %5667 = vmatprep.subr.mxu0 0.0
        %5668 = vmatpush1.msra.mxu0 0.0
        %5669 = vmatprep.subr.mxu0 0.0
        %5670 = vmatpush1.msra.mxu0 0.0
        %5671 = vmatprep.subr.mxu0 0.0
        %5672 = vmatpush1.msra.mxu0 0.0
        %5673 = vmatprep.subr.mxu0 0.0
        %5674 = vmatpush1.msra.mxu0 0.0
        %5675 = vmatprep.subr.mxu0 0.0
        %5676 = vmatpush1.msra.mxu0 0.0
        %5677 = vmatprep.subr.mxu0 0.0
        %5678 = vmatpush1.msra.mxu0 0.0
        %5679 = vmatprep.subr.mxu0 0.0
        %5680 = vmatpush1.msra.mxu0 0.0
        %5681 = vmatprep.subr.mxu0 0.0
        %5682 = vmatpush1.msra.mxu0 0.0
        %5683 = vmatprep.subr.mxu0 0.0
        %5684 = vmatpush1.msra.mxu0 0.0
        %5685 = vmatprep.subr.mxu0 0.0
        %5686 = vmatpush1.msra.mxu0 0.0
        %5687 = vmatprep.subr.mxu0 0.0
        %5688 = vmatpush1.msra.mxu0 0.0
        %5689 = vmatprep.subr.mxu0 0.0
        %5690 = vmatpush1.msra.mxu0 0.0
        %5691 = vmatprep.subr.mxu0 0.0
        %5692 = vmatpush1.msra.mxu0 0.0
        %5693 = vmatprep.subr.mxu0 0.0
        %5694 = vmatpush1.msra.mxu0 0.0
        %5695 = vmatprep.subr.mxu0 0.0
        %5696 = vmatpush1.msra.mxu0 0.0
        %5697 = vmatprep.subr.mxu0 0.0
        %5698 = vmatpush1.msra.mxu0 0.0
        %5699 = vmatprep.mubr.f32.mxu0 0.0
        %v5700 = vand.u32 %v4983, 4294901760
        %5701 = vmatmul.mubr.f32.gmra.mrb[0].mxu0 %v5700
        %v5702 = vpop.f32.mrb[0].mxu0
        %v5703 = vadd.f32 %v5544, %v5702
        %v5704 = vpop.f32.mrb[0].mxu0
        %v5705 = vadd.f32 %v5546, %v5704
        %5706 = vmatprep.mubr.f32.mxu0 0.0
        %v5707 = vand.u32 %v4985, 4294901760
        %5708 = vmatmul.mubr.f32.gmra.mrb[0].mxu0 %v5707
        %v5709 = vpop.f32.mrb[0].mxu0
        %v5710 = vadd.f32 %v5553, %v5709
        %v5711 = vpop.f32.mrb[0].mxu0
        %v5712 = vadd.f32 %v5555, %v5711
        %5713 = vmatprep.mubr.f32.mxu0 0.0
        %v5714 = vand.u32 %v4987, 4294901760
        %5715 = vmatmul.mubr.f32.gmra.mrb[0].mxu0 %v5714
        %v5716 = vpop.f32.mrb[0].mxu0
        %v5717 = vadd.f32 %v5562, %v5716
        %v5718 = vpop.f32.mrb[0].mxu0
        %v5719 = vadd.f32 %v5564, %v5718
        %5720 = vmatprep.mubr.f32.mxu0 0.0
        %v5721 = vand.u32 %v4989, 4294901760
        %5722 = vmatmul.mubr.f32.gmra.mrb[0].mxu0 %v5721
        %v5723 = vpop.f32.mrb[0].mxu0
        %v5724 = vadd.f32 %v5571, %v5723
        %v5725 = vpop.f32.mrb[0].mxu0
        %v5726 = vadd.f32 %v5573, %v5725
        %5727 = vmatprep.mubr.f32.mxu0 0.0
        %v5728 = vand.u32 %v4991, 4294901760
        %5729 = vmatmul.mubr.f32.gmra.mrb[0].mxu0 %v5728
        %v5730 = vpop.f32.mrb[0].mxu0
        %v5731 = vadd.f32 %v5580, %v5730
        %v5732 = vpop.f32.mrb[0].mxu0
        %v5733 = vadd.f32 %v5582, %v5732
        %5734 = vmatprep.mubr.f32.mxu0 0.0
        %v5735 = vand.u32 %v4993, 4294901760
        %5736 = vmatmul.mubr.f32.gmra.mrb[0].mxu0 %v5735
        %v5737 = vpop.f32.mrb[0].mxu0
        %v5738 = vadd.f32 %v5589, %v5737
        %v5739 = vpop.f32.mrb[0].mxu0
        %v5740 = vadd.f32 %v5591, %v5739
        %5741 = vmatprep.mubr.f32.mxu0 0.0
        %v5742 = vand.u32 %v4995, 4294901760
        %5743 = vmatmul.mubr.f32.gmra.mrb[0].mxu0 %v5742
        %v5744 = vpop.f32.mrb[0].mxu0
        %v5745 = vadd.f32 %v5598, %v5744
        %v5746 = vpop.f32.mrb[0].mxu0
        %v5747 = vadd.f32 %v5600, %v5746
        %5748 = vmatprep.mubr.f32.mxu0 0.0
        %v5749 = vand.u32 %v4997, 4294901760
        %5750 = vmatmul.mubr.f32.gmra.mrb[0].mxu0 %v5749
        %v5751 = vpop.f32.mrb[0].mxu0
        %v5752 = vadd.f32 %v5607, %v5751
        %v5753 = vpop.f32.mrb[0].mxu0
        %v5754 = vadd.f32 %v5609, %v5753
        %5755 = vdwg.mxu0
        %v5756 = vand.u32 %v4921, 4294901760
        %5757 = vmatprep.subr.mxu0 %v5756
        %v5758 = vand.u32 %v4920, 4294901760
        %5759 = vmatpush1.msra.mxu0 %v5758
        %v5760 = vand.u32 %v4925, 4294901760
        %5761 = vmatprep.subr.mxu0 %v5760
        %v5762 = vand.u32 %v4924, 4294901760
        %5763 = vmatpush1.msra.mxu0 %v5762
        %v5764 = vand.u32 %v4929, 4294901760
        %5765 = vmatprep.subr.mxu0 %v5764
        %v5766 = vand.u32 %v4928, 4294901760
        %5767 = vmatpush1.msra.mxu0 %v5766
        %v5768 = vand.u32 %v4933, 4294901760
        %5769 = vmatprep.subr.mxu0 %v5768
        %v5770 = vand.u32 %v4932, 4294901760
        %5771 = vmatpush1.msra.mxu0 %v5770
        %5772 = vmatprep.subr.mxu0 0.0
        %5773 = vmatpush1.msra.mxu0 0.0
        %5774 = vmatprep.subr.mxu0 0.0
        %5775 = vmatpush1.msra.mxu0 0.0
        %5776 = vmatprep.subr.mxu0 0.0
        %5777 = vmatpush1.msra.mxu0 0.0
        %5778 = vmatprep.subr.mxu0 0.0
        %5779 = vmatpush1.msra.mxu0 0.0
        %5780 = vmatprep.subr.mxu0 0.0
        %5781 = vmatpush1.msra.mxu0 0.0
        %5782 = vmatprep.subr.mxu0 0.0
        %5783 = vmatpush1.msra.mxu0 0.0
        %5784 = vmatprep.subr.mxu0 0.0
        %5785 = vmatpush1.msra.mxu0 0.0
        %5786 = vmatprep.subr.mxu0 0.0
        %5787 = vmatpush1.msra.mxu0 0.0
        %5788 = vmatprep.subr.mxu0 0.0
        %5789 = vmatpush1.msra.mxu0 0.0
        %5790 = vmatprep.subr.mxu0 0.0
        %5791 = vmatpush1.msra.mxu0 0.0
        %5792 = vmatprep.subr.mxu0 0.0
        %5793 = vmatpush1.msra.mxu0 0.0
        %5794 = vmatprep.subr.mxu0 0.0
        %5795 = vmatpush1.msra.mxu0 0.0
        %5796 = vmatprep.subr.mxu0 0.0
        %5797 = vmatpush1.msra.mxu0 0.0
        %5798 = vmatprep.subr.mxu0 0.0
        %5799 = vmatpush1.msra.mxu0 0.0
        %5800 = vmatprep.subr.mxu0 0.0
        %5801 = vmatpush1.msra.mxu0 0.0
        %5802 = vmatprep.subr.mxu0 0.0
        %5803 = vmatpush1.msra.mxu0 0.0
        %5804 = vmatprep.subr.mxu0 0.0
        %5805 = vmatpush1.msra.mxu0 0.0
        %5806 = vmatprep.subr.mxu0 0.0
        %5807 = vmatpush1.msra.mxu0 0.0
        %5808 = vmatprep.subr.mxu0 0.0
        %5809 = vmatpush1.msra.mxu0 0.0
        %5810 = vmatprep.subr.mxu0 0.0
        %5811 = vmatpush1.msra.mxu0 0.0
        %5812 = vmatprep.subr.mxu0 0.0
        %5813 = vmatpush1.msra.mxu0 0.0
        %5814 = vmatprep.subr.mxu0 0.0
        %5815 = vmatpush1.msra.mxu0 0.0
        %5816 = vmatprep.subr.mxu0 0.0
        %5817 = vmatpush1.msra.mxu0 0.0
        %5818 = vmatprep.subr.mxu0 0.0
        %5819 = vmatpush1.msra.mxu0 0.0
        %5820 = vmatprep.subr.mxu0 0.0
        %5821 = vmatpush1.msra.mxu0 0.0
        %5822 = vmatprep.subr.mxu0 0.0
        %5823 = vmatpush1.msra.mxu0 0.0
        %5824 = vmatprep.subr.mxu0 0.0
        %5825 = vmatpush1.msra.mxu0 0.0
        %5826 = vmatprep.subr.mxu0 0.0
        %5827 = vmatpush1.msra.mxu0 0.0
        %5828 = vmatprep.mubr.f32.mxu0 0.0
        %v5829 = vand.u32 %v4983, 4294901760
        %5830 = vmatmul.mubr.f32.gmra.mrb[0].mxu0 %v5829
        %v5831 = vpop.f32.mrb[0].mxu0
        %v5832 = vadd.f32 %v5703, %v5831
        %v5833 = vpop.f32.mrb[0].mxu0
        %v5834 = vadd.f32 %v5705, %v5833
        %5835 = vmatprep.mubr.f32.mxu0 0.0
        %v5836 = vand.u32 %v4985, 4294901760
        %5837 = vmatmul.mubr.f32.gmra.mrb[0].mxu0 %v5836
        %v5838 = vpop.f32.mrb[0].mxu0
        %v5839 = vadd.f32 %v5710, %v5838
        %v5840 = vpop.f32.mrb[0].mxu0
        %v5841 = vadd.f32 %v5712, %v5840
        %5842 = vmatprep.mubr.f32.mxu0 0.0
        %v5843 = vand.u32 %v4987, 4294901760
        %5844 = vmatmul.mubr.f32.gmra.mrb[0].mxu0 %v5843
        %v5845 = vpop.f32.mrb[0].mxu0
        %v5846 = vadd.f32 %v5717, %v5845
        %v5847 = vpop.f32.mrb[0].mxu0
        %v5848 = vadd.f32 %v5719, %v5847
        %5849 = vmatprep.mubr.f32.mxu0 0.0
        %v5850 = vand.u32 %v4989, 4294901760
        %5851 = vmatmul.mubr.f32.gmra.mrb[0].mxu0 %v5850
        %v5852 = vpop.f32.mrb[0].mxu0
        %v5853 = vadd.f32 %v5724, %v5852
        %v5854 = vpop.f32.mrb[0].mxu0
        %v5855 = vadd.f32 %v5726, %v5854
        %5856 = vmatprep.mubr.f32.mxu0 0.0
        %v5857 = vand.u32 %v4991, 4294901760
        %5858 = vmatmul.mubr.f32.gmra.mrb[0].mxu0 %v5857
        %v5859 = vpop.f32.mrb[0].mxu0
        %v5860 = vadd.f32 %v5731, %v5859
        %v5861 = vpop.f32.mrb[0].mxu0
        %v5862 = vadd.f32 %v5733, %v5861
        %5863 = vmatprep.mubr.f32.mxu0 0.0
        %v5864 = vand.u32 %v4993, 4294901760
        %5865 = vmatmul.mubr.f32.gmra.mrb[0].mxu0 %v5864
        %v5866 = vpop.f32.mrb[0].mxu0
        %v5867 = vadd.f32 %v5738, %v5866
        %v5868 = vpop.f32.mrb[0].mxu0
        %v5869 = vadd.f32 %v5740, %v5868
        %5870 = vmatprep.mubr.f32.mxu0 0.0
        %v5871 = vand.u32 %v4995, 4294901760
        %5872 = vmatmul.mubr.f32.gmra.mrb[0].mxu0 %v5871
        %v5873 = vpop.f32.mrb[0].mxu0
        %v5874 = vadd.f32 %v5745, %v5873
        %v5875 = vpop.f32.mrb[0].mxu0
        %v5876 = vadd.f32 %v5747, %v5875
        %5877 = vmatprep.mubr.f32.mxu0 0.0
        %v5878 = vand.u32 %v4997, 4294901760
        %5879 = vmatmul.mubr.f32.gmra.mrb[0].mxu0 %v5878
        %v5880 = vpop.f32.mrb[0].mxu0
        %v5881 = vadd.f32 %v5752, %v5880
        %v5882 = vpop.f32.mrb[0].mxu0
        %v5883 = vadd.f32 %v5754, %v5882
        %5884 = vdwg.mxu0
        %v5885 = vand.u32 %v4923, 4294901760
        %5886 = vmatprep.subr.mxu0 %v5885
        %v5887 = vand.u32 %v4922, 4294901760
        %5888 = vmatpush1.msra.mxu0 %v5887
        %v5889 = vand.u32 %v4927, 4294901760
        %5890 = vmatprep.subr.mxu0 %v5889
        %v5891 = vand.u32 %v4926, 4294901760
        %5892 = vmatpush1.msra.mxu0 %v5891
        %v5893 = vand.u32 %v4931, 4294901760
        %5894 = vmatprep.subr.mxu0 %v5893
        %v5895 = vand.u32 %v4930, 4294901760
        %5896 = vmatpush1.msra.mxu0 %v5895
        %v5897 = vand.u32 %v4935, 4294901760
        %5898 = vmatprep.subr.mxu0 %v5897
        %v5899 = vand.u32 %v4934, 4294901760
        %5900 = vmatpush1.msra.mxu0 %v5899
        %5901 = vmatprep.subr.mxu0 0.0
        %5902 = vmatpush1.msra.mxu0 0.0
        %5903 = vmatprep.subr.mxu0 0.0
        %5904 = vmatpush1.msra.mxu0 0.0
        %5905 = vmatprep.subr.mxu0 0.0
        %5906 = vmatpush1.msra.mxu0 0.0
        %5907 = vmatprep.subr.mxu0 0.0
        %5908 = vmatpush1.msra.mxu0 0.0
        %5909 = vmatprep.subr.mxu0 0.0
        %5910 = vmatpush1.msra.mxu0 0.0
        %5911 = vmatprep.subr.mxu0 0.0
        %5912 = vmatpush1.msra.mxu0 0.0
        %5913 = vmatprep.subr.mxu0 0.0
        %5914 = vmatpush1.msra.mxu0 0.0
        %5915 = vmatprep.subr.mxu0 0.0
        %5916 = vmatpush1.msra.mxu0 0.0
        %5917 = vmatprep.subr.mxu0 0.0
        %5918 = vmatpush1.msra.mxu0 0.0
        %5919 = vmatprep.subr.mxu0 0.0
        %5920 = vmatpush1.msra.mxu0 0.0
        %5921 = vmatprep.subr.mxu0 0.0
        %5922 = vmatpush1.msra.mxu0 0.0
        %5923 = vmatprep.subr.mxu0 0.0
        %5924 = vmatpush1.msra.mxu0 0.0
        %5925 = vmatprep.subr.mxu0 0.0
        %5926 = vmatpush1.msra.mxu0 0.0
        %5927 = vmatprep.subr.mxu0 0.0
        %5928 = vmatpush1.msra.mxu0 0.0
        %5929 = vmatprep.subr.mxu0 0.0
        %5930 = vmatpush1.msra.mxu0 0.0
        %5931 = vmatprep.subr.mxu0 0.0
        %5932 = vmatpush1.msra.mxu0 0.0
        %5933 = vmatprep.subr.mxu0 0.0
        %5934 = vmatpush1.msra.mxu0 0.0
        %5935 = vmatprep.subr.mxu0 0.0
        %5936 = vmatpush1.msra.mxu0 0.0
        %5937 = vmatprep.subr.mxu0 0.0
        %5938 = vmatpush1.msra.mxu0 0.0
        %5939 = vmatprep.subr.mxu0 0.0
        %5940 = vmatpush1.msra.mxu0 0.0
        %5941 = vmatprep.subr.mxu0 0.0
        %5942 = vmatpush1.msra.mxu0 0.0
        %5943 = vmatprep.subr.mxu0 0.0
        %5944 = vmatpush1.msra.mxu0 0.0
        %5945 = vmatprep.subr.mxu0 0.0
        %5946 = vmatpush1.msra.mxu0 0.0
        %5947 = vmatprep.subr.mxu0 0.0
        %5948 = vmatpush1.msra.mxu0 0.0
        %5949 = vmatprep.subr.mxu0 0.0
        %5950 = vmatpush1.msra.mxu0 0.0
        %5951 = vmatprep.subr.mxu0 0.0
        %5952 = vmatpush1.msra.mxu0 0.0
        %5953 = vmatprep.subr.mxu0 0.0
        %5954 = vmatpush1.msra.mxu0 0.0
        %5955 = vmatprep.subr.mxu0 0.0
        %5956 = vmatpush1.msra.mxu0 0.0
        %5957 = vmatprep.mubr.f32.mxu0 0.0
        %v5958 = vand.u32 %v4983, 4294901760
        %v5959 = vsub.f32 %v4983, %v5958
        %v5960 = vand.u32 %v5959, 4294901760
        %v5961 = vsub.f32 %v5959, %v5960
        %v5962 = vand.u32 %v5961, 4294901760
        %5963 = vmatmul.mubr.f32.gmra.mrb[0].mxu0 %v5962
        %v5964 = vpop.f32.mrb[0].mxu0
        %v5965 = vadd.f32 %v4949, %v5964
        %v5966 = vpop.f32.mrb[0].mxu0
        %v5967 = vadd.f32 %v4953, %v5966
        %5968 = vmatprep.mubr.f32.mxu0 0.0
        %v5969 = vand.u32 %v4985, 4294901760
        %v5970 = vsub.f32 %v4985, %v5969
        %v5971 = vand.u32 %v5970, 4294901760
        %v5972 = vsub.f32 %v5970, %v5971
        %v5973 = vand.u32 %v5972, 4294901760
        %5974 = vmatmul.mubr.f32.gmra.mrb[0].mxu0 %v5973
        %v5975 = vpop.f32.mrb[0].mxu0
        %v5976 = vadd.f32 %v4949, %v5975
        %v5977 = vpop.f32.mrb[0].mxu0
        %v5978 = vadd.f32 %v4953, %v5977
        %5979 = vmatprep.mubr.f32.mxu0 0.0
        %v5980 = vand.u32 %v4987, 4294901760
        %v5981 = vsub.f32 %v4987, %v5980
        %v5982 = vand.u32 %v5981, 4294901760
        %v5983 = vsub.f32 %v5981, %v5982
        %v5984 = vand.u32 %v5983, 4294901760
        %5985 = vmatmul.mubr.f32.gmra.mrb[0].mxu0 %v5984
        %v5986 = vpop.f32.mrb[0].mxu0
        %v5987 = vadd.f32 %v4949, %v5986
        %v5988 = vpop.f32.mrb[0].mxu0
        %v5989 = vadd.f32 %v4953, %v5988
        %5990 = vmatprep.mubr.f32.mxu0 0.0
        %v5991 = vand.u32 %v4989, 4294901760
        %v5992 = vsub.f32 %v4989, %v5991
        %v5993 = vand.u32 %v5992, 4294901760
        %v5994 = vsub.f32 %v5992, %v5993
        %v5995 = vand.u32 %v5994, 4294901760
        %5996 = vmatmul.mubr.f32.gmra.mrb[0].mxu0 %v5995
        %v5997 = vpop.f32.mrb[0].mxu0
        %v5998 = vadd.f32 %v4949, %v5997
        %v5999 = vpop.f32.mrb[0].mxu0
        %v6000 = vadd.f32 %v4953, %v5999
        %6001 = vmatprep.mubr.f32.mxu0 0.0
        %v6002 = vand.u32 %v4991, 4294901760
        %v6003 = vsub.f32 %v4991, %v6002
        %v6004 = vand.u32 %v6003, 4294901760
        %v6005 = vsub.f32 %v6003, %v6004
        %v6006 = vand.u32 %v6005, 4294901760
        %6007 = vmatmul.mubr.f32.gmra.mrb[0].mxu0 %v6006
        %v6008 = vpop.f32.mrb[0].mxu0
        %v6009 = vadd.f32 %v4949, %v6008
        %v6010 = vpop.f32.mrb[0].mxu0
        %v6011 = vadd.f32 %v4953, %v6010
        %6012 = vmatprep.mubr.f32.mxu0 0.0
        %v6013 = vand.u32 %v4993, 4294901760
        %v6014 = vsub.f32 %v4993, %v6013
        %v6015 = vand.u32 %v6014, 4294901760
        %v6016 = vsub.f32 %v6014, %v6015
        %v6017 = vand.u32 %v6016, 4294901760
        %6018 = vmatmul.mubr.f32.gmra.mrb[0].mxu0 %v6017
        %v6019 = vpop.f32.mrb[0].mxu0
        %v6020 = vadd.f32 %v4949, %v6019
        %v6021 = vpop.f32.mrb[0].mxu0
        %v6022 = vadd.f32 %v4953, %v6021
        %6023 = vmatprep.mubr.f32.mxu0 0.0
        %v6024 = vand.u32 %v4995, 4294901760
        %v6025 = vsub.f32 %v4995, %v6024
        %v6026 = vand.u32 %v6025, 4294901760
        %v6027 = vsub.f32 %v6025, %v6026
        %v6028 = vand.u32 %v6027, 4294901760
        %6029 = vmatmul.mubr.f32.gmra.mrb[0].mxu0 %v6028
        %v6030 = vpop.f32.mrb[0].mxu0
        %v6031 = vadd.f32 %v4949, %v6030
        %v6032 = vpop.f32.mrb[0].mxu0
        %v6033 = vadd.f32 %v4953, %v6032
        %6034 = vmatprep.mubr.f32.mxu0 0.0
        %v6035 = vand.u32 %v4997, 4294901760
        %v6036 = vsub.f32 %v4997, %v6035
        %v6037 = vand.u32 %v6036, 4294901760
        %v6038 = vsub.f32 %v6036, %v6037
        %v6039 = vand.u32 %v6038, 4294901760
        %6040 = vmatmul.mubr.f32.gmra.mrb[0].mxu0 %v6039
        %v6041 = vpop.f32.mrb[0].mxu0
        %v6042 = vadd.f32 %v4949, %v6041
        %v6043 = vpop.f32.mrb[0].mxu0
        %v6044 = vadd.f32 %v4953, %v6043
        %6045 = vdwg.mxu0
        %v6046 = vand.u32 %v4923, 4294901760
        %v6047 = vsub.f32 %v4923, %v6046
        %v6048 = vand.u32 %v6047, 4294901760
        %v6049 = vsub.f32 %v6047, %v6048
        %v6050 = vand.u32 %v6049, 4294901760
        %6051 = vmatprep.subr.mxu0 %v6050
        %v6052 = vand.u32 %v4922, 4294901760
        %v6053 = vsub.f32 %v4922, %v6052
        %v6054 = vand.u32 %v6053, 4294901760
        %v6055 = vsub.f32 %v6053, %v6054
        %v6056 = vand.u32 %v6055, 4294901760
        %6057 = vmatpush1.msra.mxu0 %v6056
        %v6058 = vand.u32 %v4927, 4294901760
        %v6059 = vsub.f32 %v4927, %v6058
        %v6060 = vand.u32 %v6059, 4294901760
        %v6061 = vsub.f32 %v6059, %v6060
        %v6062 = vand.u32 %v6061, 4294901760
        %6063 = vmatprep.subr.mxu0 %v6062
        %v6064 = vand.u32 %v4926, 4294901760
        %v6065 = vsub.f32 %v4926, %v6064
        %v6066 = vand.u32 %v6065, 4294901760
        %v6067 = vsub.f32 %v6065, %v6066
        %v6068 = vand.u32 %v6067, 4294901760
        %6069 = vmatpush1.msra.mxu0 %v6068
        %v6070 = vand.u32 %v4931, 4294901760
        %v6071 = vsub.f32 %v4931, %v6070
        %v6072 = vand.u32 %v6071, 4294901760
        %v6073 = vsub.f32 %v6071, %v6072
        %v6074 = vand.u32 %v6073, 4294901760
        %6075 = vmatprep.subr.mxu0 %v6074
        %v6076 = vand.u32 %v4930, 4294901760
        %v6077 = vsub.f32 %v4930, %v6076
        %v6078 = vand.u32 %v6077, 4294901760
        %v6079 = vsub.f32 %v6077, %v6078
        %v6080 = vand.u32 %v6079, 4294901760
        %6081 = vmatpush1.msra.mxu0 %v6080
        %v6082 = vand.u32 %v4935, 4294901760
        %v6083 = vsub.f32 %v4935, %v6082
        %v6084 = vand.u32 %v6083, 4294901760
        %v6085 = vsub.f32 %v6083, %v6084
        %v6086 = vand.u32 %v6085, 4294901760
        %6087 = vmatprep.subr.mxu0 %v6086
        %v6088 = vand.u32 %v4934, 4294901760
        %v6089 = vsub.f32 %v4934, %v6088
        %v6090 = vand.u32 %v6089, 4294901760
        %v6091 = vsub.f32 %v6089, %v6090
        %v6092 = vand.u32 %v6091, 4294901760
        %6093 = vmatpush1.msra.mxu0 %v6092
        %6094 = vmatprep.subr.mxu0 0.0
        %6095 = vmatpush1.msra.mxu0 0.0
        %6096 = vmatprep.subr.mxu0 0.0
        %6097 = vmatpush1.msra.mxu0 0.0
        %6098 = vmatprep.subr.mxu0 0.0
        %6099 = vmatpush1.msra.mxu0 0.0
        %6100 = vmatprep.subr.mxu0 0.0
        %6101 = vmatpush1.msra.mxu0 0.0
        %6102 = vmatprep.subr.mxu0 0.0
        %6103 = vmatpush1.msra.mxu0 0.0
        %6104 = vmatprep.subr.mxu0 0.0
        %6105 = vmatpush1.msra.mxu0 0.0
        %6106 = vmatprep.subr.mxu0 0.0
        %6107 = vmatpush1.msra.mxu0 0.0
        %6108 = vmatprep.subr.mxu0 0.0
        %6109 = vmatpush1.msra.mxu0 0.0
        %6110 = vmatprep.subr.mxu0 0.0
        %6111 = vmatpush1.msra.mxu0 0.0
        %6112 = vmatprep.subr.mxu0 0.0
        %6113 = vmatpush1.msra.mxu0 0.0
        %6114 = vmatprep.subr.mxu0 0.0
        %6115 = vmatpush1.msra.mxu0 0.0
        %6116 = vmatprep.subr.mxu0 0.0
        %6117 = vmatpush1.msra.mxu0 0.0
        %6118 = vmatprep.subr.mxu0 0.0
        %6119 = vmatpush1.msra.mxu0 0.0
        %6120 = vmatprep.subr.mxu0 0.0
        %6121 = vmatpush1.msra.mxu0 0.0
        %6122 = vmatprep.subr.mxu0 0.0
        %6123 = vmatpush1.msra.mxu0 0.0
        %6124 = vmatprep.subr.mxu0 0.0
        %6125 = vmatpush1.msra.mxu0 0.0
        %6126 = vmatprep.subr.mxu0 0.0
        %6127 = vmatpush1.msra.mxu0 0.0
        %6128 = vmatprep.subr.mxu0 0.0
        %6129 = vmatpush1.msra.mxu0 0.0
        %6130 = vmatprep.subr.mxu0 0.0
        %6131 = vmatpush1.msra.mxu0 0.0
        %6132 = vmatprep.subr.mxu0 0.0
        %6133 = vmatpush1.msra.mxu0 0.0
        %6134 = vmatprep.subr.mxu0 0.0
        %6135 = vmatpush1.msra.mxu0 0.0
        %6136 = vmatprep.subr.mxu0 0.0
        %6137 = vmatpush1.msra.mxu0 0.0
        %6138 = vmatprep.subr.mxu0 0.0
        %6139 = vmatpush1.msra.mxu0 0.0
        %6140 = vmatprep.subr.mxu0 0.0
        %6141 = vmatpush1.msra.mxu0 0.0
        %6142 = vmatprep.subr.mxu0 0.0
        %6143 = vmatpush1.msra.mxu0 0.0
        %6144 = vmatprep.subr.mxu0 0.0
        %6145 = vmatpush1.msra.mxu0 0.0
        %6146 = vmatprep.subr.mxu0 0.0
        %6147 = vmatpush1.msra.mxu0 0.0
        %6148 = vmatprep.subr.mxu0 0.0
        %6149 = vmatpush1.msra.mxu0 0.0
        %6150 = vmatprep.mubr.f32.mxu0 0.0
        %v6151 = vand.u32 %v4983, 4294901760
        %6152 = vmatmul.mubr.f32.gmra.mrb[0].mxu0 %v6151
        %v6153 = vpop.f32.mrb[0].mxu0
        %v6154 = vadd.f32 %v5965, %v6153
        %v6155 = vpop.f32.mrb[0].mxu0
        %v6156 = vadd.f32 %v5967, %v6155
        %6157 = vmatprep.mubr.f32.mxu0 0.0
        %v6158 = vand.u32 %v4985, 4294901760
        %6159 = vmatmul.mubr.f32.gmra.mrb[0].mxu0 %v6158
        %v6160 = vpop.f32.mrb[0].mxu0
        %v6161 = vadd.f32 %v5976, %v6160
        %v6162 = vpop.f32.mrb[0].mxu0
        %v6163 = vadd.f32 %v5978, %v6162
        %6164 = vmatprep.mubr.f32.mxu0 0.0
        %v6165 = vand.u32 %v4987, 4294901760
        %6166 = vmatmul.mubr.f32.gmra.mrb[0].mxu0 %v6165
        %v6167 = vpop.f32.mrb[0].mxu0
        %v6168 = vadd.f32 %v5987, %v6167
        %v6169 = vpop.f32.mrb[0].mxu0
        %v6170 = vadd.f32 %v5989, %v6169
        %6171 = vmatprep.mubr.f32.mxu0 0.0
        %v6172 = vand.u32 %v4989, 4294901760
        %6173 = vmatmul.mubr.f32.gmra.mrb[0].mxu0 %v6172
        %v6174 = vpop.f32.mrb[0].mxu0
        %v6175 = vadd.f32 %v5998, %v6174
        %v6176 = vpop.f32.mrb[0].mxu0
        %v6177 = vadd.f32 %v6000, %v6176
        %6178 = vmatprep.mubr.f32.mxu0 0.0
        %v6179 = vand.u32 %v4991, 4294901760
        %6180 = vmatmul.mubr.f32.gmra.mrb[0].mxu0 %v6179
        %v6181 = vpop.f32.mrb[0].mxu0
        %v6182 = vadd.f32 %v6009, %v6181
        %v6183 = vpop.f32.mrb[0].mxu0
        %v6184 = vadd.f32 %v6011, %v6183
        %6185 = vmatprep.mubr.f32.mxu0 0.0
        %v6186 = vand.u32 %v4993, 4294901760
        %6187 = vmatmul.mubr.f32.gmra.mrb[0].mxu0 %v6186
        %v6188 = vpop.f32.mrb[0].mxu0
        %v6189 = vadd.f32 %v6020, %v6188
        %v6190 = vpop.f32.mrb[0].mxu0
        %v6191 = vadd.f32 %v6022, %v6190
        %6192 = vmatprep.mubr.f32.mxu0 0.0
        %v6193 = vand.u32 %v4995, 4294901760
        %6194 = vmatmul.mubr.f32.gmra.mrb[0].mxu0 %v6193
        %v6195 = vpop.f32.mrb[0].mxu0
        %v6196 = vadd.f32 %v6031, %v6195
        %v6197 = vpop.f32.mrb[0].mxu0
        %v6198 = vadd.f32 %v6033, %v6197
        %6199 = vmatprep.mubr.f32.mxu0 0.0
        %v6200 = vand.u32 %v4997, 4294901760
        %6201 = vmatmul.mubr.f32.gmra.mrb[0].mxu0 %v6200
        %v6202 = vpop.f32.mrb[0].mxu0
        %v6203 = vadd.f32 %v6042, %v6202
        %v6204 = vpop.f32.mrb[0].mxu0
        %v6205 = vadd.f32 %v6044, %v6204
        %6206 = vdwg.mxu0
        %v6207 = vand.u32 %v4923, 4294901760
        %v6208 = vsub.f32 %v4923, %v6207
        %6209 = vmatprep.subr.mxu0 %v6208
        %v6210 = vand.u32 %v4922, 4294901760
        %v6211 = vsub.f32 %v4922, %v6210
        %6212 = vmatpush1.msra.mxu0 %v6211
        %v6213 = vand.u32 %v4927, 4294901760
        %v6214 = vsub.f32 %v4927, %v6213
        %6215 = vmatprep.subr.mxu0 %v6214
        %v6216 = vand.u32 %v4926, 4294901760
        %v6217 = vsub.f32 %v4926, %v6216
        %6218 = vmatpush1.msra.mxu0 %v6217
        %v6219 = vand.u32 %v4931, 4294901760
        %v6220 = vsub.f32 %v4931, %v6219
        %6221 = vmatprep.subr.mxu0 %v6220
        %v6222 = vand.u32 %v4930, 4294901760
        %v6223 = vsub.f32 %v4930, %v6222
        %6224 = vmatpush1.msra.mxu0 %v6223
        %v6225 = vand.u32 %v4935, 4294901760
        %v6226 = vsub.f32 %v4935, %v6225
        %6227 = vmatprep.subr.mxu0 %v6226
        %v6228 = vand.u32 %v4934, 4294901760
        %v6229 = vsub.f32 %v4934, %v6228
        %6230 = vmatpush1.msra.mxu0 %v6229
        %6231 = vmatprep.subr.mxu0 0.0
        %6232 = vmatpush1.msra.mxu0 0.0
        %6233 = vmatprep.subr.mxu0 0.0
        %6234 = vmatpush1.msra.mxu0 0.0
        %6235 = vmatprep.subr.mxu0 0.0
        %6236 = vmatpush1.msra.mxu0 0.0
        %6237 = vmatprep.subr.mxu0 0.0
        %6238 = vmatpush1.msra.mxu0 0.0
        %6239 = vmatprep.subr.mxu0 0.0
        %6240 = vmatpush1.msra.mxu0 0.0
        %6241 = vmatprep.subr.mxu0 0.0
        %6242 = vmatpush1.msra.mxu0 0.0
        %6243 = vmatprep.subr.mxu0 0.0
        %6244 = vmatpush1.msra.mxu0 0.0
        %6245 = vmatprep.subr.mxu0 0.0
        %6246 = vmatpush1.msra.mxu0 0.0
        %6247 = vmatprep.subr.mxu0 0.0
        %6248 = vmatpush1.msra.mxu0 0.0
        %6249 = vmatprep.subr.mxu0 0.0
        %6250 = vmatpush1.msra.mxu0 0.0
        %6251 = vmatprep.subr.mxu0 0.0
        %6252 = vmatpush1.msra.mxu0 0.0
        %6253 = vmatprep.subr.mxu0 0.0
        %6254 = vmatpush1.msra.mxu0 0.0
        %6255 = vmatprep.subr.mxu0 0.0
        %6256 = vmatpush1.msra.mxu0 0.0
        %6257 = vmatprep.subr.mxu0 0.0
        %6258 = vmatpush1.msra.mxu0 0.0
        %6259 = vmatprep.subr.mxu0 0.0
        %6260 = vmatpush1.msra.mxu0 0.0
        %6261 = vmatprep.subr.mxu0 0.0
        %6262 = vmatpush1.msra.mxu0 0.0
        %6263 = vmatprep.subr.mxu0 0.0
        %6264 = vmatpush1.msra.mxu0 0.0
        %6265 = vmatprep.subr.mxu0 0.0
        %6266 = vmatpush1.msra.mxu0 0.0
        %6267 = vmatprep.subr.mxu0 0.0
        %6268 = vmatpush1.msra.mxu0 0.0
        %6269 = vmatprep.subr.mxu0 0.0
        %6270 = vmatpush1.msra.mxu0 0.0
        %6271 = vmatprep.subr.mxu0 0.0
        %6272 = vmatpush1.msra.mxu0 0.0
        %6273 = vmatprep.subr.mxu0 0.0
        %6274 = vmatpush1.msra.mxu0 0.0
        %6275 = vmatprep.subr.mxu0 0.0
        %6276 = vmatpush1.msra.mxu0 0.0
        %6277 = vmatprep.subr.mxu0 0.0
        %6278 = vmatpush1.msra.mxu0 0.0
        %6279 = vmatprep.subr.mxu0 0.0
        %6280 = vmatpush1.msra.mxu0 0.0
        %6281 = vmatprep.subr.mxu0 0.0
        %6282 = vmatpush1.msra.mxu0 0.0
        %6283 = vmatprep.subr.mxu0 0.0
        %6284 = vmatpush1.msra.mxu0 0.0
        %6285 = vmatprep.subr.mxu0 0.0
        %6286 = vmatpush1.msra.mxu0 0.0
        %6287 = vmatprep.mubr.f32.mxu0 0.0
        %v6288 = vand.u32 %v4983, 4294901760
        %v6289 = vsub.f32 %v4983, %v6288
        %6290 = vmatmul.mubr.f32.gmra.mrb[0].mxu0 %v6289
        %v6291 = vpop.f32.mrb[0].mxu0
        %v6292 = vadd.f32 %v6154, %v6291
        %v6293 = vpop.f32.mrb[0].mxu0
        %v6294 = vadd.f32 %v6156, %v6293
        %6295 = vmatprep.mubr.f32.mxu0 0.0
        %v6296 = vand.u32 %v4985, 4294901760
        %v6297 = vsub.f32 %v4985, %v6296
        %6298 = vmatmul.mubr.f32.gmra.mrb[0].mxu0 %v6297
        %v6299 = vpop.f32.mrb[0].mxu0
        %v6300 = vadd.f32 %v6161, %v6299
        %v6301 = vpop.f32.mrb[0].mxu0
        %v6302 = vadd.f32 %v6163, %v6301
        %6303 = vmatprep.mubr.f32.mxu0 0.0
        %v6304 = vand.u32 %v4987, 4294901760
        %v6305 = vsub.f32 %v4987, %v6304
        %6306 = vmatmul.mubr.f32.gmra.mrb[0].mxu0 %v6305
        %v6307 = vpop.f32.mrb[0].mxu0
        %v6308 = vadd.f32 %v6168, %v6307
        %v6309 = vpop.f32.mrb[0].mxu0
        %v6310 = vadd.f32 %v6170, %v6309
        %6311 = vmatprep.mubr.f32.mxu0 0.0
        %v6312 = vand.u32 %v4989, 4294901760
        %v6313 = vsub.f32 %v4989, %v6312
        %6314 = vmatmul.mubr.f32.gmra.mrb[0].mxu0 %v6313
        %v6315 = vpop.f32.mrb[0].mxu0
        %v6316 = vadd.f32 %v6175, %v6315
        %v6317 = vpop.f32.mrb[0].mxu0
        %v6318 = vadd.f32 %v6177, %v6317
        %6319 = vmatprep.mubr.f32.mxu0 0.0
        %v6320 = vand.u32 %v4991, 4294901760
        %v6321 = vsub.f32 %v4991, %v6320
        %6322 = vmatmul.mubr.f32.gmra.mrb[0].mxu0 %v6321
        %v6323 = vpop.f32.mrb[0].mxu0
        %v6324 = vadd.f32 %v6182, %v6323
        %v6325 = vpop.f32.mrb[0].mxu0
        %v6326 = vadd.f32 %v6184, %v6325
        %6327 = vmatprep.mubr.f32.mxu0 0.0
        %v6328 = vand.u32 %v4993, 4294901760
        %v6329 = vsub.f32 %v4993, %v6328
        %6330 = vmatmul.mubr.f32.gmra.mrb[0].mxu0 %v6329
        %v6331 = vpop.f32.mrb[0].mxu0
        %v6332 = vadd.f32 %v6189, %v6331
        %v6333 = vpop.f32.mrb[0].mxu0
        %v6334 = vadd.f32 %v6191, %v6333
        %6335 = vmatprep.mubr.f32.mxu0 0.0
        %v6336 = vand.u32 %v4995, 4294901760
        %v6337 = vsub.f32 %v4995, %v6336
        %6338 = vmatmul.mubr.f32.gmra.mrb[0].mxu0 %v6337
        %v6339 = vpop.f32.mrb[0].mxu0
        %v6340 = vadd.f32 %v6196, %v6339
        %v6341 = vpop.f32.mrb[0].mxu0
        %v6342 = vadd.f32 %v6198, %v6341
        %6343 = vmatprep.mubr.f32.mxu0 0.0
        %v6344 = vand.u32 %v4997, 4294901760
        %v6345 = vsub.f32 %v4997, %v6344
        %6346 = vmatmul.mubr.f32.gmra.mrb[0].mxu0 %v6345
        %v6347 = vpop.f32.mrb[0].mxu0
        %v6348 = vadd.f32 %v6203, %v6347
        %v6349 = vpop.f32.mrb[0].mxu0
        %v6350 = vadd.f32 %v6205, %v6349
        %6351 = vdwg.mxu0
        %v6352 = vand.u32 %v4923, 4294901760
        %6353 = vmatprep.subr.mxu0 %v6352
        %v6354 = vand.u32 %v4922, 4294901760
        %6355 = vmatpush1.msra.mxu0 %v6354
        %v6356 = vand.u32 %v4927, 4294901760
        %6357 = vmatprep.subr.mxu0 %v6356
        %v6358 = vand.u32 %v4926, 4294901760
        %6359 = vmatpush1.msra.mxu0 %v6358
        %v6360 = vand.u32 %v4931, 4294901760
        %6361 = vmatprep.subr.mxu0 %v6360
        %v6362 = vand.u32 %v4930, 4294901760
        %6363 = vmatpush1.msra.mxu0 %v6362
        %v6364 = vand.u32 %v4935, 4294901760
        %6365 = vmatprep.subr.mxu0 %v6364
        %v6366 = vand.u32 %v4934, 4294901760
        %6367 = vmatpush1.msra.mxu0 %v6366
        %6368 = vmatprep.subr.mxu0 0.0
        %6369 = vmatpush1.msra.mxu0 0.0
        %6370 = vmatprep.subr.mxu0 0.0
        %6371 = vmatpush1.msra.mxu0 0.0
        %6372 = vmatprep.subr.mxu0 0.0
        %6373 = vmatpush1.msra.mxu0 0.0
        %6374 = vmatprep.subr.mxu0 0.0
        %6375 = vmatpush1.msra.mxu0 0.0
        %6376 = vmatprep.subr.mxu0 0.0
        %6377 = vmatpush1.msra.mxu0 0.0
        %6378 = vmatprep.subr.mxu0 0.0
        %6379 = vmatpush1.msra.mxu0 0.0
        %6380 = vmatprep.subr.mxu0 0.0
        %6381 = vmatpush1.msra.mxu0 0.0
        %6382 = vmatprep.subr.mxu0 0.0
        %6383 = vmatpush1.msra.mxu0 0.0
        %6384 = vmatprep.subr.mxu0 0.0
        %6385 = vmatpush1.msra.mxu0 0.0
        %6386 = vmatprep.subr.mxu0 0.0
        %6387 = vmatpush1.msra.mxu0 0.0
        %6388 = vmatprep.subr.mxu0 0.0
        %6389 = vmatpush1.msra.mxu0 0.0
        %6390 = vmatprep.subr.mxu0 0.0
        %6391 = vmatpush1.msra.mxu0 0.0
        %6392 = vmatprep.subr.mxu0 0.0
        %6393 = vmatpush1.msra.mxu0 0.0
        %6394 = vmatprep.subr.mxu0 0.0
        %6395 = vmatpush1.msra.mxu0 0.0
        %6396 = vmatprep.subr.mxu0 0.0
        %6397 = vmatpush1.msra.mxu0 0.0
        %6398 = vmatprep.subr.mxu0 0.0
        %6399 = vmatpush1.msra.mxu0 0.0
        %6400 = vmatprep.subr.mxu0 0.0
        %6401 = vmatpush1.msra.mxu0 0.0
        %6402 = vmatprep.subr.mxu0 0.0
        %6403 = vmatpush1.msra.mxu0 0.0
        %6404 = vmatprep.subr.mxu0 0.0
        %6405 = vmatpush1.msra.mxu0 0.0
        %6406 = vmatprep.subr.mxu0 0.0
        %6407 = vmatpush1.msra.mxu0 0.0
        %6408 = vmatprep.subr.mxu0 0.0
        %6409 = vmatpush1.msra.mxu0 0.0
        %6410 = vmatprep.subr.mxu0 0.0
        %6411 = vmatpush1.msra.mxu0 0.0
        %6412 = vmatprep.subr.mxu0 0.0
        %6413 = vmatpush1.msra.mxu0 0.0
        %6414 = vmatprep.subr.mxu0 0.0
        %6415 = vmatpush1.msra.mxu0 0.0
        %6416 = vmatprep.subr.mxu0 0.0
        %6417 = vmatpush1.msra.mxu0 0.0
        %6418 = vmatprep.subr.mxu0 0.0
        %6419 = vmatpush1.msra.mxu0 0.0
        %6420 = vmatprep.subr.mxu0 0.0
        %6421 = vmatpush1.msra.mxu0 0.0
        %6422 = vmatprep.subr.mxu0 0.0
        %6423 = vmatpush1.msra.mxu0 0.0
        %6424 = vmatprep.mubr.f32.mxu0 0.0
        %v6425 = vand.u32 %v4983, 4294901760
        %v6426 = vsub.f32 %v4983, %v6425
        %v6427 = vand.u32 %v6426, 4294901760
        %6428 = vmatmul.mubr.f32.gmra.mrb[0].mxu0 %v6427
        %v6429 = vpop.f32.mrb[0].mxu0
        %v6430 = vadd.f32 %v6292, %v6429
        %v6431 = vpop.f32.mrb[0].mxu0
        %v6432 = vadd.f32 %v6294, %v6431
        %6433 = vmatprep.mubr.f32.mxu0 0.0
        %v6434 = vand.u32 %v4985, 4294901760
        %v6435 = vsub.f32 %v4985, %v6434
        %v6436 = vand.u32 %v6435, 4294901760
        %6437 = vmatmul.mubr.f32.gmra.mrb[0].mxu0 %v6436
        %v6438 = vpop.f32.mrb[0].mxu0
        %v6439 = vadd.f32 %v6300, %v6438
        %v6440 = vpop.f32.mrb[0].mxu0
        %v6441 = vadd.f32 %v6302, %v6440
        %6442 = vmatprep.mubr.f32.mxu0 0.0
        %v6443 = vand.u32 %v4987, 4294901760
        %v6444 = vsub.f32 %v4987, %v6443
        %v6445 = vand.u32 %v6444, 4294901760
        %6446 = vmatmul.mubr.f32.gmra.mrb[0].mxu0 %v6445
        %v6447 = vpop.f32.mrb[0].mxu0
        %v6448 = vadd.f32 %v6308, %v6447
        %v6449 = vpop.f32.mrb[0].mxu0
        %v6450 = vadd.f32 %v6310, %v6449
        %6451 = vmatprep.mubr.f32.mxu0 0.0
        %v6452 = vand.u32 %v4989, 4294901760
        %v6453 = vsub.f32 %v4989, %v6452
        %v6454 = vand.u32 %v6453, 4294901760
        %6455 = vmatmul.mubr.f32.gmra.mrb[0].mxu0 %v6454
        %v6456 = vpop.f32.mrb[0].mxu0
        %v6457 = vadd.f32 %v6316, %v6456
        %v6458 = vpop.f32.mrb[0].mxu0
        %v6459 = vadd.f32 %v6318, %v6458
        %6460 = vmatprep.mubr.f32.mxu0 0.0
        %v6461 = vand.u32 %v4991, 4294901760
        %v6462 = vsub.f32 %v4991, %v6461
        %v6463 = vand.u32 %v6462, 4294901760
        %6464 = vmatmul.mubr.f32.gmra.mrb[0].mxu0 %v6463
        %v6465 = vpop.f32.mrb[0].mxu0
        %v6466 = vadd.f32 %v6324, %v6465
        %v6467 = vpop.f32.mrb[0].mxu0
        %v6468 = vadd.f32 %v6326, %v6467
        %6469 = vmatprep.mubr.f32.mxu0 0.0
        %v6470 = vand.u32 %v4993, 4294901760
        %v6471 = vsub.f32 %v4993, %v6470
        %v6472 = vand.u32 %v6471, 4294901760
        %6473 = vmatmul.mubr.f32.gmra.mrb[0].mxu0 %v6472
        %v6474 = vpop.f32.mrb[0].mxu0
        %v6475 = vadd.f32 %v6332, %v6474
        %v6476 = vpop.f32.mrb[0].mxu0
        %v6477 = vadd.f32 %v6334, %v6476
        %6478 = vmatprep.mubr.f32.mxu0 0.0
        %v6479 = vand.u32 %v4995, 4294901760
        %v6480 = vsub.f32 %v4995, %v6479
        %v6481 = vand.u32 %v6480, 4294901760
        %6482 = vmatmul.mubr.f32.gmra.mrb[0].mxu0 %v6481
        %v6483 = vpop.f32.mrb[0].mxu0
        %v6484 = vadd.f32 %v6340, %v6483
        %v6485 = vpop.f32.mrb[0].mxu0
        %v6486 = vadd.f32 %v6342, %v6485
        %6487 = vmatprep.mubr.f32.mxu0 0.0
        %v6488 = vand.u32 %v4997, 4294901760
        %v6489 = vsub.f32 %v4997, %v6488
        %v6490 = vand.u32 %v6489, 4294901760
        %6491 = vmatmul.mubr.f32.gmra.mrb[0].mxu0 %v6490
        %v6492 = vpop.f32.mrb[0].mxu0
        %v6493 = vadd.f32 %v6348, %v6492
        %v6494 = vpop.f32.mrb[0].mxu0
        %v6495 = vadd.f32 %v6350, %v6494
        %6496 = vdwg.mxu0
        %v6497 = vand.u32 %v4923, 4294901760
        %v6498 = vsub.f32 %v4923, %v6497
        %v6499 = vand.u32 %v6498, 4294901760
        %6500 = vmatprep.subr.mxu0 %v6499
        %v6501 = vand.u32 %v4922, 4294901760
        %v6502 = vsub.f32 %v4922, %v6501
        %v6503 = vand.u32 %v6502, 4294901760
        %6504 = vmatpush1.msra.mxu0 %v6503
        %v6505 = vand.u32 %v4927, 4294901760
        %v6506 = vsub.f32 %v4927, %v6505
        %v6507 = vand.u32 %v6506, 4294901760
        %6508 = vmatprep.subr.mxu0 %v6507
        %v6509 = vand.u32 %v4926, 4294901760
        %v6510 = vsub.f32 %v4926, %v6509
        %v6511 = vand.u32 %v6510, 4294901760
        %6512 = vmatpush1.msra.mxu0 %v6511
        %v6513 = vand.u32 %v4931, 4294901760
        %v6514 = vsub.f32 %v4931, %v6513
        %v6515 = vand.u32 %v6514, 4294901760
        %6516 = vmatprep.subr.mxu0 %v6515
        %v6517 = vand.u32 %v4930, 4294901760
        %v6518 = vsub.f32 %v4930, %v6517
        %v6519 = vand.u32 %v6518, 4294901760
        %6520 = vmatpush1.msra.mxu0 %v6519
        %v6521 = vand.u32 %v4935, 4294901760
        %v6522 = vsub.f32 %v4935, %v6521
        %v6523 = vand.u32 %v6522, 4294901760
        %6524 = vmatprep.subr.mxu0 %v6523
        %v6525 = vand.u32 %v4934, 4294901760
        %v6526 = vsub.f32 %v4934, %v6525
        %v6527 = vand.u32 %v6526, 4294901760
        %6528 = vmatpush1.msra.mxu0 %v6527
        %6529 = vmatprep.subr.mxu0 0.0
        %6530 = vmatpush1.msra.mxu0 0.0
        %6531 = vmatprep.subr.mxu0 0.0
        %6532 = vmatpush1.msra.mxu0 0.0
        %6533 = vmatprep.subr.mxu0 0.0
        %6534 = vmatpush1.msra.mxu0 0.0
        %6535 = vmatprep.subr.mxu0 0.0
        %6536 = vmatpush1.msra.mxu0 0.0
        %6537 = vmatprep.subr.mxu0 0.0
        %6538 = vmatpush1.msra.mxu0 0.0
        %6539 = vmatprep.subr.mxu0 0.0
        %6540 = vmatpush1.msra.mxu0 0.0
        %6541 = vmatprep.subr.mxu0 0.0
        %6542 = vmatpush1.msra.mxu0 0.0
        %6543 = vmatprep.subr.mxu0 0.0
        %6544 = vmatpush1.msra.mxu0 0.0
        %6545 = vmatprep.subr.mxu0 0.0
        %6546 = vmatpush1.msra.mxu0 0.0
        %6547 = vmatprep.subr.mxu0 0.0
        %6548 = vmatpush1.msra.mxu0 0.0
        %6549 = vmatprep.subr.mxu0 0.0
        %6550 = vmatpush1.msra.mxu0 0.0
        %6551 = vmatprep.subr.mxu0 0.0
        %6552 = vmatpush1.msra.mxu0 0.0
        %6553 = vmatprep.subr.mxu0 0.0
        %6554 = vmatpush1.msra.mxu0 0.0
        %6555 = vmatprep.subr.mxu0 0.0
        %6556 = vmatpush1.msra.mxu0 0.0
        %6557 = vmatprep.subr.mxu0 0.0
        %6558 = vmatpush1.msra.mxu0 0.0
        %6559 = vmatprep.subr.mxu0 0.0
        %6560 = vmatpush1.msra.mxu0 0.0
        %6561 = vmatprep.subr.mxu0 0.0
        %6562 = vmatpush1.msra.mxu0 0.0
        %6563 = vmatprep.subr.mxu0 0.0
        %6564 = vmatpush1.msra.mxu0 0.0
        %6565 = vmatprep.subr.mxu0 0.0
        %6566 = vmatpush1.msra.mxu0 0.0
        %6567 = vmatprep.subr.mxu0 0.0
        %6568 = vmatpush1.msra.mxu0 0.0
        %6569 = vmatprep.subr.mxu0 0.0
        %6570 = vmatpush1.msra.mxu0 0.0
        %6571 = vmatprep.subr.mxu0 0.0
        %6572 = vmatpush1.msra.mxu0 0.0
        %6573 = vmatprep.subr.mxu0 0.0
        %6574 = vmatpush1.msra.mxu0 0.0
        %6575 = vmatprep.subr.mxu0 0.0
        %6576 = vmatpush1.msra.mxu0 0.0
        %6577 = vmatprep.subr.mxu0 0.0
        %6578 = vmatpush1.msra.mxu0 0.0
        %6579 = vmatprep.subr.mxu0 0.0
        %6580 = vmatpush1.msra.mxu0 0.0
        %6581 = vmatprep.subr.mxu0 0.0
        %6582 = vmatpush1.msra.mxu0 0.0
        %6583 = vmatprep.subr.mxu0 0.0
        %6584 = vmatpush1.msra.mxu0 0.0
        %6585 = vmatprep.mubr.f32.mxu0 0.0
        %v6586 = vand.u32 %v4983, 4294901760
        %6587 = vmatmul.mubr.f32.gmra.mrb[0].mxu0 %v6586
        %v6588 = vpop.f32.mrb[0].mxu0
        %v6589 = vadd.f32 %v6430, %v6588
        %v6590 = vpop.f32.mrb[0].mxu0
        %v6591 = vadd.f32 %v6432, %v6590
        %6592 = vmatprep.mubr.f32.mxu0 0.0
        %v6593 = vand.u32 %v4985, 4294901760
        %6594 = vmatmul.mubr.f32.gmra.mrb[0].mxu0 %v6593
        %v6595 = vpop.f32.mrb[0].mxu0
        %v6596 = vadd.f32 %v6439, %v6595
        %v6597 = vpop.f32.mrb[0].mxu0
        %v6598 = vadd.f32 %v6441, %v6597
        %6599 = vmatprep.mubr.f32.mxu0 0.0
        %v6600 = vand.u32 %v4987, 4294901760
        %6601 = vmatmul.mubr.f32.gmra.mrb[0].mxu0 %v6600
        %v6602 = vpop.f32.mrb[0].mxu0
        %v6603 = vadd.f32 %v6448, %v6602
        %v6604 = vpop.f32.mrb[0].mxu0
        %v6605 = vadd.f32 %v6450, %v6604
        %6606 = vmatprep.mubr.f32.mxu0 0.0
        %v6607 = vand.u32 %v4989, 4294901760
        %6608 = vmatmul.mubr.f32.gmra.mrb[0].mxu0 %v6607
        %v6609 = vpop.f32.mrb[0].mxu0
        %v6610 = vadd.f32 %v6457, %v6609
        %v6611 = vpop.f32.mrb[0].mxu0
        %v6612 = vadd.f32 %v6459, %v6611
        %6613 = vmatprep.mubr.f32.mxu0 0.0
        %v6614 = vand.u32 %v4991, 4294901760
        %6615 = vmatmul.mubr.f32.gmra.mrb[0].mxu0 %v6614
        %v6616 = vpop.f32.mrb[0].mxu0
        %v6617 = vadd.f32 %v6466, %v6616
        %v6618 = vpop.f32.mrb[0].mxu0
        %v6619 = vadd.f32 %v6468, %v6618
        %6620 = vmatprep.mubr.f32.mxu0 0.0
        %v6621 = vand.u32 %v4993, 4294901760
        %6622 = vmatmul.mubr.f32.gmra.mrb[0].mxu0 %v6621
        %v6623 = vpop.f32.mrb[0].mxu0
        %v6624 = vadd.f32 %v6475, %v6623
        %v6625 = vpop.f32.mrb[0].mxu0
        %v6626 = vadd.f32 %v6477, %v6625
        %6627 = vmatprep.mubr.f32.mxu0 0.0
        %v6628 = vand.u32 %v4995, 4294901760
        %6629 = vmatmul.mubr.f32.gmra.mrb[0].mxu0 %v6628
        %v6630 = vpop.f32.mrb[0].mxu0
        %v6631 = vadd.f32 %v6484, %v6630
        %v6632 = vpop.f32.mrb[0].mxu0
        %v6633 = vadd.f32 %v6486, %v6632
        %6634 = vmatprep.mubr.f32.mxu0 0.0
        %v6635 = vand.u32 %v4997, 4294901760
        %6636 = vmatmul.mubr.f32.gmra.mrb[0].mxu0 %v6635
        %v6637 = vpop.f32.mrb[0].mxu0
        %v6638 = vadd.f32 %v6493, %v6637
        %v6639 = vpop.f32.mrb[0].mxu0
        %v6640 = vadd.f32 %v6495, %v6639
        %6641 = vdwg.mxu0
        %v6642 = vand.u32 %v4923, 4294901760
        %6643 = vmatprep.subr.mxu0 %v6642
        %v6644 = vand.u32 %v4922, 4294901760
        %6645 = vmatpush1.msra.mxu0 %v6644
        %v6646 = vand.u32 %v4927, 4294901760
        %6647 = vmatprep.subr.mxu0 %v6646
        %v6648 = vand.u32 %v4926, 4294901760
        %6649 = vmatpush1.msra.mxu0 %v6648
        %v6650 = vand.u32 %v4931, 4294901760
        %6651 = vmatprep.subr.mxu0 %v6650
        %v6652 = vand.u32 %v4930, 4294901760
        %6653 = vmatpush1.msra.mxu0 %v6652
        %v6654 = vand.u32 %v4935, 4294901760
        %6655 = vmatprep.subr.mxu0 %v6654
        %v6656 = vand.u32 %v4934, 4294901760
        %6657 = vmatpush1.msra.mxu0 %v6656
        %6658 = vmatprep.subr.mxu0 0.0
        %6659 = vmatpush1.msra.mxu0 0.0
        %6660 = vmatprep.subr.mxu0 0.0
        %6661 = vmatpush1.msra.mxu0 0.0
        %6662 = vmatprep.subr.mxu0 0.0
        %6663 = vmatpush1.msra.mxu0 0.0
        %6664 = vmatprep.subr.mxu0 0.0
        %6665 = vmatpush1.msra.mxu0 0.0
        %6666 = vmatprep.subr.mxu0 0.0
        %6667 = vmatpush1.msra.mxu0 0.0
        %6668 = vmatprep.subr.mxu0 0.0
        %6669 = vmatpush1.msra.mxu0 0.0
        %6670 = vmatprep.subr.mxu0 0.0
        %6671 = vmatpush1.msra.mxu0 0.0
        %6672 = vmatprep.subr.mxu0 0.0
        %6673 = vmatpush1.msra.mxu0 0.0
        %6674 = vmatprep.subr.mxu0 0.0
        %6675 = vmatpush1.msra.mxu0 0.0
        %6676 = vmatprep.subr.mxu0 0.0
        %6677 = vmatpush1.msra.mxu0 0.0
        %6678 = vmatprep.subr.mxu0 0.0
        %6679 = vmatpush1.msra.mxu0 0.0
        %6680 = vmatprep.subr.mxu0 0.0
        %6681 = vmatpush1.msra.mxu0 0.0
        %6682 = vmatprep.subr.mxu0 0.0
        %6683 = vmatpush1.msra.mxu0 0.0
        %6684 = vmatprep.subr.mxu0 0.0
        %6685 = vmatpush1.msra.mxu0 0.0
        %6686 = vmatprep.subr.mxu0 0.0
        %6687 = vmatpush1.msra.mxu0 0.0
        %6688 = vmatprep.subr.mxu0 0.0
        %6689 = vmatpush1.msra.mxu0 0.0
        %6690 = vmatprep.subr.mxu0 0.0
        %6691 = vmatpush1.msra.mxu0 0.0
        %6692 = vmatprep.subr.mxu0 0.0
        %6693 = vmatpush1.msra.mxu0 0.0
        %6694 = vmatprep.subr.mxu0 0.0
        %6695 = vmatpush1.msra.mxu0 0.0
        %6696 = vmatprep.subr.mxu0 0.0
        %6697 = vmatpush1.msra.mxu0 0.0
        %6698 = vmatprep.subr.mxu0 0.0
        %6699 = vmatpush1.msra.mxu0 0.0
        %6700 = vmatprep.subr.mxu0 0.0
        %6701 = vmatpush1.msra.mxu0 0.0
        %6702 = vmatprep.subr.mxu0 0.0
        %6703 = vmatpush1.msra.mxu0 0.0
        %6704 = vmatprep.subr.mxu0 0.0
        %6705 = vmatpush1.msra.mxu0 0.0
        %6706 = vmatprep.subr.mxu0 0.0
        %6707 = vmatpush1.msra.mxu0 0.0
        %6708 = vmatprep.subr.mxu0 0.0
        %6709 = vmatpush1.msra.mxu0 0.0
        %6710 = vmatprep.subr.mxu0 0.0
        %6711 = vmatpush1.msra.mxu0 0.0
        %6712 = vmatprep.subr.mxu0 0.0
        %6713 = vmatpush1.msra.mxu0 0.0
        %6714 = vmatprep.mubr.f32.mxu0 0.0
        %v6715 = vand.u32 %v4983, 4294901760
        %6716 = vmatmul.mubr.f32.gmra.mrb[0].mxu0 %v6715
        %v6717 = vpop.f32.mrb[0].mxu0
        %v6718 = vadd.f32 %v6589, %v6717
        %v6719 = vpop.f32.mrb[0].mxu0
        %v6720 = vadd.f32 %v6591, %v6719
        %6721 = vmatprep.mubr.f32.mxu0 0.0
        %v6722 = vand.u32 %v4985, 4294901760
        %6723 = vmatmul.mubr.f32.gmra.mrb[0].mxu0 %v6722
        %v6724 = vpop.f32.mrb[0].mxu0
        %v6725 = vadd.f32 %v6596, %v6724
        %v6726 = vpop.f32.mrb[0].mxu0
        %v6727 = vadd.f32 %v6598, %v6726
        %6728 = vmatprep.mubr.f32.mxu0 0.0
        %v6729 = vand.u32 %v4987, 4294901760
        %6730 = vmatmul.mubr.f32.gmra.mrb[0].mxu0 %v6729
        %v6731 = vpop.f32.mrb[0].mxu0
        %v6732 = vadd.f32 %v6603, %v6731
        %v6733 = vpop.f32.mrb[0].mxu0
        %v6734 = vadd.f32 %v6605, %v6733
        %6735 = vmatprep.mubr.f32.mxu0 0.0
        %v6736 = vand.u32 %v4989, 4294901760
        %6737 = vmatmul.mubr.f32.gmra.mrb[0].mxu0 %v6736
        %v6738 = vpop.f32.mrb[0].mxu0
        %v6739 = vadd.f32 %v6610, %v6738
        %v6740 = vpop.f32.mrb[0].mxu0
        %v6741 = vadd.f32 %v6612, %v6740
        %6742 = vmatprep.mubr.f32.mxu0 0.0
        %v6743 = vand.u32 %v4991, 4294901760
        %6744 = vmatmul.mubr.f32.gmra.mrb[0].mxu0 %v6743
        %v6745 = vpop.f32.mrb[0].mxu0
        %v6746 = vadd.f32 %v6617, %v6745
        %v6747 = vpop.f32.mrb[0].mxu0
        %v6748 = vadd.f32 %v6619, %v6747
        %6749 = vmatprep.mubr.f32.mxu0 0.0
        %v6750 = vand.u32 %v4993, 4294901760
        %6751 = vmatmul.mubr.f32.gmra.mrb[0].mxu0 %v6750
        %v6752 = vpop.f32.mrb[0].mxu0
        %v6753 = vadd.f32 %v6624, %v6752
        %v6754 = vpop.f32.mrb[0].mxu0
        %v6755 = vadd.f32 %v6626, %v6754
        %6756 = vmatprep.mubr.f32.mxu0 0.0
        %v6757 = vand.u32 %v4995, 4294901760
        %6758 = vmatmul.mubr.f32.gmra.mrb[0].mxu0 %v6757
        %v6759 = vpop.f32.mrb[0].mxu0
        %v6760 = vadd.f32 %v6631, %v6759
        %v6761 = vpop.f32.mrb[0].mxu0
        %v6762 = vadd.f32 %v6633, %v6761
        %6763 = vmatprep.mubr.f32.mxu0 0.0
        %v6764 = vand.u32 %v4997, 4294901760
        %6765 = vmatmul.mubr.f32.gmra.mrb[0].mxu0 %v6764
        %v6766 = vpop.f32.mrb[0].mxu0
        %v6767 = vadd.f32 %v6638, %v6766
        %v6768 = vpop.f32.mrb[0].mxu0
        %v6769 = vadd.f32 %v6640, %v6768
        %6770 = vdwg.mxu0
        %v6771 = vadd.f32 %v5832, %v277
        %v6772 = vadd.f32 %v5834, %v278
        %v6773 = vadd.f32 %v6718, %v279
        %v6774 = vadd.f32 %v6720, %v280
        %v6775 = vadd.f32 %v5839, %v281
        %v6776 = vadd.f32 %v5841, %v282
        %v6777 = vadd.f32 %v6725, %v283
        %v6778 = vadd.f32 %v6727, %v284
        %v6779 = vadd.f32 %v5846, %v285
        %v6780 = vadd.f32 %v5848, %v286
        %v6781 = vadd.f32 %v6732, %v287
        %v6782 = vadd.f32 %v6734, %v288
        %v6783 = vadd.f32 %v5853, %v289
        %v6784 = vadd.f32 %v5855, %v290
        %v6785 = vadd.f32 %v6739, %v291
        %v6786 = vadd.f32 %v6741, %v292
        %v6787 = vadd.f32 %v5860, %v293
        %v6788 = vadd.f32 %v5862, %v294
        %v6789 = vadd.f32 %v6746, %v295
        %v6790 = vadd.f32 %v6748, %v296
        %v6791 = vadd.f32 %v5867, %v297
        %v6792 = vadd.f32 %v5869, %v298
        %v6793 = vadd.f32 %v6753, %v299
        %v6794 = vadd.f32 %v6755, %v300
        %v6795 = vadd.f32 %v5874, %v301
        %v6796 = vadd.f32 %v5876, %v302
        %v6797 = vadd.f32 %v6760, %v303
        %v6798 = vadd.f32 %v6762, %v304
        %v6799 = vadd.f32 %v5881, %v305
        %v6800 = vadd.f32 %v5883, %v306
        %v6801 = vadd.f32 %v6767, %v307
        %v6802 = vadd.f32 %v6769, %v308
        %v6803 = vmax.f32 %v6771, 0.0
        %v6804 = vmax.f32 %v6772, 0.0
        %v6805 = vmax.f32 %v6773, 0.0
        %v6806 = vmax.f32 %v6774, 0.0
        %v6807 = vmax.f32 %v6775, 0.0
        %v6808 = vmax.f32 %v6776, 0.0
        %v6809 = vmax.f32 %v6777, 0.0
        %v6810 = vmax.f32 %v6778, 0.0
        %v6811 = vmax.f32 %v6779, 0.0
        %v6812 = vmax.f32 %v6780, 0.0
        %v6813 = vmax.f32 %v6781, 0.0
        %v6814 = vmax.f32 %v6782, 0.0
        %v6815 = vmax.f32 %v6783, 0.0
        %v6816 = vmax.f32 %v6784, 0.0
        %v6817 = vmax.f32 %v6785, 0.0
        %v6818 = vmax.f32 %v6786, 0.0
        %v6819 = vmax.f32 %v6787, 0.0
        %v6820 = vmax.f32 %v6788, 0.0
        %v6821 = vmax.f32 %v6789, 0.0
        %v6822 = vmax.f32 %v6790, 0.0
        %v6823 = vmax.f32 %v6791, 0.0
        %v6824 = vmax.f32 %v6792, 0.0
        %v6825 = vmax.f32 %v6793, 0.0
        %v6826 = vmax.f32 %v6794, 0.0
        %v6827 = vmax.f32 %v6795, 0.0
        %v6828 = vmax.f32 %v6796, 0.0
        %v6829 = vmax.f32 %v6797, 0.0
        %v6830 = vmax.f32 %v6798, 0.0
        %v6831 = vmax.f32 %v6799, 0.0
        %v6832 = vmax.f32 %v6800, 0.0
        %v6833 = vmax.f32 %v6801, 0.0
        %v6834 = vmax.f32 %v6802, 0.0
        %6835 = vst [vmem:[%s271] sm:$0xff] %v6803
        %6836 = vst [vmem:[%s271 + $0x8] sm:$0xff] %v6804
        %6837 = vst [vmem:[%s271 + $0x10] sm:$0xff] %v6805
        %6838 = vst [vmem:[%s271 + $0x18] sm:$0xff] %v6806
        %6839 = vst [vmem:[%s271 + $0x20] sm:$0xff] %v6807
        %6840 = vst [vmem:[%s271 + $0x28] sm:$0xff] %v6808
        %6841 = vst [vmem:[%s271 + $0x30] sm:$0xff] %v6809
        %6842 = vst [vmem:[%s271 + $0x38] sm:$0xff] %v6810
        %6843 = vst [vmem:[%s271 + $0x40] sm:$0xff] %v6811
        %6844 = vst [vmem:[%s271 + $0x48] sm:$0xff] %v6812
        %6845 = vst [vmem:[%s271 + $0x50] sm:$0xff] %v6813
        %6846 = vst [vmem:[%s271 + $0x58] sm:$0xff] %v6814
        %6847 = vst [vmem:[%s271 + $0x60] sm:$0xff] %v6815
        %6848 = vst [vmem:[%s271 + $0x68] sm:$0xff] %v6816
        %6849 = vst [vmem:[%s271 + $0x70] sm:$0xff] %v6817
        %6850 = vst [vmem:[%s271 + $0x78] sm:$0xff] %v6818
        %6851 = vst [vmem:[%s271 + $0x80] sm:$0xff] %v6819
        %6852 = vst [vmem:[%s271 + $0x88] sm:$0xff] %v6820
        %6853 = vst [vmem:[%s271 + $0x90] sm:$0xff] %v6821
        %6854 = vst [vmem:[%s271 + $0x98] sm:$0xff] %v6822
        %6855 = vst [vmem:[%s271 + $0xa0] sm:$0xff] %v6823
        %6856 = vst [vmem:[%s271 + $0xa8] sm:$0xff] %v6824
        %6857 = vst [vmem:[%s271 + $0xb0] sm:$0xff] %v6825
        %6858 = vst [vmem:[%s271 + $0xb8] sm:$0xff] %v6826
        %6859 = vst [vmem:[%s271 + $0xc0] sm:$0xff] %v6827
        %6860 = vst [vmem:[%s271 + $0xc8] sm:$0xff] %v6828
        %6861 = vst [vmem:[%s271 + $0xd0] sm:$0xff] %v6829
        %6862 = vst [vmem:[%s271 + $0xd8] sm:$0xff] %v6830
        %6863 = vst [vmem:[%s271 + $0xe0] sm:$0xff] %v6831
        %6864 = vst [vmem:[%s271 + $0xe8] sm:$0xff] %v6832
        %6865 = vst [vmem:[%s271 + $0xf0] sm:$0xff] %v6833
        %6866 = vst [vmem:[%s271 + $0xf8] sm:$0xff] %v6834
        %s6867 = sand.u32 %s181, 1
        %s6868 = scalar_lea.sflag [#allocation3], %s6867
        %s6869 = sand.u32 %s181, 1
        %s6870 = smul.addr %s6869, 256
        %s6871 = scalar_lea.vmem [#allocation2], %s6870
        // Predicated region
        $region49: #{tpu_custom_call.1} parent=47 // pred_check
          %p6872 = pneg %p191
        $region50: #{tpu_custom_call.1} parent=47 // pred_check_branch
          %6874 = sbr.rel (%p6872) target = $region52
        $region51: #{tpu_custom_call.1} parent=47 // pred_region
          %s6876 = ssub.s32 4096, 4096
          %6877 = vsyncadd %s6868, %s6876
          %s6878 = smul.addr %s21, 32
          %s6879 = smul.addr %s6878, 128
          %s6880 = scalar_lea.hbm %s7, %s6879
          %s6881 = sshll.u32 %s6871, 4
          %s6882 = int_to_ptr.vmem [resolvable:$true] %s6881
          %6887 = dma.vmem_to_hbm [thread:$0]  %s6882, 4096, %s6880, %s6868, 512, 512, 32
        $region52: #{tpu_custom_call.1} parent=47 // pred_fallthru
          _
      $region48: #{tpu_custom_call.1} parent=5 // pred_fallthru
        _
      %p6888 = scmp.le.s32.totalorder 2, %s16
      // Predicated region
      $region53: #{tpu_custom_call.1} parent=5 // pred_check
        %p6889 = pneg %p6888
      $region54: #{tpu_custom_call.1} parent=5 // pred_check_branch
        %6891 = sbr.rel (%p6889) target = $region56
      $region55: #{tpu_custom_call.1} parent=5 // pred_region
        %s6892 = ssub.s32 %s16, 2
        // Predicated region
        $region57: #{tpu_custom_call.1} parent=55 // pred_check
          %p6893 = pneg %p197
        $region58: #{tpu_custom_call.1} parent=55 // pred_check_branch
          %6895 = sbr.rel (%p6893) target = $region60
        $region59: #{tpu_custom_call.1} parent=55 // pred_region
          %s6896 = sand.u32 %s182, 1
          %s6897 = scalar_lea.sflag [#allocation3], %s6896
          %s6898 = sand.u32 %s182, 1
          %s6899 = smul.addr %s6898, 256
          %s6900 = scalar_lea.vmem [#allocation2], %s6899
          %6901 = dma.done %s6897, 4096
        $region60: #{tpu_custom_call.1} parent=55 // pred_fallthru
          _
      $region56: #{tpu_custom_call.1} parent=5 // pred_fallthru
        _
    $region6: #{tpu_custom_call.1} parent=1 // loop_footer
      %s20 = sadd.s32 1, %s16
    $region7: #{tpu_custom_call.1} parent=1 // loop_footer_branch
      %15 = sbr.rel target = $region3
    $region8: #{tpu_custom_call.1} parent=1 // loop_exit
      _
    %6902 = vsyncpa [#allocation3], 1
    %s6903 = scalar_lea.sflag [#allocation3], 1
    %6904 = vsyncpa %s6903, 1

</llo_original>
